<compile_context>
chip_gen: v5e
topology: v5e:2x2
jax: 0.10.0
libtpu: 0.0.40
codegen_flags: <defaults>
</compile_context>

<pallas_src>
import functools

import jax
import jax.numpy as jnp
from jax import lax
from jax.experimental import pallas as pl
from jax.experimental.pallas import tpu as pltpu


def _round_up(x, m):
    return ((x + m - 1) // m) * m


def _cdiv(a, b):
    return -(-a // b)


def ner_fused_kernel(x_ref, wih_ref, whh_ref, b_ref, wout_ref, bout_ref,
                     out_ref, gx_ref, hall_ref, *state_refs,
                     hidden_pad, carry_in_regs, unroll):
    """Fused LSTM + Linear for one batch chunk; whole sequence resident in VMEM.

    x_ref    : (T, Bc, E)     bf16 time-major embeddings for this batch chunk
    wih_ref  : (E, 4*Hp)      bf16 input->gates weight (gate blocks lane-aligned)
    whh_ref  : (Hp, 4*Hp)     bf16 hidden->gates weight
    b_ref    : (1, 4*Hp)      f32  bias_ih + bias_hh (padded)
    wout_ref : (Hp, Cp)       bf16 output Linear weight (transposed, padded)
    bout_ref : (1, Cp)        f32  output Linear bias (padded)
    out_ref  : (T, Bc, Cp)    f32  logits
    gx_ref   : (T, Bc, 4*Hp)  bf16 scratch: precomputed input projection
    hall_ref : (T, Bc, Hp)    bf16 scratch: hidden state of every step
    state_refs: () if carry_in_regs else (h_ref, c_ref): (Bc, Hp) f32 scratch
    """
    Hp = hidden_pad
    T, Bc, E = x_ref.shape
    Cp = out_ref.shape[-1]
    f32, bf16 = jnp.float32, jnp.bfloat16

    # ---- (1) Input projection for ALL timesteps: one big bf16 MXU matmul,
    #          f32 accumulation, bias added once, stored bf16 (halves scratch).
    #          (Reshapes are done on f32 arrays, the layout-safe known-good path.)
    x2 = x_ref[...].astype(f32).reshape(T * Bc, E).astype(bf16)
    gx = jnp.dot(x2, wih_ref[...], preferred_element_type=f32) + b_ref[...]
    gx_ref[...] = gx.reshape(T, Bc, 4 * Hp).astype(bf16)

    # ---- (2)+(3) Serial recurrence: only the small (Bc,Hp)@(Hp,4Hp) matmul and
    #      VPU/EUP gate math sit on the critical path.  Gate slices are
    #      128-lane aligned, so no cross-lane extraction inside the loop.
    # TODO(synk): for H <= 32 all 4 gates fit one 128-lane block; packing them
    #   (whh (H,128) + lane-masked gate select) would cut per-step MXU/EUP work
    #   ~4x.  Kept unpacked so one layout covers every H.
    # TODO(synk): on v5e/v6e, holding W_hh in MXU staging registers across the
    #   T loop (pltpu.matmul_push_rhs/acc_lhs/pop) would avoid re-pushing the
    #   RHS every step in the weight-push-bound regime.
    def gate_math(gates, c_prev):
        # PyTorch gate ordering: i, f, g, o.
        i_g = jax.nn.sigmoid(gates[:, 0 * Hp:1 * Hp])
        f_g = jax.nn.sigmoid(gates[:, 1 * Hp:2 * Hp])
        g_g = jnp.tanh(gates[:, 2 * Hp:3 * Hp])
        o_g = jax.nn.sigmoid(gates[:, 3 * Hp:4 * Hp])
        c_new = f_g * c_prev + i_g * g_g
        h_new = o_g * jnp.tanh(c_new)
        return h_new, c_new

    if carry_in_regs:
        # h/c live in vregs: no store->load round trip on the serial path.
        def step(t, carry):
            h, c = carry
            gates = gx_ref[t].astype(f32) + jnp.dot(
                h.astype(bf16), whh_ref[...], preferred_element_type=f32)
            h_new, c_new = gate_math(gates, c)
            hall_ref[t] = h_new.astype(bf16)
            return (h_new, c_new)

        zeros = jnp.zeros((Bc, Hp), f32)
        lax.fori_loop(0, T, step, (zeros, zeros), unroll=unroll)
    else:
        h_ref, c_ref = state_refs
        h_ref[...] = jnp.zeros_like(h_ref)
        c_ref[...] = jnp.zeros_like(c_ref)

        def step(t, carry):
            gates = gx_ref[t].astype(f32) + jnp.dot(
                h_ref[...].astype(bf16), whh_ref[...], preferred_element_type=f32)
            h_new, c_new = gate_math(gates, c_ref[...])
            c_ref[...] = c_new
            h_ref[...] = h_new
            hall_ref[t] = h_new.astype(bf16)
            return carry

        lax.fori_loop(0, T, step, 0, unroll=unroll)

    # ---- (4) Output Linear over all timesteps at once; lane-dense store
    #          (Cp is a multiple of 128).
    h2 = hall_ref[...].astype(f32).reshape(T * Bc, Hp).astype(bf16)
    logits = jnp.dot(h2, wout_ref[...], preferred_element_type=f32) + bout_ref[...]
    out_ref[...] = logits.reshape(T, Bc, Cp)


_VMEM_SCRATCH_BUDGET = 44 * 1024 * 1024   # headroom inside v7x's 64 MiB per TC


def ner_forward(embeddings, params):
    """embeddings: (B, T, E) float32, batch_first like the PyTorch module."""
    w_ih, w_hh, b_ih, b_hh, w_out, b_out = (
        params["w_ih"], params["w_hh"], params["b_ih"], params["b_hh"],
        params["w_out"], params["b_out"],
    )
    B, T, E = embeddings.shape
    H = w_ih.shape[0] // 4
    C = w_out.shape[0]

    Hp = _round_up(H, 128)           # lane-aligned gate blocks
    Cp = _round_up(C, 128)           # lane-dense output store
    f32, bf16 = jnp.float32, jnp.bfloat16

    # ---- Batch-chunk selection ------------------------------------------------
    def vmem_bytes(bc):
        gx = T * bc * 4 * Hp * 2                       # bf16 scratch
        hall = T * bc * Hp * 2                         # bf16 scratch
        state = 0 if bc * Hp <= 8 * 1024 else 2 * bc * Hp * 4
        x_blk = 2 * T * bc * E * 2                     # double-buffered bf16 in
        out_blk = 2 * T * bc * Cp * 4                  # double-buffered f32 out
        wts = (E * 4 * Hp + Hp * 4 * Hp + Hp * Cp) * 2 + (4 * Hp + Cp) * 4
        return gx + hall + state + x_blk + out_blk + wts

    Bp_min = _round_up(max(B, 8), 8)
    # Largest chunk (cap 128 = full MXU rows) that fits the VMEM budget.
    b_max = min(128, Bp_min)
    while b_max > 8 and vmem_bytes(b_max) > _VMEM_SCRATCH_BUDGET:
        b_max = max(8, _round_up(b_max // 2, 8))
    # TODO(synk): for very long sequences, additionally tile the recurrence over
    #   T chunks (per-chunk gx) so scratch VMEM becomes independent of T instead
    #   of only shrinking the batch chunk.

    n_chunks = _cdiv(Bp_min, b_max)
    if n_chunks > 1 and n_chunks % 2:
        n_chunks += 1                # even grid -> v7x megacore shards "parallel"
    b_chunk = max(8, _round_up(_cdiv(Bp_min, n_chunks), 8))
    Bp = n_chunks * b_chunk

    # ---- Parameter packing ------------------------------------------------------
    # Pad each gate block H -> Hp (lane aligned), pre-transpose so every kernel
    # matmul is plain (rows, K) @ (K, cols), and cast MXU operands to bf16.
    wih_p = jnp.transpose(
        jnp.pad(w_ih.reshape(4, H, E), ((0, 0), (0, Hp - H), (0, 0))),
        (2, 0, 1)).reshape(E, 4 * Hp).astype(bf16)                       # (E, 4Hp)
    whh_p = jnp.transpose(
        jnp.pad(w_hh.reshape(4, H, H), ((0, 0), (0, Hp - H), (0, Hp - H))),
        (2, 0, 1)).reshape(Hp, 4 * Hp).astype(bf16)                      # (Hp, 4Hp)
    bias_p = jnp.pad((b_ih + b_hh).reshape(4, H),
                     ((0, 0), (0, Hp - H))).reshape(1, 4 * Hp).astype(f32)
    wout_p = jnp.pad(w_out, ((0, Cp - C), (0, Hp - H))).T.astype(bf16)   # (Hp, Cp)
    bout_p = jnp.pad(b_out, (0, Cp - C)).reshape(1, Cp).astype(f32)

    # Time-major, batch padded to Bp, bf16 DMA (halves the main HBM stream).
    # TODO(synk): at production scale feed time-major bf16 activations directly
    #   instead of paying this wrapper-side HBM transpose/pad pass.
    x_tm = jnp.transpose(
        jnp.pad(embeddings.astype(f32), ((0, Bp - B), (0, 0), (0, 0))),
        (1, 0, 2)).astype(bf16)                                          # (T, Bp, E)

    carry_in_regs = b_chunk * Hp <= 8 * 1024   # h and c each fit in a few vregs
    unroll = T if T <= 32 else 4               # partial unroll -> LLO visibility

    kernel = functools.partial(ner_fused_kernel, hidden_pad=Hp,
                               carry_in_regs=carry_in_regs, unroll=unroll)

    scratch = [pltpu.VMEM((T, b_chunk, 4 * Hp), bf16),   # gx: input projection
               pltpu.VMEM((T, b_chunk, Hp), bf16)]       # h of every step
    if not carry_in_regs:
        scratch += [pltpu.VMEM((b_chunk, Hp), f32),      # h state
                    pltpu.VMEM((b_chunk, Hp), f32)]      # c state

    def run(single_buffer_weights):
        def resident(shape):
            # Grid-constant weights: no need for double buffering.
            if single_buffer_weights:
                return pl.BlockSpec(shape, lambda i: (0, 0),
                                    pipeline_mode=pl.Buffered(1))
            return pl.BlockSpec(shape, lambda i: (0, 0))

        return pl.pallas_call(
            kernel,
            out_shape=jax.ShapeDtypeStruct((T, Bp, Cp), f32),
            grid_spec=pltpu.PrefetchScalarGridSpec(
                num_scalar_prefetch=0,
                grid=(Bp // b_chunk,),
                in_specs=[
                    pl.BlockSpec((T, b_chunk, E), lambda i: (0, i, 0)),  # x chunk
                    resident((E, 4 * Hp)),        # W_ih^T (resident)
                    resident((Hp, 4 * Hp)),       # W_hh^T (resident)
                    resident((1, 4 * Hp)),        # combined bias
                    resident((Hp, Cp)),           # W_out^T (resident)
                    resident((1, Cp)),            # b_out
                ],
                out_specs=pl.BlockSpec((T, b_chunk, Cp), lambda i: (0, i, 0)),
                scratch_shapes=scratch,
            ),
            compiler_params=pltpu.CompilerParams(
                dimension_semantics=("parallel",),       # batch chunks independent
                vmem_limit_bytes=56 * 1024 * 1024,       # <= v7x 64 MiB / TC
            ),
        )(x_tm, wih_p, whh_p, bias_p, wout_p, bout_p)

    try:
        out_tm = run(single_buffer_weights=True)
    except Exception:
        # pipeline_mode=pl.Buffered(1) not accepted by this jax version; default
        # double-buffered resident weights are still correct, just use more VMEM.
        out_tm = run(single_buffer_weights=False)

    # Back to batch-first; drop batch / class padding.
    # TODO(synk): consumers that accept time-major (T,B,C) bf16 output would
    #   avoid this extra HBM transpose pass and the padded-class writeback.
    return jnp.transpose(out_tm, (1, 0, 2))[:B, :, :C]


def ner_forward_ref(embeddings, params):
    """Pure-JAX f32 reference (same math as torch nn.LSTM + nn.Linear)."""
    w_ih, w_hh, b_ih, b_hh, w_out, b_out = (
        params["w_ih"], params["w_hh"], params["b_ih"], params["b_hh"],
        params["w_out"], params["b_out"],
    )
    B, T, E = embeddings.shape
    H = w_hh.shape[1]

    def step(carry, x_t):
        h, c = carry
        gates = x_t @ w_ih.T + h @ w_hh.T + b_ih + b_hh
        i = jax.nn.sigmoid(gates[:, 0 * H:1 * H])
        f = jax.nn.sigmoid(gates[:, 1 * H:2 * H])
        g = jnp.tanh(gates[:, 2 * H:3 * H])
        o = jax.nn.sigmoid(gates[:, 3 * H:4 * H])
        c = f * c + i * g
        h = o * jnp.tanh(c)
        return (h, c), h

    h0 = jnp.zeros((B, H), jnp.float32)
    c0 = jnp.zeros((B, H), jnp.float32)
    _, hs = lax.scan(step, (h0, c0), jnp.transpose(embeddings, (1, 0, 2)))
    lstm_out = jnp.transpose(hs, (1, 0, 2))  # (B, T, H)
    return lstm_out @ w_out.T + b_out


def init_params(key, embedding_dim, hidden_size, n_classes):
    """Deterministic synthetic parameters with PyTorch LSTM/Linear shapes."""
    ks = jax.random.split(key, 6)
    scale = 0.1
    return {
        "w_ih": scale * jax.random.normal(ks[0], (4 * hidden_size, embedding_dim), jnp.float32),
        "w_hh": scale * jax.random.normal(ks[1], (4 * hidden_size, hidden_size), jnp.float32),
        "b_ih": scale * jax.random.normal(ks[2], (4 * hidden_size,), jnp.float32),
        "b_hh": scale * jax.random.normal(ks[3], (4 * hidden_size,), jnp.float32),
        "w_out": scale * jax.random.normal(ks[4], (n_classes, hidden_size), jnp.float32),
        "b_out": scale * jax.random.normal(ks[5], (n_classes,), jnp.float32),
    }


if __name__ == "__main__":
    # Small shapes consistent with the module (batch_first embeddings input).
    batch, seq_len, embedding_dim, hidden_size, n_classes = 2, 8, 32, 32, 8

    key = jax.random.PRNGKey(0)
    k_x, k_p = jax.random.split(key)
    embeddings = jax.random.normal(k_x, (batch, seq_len, embedding_dim), jnp.float32)
    params = init_params(k_p, embedding_dim, hidden_size, n_classes)

    out = jax.block_until_ready(ner_forward(embeddings, params))
    ref = jax.block_until_ready(ner_forward_ref(embeddings, params))

    assert out.shape == (batch, seq_len, n_classes)
    # bf16 MXU operands / bf16 gx storage -> looser tolerance vs f32 reference.
    max_diff = float(jnp.max(jnp.abs(out - ref)))
    assert jnp.allclose(out, ref, atol=3e-2, rtol=3e-2), (
        f"Pallas output mismatch vs reference: max abs diff = {max_diff}")
    print("KERNEL_OK")
</pallas_src>

<mosaic_0001>
module attributes {stable_mosaic.version = 11 : i64} {
  func.func @ner_fused_kernel(%arg0: i32, %arg1: memref<8x8x32xbf16, #tpu.memory_space<vmem>>, %arg2: memref<32x512xbf16, #tpu.memory_space<vmem>>, %arg3: memref<128x512xbf16, #tpu.memory_space<vmem>>, %arg4: memref<1x512xf32, #tpu.memory_space<vmem>>, %arg5: memref<128x128xbf16, #tpu.memory_space<vmem>>, %arg6: memref<1x128xf32, #tpu.memory_space<vmem>>, %arg7: memref<8x8x128xf32, #tpu.memory_space<vmem>>, %arg8: memref<8x8x512xbf16, #tpu.memory_space<vmem>>, %arg9: memref<8x8x128xbf16, #tpu.memory_space<vmem>>) attributes {dimension_semantics = [#tpu.dimension_semantics<parallel>], iteration_bounds = array<i64: 1>, scalar_prefetch = 0 : i64, scratch_operands = 2 : i64, tpu.core_type = #tpu.core_type<tc>, window_params = [{transform_indices = @transform_0, window_bounds = array<i64: 8, 8, 32>}, {pipeline_mode = #tpu.pipeline_mode<synchronous>, transform_indices = @transform_1, window_bounds = array<i64: 32, 512>}, {pipeline_mode = #tpu.pipeline_mode<synchronous>, transform_indices = @transform_2, window_bounds = array<i64: 128, 512>}, {pipeline_mode = #tpu.pipeline_mode<synchronous>, transform_indices = @transform_3, window_bounds = array<i64: 1, 512>}, {pipeline_mode = #tpu.pipeline_mode<synchronous>, transform_indices = @transform_4, window_bounds = array<i64: 128, 128>}, {pipeline_mode = #tpu.pipeline_mode<synchronous>, transform_indices = @transform_5, window_bounds = array<i64: 1, 128>}, {transform_indices = @transform_6, window_bounds = array<i64: 8, 8, 128>}]} {
    %c0 = arith.constant 0 : index
    %c0_0 = arith.constant 0 : index
    %c0_1 = arith.constant 0 : index
    %0 = vector.load %arg1[%c0, %c0_0, %c0_1] : memref<8x8x32xbf16, #tpu.memory_space<vmem>>, vector<8x8x32xbf16>
    %1 = arith.extf %0 : vector<8x8x32xbf16> to vector<8x8x32xf32>
    %2 = vector.shape_cast %1 : vector<8x8x32xf32> to vector<64x32xf32>
    %3 = arith.truncf %2 : vector<64x32xf32> to vector<64x32xbf16>
    %c0_2 = arith.constant 0 : index
    %c0_3 = arith.constant 0 : index
    %4 = vector.load %arg2[%c0_2, %c0_3] : memref<32x512xbf16, #tpu.memory_space<vmem>>, vector<32x512xbf16>
    %cst = arith.constant dense<0.000000e+00> : vector<64x512xf32>
    %5 = tpu.matmul %3, %4, %cst {dimension_numbers = #tpu.dot_dimension_numbers<[1], [0], [0], [1], [0, 0, 1, 1], [], []>} : vector<64x32xbf16>, vector<32x512xbf16>, vector<64x512xf32> -> vector<64x512xf32>
    %c0_4 = arith.constant 0 : index
    %c0_5 = arith.constant 0 : index
    %6 = vector.load %arg4[%c0_4, %c0_5] : memref<1x512xf32, #tpu.memory_space<vmem>>, vector<1x512xf32>
    %7 = vector.broadcast %6 : vector<1x512xf32> to vector<64x512xf32>
    %8 = arith.addf %5, %7 : vector<64x512xf32>
    %9 = vector.shape_cast %8 : vector<64x512xf32> to vector<8x8x512xf32>
    %10 = arith.truncf %9 : vector<8x8x512xf32> to vector<8x8x512xbf16>
    %c0_6 = arith.constant 0 : index
    %c0_7 = arith.constant 0 : index
    %c0_8 = arith.constant 0 : index
    %11 = vector.load %arg8[%c0_6, %c0_7, %c0_8] : memref<8x8x512xbf16, #tpu.memory_space<vmem>>, vector<8x8x512xbf16>
    tpu.vector_store %arg8[%c0_6, %c0_7, %c0_8], %10 {strides = array<i32>} : memref<8x8x512xbf16, #tpu.memory_space<vmem>>, vector<8x8x512xbf16>,
    %cst_9 = arith.constant 0.000000e+00 : f32
    %12 = vector.broadcast %cst_9 : f32 to vector<8x128xf32>
    %c0_i32 = arith.constant 0 : i32
    %13 = arith.index_cast %c0_i32 : i32 to index
    %c0_10 = arith.constant 0 : index
    %c0_11 = arith.constant 0 : index
    %14 = vector.load %arg8[%13, %c0_10, %c0_11] : memref<8x8x512xbf16, #tpu.memory_space<vmem>>, vector<1x8x512xbf16>
    %15 = vector.shape_cast %14 : vector<1x8x512xbf16> to vector<8x512xbf16>
    %16 = arith.extf %15 : vector<8x512xbf16> to vector<8x512xf32>
    %17 = arith.truncf %12 : vector<8x128xf32> to vector<8x128xbf16>
    %c0_12 = arith.constant 0 : index
    %c0_13 = arith.constant 0 : index
    %18 = vector.load %arg3[%c0_12, %c0_13] : memref<128x512xbf16, #tpu.memory_space<vmem>>, vector<128x512xbf16>
    %cst_14 = arith.constant dense<0.000000e+00> : vector<8x512xf32>
    %19 = tpu.matmul %17, %18, %cst_14 {dimension_numbers = #tpu.dot_dimension_numbers<[1], [0], [0], [1], [0, 0, 1, 1], [], []>} : vector<8x128xbf16>, vector<128x512xbf16>, vector<8x512xf32> -> vector<8x512xf32>
    %20 = arith.addf %16, %19 : vector<8x512xf32>
    %21 = vector.extract_strided_slice %20 {offsets = [0, 0], sizes = [8, 128], strides = [1, 1]} : vector<8x512xf32> to vector<8x128xf32>
    %22 = arith.negf %21 : vector<8x128xf32>
    %23 = math.exp %22 : vector<8x128xf32>
    %cst_15 = arith.constant 1.000000e+00 : f32
    %24 = vector.broadcast %cst_15 : f32 to vector<8x128xf32>
    %25 = arith.addf %24, %23 : vector<8x128xf32>
    %26 = arith.divf %24, %25 : vector<8x128xf32>
    %27 = vector.extract_strided_slice %20 {offsets = [0, 128], sizes = [8, 128], strides = [1, 1]} : vector<8x512xf32> to vector<8x128xf32>
    %28 = arith.negf %27 : vector<8x128xf32>
    %29 = math.exp %28 : vector<8x128xf32>
    %cst_16 = arith.constant 1.000000e+00 : f32
    %30 = vector.broadcast %cst_16 : f32 to vector<8x128xf32>
    %31 = arith.addf %30, %29 : vector<8x128xf32>
    %32 = arith.divf %30, %31 : vector<8x128xf32>
    %33 = vector.extract_strided_slice %20 {offsets = [0, 256], sizes = [8, 128], strides = [1, 1]} : vector<8x512xf32> to vector<8x128xf32>
    %34 = math.tanh %33 : vector<8x128xf32>
    %35 = vector.extract_strided_slice %20 {offsets = [0, 384], sizes = [8, 128], strides = [1, 1]} : vector<8x512xf32> to vector<8x128xf32>
    %36 = arith.negf %35 : vector<8x128xf32>
    %37 = math.exp %36 : vector<8x128xf32>
    %cst_17 = arith.constant 1.000000e+00 : f32
    %38 = vector.broadcast %cst_17 : f32 to vector<8x128xf32>
    %39 = arith.addf %38, %37 : vector<8x128xf32>
    %40 = arith.divf %38, %39 : vector<8x128xf32>
    %41 = arith.mulf %32, %12 : vector<8x128xf32>
    %42 = arith.mulf %26, %34 : vector<8x128xf32>
    %43 = arith.addf %41, %42 : vector<8x128xf32>
    %44 = math.tanh %43 : vector<8x128xf32>
    %45 = arith.mulf %40, %44 : vector<8x128xf32>
    %46 = arith.truncf %45 : vector<8x128xf32> to vector<8x128xbf16>
    %47 = arith.index_cast %c0_i32 : i32 to index
    %c0_18 = arith.constant 0 : index
    %c0_19 = arith.constant 0 : index
    %48 = vector.load %arg9[%47, %c0_18, %c0_19] : memref<8x8x128xbf16, #tpu.memory_space<vmem>>, vector<1x8x128xbf16>
    %49 = vector.shape_cast %48 : vector<1x8x128xbf16> to vector<8x128xbf16>
    %50 = vector.shape_cast %46 : vector<8x128xbf16> to vector<1x8x128xbf16>
    tpu.vector_store %arg9[%47, %c0_18, %c0_19], %50 {strides = array<i32>} : memref<8x8x128xbf16, #tpu.memory_space<vmem>>, vector<1x8x128xbf16>,
    %c1_i32 = arith.constant 1 : i32
    %51 = arith.index_cast %c1_i32 : i32 to index
    %c0_20 = arith.constant 0 : index
    %c0_21 = arith.constant 0 : index
    %52 = vector.load %arg8[%51, %c0_20, %c0_21] : memref<8x8x512xbf16, #tpu.memory_space<vmem>>, vector<1x8x512xbf16>
    %53 = vector.shape_cast %52 : vector<1x8x512xbf16> to vector<8x512xbf16>
    %54 = arith.extf %53 : vector<8x512xbf16> to vector<8x512xf32>
    %55 = arith.truncf %45 : vector<8x128xf32> to vector<8x128xbf16>
    %c0_22 = arith.constant 0 : index
    %c0_23 = arith.constant 0 : index
    %56 = vector.load %arg3[%c0_22, %c0_23] : memref<128x512xbf16, #tpu.memory_space<vmem>>, vector<128x512xbf16>
    %cst_24 = arith.constant dense<0.000000e+00> : vector<8x512xf32>
    %57 = tpu.matmul %55, %56, %cst_24 {dimension_numbers = #tpu.dot_dimension_numbers<[1], [0], [0], [1], [0, 0, 1, 1], [], []>} : vector<8x128xbf16>, vector<128x512xbf16>, vector<8x512xf32> -> vector<8x512xf32>
    %58 = arith.addf %54, %57 : vector<8x512xf32>
    %59 = vector.extract_strided_slice %58 {offsets = [0, 0], sizes = [8, 128], strides = [1, 1]} : vector<8x512xf32> to vector<8x128xf32>
    %60 = arith.negf %59 : vector<8x128xf32>
    %61 = math.exp %60 : vector<8x128xf32>
    %cst_25 = arith.constant 1.000000e+00 : f32
    %62 = vector.broadcast %cst_25 : f32 to vector<8x128xf32>
    %63 = arith.addf %62, %61 : vector<8x128xf32>
    %64 = arith.divf %62, %63 : vector<8x128xf32>
    %65 = vector.extract_strided_slice %58 {offsets = [0, 128], sizes = [8, 128], strides = [1, 1]} : vector<8x512xf32> to vector<8x128xf32>
    %66 = arith.negf %65 : vector<8x128xf32>
    %67 = math.exp %66 : vector<8x128xf32>
    %cst_26 = arith.constant 1.000000e+00 : f32
    %68 = vector.broadcast %cst_26 : f32 to vector<8x128xf32>
    %69 = arith.addf %68, %67 : vector<8x128xf32>
    %70 = arith.divf %68, %69 : vector<8x128xf32>
    %71 = vector.extract_strided_slice %58 {offsets = [0, 256], sizes = [8, 128], strides = [1, 1]} : vector<8x512xf32> to vector<8x128xf32>
    %72 = math.tanh %71 : vector<8x128xf32>
    %73 = vector.extract_strided_slice %58 {offsets = [0, 384], sizes = [8, 128], strides = [1, 1]} : vector<8x512xf32> to vector<8x128xf32>
    %74 = arith.negf %73 : vector<8x128xf32>
    %75 = math.exp %74 : vector<8x128xf32>
    %cst_27 = arith.constant 1.000000e+00 : f32
    %76 = vector.broadcast %cst_27 : f32 to vector<8x128xf32>
    %77 = arith.addf %76, %75 : vector<8x128xf32>
    %78 = arith.divf %76, %77 : vector<8x128xf32>
    %79 = arith.mulf %70, %43 : vector<8x128xf32>
    %80 = arith.mulf %64, %72 : vector<8x128xf32>
    %81 = arith.addf %79, %80 : vector<8x128xf32>
    %82 = math.tanh %81 : vector<8x128xf32>
    %83 = arith.mulf %78, %82 : vector<8x128xf32>
    %84 = arith.truncf %83 : vector<8x128xf32> to vector<8x128xbf16>
    %85 = arith.index_cast %c1_i32 : i32 to index
    %c0_28 = arith.constant 0 : index
    %c0_29 = arith.constant 0 : index
    %86 = vector.load %arg9[%85, %c0_28, %c0_29] : memref<8x8x128xbf16, #tpu.memory_space<vmem>>, vector<1x8x128xbf16>
    %87 = vector.shape_cast %86 : vector<1x8x128xbf16> to vector<8x128xbf16>
    %88 = vector.shape_cast %84 : vector<8x128xbf16> to vector<1x8x128xbf16>
    tpu.vector_store %arg9[%85, %c0_28, %c0_29], %88 {strides = array<i32>} : memref<8x8x128xbf16, #tpu.memory_space<vmem>>, vector<1x8x128xbf16>,
    %c2_i32 = arith.constant 2 : i32
    %89 = arith.index_cast %c2_i32 : i32 to index
    %c0_30 = arith.constant 0 : index
    %c0_31 = arith.constant 0 : index
    %90 = vector.load %arg8[%89, %c0_30, %c0_31] : memref<8x8x512xbf16, #tpu.memory_space<vmem>>, vector<1x8x512xbf16>
    %91 = vector.shape_cast %90 : vector<1x8x512xbf16> to vector<8x512xbf16>
    %92 = arith.extf %91 : vector<8x512xbf16> to vector<8x512xf32>
    %93 = arith.truncf %83 : vector<8x128xf32> to vector<8x128xbf16>
    %c0_32 = arith.constant 0 : index
    %c0_33 = arith.constant 0 : index
    %94 = vector.load %arg3[%c0_32, %c0_33] : memref<128x512xbf16, #tpu.memory_space<vmem>>, vector<128x512xbf16>
    %cst_34 = arith.constant dense<0.000000e+00> : vector<8x512xf32>
    %95 = tpu.matmul %93, %94, %cst_34 {dimension_numbers = #tpu.dot_dimension_numbers<[1], [0], [0], [1], [0, 0, 1, 1], [], []>} : vector<8x128xbf16>, vector<128x512xbf16>, vector<8x512xf32> -> vector<8x512xf32>
    %96 = arith.addf %92, %95 : vector<8x512xf32>
    %97 = vector.extract_strided_slice %96 {offsets = [0, 0], sizes = [8, 128], strides = [1, 1]} : vector<8x512xf32> to vector<8x128xf32>
    %98 = arith.negf %97 : vector<8x128xf32>
    %99 = math.exp %98 : vector<8x128xf32>
    %cst_35 = arith.constant 1.000000e+00 : f32
    %100 = vector.broadcast %cst_35 : f32 to vector<8x128xf32>
    %101 = arith.addf %100, %99 : vector<8x128xf32>
    %102 = arith.divf %100, %101 : vector<8x128xf32>
    %103 = vector.extract_strided_slice %96 {offsets = [0, 128], sizes = [8, 128], strides = [1, 1]} : vector<8x512xf32> to vector<8x128xf32>
    %104 = arith.negf %103 : vector<8x128xf32>
    %105 = math.exp %104 : vector<8x128xf32>
    %cst_36 = arith.constant 1.000000e+00 : f32
    %106 = vector.broadcast %cst_36 : f32 to vector<8x128xf32>
    %107 = arith.addf %106, %105 : vector<8x128xf32>
    %108 = arith.divf %106, %107 : vector<8x128xf32>
    %109 = vector.extract_strided_slice %96 {offsets = [0, 256], sizes = [8, 128], strides = [1, 1]} : vector<8x512xf32> to vector<8x128xf32>
    %110 = math.tanh %109 : vector<8x128xf32>
    %111 = vector.extract_strided_slice %96 {offsets = [0, 384], sizes = [8, 128], strides = [1, 1]} : vector<8x512xf32> to vector<8x128xf32>
    %112 = arith.negf %111 : vector<8x128xf32>
    %113 = math.exp %112 : vector<8x128xf32>
    %cst_37 = arith.constant 1.000000e+00 : f32
    %114 = vector.broadcast %cst_37 : f32 to vector<8x128xf32>
    %115 = arith.addf %114, %113 : vector<8x128xf32>
    %116 = arith.divf %114, %115 : vector<8x128xf32>
    %117 = arith.mulf %108, %81 : vector<8x128xf32>
    %118 = arith.mulf %102, %110 : vector<8x128xf32>
    %119 = arith.addf %117, %118 : vector<8x128xf32>
    %120 = math.tanh %119 : vector<8x128xf32>
    %121 = arith.mulf %116, %120 : vector<8x128xf32>
    %122 = arith.truncf %121 : vector<8x128xf32> to vector<8x128xbf16>
    %123 = arith.index_cast %c2_i32 : i32 to index
    %c0_38 = arith.constant 0 : index
    %c0_39 = arith.constant 0 : index
    %124 = vector.load %arg9[%123, %c0_38, %c0_39] : memref<8x8x128xbf16, #tpu.memory_space<vmem>>, vector<1x8x128xbf16>
    %125 = vector.shape_cast %124 : vector<1x8x128xbf16> to vector<8x128xbf16>
    %126 = vector.shape_cast %122 : vector<8x128xbf16> to vector<1x8x128xbf16>
    tpu.vector_store %arg9[%123, %c0_38, %c0_39], %126 {strides = array<i32>} : memref<8x8x128xbf16, #tpu.memory_space<vmem>>, vector<1x8x128xbf16>,
    %c3_i32 = arith.constant 3 : i32
    %127 = arith.index_cast %c3_i32 : i32 to index
    %c0_40 = arith.constant 0 : index
    %c0_41 = arith.constant 0 : index
    %128 = vector.load %arg8[%127, %c0_40, %c0_41] : memref<8x8x512xbf16, #tpu.memory_space<vmem>>, vector<1x8x512xbf16>
    %129 = vector.shape_cast %128 : vector<1x8x512xbf16> to vector<8x512xbf16>
    %130 = arith.extf %129 : vector<8x512xbf16> to vector<8x512xf32>
    %131 = arith.truncf %121 : vector<8x128xf32> to vector<8x128xbf16>
    %c0_42 = arith.constant 0 : index
    %c0_43 = arith.constant 0 : index
    %132 = vector.load %arg3[%c0_42, %c0_43] : memref<128x512xbf16, #tpu.memory_space<vmem>>, vector<128x512xbf16>
    %cst_44 = arith.constant dense<0.000000e+00> : vector<8x512xf32>
    %133 = tpu.matmul %131, %132, %cst_44 {dimension_numbers = #tpu.dot_dimension_numbers<[1], [0], [0], [1], [0, 0, 1, 1], [], []>} : vector<8x128xbf16>, vector<128x512xbf16>, vector<8x512xf32> -> vector<8x512xf32>
    %134 = arith.addf %130, %133 : vector<8x512xf32>
    %135 = vector.extract_strided_slice %134 {offsets = [0, 0], sizes = [8, 128], strides = [1, 1]} : vector<8x512xf32> to vector<8x128xf32>
    %136 = arith.negf %135 : vector<8x128xf32>
    %137 = math.exp %136 : vector<8x128xf32>
    %cst_45 = arith.constant 1.000000e+00 : f32
    %138 = vector.broadcast %cst_45 : f32 to vector<8x128xf32>
    %139 = arith.addf %138, %137 : vector<8x128xf32>
    %140 = arith.divf %138, %139 : vector<8x128xf32>
    %141 = vector.extract_strided_slice %134 {offsets = [0, 128], sizes = [8, 128], strides = [1, 1]} : vector<8x512xf32> to vector<8x128xf32>
    %142 = arith.negf %141 : vector<8x128xf32>
    %143 = math.exp %142 : vector<8x128xf32>
    %cst_46 = arith.constant 1.000000e+00 : f32
    %144 = vector.broadcast %cst_46 : f32 to vector<8x128xf32>
    %145 = arith.addf %144, %143 : vector<8x128xf32>
    %146 = arith.divf %144, %145 : vector<8x128xf32>
    %147 = vector.extract_strided_slice %134 {offsets = [0, 256], sizes = [8, 128], strides = [1, 1]} : vector<8x512xf32> to vector<8x128xf32>
    %148 = math.tanh %147 : vector<8x128xf32>
    %149 = vector.extract_strided_slice %134 {offsets = [0, 384], sizes = [8, 128], strides = [1, 1]} : vector<8x512xf32> to vector<8x128xf32>
    %150 = arith.negf %149 : vector<8x128xf32>
    %151 = math.exp %150 : vector<8x128xf32>
    %cst_47 = arith.constant 1.000000e+00 : f32
    %152 = vector.broadcast %cst_47 : f32 to vector<8x128xf32>
    %153 = arith.addf %152, %151 : vector<8x128xf32>
    %154 = arith.divf %152, %153 : vector<8x128xf32>
    %155 = arith.mulf %146, %119 : vector<8x128xf32>
    %156 = arith.mulf %140, %148 : vector<8x128xf32>
    %157 = arith.addf %155, %156 : vector<8x128xf32>
    %158 = math.tanh %157 : vector<8x128xf32>
    %159 = arith.mulf %154, %158 : vector<8x128xf32>
    %160 = arith.truncf %159 : vector<8x128xf32> to vector<8x128xbf16>
    %161 = arith.index_cast %c3_i32 : i32 to index
    %c0_48 = arith.constant 0 : index
    %c0_49 = arith.constant 0 : index
    %162 = vector.load %arg9[%161, %c0_48, %c0_49] : memref<8x8x128xbf16, #tpu.memory_space<vmem>>, vector<1x8x128xbf16>
    %163 = vector.shape_cast %162 : vector<1x8x128xbf16> to vector<8x128xbf16>
    %164 = vector.shape_cast %160 : vector<8x128xbf16> to vector<1x8x128xbf16>
    tpu.vector_store %arg9[%161, %c0_48, %c0_49], %164 {strides = array<i32>} : memref<8x8x128xbf16, #tpu.memory_space<vmem>>, vector<1x8x128xbf16>,
    %c4_i32 = arith.constant 4 : i32
    %165 = arith.index_cast %c4_i32 : i32 to index
    %c0_50 = arith.constant 0 : index
    %c0_51 = arith.constant 0 : index
    %166 = vector.load %arg8[%165, %c0_50, %c0_51] : memref<8x8x512xbf16, #tpu.memory_space<vmem>>, vector<1x8x512xbf16>
    %167 = vector.shape_cast %166 : vector<1x8x512xbf16> to vector<8x512xbf16>
    %168 = arith.extf %167 : vector<8x512xbf16> to vector<8x512xf32>
    %169 = arith.truncf %159 : vector<8x128xf32> to vector<8x128xbf16>
    %c0_52 = arith.constant 0 : index
    %c0_53 = arith.constant 0 : index
    %170 = vector.load %arg3[%c0_52, %c0_53] : memref<128x512xbf16, #tpu.memory_space<vmem>>, vector<128x512xbf16>
    %cst_54 = arith.constant dense<0.000000e+00> : vector<8x512xf32>
    %171 = tpu.matmul %169, %170, %cst_54 {dimension_numbers = #tpu.dot_dimension_numbers<[1], [0], [0], [1], [0, 0, 1, 1], [], []>} : vector<8x128xbf16>, vector<128x512xbf16>, vector<8x512xf32> -> vector<8x512xf32>
    %172 = arith.addf %168, %171 : vector<8x512xf32>
    %173 = vector.extract_strided_slice %172 {offsets = [0, 0], sizes = [8, 128], strides = [1, 1]} : vector<8x512xf32> to vector<8x128xf32>
    %174 = arith.negf %173 : vector<8x128xf32>
    %175 = math.exp %174 : vector<8x128xf32>
    %cst_55 = arith.constant 1.000000e+00 : f32
    %176 = vector.broadcast %cst_55 : f32 to vector<8x128xf32>
    %177 = arith.addf %176, %175 : vector<8x128xf32>
    %178 = arith.divf %176, %177 : vector<8x128xf32>
    %179 = vector.extract_strided_slice %172 {offsets = [0, 128], sizes = [8, 128], strides = [1, 1]} : vector<8x512xf32> to vector<8x128xf32>
    %180 = arith.negf %179 : vector<8x128xf32>
    %181 = math.exp %180 : vector<8x128xf32>
    %cst_56 = arith.constant 1.000000e+00 : f32
    %182 = vector.broadcast %cst_56 : f32 to vector<8x128xf32>
    %183 = arith.addf %182, %181 : vector<8x128xf32>
    %184 = arith.divf %182, %183 : vector<8x128xf32>
    %185 = vector.extract_strided_slice %172 {offsets = [0, 256], sizes = [8, 128], strides = [1, 1]} : vector<8x512xf32> to vector<8x128xf32>
    %186 = math.tanh %185 : vector<8x128xf32>
    %187 = vector.extract_strided_slice %172 {offsets = [0, 384], sizes = [8, 128], strides = [1, 1]} : vector<8x512xf32> to vector<8x128xf32>
    %188 = arith.negf %187 : vector<8x128xf32>
    %189 = math.exp %188 : vector<8x128xf32>
    %cst_57 = arith.constant 1.000000e+00 : f32
    %190 = vector.broadcast %cst_57 : f32 to vector<8x128xf32>
    %191 = arith.addf %190, %189 : vector<8x128xf32>
    %192 = arith.divf %190, %191 : vector<8x128xf32>
    %193 = arith.mulf %184, %157 : vector<8x128xf32>
    %194 = arith.mulf %178, %186 : vector<8x128xf32>
    %195 = arith.addf %193, %194 : vector<8x128xf32>
    %196 = math.tanh %195 : vector<8x128xf32>
    %197 = arith.mulf %192, %196 : vector<8x128xf32>
    %198 = arith.truncf %197 : vector<8x128xf32> to vector<8x128xbf16>
    %199 = arith.index_cast %c4_i32 : i32 to index
    %c0_58 = arith.constant 0 : index
    %c0_59 = arith.constant 0 : index
    %200 = vector.load %arg9[%199, %c0_58, %c0_59] : memref<8x8x128xbf16, #tpu.memory_space<vmem>>, vector<1x8x128xbf16>
    %201 = vector.shape_cast %200 : vector<1x8x128xbf16> to vector<8x128xbf16>
    %202 = vector.shape_cast %198 : vector<8x128xbf16> to vector<1x8x128xbf16>
    tpu.vector_store %arg9[%199, %c0_58, %c0_59], %202 {strides = array<i32>} : memref<8x8x128xbf16, #tpu.memory_space<vmem>>, vector<1x8x128xbf16>,
    %c5_i32 = arith.constant 5 : i32
    %203 = arith.index_cast %c5_i32 : i32 to index
    %c0_60 = arith.constant 0 : index
    %c0_61 = arith.constant 0 : index
    %204 = vector.load %arg8[%203, %c0_60, %c0_61] : memref<8x8x512xbf16, #tpu.memory_space<vmem>>, vector<1x8x512xbf16>
    %205 = vector.shape_cast %204 : vector<1x8x512xbf16> to vector<8x512xbf16>
    %206 = arith.extf %205 : vector<8x512xbf16> to vector<8x512xf32>
    %207 = arith.truncf %197 : vector<8x128xf32> to vector<8x128xbf16>
    %c0_62 = arith.constant 0 : index
    %c0_63 = arith.constant 0 : index
    %208 = vector.load %arg3[%c0_62, %c0_63] : memref<128x512xbf16, #tpu.memory_space<vmem>>, vector<128x512xbf16>
    %cst_64 = arith.constant dense<0.000000e+00> : vector<8x512xf32>
    %209 = tpu.matmul %207, %208, %cst_64 {dimension_numbers = #tpu.dot_dimension_numbers<[1], [0], [0], [1], [0, 0, 1, 1], [], []>} : vector<8x128xbf16>, vector<128x512xbf16>, vector<8x512xf32> -> vector<8x512xf32>
    %210 = arith.addf %206, %209 : vector<8x512xf32>
    %211 = vector.extract_strided_slice %210 {offsets = [0, 0], sizes = [8, 128], strides = [1, 1]} : vector<8x512xf32> to vector<8x128xf32>
    %212 = arith.negf %211 : vector<8x128xf32>
    %213 = math.exp %212 : vector<8x128xf32>
    %cst_65 = arith.constant 1.000000e+00 : f32
    %214 = vector.broadcast %cst_65 : f32 to vector<8x128xf32>
    %215 = arith.addf %214, %213 : vector<8x128xf32>
    %216 = arith.divf %214, %215 : vector<8x128xf32>
    %217 = vector.extract_strided_slice %210 {offsets = [0, 128], sizes = [8, 128], strides = [1, 1]} : vector<8x512xf32> to vector<8x128xf32>
    %218 = arith.negf %217 : vector<8x128xf32>
    %219 = math.exp %218 : vector<8x128xf32>
    %cst_66 = arith.constant 1.000000e+00 : f32
    %220 = vector.broadcast %cst_66 : f32 to vector<8x128xf32>
    %221 = arith.addf %220, %219 : vector<8x128xf32>
    %222 = arith.divf %220, %221 : vector<8x128xf32>
    %223 = vector.extract_strided_slice %210 {offsets = [0, 256], sizes = [8, 128], strides = [1, 1]} : vector<8x512xf32> to vector<8x128xf32>
    %224 = math.tanh %223 : vector<8x128xf32>
    %225 = vector.extract_strided_slice %210 {offsets = [0, 384], sizes = [8, 128], strides = [1, 1]} : vector<8x512xf32> to vector<8x128xf32>
    %226 = arith.negf %225 : vector<8x128xf32>
    %227 = math.exp %226 : vector<8x128xf32>
    %cst_67 = arith.constant 1.000000e+00 : f32
    %228 = vector.broadcast %cst_67 : f32 to vector<8x128xf32>
    %229 = arith.addf %228, %227 : vector<8x128xf32>
    %230 = arith.divf %228, %229 : vector<8x128xf32>
    %231 = arith.mulf %222, %195 : vector<8x128xf32>
    %232 = arith.mulf %216, %224 : vector<8x128xf32>
    %233 = arith.addf %231, %232 : vector<8x128xf32>
    %234 = math.tanh %233 : vector<8x128xf32>
    %235 = arith.mulf %230, %234 : vector<8x128xf32>
    %236 = arith.truncf %235 : vector<8x128xf32> to vector<8x128xbf16>
    %237 = arith.index_cast %c5_i32 : i32 to index
    %c0_68 = arith.constant 0 : index
    %c0_69 = arith.constant 0 : index
    %238 = vector.load %arg9[%237, %c0_68, %c0_69] : memref<8x8x128xbf16, #tpu.memory_space<vmem>>, vector<1x8x128xbf16>
    %239 = vector.shape_cast %238 : vector<1x8x128xbf16> to vector<8x128xbf16>
    %240 = vector.shape_cast %236 : vector<8x128xbf16> to vector<1x8x128xbf16>
    tpu.vector_store %arg9[%237, %c0_68, %c0_69], %240 {strides = array<i32>} : memref<8x8x128xbf16, #tpu.memory_space<vmem>>, vector<1x8x128xbf16>,
    %c6_i32 = arith.constant 6 : i32
    %241 = arith.index_cast %c6_i32 : i32 to index
    %c0_70 = arith.constant 0 : index
    %c0_71 = arith.constant 0 : index
    %242 = vector.load %arg8[%241, %c0_70, %c0_71] : memref<8x8x512xbf16, #tpu.memory_space<vmem>>, vector<1x8x512xbf16>
    %243 = vector.shape_cast %242 : vector<1x8x512xbf16> to vector<8x512xbf16>
    %244 = arith.extf %243 : vector<8x512xbf16> to vector<8x512xf32>
    %245 = arith.truncf %235 : vector<8x128xf32> to vector<8x128xbf16>
    %c0_72 = arith.constant 0 : index
    %c0_73 = arith.constant 0 : index
    %246 = vector.load %arg3[%c0_72, %c0_73] : memref<128x512xbf16, #tpu.memory_space<vmem>>, vector<128x512xbf16>
    %cst_74 = arith.constant dense<0.000000e+00> : vector<8x512xf32>
    %247 = tpu.matmul %245, %246, %cst_74 {dimension_numbers = #tpu.dot_dimension_numbers<[1], [0], [0], [1], [0, 0, 1, 1], [], []>} : vector<8x128xbf16>, vector<128x512xbf16>, vector<8x512xf32> -> vector<8x512xf32>
    %248 = arith.addf %244, %247 : vector<8x512xf32>
    %249 = vector.extract_strided_slice %248 {offsets = [0, 0], sizes = [8, 128], strides = [1, 1]} : vector<8x512xf32> to vector<8x128xf32>
    %250 = arith.negf %249 : vector<8x128xf32>
    %251 = math.exp %250 : vector<8x128xf32>
    %cst_75 = arith.constant 1.000000e+00 : f32
    %252 = vector.broadcast %cst_75 : f32 to vector<8x128xf32>
    %253 = arith.addf %252, %251 : vector<8x128xf32>
    %254 = arith.divf %252, %253 : vector<8x128xf32>
    %255 = vector.extract_strided_slice %248 {offsets = [0, 128], sizes = [8, 128], strides = [1, 1]} : vector<8x512xf32> to vector<8x128xf32>
    %256 = arith.negf %255 : vector<8x128xf32>
    %257 = math.exp %256 : vector<8x128xf32>
    %cst_76 = arith.constant 1.000000e+00 : f32
    %258 = vector.broadcast %cst_76 : f32 to vector<8x128xf32>
    %259 = arith.addf %258, %257 : vector<8x128xf32>
    %260 = arith.divf %258, %259 : vector<8x128xf32>
    %261 = vector.extract_strided_slice %248 {offsets = [0, 256], sizes = [8, 128], strides = [1, 1]} : vector<8x512xf32> to vector<8x128xf32>
    %262 = math.tanh %261 : vector<8x128xf32>
    %263 = vector.extract_strided_slice %248 {offsets = [0, 384], sizes = [8, 128], strides = [1, 1]} : vector<8x512xf32> to vector<8x128xf32>
    %264 = arith.negf %263 : vector<8x128xf32>
    %265 = math.exp %264 : vector<8x128xf32>
    %cst_77 = arith.constant 1.000000e+00 : f32
    %266 = vector.broadcast %cst_77 : f32 to vector<8x128xf32>
    %267 = arith.addf %266, %265 : vector<8x128xf32>
    %268 = arith.divf %266, %267 : vector<8x128xf32>
    %269 = arith.mulf %260, %233 : vector<8x128xf32>
    %270 = arith.mulf %254, %262 : vector<8x128xf32>
    %271 = arith.addf %269, %270 : vector<8x128xf32>
    %272 = math.tanh %271 : vector<8x128xf32>
    %273 = arith.mulf %268, %272 : vector<8x128xf32>
    %274 = arith.truncf %273 : vector<8x128xf32> to vector<8x128xbf16>
    %275 = arith.index_cast %c6_i32 : i32 to index
    %c0_78 = arith.constant 0 : index
    %c0_79 = arith.constant 0 : index
    %276 = vector.load %arg9[%275, %c0_78, %c0_79] : memref<8x8x128xbf16, #tpu.memory_space<vmem>>, vector<1x8x128xbf16>
    %277 = vector.shape_cast %276 : vector<1x8x128xbf16> to vector<8x128xbf16>
    %278 = vector.shape_cast %274 : vector<8x128xbf16> to vector<1x8x128xbf16>
    tpu.vector_store %arg9[%275, %c0_78, %c0_79], %278 {strides = array<i32>} : memref<8x8x128xbf16, #tpu.memory_space<vmem>>, vector<1x8x128xbf16>,
    %c7_i32 = arith.constant 7 : i32
    %279 = arith.index_cast %c7_i32 : i32 to index
    %c0_80 = arith.constant 0 : index
    %c0_81 = arith.constant 0 : index
    %280 = vector.load %arg8[%279, %c0_80, %c0_81] : memref<8x8x512xbf16, #tpu.memory_space<vmem>>, vector<1x8x512xbf16>
    %281 = vector.shape_cast %280 : vector<1x8x512xbf16> to vector<8x512xbf16>
    %282 = arith.extf %281 : vector<8x512xbf16> to vector<8x512xf32>
    %283 = arith.truncf %273 : vector<8x128xf32> to vector<8x128xbf16>
    %c0_82 = arith.constant 0 : index
    %c0_83 = arith.constant 0 : index
    %284 = vector.load %arg3[%c0_82, %c0_83] : memref<128x512xbf16, #tpu.memory_space<vmem>>, vector<128x512xbf16>
    %cst_84 = arith.constant dense<0.000000e+00> : vector<8x512xf32>
    %285 = tpu.matmul %283, %284, %cst_84 {dimension_numbers = #tpu.dot_dimension_numbers<[1], [0], [0], [1], [0, 0, 1, 1], [], []>} : vector<8x128xbf16>, vector<128x512xbf16>, vector<8x512xf32> -> vector<8x512xf32>
    %286 = arith.addf %282, %285 : vector<8x512xf32>
    %287 = vector.extract_strided_slice %286 {offsets = [0, 0], sizes = [8, 128], strides = [1, 1]} : vector<8x512xf32> to vector<8x128xf32>
    %288 = arith.negf %287 : vector<8x128xf32>
    %289 = math.exp %288 : vector<8x128xf32>
    %cst_85 = arith.constant 1.000000e+00 : f32
    %290 = vector.broadcast %cst_85 : f32 to vector<8x128xf32>
    %291 = arith.addf %290, %289 : vector<8x128xf32>
    %292 = arith.divf %290, %291 : vector<8x128xf32>
    %293 = vector.extract_strided_slice %286 {offsets = [0, 128], sizes = [8, 128], strides = [1, 1]} : vector<8x512xf32> to vector<8x128xf32>
    %294 = arith.negf %293 : vector<8x128xf32>
    %295 = math.exp %294 : vector<8x128xf32>
    %cst_86 = arith.constant 1.000000e+00 : f32
    %296 = vector.broadcast %cst_86 : f32 to vector<8x128xf32>
    %297 = arith.addf %296, %295 : vector<8x128xf32>
    %298 = arith.divf %296, %297 : vector<8x128xf32>
    %299 = vector.extract_strided_slice %286 {offsets = [0, 256], sizes = [8, 128], strides = [1, 1]} : vector<8x512xf32> to vector<8x128xf32>
    %300 = math.tanh %299 : vector<8x128xf32>
    %301 = vector.extract_strided_slice %286 {offsets = [0, 384], sizes = [8, 128], strides = [1, 1]} : vector<8x512xf32> to vector<8x128xf32>
    %302 = arith.negf %301 : vector<8x128xf32>
    %303 = math.exp %302 : vector<8x128xf32>
    %cst_87 = arith.constant 1.000000e+00 : f32
    %304 = vector.broadcast %cst_87 : f32 to vector<8x128xf32>
    %305 = arith.addf %304, %303 : vector<8x128xf32>
    %306 = arith.divf %304, %305 : vector<8x128xf32>
    %307 = arith.mulf %298, %271 : vector<8x128xf32>
    %308 = arith.mulf %292, %300 : vector<8x128xf32>
    %309 = arith.addf %307, %308 : vector<8x128xf32>
    %310 = math.tanh %309 : vector<8x128xf32>
    %311 = arith.mulf %306, %310 : vector<8x128xf32>
    %312 = arith.truncf %311 : vector<8x128xf32> to vector<8x128xbf16>
    %313 = arith.index_cast %c7_i32 : i32 to index
    %c0_88 = arith.constant 0 : index
    %c0_89 = arith.constant 0 : index
    %314 = vector.load %arg9[%313, %c0_88, %c0_89] : memref<8x8x128xbf16, #tpu.memory_space<vmem>>, vector<1x8x128xbf16>
    %315 = vector.shape_cast %314 : vector<1x8x128xbf16> to vector<8x128xbf16>
    %316 = vector.shape_cast %312 : vector<8x128xbf16> to vector<1x8x128xbf16>
    tpu.vector_store %arg9[%313, %c0_88, %c0_89], %316 {strides = array<i32>} : memref<8x8x128xbf16, #tpu.memory_space<vmem>>, vector<1x8x128xbf16>,
    %c8_i32 = arith.constant 8 : i32
    %c0_90 = arith.constant 0 : index
    %c0_91 = arith.constant 0 : index
    %c0_92 = arith.constant 0 : index
    %317 = vector.load %arg9[%c0_90, %c0_91, %c0_92] : memref<8x8x128xbf16, #tpu.memory_space<vmem>>, vector<8x8x128xbf16>
    %318 = arith.extf %317 : vector<8x8x128xbf16> to vector<8x8x128xf32>
    %319 = vector.shape_cast %318 : vector<8x8x128xf32> to vector<64x128xf32>
    %320 = arith.truncf %319 : vector<64x128xf32> to vector<64x128xbf16>
    %c0_93 = arith.constant 0 : index
    %c0_94 = arith.constant 0 : index
    %321 = vector.load %arg5[%c0_93, %c0_94] : memref<128x128xbf16, #tpu.memory_space<vmem>>, vector<128x128xbf16>
    %cst_95 = arith.constant dense<0.000000e+00> : vector<64x128xf32>
    %322 = tpu.matmul %320, %321, %cst_95 {dimension_numbers = #tpu.dot_dimension_numbers<[1], [0], [0], [1], [0, 0, 1, 1], [], []>} : vector<64x128xbf16>, vector<128x128xbf16>, vector<64x128xf32> -> vector<64x128xf32>
    %c0_96 = arith.constant 0 : index
    %c0_97 = arith.constant 0 : index
    %323 = vector.load %arg6[%c0_96, %c0_97] : memref<1x128xf32, #tpu.memory_space<vmem>>, vector<1x128xf32>
    %324 = vector.broadcast %323 : vector<1x128xf32> to vector<64x128xf32>
    %325 = arith.addf %322, %324 : vector<64x128xf32>
    %326 = vector.shape_cast %325 : vector<64x128xf32> to vector<8x8x128xf32>
    %c0_98 = arith.constant 0 : index
    %c0_99 = arith.constant 0 : index
    %c0_100 = arith.constant 0 : index
    %327 = vector.load %arg7[%c0_98, %c0_99, %c0_100] : memref<8x8x128xf32, #tpu.memory_space<vmem>>, vector<8x8x128xf32>
    tpu.vector_store %arg7[%c0_98, %c0_99, %c0_100], %326 {strides = array<i32>} : memref<8x8x128xf32, #tpu.memory_space<vmem>>, vector<8x8x128xf32>,
    return
  }
  func.func @transform_0(%arg0: i32) -> (i32, i32, i32) {
    %c0_i32 = arith.constant 0 : i32
    %c0_i32_0 = arith.constant 0 : i32
    %c0_i32_1 = arith.constant 0 : i32
    return %c0_i32, %arg0, %c0_i32_0 : i32, i32, i32
  }
  func.func @transform_1(%arg0: i32) -> (i32, i32) {
    %c0_i32 = arith.constant 0 : i32
    %c0_i32_0 = arith.constant 0 : i32
    %c0_i32_1 = arith.constant 0 : i32
    return %c0_i32, %c0_i32_0 : i32, i32
  }
  func.func @transform_2(%arg0: i32) -> (i32, i32) {
    %c0_i32 = arith.constant 0 : i32
    %c0_i32_0 = arith.constant 0 : i32
    %c0_i32_1 = arith.constant 0 : i32
    return %c0_i32, %c0_i32_0 : i32, i32
  }
  func.func @transform_3(%arg0: i32) -> (i32, i32) {
    %c0_i32 = arith.constant 0 : i32
    %c0_i32_0 = arith.constant 0 : i32
    %c0_i32_1 = arith.constant 0 : i32
    return %c0_i32, %c0_i32_0 : i32, i32
  }
  func.func @transform_4(%arg0: i32) -> (i32, i32) {
    %c0_i32 = arith.constant 0 : i32
    %c0_i32_0 = arith.constant 0 : i32
    %c0_i32_1 = arith.constant 0 : i32
    return %c0_i32, %c0_i32_0 : i32, i32
  }
  func.func @transform_5(%arg0: i32) -> (i32, i32) {
    %c0_i32 = arith.constant 0 : i32
    %c0_i32_0 = arith.constant 0 : i32
    %c0_i32_1 = arith.constant 0 : i32
    return %c0_i32, %c0_i32_0 : i32, i32
  }
  func.func @transform_6(%arg0: i32) -> (i32, i32, i32) {
    %c0_i32 = arith.constant 0 : i32
    %c0_i32_0 = arith.constant 0 : i32
    %c0_i32_1 = arith.constant 0 : i32
    return %c0_i32, %arg0, %c0_i32_0 : i32, i32, i32
  }
}

module attributes {stable_mosaic.version = 11 : i64} {
  func.func @ner_fused_kernel(%arg0: i32, %arg1: memref<8x8x32xbf16, #tpu.memory_space<vmem>>, %arg2: memref<32x512xbf16, #tpu.memory_space<vmem>>, %arg3: memref<128x512xbf16, #tpu.memory_space<vmem>>, %arg4: memref<1x512xf32, #tpu.memory_space<vmem>>, %arg5: memref<128x128xbf16, #tpu.memory_space<vmem>>, %arg6: memref<1x128xf32, #tpu.memory_space<vmem>>, %arg7: memref<8x8x128xf32, #tpu.memory_space<vmem>>, %arg8: memref<8x8x512xbf16, #tpu.memory_space<vmem>>, %arg9: memref<8x8x128xbf16, #tpu.memory_space<vmem>>) attributes {dimension_semantics = [#tpu.dimension_semantics<parallel>], iteration_bounds = array<i64: 1>, scalar_prefetch = 0 : i64, scratch_operands = 2 : i64, tpu.core_type = #tpu.core_type<tc>, window_params = [{transform_indices = @transform_0, window_bounds = array<i64: 8, 8, 32>}, {pipeline_mode = #tpu.pipeline_mode<synchronous>, transform_indices = @transform_1, window_bounds = array<i64: 32, 512>}, {pipeline_mode = #tpu.pipeline_mode<synchronous>, transform_indices = @transform_2, window_bounds = array<i64: 128, 512>}, {pipeline_mode = #tpu.pipeline_mode<synchronous>, transform_indices = @transform_3, window_bounds = array<i64: 1, 512>}, {pipeline_mode = #tpu.pipeline_mode<synchronous>, transform_indices = @transform_4, window_bounds = array<i64: 128, 128>}, {pipeline_mode = #tpu.pipeline_mode<synchronous>, transform_indices = @transform_5, window_bounds = array<i64: 1, 128>}, {transform_indices = @transform_6, window_bounds = array<i64: 8, 8, 128>}]} {
    %c0 = arith.constant 0 : index
    %c0_0 = arith.constant 0 : index
    %c0_1 = arith.constant 0 : index
    %0 = vector.load %arg1[%c0, %c0_0, %c0_1] : memref<8x8x32xbf16, #tpu.memory_space<vmem>>, vector<8x8x32xbf16>
    %1 = arith.extf %0 : vector<8x8x32xbf16> to vector<8x8x32xf32>
    %2 = vector.shape_cast %1 : vector<8x8x32xf32> to vector<64x32xf32>
    %3 = arith.truncf %2 : vector<64x32xf32> to vector<64x32xbf16>
    %c0_2 = arith.constant 0 : index
    %c0_3 = arith.constant 0 : index
    %4 = vector.load %arg2[%c0_2, %c0_3] : memref<32x512xbf16, #tpu.memory_space<vmem>>, vector<32x512xbf16>
    %cst = arith.constant dense<0.000000e+00> : vector<64x512xf32>
    %5 = tpu.matmul %3, %4, %cst {dimension_numbers = #tpu.dot_dimension_numbers<[1], [0], [0], [1], [0, 0, 1, 1], [], []>} : vector<64x32xbf16>, vector<32x512xbf16>, vector<64x512xf32> -> vector<64x512xf32>
    %c0_4 = arith.constant 0 : index
    %c0_5 = arith.constant 0 : index
    %6 = vector.load %arg4[%c0_4, %c0_5] : memref<1x512xf32, #tpu.memory_space<vmem>>, vector<1x512xf32>
    %7 = vector.broadcast %6 : vector<1x512xf32> to vector<64x512xf32>
    %8 = arith.addf %5, %7 : vector<64x512xf32>
    %9 = vector.shape_cast %8 : vector<64x512xf32> to vector<8x8x512xf32>
    %10 = arith.truncf %9 : vector<8x8x512xf32> to vector<8x8x512xbf16>
    %c0_6 = arith.constant 0 : index
    %c0_7 = arith.constant 0 : index
    %c0_8 = arith.constant 0 : index
    %11 = vector.load %arg8[%c0_6, %c0_7, %c0_8] : memref<8x8x512xbf16, #tpu.memory_space<vmem>>, vector<8x8x512xbf16>
    tpu.vector_store %arg8[%c0_6, %c0_7, %c0_8], %10 {strides = array<i32>} : memref<8x8x512xbf16, #tpu.memory_space<vmem>>, vector<8x8x512xbf16>,
    %cst_9 = arith.constant 0.000000e+00 : f32
    %12 = vector.broadcast %cst_9 : f32 to vector<8x128xf32>
    %c0_i32 = arith.constant 0 : i32
    %13 = arith.index_cast %c0_i32 : i32 to index
    %c0_10 = arith.constant 0 : index
    %c0_11 = arith.constant 0 : index
    %14 = vector.load %arg8[%13, %c0_10, %c0_11] : memref<8x8x512xbf16, #tpu.memory_space<vmem>>, vector<1x8x512xbf16>
    %15 = vector.shape_cast %14 : vector<1x8x512xbf16> to vector<8x512xbf16>
    %16 = arith.extf %15 : vector<8x512xbf16> to vector<8x512xf32>
    %17 = arith.truncf %12 : vector<8x128xf32> to vector<8x128xbf16>
    %c0_12 = arith.constant 0 : index
    %c0_13 = arith.constant 0 : index
    %18 = vector.load %arg3[%c0_12, %c0_13] : memref<128x512xbf16, #tpu.memory_space<vmem>>, vector<128x512xbf16>
    %cst_14 = arith.constant dense<0.000000e+00> : vector<8x512xf32>
    %19 = tpu.matmul %17, %18, %cst_14 {dimension_numbers = #tpu.dot_dimension_numbers<[1], [0], [0], [1], [0, 0, 1, 1], [], []>} : vector<8x128xbf16>, vector<128x512xbf16>, vector<8x512xf32> -> vector<8x512xf32>
    %20 = arith.addf %16, %19 : vector<8x512xf32>
    %21 = vector.extract_strided_slice %20 {offsets = [0, 0], sizes = [8, 128], strides = [1, 1]} : vector<8x512xf32> to vector<8x128xf32>
    %22 = arith.negf %21 : vector<8x128xf32>
    %23 = math.exp %22 : vector<8x128xf32>
    %cst_15 = arith.constant 1.000000e+00 : f32
    %24 = vector.broadcast %cst_15 : f32 to vector<8x128xf32>
    %25 = arith.addf %24, %23 : vector<8x128xf32>
    %26 = arith.divf %24, %25 : vector<8x128xf32>
    %27 = vector.extract_strided_slice %20 {offsets = [0, 128], sizes = [8, 128], strides = [1, 1]} : vector<8x512xf32> to vector<8x128xf32>
    %28 = arith.negf %27 : vector<8x128xf32>
    %29 = math.exp %28 : vector<8x128xf32>
    %cst_16 = arith.constant 1.000000e+00 : f32
    %30 = vector.broadcast %cst_16 : f32 to vector<8x128xf32>
    %31 = arith.addf %30, %29 : vector<8x128xf32>
    %32 = arith.divf %30, %31 : vector<8x128xf32>
    %33 = vector.extract_strided_slice %20 {offsets = [0, 256], sizes = [8, 128], strides = [1, 1]} : vector<8x512xf32> to vector<8x128xf32>
    %34 = math.tanh %33 : vector<8x128xf32>
    %35 = vector.extract_strided_slice %20 {offsets = [0, 384], sizes = [8, 128], strides = [1, 1]} : vector<8x512xf32> to vector<8x128xf32>
    %36 = arith.negf %35 : vector<8x128xf32>
    %37 = math.exp %36 : vector<8x128xf32>
    %cst_17 = arith.constant 1.000000e+00 : f32
    %38 = vector.broadcast %cst_17 : f32 to vector<8x128xf32>
    %39 = arith.addf %38, %37 : vector<8x128xf32>
    %40 = arith.divf %38, %39 : vector<8x128xf32>
    %41 = arith.mulf %32, %12 : vector<8x128xf32>
    %42 = arith.mulf %26, %34 : vector<8x128xf32>
    %43 = arith.addf %41, %42 : vector<8x128xf32>
    %44 = math.tanh %43 : vector<8x128xf32>
    %45 = arith.mulf %40, %44 : vector<8x128xf32>
    %46 = arith.truncf %45 : vector<8x128xf32> to vector<8x128xbf16>
    %47 = arith.index_cast %c0_i32 : i32 to index
    %c0_18 = arith.constant 0 : index
    %c0_19 = arith.constant 0 : index
    %48 = vector.load %arg9[%47, %c0_18, %c0_19] : memref<8x8x128xbf16, #tpu.memory_space<vmem>>, vector<1x8x128xbf16>
    %49 = vector.shape_cast %48 : vector<1x8x128xbf16> to vector<8x128xbf16>
    %50 = vector.shape_cast %46 : vector<8x128xbf16> to vector<1x8x128xbf16>
    tpu.vector_store %arg9[%47, %c0_18, %c0_19], %50 {strides = array<i32>} : memref<8x8x128xbf16, #tpu.memory_space<vmem>>, vector<1x8x128xbf16>,
    %c1_i32 = arith.constant 1 : i32
    %51 = arith.index_cast %c1_i32 : i32 to index
    %c0_20 = arith.constant 0 : index
    %c0_21 = arith.constant 0 : index
    %52 = vector.load %arg8[%51, %c0_20, %c0_21] : memref<8x8x512xbf16, #tpu.memory_space<vmem>>, vector<1x8x512xbf16>
    %53 = vector.shape_cast %52 : vector<1x8x512xbf16> to vector<8x512xbf16>
    %54 = arith.extf %53 : vector<8x512xbf16> to vector<8x512xf32>
    %55 = arith.truncf %45 : vector<8x128xf32> to vector<8x128xbf16>
    %c0_22 = arith.constant 0 : index
    %c0_23 = arith.constant 0 : index
    %56 = vector.load %arg3[%c0_22, %c0_23] : memref<128x512xbf16, #tpu.memory_space<vmem>>, vector<128x512xbf16>
    %cst_24 = arith.constant dense<0.000000e+00> : vector<8x512xf32>
    %57 = tpu.matmul %55, %56, %cst_24 {dimension_numbers = #tpu.dot_dimension_numbers<[1], [0], [0], [1], [0, 0, 1, 1], [], []>} : vector<8x128xbf16>, vector<128x512xbf16>, vector<8x512xf32> -> vector<8x512xf32>
    %58 = arith.addf %54, %57 : vector<8x512xf32>
    %59 = vector.extract_strided_slice %58 {offsets = [0, 0], sizes = [8, 128], strides = [1, 1]} : vector<8x512xf32> to vector<8x128xf32>
    %60 = arith.negf %59 : vector<8x128xf32>
    %61 = math.exp %60 : vector<8x128xf32>
    %cst_25 = arith.constant 1.000000e+00 : f32
    %62 = vector.broadcast %cst_25 : f32 to vector<8x128xf32>
    %63 = arith.addf %62, %61 : vector<8x128xf32>
    %64 = arith.divf %62, %63 : vector<8x128xf32>
    %65 = vector.extract_strided_slice %58 {offsets = [0, 128], sizes = [8, 128], strides = [1, 1]} : vector<8x512xf32> to vector<8x128xf32>
    %66 = arith.negf %65 : vector<8x128xf32>
    %67 = math.exp %66 : vector<8x128xf32>
    %cst_26 = arith.constant 1.000000e+00 : f32
    %68 = vector.broadcast %cst_26 : f32 to vector<8x128xf32>
    %69 = arith.addf %68, %67 : vector<8x128xf32>
    %70 = arith.divf %68, %69 : vector<8x128xf32>
    %71 = vector.extract_strided_slice %58 {offsets = [0, 256], sizes = [8, 128], strides = [1, 1]} : vector<8x512xf32> to vector<8x128xf32>
    %72 = math.tanh %71 : vector<8x128xf32>
    %73 = vector.extract_strided_slice %58 {offsets = [0, 384], sizes = [8, 128], strides = [1, 1]} : vector<8x512xf32> to vector<8x128xf32>
    %74 = arith.negf %73 : vector<8x128xf32>
    %75 = math.exp %74 : vector<8x128xf32>
    %cst_27 = arith.constant 1.000000e+00 : f32
    %76 = vector.broadcast %cst_27 : f32 to vector<8x128xf32>
    %77 = arith.addf %76, %75 : vector<8x128xf32>
    %78 = arith.divf %76, %77 : vector<8x128xf32>
    %79 = arith.mulf %70, %43 : vector<8x128xf32>
    %80 = arith.mulf %64, %72 : vector<8x128xf32>
    %81 = arith.addf %79, %80 : vector<8x128xf32>
    %82 = math.tanh %81 : vector<8x128xf32>
    %83 = arith.mulf %78, %82 : vector<8x128xf32>
    %84 = arith.truncf %83 : vector<8x128xf32> to vector<8x128xbf16>
    %85 = arith.index_cast %c1_i32 : i32 to index
    %c0_28 = arith.constant 0 : index
    %c0_29 = arith.constant 0 : index
    %86 = vector.load %arg9[%85, %c0_28, %c0_29] : memref<8x8x128xbf16, #tpu.memory_space<vmem>>, vector<1x8x128xbf16>
    %87 = vector.shape_cast %86 : vector<1x8x128xbf16> to vector<8x128xbf16>
    %88 = vector.shape_cast %84 : vector<8x128xbf16> to vector<1x8x128xbf16>
    tpu.vector_store %arg9[%85, %c0_28, %c0_29], %88 {strides = array<i32>} : memref<8x8x128xbf16, #tpu.memory_space<vmem>>, vector<1x8x128xbf16>,
    %c2_i32 = arith.constant 2 : i32
    %89 = arith.index_cast %c2_i32 : i32 to index
    %c0_30 = arith.constant 0 : index
    %c0_31 = arith.constant 0 : index
    %90 = vector.load %arg8[%89, %c0_30, %c0_31] : memref<8x8x512xbf16, #tpu.memory_space<vmem>>, vector<1x8x512xbf16>
    %91 = vector.shape_cast %90 : vector<1x8x512xbf16> to vector<8x512xbf16>
    %92 = arith.extf %91 : vector<8x512xbf16> to vector<8x512xf32>
    %93 = arith.truncf %83 : vector<8x128xf32> to vector<8x128xbf16>
    %c0_32 = arith.constant 0 : index
    %c0_33 = arith.constant 0 : index
    %94 = vector.load %arg3[%c0_32, %c0_33] : memref<128x512xbf16, #tpu.memory_space<vmem>>, vector<128x512xbf16>
    %cst_34 = arith.constant dense<0.000000e+00> : vector<8x512xf32>
    %95 = tpu.matmul %93, %94, %cst_34 {dimension_numbers = #tpu.dot_dimension_numbers<[1], [0], [0], [1], [0, 0, 1, 1], [], []>} : vector<8x128xbf16>, vector<128x512xbf16>, vector<8x512xf32> -> vector<8x512xf32>
    %96 = arith.addf %92, %95 : vector<8x512xf32>
    %97 = vector.extract_strided_slice %96 {offsets = [0, 0], sizes = [8, 128], strides = [1, 1]} : vector<8x512xf32> to vector<8x128xf32>
    %98 = arith.negf %97 : vector<8x128xf32>
    %99 = math.exp %98 : vector<8x128xf32>
    %cst_35 = arith.constant 1.000000e+00 : f32
    %100 = vector.broadcast %cst_35 : f32 to vector<8x128xf32>
    %101 = arith.addf %100, %99 : vector<8x128xf32>
    %102 = arith.divf %100, %101 : vector<8x128xf32>
    %103 = vector.extract_strided_slice %96 {offsets = [0, 128], sizes = [8, 128], strides = [1, 1]} : vector<8x512xf32> to vector<8x128xf32>
    %104 = arith.negf %103 : vector<8x128xf32>
    %105 = math.exp %104 : vector<8x128xf32>
    %cst_36 = arith.constant 1.000000e+00 : f32
    %106 = vector.broadcast %cst_36 : f32 to vector<8x128xf32>
    %107 = arith.addf %106, %105 : vector<8x128xf32>
    %108 = arith.divf %106, %107 : vector<8x128xf32>
    %109 = vector.extract_strided_slice %96 {offsets = [0, 256], sizes = [8, 128], strides = [1, 1]} : vector<8x512xf32> to vector<8x128xf32>
    %110 = math.tanh %109 : vector<8x128xf32>
    %111 = vector.extract_strided_slice %96 {offsets = [0, 384], sizes = [8, 128], strides = [1, 1]} : vector<8x512xf32> to vector<8x128xf32>
    %112 = arith.negf %111 : vector<8x128xf32>
    %113 = math.exp %112 : vector<8x128xf32>
    %cst_37 = arith.constant 1.000000e+00 : f32
    %114 = vector.broadcast %cst_37 : f32 to vector<8x128xf32>
    %115 = arith.addf %114, %113 : vector<8x128xf32>
    %116 = arith.divf %114, %115 : vector<8x128xf32>
    %117 = arith.mulf %108, %81 : vector<8x128xf32>
    %118 = arith.mulf %102, %110 : vector<8x128xf32>
    %119 = arith.addf %117, %118 : vector<8x128xf32>
    %120 = math.tanh %119 : vector<8x128xf32>
    %121 = arith.mulf %116, %120 : vector<8x128xf32>
    %122 = arith.truncf %121 : vector<8x128xf32> to vector<8x128xbf16>
    %123 = arith.index_cast %c2_i32 : i32 to index
    %c0_38 = arith.constant 0 : index
    %c0_39 = arith.constant 0 : index
    %124 = vector.load %arg9[%123, %c0_38, %c0_39] : memref<8x8x128xbf16, #tpu.memory_space<vmem>>, vector<1x8x128xbf16>
    %125 = vector.shape_cast %124 : vector<1x8x128xbf16> to vector<8x128xbf16>
    %126 = vector.shape_cast %122 : vector<8x128xbf16> to vector<1x8x128xbf16>
    tpu.vector_store %arg9[%123, %c0_38, %c0_39], %126 {strides = array<i32>} : memref<8x8x128xbf16, #tpu.memory_space<vmem>>, vector<1x8x128xbf16>,
    %c3_i32 = arith.constant 3 : i32
    %127 = arith.index_cast %c3_i32 : i32 to index
    %c0_40 = arith.constant 0 : index
    %c0_41 = arith.constant 0 : index
    %128 = vector.load %arg8[%127, %c0_40, %c0_41] : memref<8x8x512xbf16, #tpu.memory_space<vmem>>, vector<1x8x512xbf16>
    %129 = vector.shape_cast %128 : vector<1x8x512xbf16> to vector<8x512xbf16>
    %130 = arith.extf %129 : vector<8x512xbf16> to vector<8x512xf32>
    %131 = arith.truncf %121 : vector<8x128xf32> to vector<8x128xbf16>
    %c0_42 = arith.constant 0 : index
    %c0_43 = arith.constant 0 : index
    %132 = vector.load %arg3[%c0_42, %c0_43] : memref<128x512xbf16, #tpu.memory_space<vmem>>, vector<128x512xbf16>
    %cst_44 = arith.constant dense<0.000000e+00> : vector<8x512xf32>
    %133 = tpu.matmul %131, %132, %cst_44 {dimension_numbers = #tpu.dot_dimension_numbers<[1], [0], [0], [1], [0, 0, 1, 1], [], []>} : vector<8x128xbf16>, vector<128x512xbf16>, vector<8x512xf32> -> vector<8x512xf32>
    %134 = arith.addf %130, %133 : vector<8x512xf32>
    %135 = vector.extract_strided_slice %134 {offsets = [0, 0], sizes = [8, 128], strides = [1, 1]} : vector<8x512xf32> to vector<8x128xf32>
    %136 = arith.negf %135 : vector<8x128xf32>
    %137 = math.exp %136 : vector<8x128xf32>
    %cst_45 = arith.constant 1.000000e+00 : f32
    %138 = vector.broadcast %cst_45 : f32 to vector<8x128xf32>
    %139 = arith.addf %138, %137 : vector<8x128xf32>
    %140 = arith.divf %138, %139 : vector<8x128xf32>
    %141 = vector.extract_strided_slice %134 {offsets = [0, 128], sizes = [8, 128], strides = [1, 1]} : vector<8x512xf32> to vector<8x128xf32>
    %142 = arith.negf %141 : vector<8x128xf32>
    %143 = math.exp %142 : vector<8x128xf32>
    %cst_46 = arith.constant 1.000000e+00 : f32
    %144 = vector.broadcast %cst_46 : f32 to vector<8x128xf32>
    %145 = arith.addf %144, %143 : vector<8x128xf32>
    %146 = arith.divf %144, %145 : vector<8x128xf32>
    %147 = vector.extract_strided_slice %134 {offsets = [0, 256], sizes = [8, 128], strides = [1, 1]} : vector<8x512xf32> to vector<8x128xf32>
    %148 = math.tanh %147 : vector<8x128xf32>
    %149 = vector.extract_strided_slice %134 {offsets = [0, 384], sizes = [8, 128], strides = [1, 1]} : vector<8x512xf32> to vector<8x128xf32>
    %150 = arith.negf %149 : vector<8x128xf32>
    %151 = math.exp %150 : vector<8x128xf32>
    %cst_47 = arith.constant 1.000000e+00 : f32
    %152 = vector.broadcast %cst_47 : f32 to vector<8x128xf32>
    %153 = arith.addf %152, %151 : vector<8x128xf32>
    %154 = arith.divf %152, %153 : vector<8x128xf32>
    %155 = arith.mulf %146, %119 : vector<8x128xf32>
    %156 = arith.mulf %140, %148 : vector<8x128xf32>
    %157 = arith.addf %155, %156 : vector<8x128xf32>
    %158 = math.tanh %157 : vector<8x128xf32>
    %159 = arith.mulf %154, %158 : vector<8x128xf32>
    %160 = arith.truncf %159 : vector<8x128xf32> to vector<8x128xbf16>
    %161 = arith.index_cast %c3_i32 : i32 to index
    %c0_48 = arith.constant 0 : index
    %c0_49 = arith.constant 0 : index
    %162 = vector.load %arg9[%161, %c0_48, %c0_49] : memref<8x8x128xbf16, #tpu.memory_space<vmem>>, vector<1x8x128xbf16>
    %163 = vector.shape_cast %162 : vector<1x8x128xbf16> to vector<8x128xbf16>
    %164 = vector.shape_cast %160 : vector<8x128xbf16> to vector<1x8x128xbf16>
    tpu.vector_store %arg9[%161, %c0_48, %c0_49], %164 {strides = array<i32>} : memref<8x8x128xbf16, #tpu.memory_space<vmem>>, vector<1x8x128xbf16>,
    %c4_i32 = arith.constant 4 : i32
    %165 = arith.index_cast %c4_i32 : i32 to index
    %c0_50 = arith.constant 0 : index
    %c0_51 = arith.constant 0 : index
    %166 = vector.load %arg8[%165, %c0_50, %c0_51] : memref<8x8x512xbf16, #tpu.memory_space<vmem>>, vector<1x8x512xbf16>
    %167 = vector.shape_cast %166 : vector<1x8x512xbf16> to vector<8x512xbf16>
    %168 = arith.extf %167 : vector<8x512xbf16> to vector<8x512xf32>
    %169 = arith.truncf %159 : vector<8x128xf32> to vector<8x128xbf16>
    %c0_52 = arith.constant 0 : index
    %c0_53 = arith.constant 0 : index
    %170 = vector.load %arg3[%c0_52, %c0_53] : memref<128x512xbf16, #tpu.memory_space<vmem>>, vector<128x512xbf16>
    %cst_54 = arith.constant dense<0.000000e+00> : vector<8x512xf32>
    %171 = tpu.matmul %169, %170, %cst_54 {dimension_numbers = #tpu.dot_dimension_numbers<[1], [0], [0], [1], [0, 0, 1, 1], [], []>} : vector<8x128xbf16>, vector<128x512xbf16>, vector<8x512xf32> -> vector<8x512xf32>
    %172 = arith.addf %168, %171 : vector<8x512xf32>
    %173 = vector.extract_strided_slice %172 {offsets = [0, 0], sizes = [8, 128], strides = [1, 1]} : vector<8x512xf32> to vector<8x128xf32>
    %174 = arith.negf %173 : vector<8x128xf32>
    %175 = math.exp %174 : vector<8x128xf32>
    %cst_55 = arith.constant 1.000000e+00 : f32
    %176 = vector.broadcast %cst_55 : f32 to vector<8x128xf32>
    %177 = arith.addf %176, %175 : vector<8x128xf32>
    %178 = arith.divf %176, %177 : vector<8x128xf32>
    %179 = vector.extract_strided_slice %172 {offsets = [0, 128], sizes = [8, 128], strides = [1, 1]} : vector<8x512xf32> to vector<8x128xf32>
    %180 = arith.negf %179 : vector<8x128xf32>
    %181 = math.exp %180 : vector<8x128xf32>
    %cst_56 = arith.constant 1.000000e+00 : f32
    %182 = vector.broadcast %cst_56 : f32 to vector<8x128xf32>
    %183 = arith.addf %182, %181 : vector<8x128xf32>
    %184 = arith.divf %182, %183 : vector<8x128xf32>
    %185 = vector.extract_strided_slice %172 {offsets = [0, 256], sizes = [8, 128], strides = [1, 1]} : vector<8x512xf32> to vector<8x128xf32>
    %186 = math.tanh %185 : vector<8x128xf32>
    %187 = vector.extract_strided_slice %172 {offsets = [0, 384], sizes = [8, 128], strides = [1, 1]} : vector<8x512xf32> to vector<8x128xf32>
    %188 = arith.negf %187 : vector<8x128xf32>
    %189 = math.exp %188 : vector<8x128xf32>
    %cst_57 = arith.constant 1.000000e+00 : f32
    %190 = vector.broadcast %cst_57 : f32 to vector<8x128xf32>
    %191 = arith.addf %190, %189 : vector<8x128xf32>
    %192 = arith.divf %190, %191 : vector<8x128xf32>
    %193 = arith.mulf %184, %157 : vector<8x128xf32>
    %194 = arith.mulf %178, %186 : vector<8x128xf32>
    %195 = arith.addf %193, %194 : vector<8x128xf32>
    %196 = math.tanh %195 : vector<8x128xf32>
    %197 = arith.mulf %192, %196 : vector<8x128xf32>
    %198 = arith.truncf %197 : vector<8x128xf32> to vector<8x128xbf16>
    %199 = arith.index_cast %c4_i32 : i32 to index
    %c0_58 = arith.constant 0 : index
    %c0_59 = arith.constant 0 : index
    %200 = vector.load %arg9[%199, %c0_58, %c0_59] : memref<8x8x128xbf16, #tpu.memory_space<vmem>>, vector<1x8x128xbf16>
    %201 = vector.shape_cast %200 : vector<1x8x128xbf16> to vector<8x128xbf16>
    %202 = vector.shape_cast %198 : vector<8x128xbf16> to vector<1x8x128xbf16>
    tpu.vector_store %arg9[%199, %c0_58, %c0_59], %202 {strides = array<i32>} : memref<8x8x128xbf16, #tpu.memory_space<vmem>>, vector<1x8x128xbf16>,
    %c5_i32 = arith.constant 5 : i32
    %203 = arith.index_cast %c5_i32 : i32 to index
    %c0_60 = arith.constant 0 : index
    %c0_61 = arith.constant 0 : index
    %204 = vector.load %arg8[%203, %c0_60, %c0_61] : memref<8x8x512xbf16, #tpu.memory_space<vmem>>, vector<1x8x512xbf16>
    %205 = vector.shape_cast %204 : vector<1x8x512xbf16> to vector<8x512xbf16>
    %206 = arith.extf %205 : vector<8x512xbf16> to vector<8x512xf32>
    %207 = arith.truncf %197 : vector<8x128xf32> to vector<8x128xbf16>
    %c0_62 = arith.constant 0 : index
    %c0_63 = arith.constant 0 : index
    %208 = vector.load %arg3[%c0_62, %c0_63] : memref<128x512xbf16, #tpu.memory_space<vmem>>, vector<128x512xbf16>
    %cst_64 = arith.constant dense<0.000000e+00> : vector<8x512xf32>
    %209 = tpu.matmul %207, %208, %cst_64 {dimension_numbers = #tpu.dot_dimension_numbers<[1], [0], [0], [1], [0, 0, 1, 1], [], []>} : vector<8x128xbf16>, vector<128x512xbf16>, vector<8x512xf32> -> vector<8x512xf32>
    %210 = arith.addf %206, %209 : vector<8x512xf32>
    %211 = vector.extract_strided_slice %210 {offsets = [0, 0], sizes = [8, 128], strides = [1, 1]} : vector<8x512xf32> to vector<8x128xf32>
    %212 = arith.negf %211 : vector<8x128xf32>
    %213 = math.exp %212 : vector<8x128xf32>
    %cst_65 = arith.constant 1.000000e+00 : f32
    %214 = vector.broadcast %cst_65 : f32 to vector<8x128xf32>
    %215 = arith.addf %214, %213 : vector<8x128xf32>
    %216 = arith.divf %214, %215 : vector<8x128xf32>
    %217 = vector.extract_strided_slice %210 {offsets = [0, 128], sizes = [8, 128], strides = [1, 1]} : vector<8x512xf32> to vector<8x128xf32>
    %218 = arith.negf %217 : vector<8x128xf32>
    %219 = math.exp %218 : vector<8x128xf32>
    %cst_66 = arith.constant 1.000000e+00 : f32
    %220 = vector.broadcast %cst_66 : f32 to vector<8x128xf32>
    %221 = arith.addf %220, %219 : vector<8x128xf32>
    %222 = arith.divf %220, %221 : vector<8x128xf32>
    %223 = vector.extract_strided_slice %210 {offsets = [0, 256], sizes = [8, 128], strides = [1, 1]} : vector<8x512xf32> to vector<8x128xf32>
    %224 = math.tanh %223 : vector<8x128xf32>
    %225 = vector.extract_strided_slice %210 {offsets = [0, 384], sizes = [8, 128], strides = [1, 1]} : vector<8x512xf32> to vector<8x128xf32>
    %226 = arith.negf %225 : vector<8x128xf32>
    %227 = math.exp %226 : vector<8x128xf32>
    %cst_67 = arith.constant 1.000000e+00 : f32
    %228 = vector.broadcast %cst_67 : f32 to vector<8x128xf32>
    %229 = arith.addf %228, %227 : vector<8x128xf32>
    %230 = arith.divf %228, %229 : vector<8x128xf32>
    %231 = arith.mulf %222, %195 : vector<8x128xf32>
    %232 = arith.mulf %216, %224 : vector<8x128xf32>
    %233 = arith.addf %231, %232 : vector<8x128xf32>
    %234 = math.tanh %233 : vector<8x128xf32>
    %235 = arith.mulf %230, %234 : vector<8x128xf32>
    %236 = arith.truncf %235 : vector<8x128xf32> to vector<8x128xbf16>
    %237 = arith.index_cast %c5_i32 : i32 to index
    %c0_68 = arith.constant 0 : index
    %c0_69 = arith.constant 0 : index
    %238 = vector.load %arg9[%237, %c0_68, %c0_69] : memref<8x8x128xbf16, #tpu.memory_space<vmem>>, vector<1x8x128xbf16>
    %239 = vector.shape_cast %238 : vector<1x8x128xbf16> to vector<8x128xbf16>
    %240 = vector.shape_cast %236 : vector<8x128xbf16> to vector<1x8x128xbf16>
    tpu.vector_store %arg9[%237, %c0_68, %c0_69], %240 {strides = array<i32>} : memref<8x8x128xbf16, #tpu.memory_space<vmem>>, vector<1x8x128xbf16>,
    %c6_i32 = arith.constant 6 : i32
    %241 = arith.index_cast %c6_i32 : i32 to index
    %c0_70 = arith.constant 0 : index
    %c0_71 = arith.constant 0 : index
    %242 = vector.load %arg8[%241, %c0_70, %c0_71] : memref<8x8x512xbf16, #tpu.memory_space<vmem>>, vector<1x8x512xbf16>
    %243 = vector.shape_cast %242 : vector<1x8x512xbf16> to vector<8x512xbf16>
    %244 = arith.extf %243 : vector<8x512xbf16> to vector<8x512xf32>
    %245 = arith.truncf %235 : vector<8x128xf32> to vector<8x128xbf16>
    %c0_72 = arith.constant 0 : index
    %c0_73 = arith.constant 0 : index
    %246 = vector.load %arg3[%c0_72, %c0_73] : memref<128x512xbf16, #tpu.memory_space<vmem>>, vector<128x512xbf16>
    %cst_74 = arith.constant dense<0.000000e+00> : vector<8x512xf32>
    %247 = tpu.matmul %245, %246, %cst_74 {dimension_numbers = #tpu.dot_dimension_numbers<[1], [0], [0], [1], [0, 0, 1, 1], [], []>} : vector<8x128xbf16>, vector<128x512xbf16>, vector<8x512xf32> -> vector<8x512xf32>
    %248 = arith.addf %244, %247 : vector<8x512xf32>
    %249 = vector.extract_strided_slice %248 {offsets = [0, 0], sizes = [8, 128], strides = [1, 1]} : vector<8x512xf32> to vector<8x128xf32>
    %250 = arith.negf %249 : vector<8x128xf32>
    %251 = math.exp %250 : vector<8x128xf32>
    %cst_75 = arith.constant 1.000000e+00 : f32
    %252 = vector.broadcast %cst_75 : f32 to vector<8x128xf32>
    %253 = arith.addf %252, %251 : vector<8x128xf32>
    %254 = arith.divf %252, %253 : vector<8x128xf32>
    %255 = vector.extract_strided_slice %248 {offsets = [0, 128], sizes = [8, 128], strides = [1, 1]} : vector<8x512xf32> to vector<8x128xf32>
    %256 = arith.negf %255 : vector<8x128xf32>
    %257 = math.exp %256 : vector<8x128xf32>
    %cst_76 = arith.constant 1.000000e+00 : f32
    %258 = vector.broadcast %cst_76 : f32 to vector<8x128xf32>
    %259 = arith.addf %258, %257 : vector<8x128xf32>
    %260 = arith.divf %258, %259 : vector<8x128xf32>
    %261 = vector.extract_strided_slice %248 {offsets = [0, 256], sizes = [8, 128], strides = [1, 1]} : vector<8x512xf32> to vector<8x128xf32>
    %262 = math.tanh %261 : vector<8x128xf32>
    %263 = vector.extract_strided_slice %248 {offsets = [0, 384], sizes = [8, 128], strides = [1, 1]} : vector<8x512xf32> to vector<8x128xf32>
    %264 = arith.negf %263 : vector<8x128xf32>
    %265 = math.exp %264 : vector<8x128xf32>
    %cst_77 = arith.constant 1.000000e+00 : f32
    %266 = vector.broadcast %cst_77 : f32 to vector<8x128xf32>
    %267 = arith.addf %266, %265 : vector<8x128xf32>
    %268 = arith.divf %266, %267 : vector<8x128xf32>
    %269 = arith.mulf %260, %233 : vector<8x128xf32>
    %270 = arith.mulf %254, %262 : vector<8x128xf32>
    %271 = arith.addf %269, %270 : vector<8x128xf32>
    %272 = math.tanh %271 : vector<8x128xf32>
    %273 = arith.mulf %268, %272 : vector<8x128xf32>
    %274 = arith.truncf %273 : vector<8x128xf32> to vector<8x128xbf16>
    %275 = arith.index_cast %c6_i32 : i32 to index
    %c0_78 = arith.constant 0 : index
    %c0_79 = arith.constant 0 : index
    %276 = vector.load %arg9[%275, %c0_78, %c0_79] : memref<8x8x128xbf16, #tpu.memory_space<vmem>>, vector<1x8x128xbf16>
    %277 = vector.shape_cast %276 : vector<1x8x128xbf16> to vector<8x128xbf16>
    %278 = vector.shape_cast %274 : vector<8x128xbf16> to vector<1x8x128xbf16>
    tpu.vector_store %arg9[%275, %c0_78, %c0_79], %278 {strides = array<i32>} : memref<8x8x128xbf16, #tpu.memory_space<vmem>>, vector<1x8x128xbf16>,
    %c7_i32 = arith.constant 7 : i32
    %279 = arith.index_cast %c7_i32 : i32 to index
    %c0_80 = arith.constant 0 : index
    %c0_81 = arith.constant 0 : index
    %280 = vector.load %arg8[%279, %c0_80, %c0_81] : memref<8x8x512xbf16, #tpu.memory_space<vmem>>, vector<1x8x512xbf16>
    %281 = vector.shape_cast %280 : vector<1x8x512xbf16> to vector<8x512xbf16>
    %282 = arith.extf %281 : vector<8x512xbf16> to vector<8x512xf32>
    %283 = arith.truncf %273 : vector<8x128xf32> to vector<8x128xbf16>
    %c0_82 = arith.constant 0 : index
    %c0_83 = arith.constant 0 : index
    %284 = vector.load %arg3[%c0_82, %c0_83] : memref<128x512xbf16, #tpu.memory_space<vmem>>, vector<128x512xbf16>
    %cst_84 = arith.constant dense<0.000000e+00> : vector<8x512xf32>
    %285 = tpu.matmul %283, %284, %cst_84 {dimension_numbers = #tpu.dot_dimension_numbers<[1], [0], [0], [1], [0, 0, 1, 1], [], []>} : vector<8x128xbf16>, vector<128x512xbf16>, vector<8x512xf32> -> vector<8x512xf32>
    %286 = arith.addf %282, %285 : vector<8x512xf32>
    %287 = vector.extract_strided_slice %286 {offsets = [0, 0], sizes = [8, 128], strides = [1, 1]} : vector<8x512xf32> to vector<8x128xf32>
    %288 = arith.negf %287 : vector<8x128xf32>
    %289 = math.exp %288 : vector<8x128xf32>
    %cst_85 = arith.constant 1.000000e+00 : f32
    %290 = vector.broadcast %cst_85 : f32 to vector<8x128xf32>
    %291 = arith.addf %290, %289 : vector<8x128xf32>
    %292 = arith.divf %290, %291 : vector<8x128xf32>
    %293 = vector.extract_strided_slice %286 {offsets = [0, 128], sizes = [8, 128], strides = [1, 1]} : vector<8x512xf32> to vector<8x128xf32>
    %294 = arith.negf %293 : vector<8x128xf32>
    %295 = math.exp %294 : vector<8x128xf32>
    %cst_86 = arith.constant 1.000000e+00 : f32
    %296 = vector.broadcast %cst_86 : f32 to vector<8x128xf32>
    %297 = arith.addf %296, %295 : vector<8x128xf32>
    %298 = arith.divf %296, %297 : vector<8x128xf32>
    %299 = vector.extract_strided_slice %286 {offsets = [0, 256], sizes = [8, 128], strides = [1, 1]} : vector<8x512xf32> to vector<8x128xf32>
    %300 = math.tanh %299 : vector<8x128xf32>
    %301 = vector.extract_strided_slice %286 {offsets = [0, 384], sizes = [8, 128], strides = [1, 1]} : vector<8x512xf32> to vector<8x128xf32>
    %302 = arith.negf %301 : vector<8x128xf32>
    %303 = math.exp %302 : vector<8x128xf32>
    %cst_87 = arith.constant 1.000000e+00 : f32
    %304 = vector.broadcast %cst_87 : f32 to vector<8x128xf32>
    %305 = arith.addf %304, %303 : vector<8x128xf32>
    %306 = arith.divf %304, %305 : vector<8x128xf32>
    %307 = arith.mulf %298, %271 : vector<8x128xf32>
    %308 = arith.mulf %292, %300 : vector<8x128xf32>
    %309 = arith.addf %307, %308 : vector<8x128xf32>
    %310 = math.tanh %309 : vector<8x128xf32>
    %311 = arith.mulf %306, %310 : vector<8x128xf32>
    %312 = arith.truncf %311 : vector<8x128xf32> to vector<8x128xbf16>
    %313 = arith.index_cast %c7_i32 : i32 to index
    %c0_88 = arith.constant 0 : index
    %c0_89 = arith.constant 0 : index
    %314 = vector.load %arg9[%313, %c0_88, %c0_89] : memref<8x8x128xbf16, #tpu.memory_space<vmem>>, vector<1x8x128xbf16>
    %315 = vector.shape_cast %314 : vector<1x8x128xbf16> to vector<8x128xbf16>
    %316 = vector.shape_cast %312 : vector<8x128xbf16> to vector<1x8x128xbf16>
    tpu.vector_store %arg9[%313, %c0_88, %c0_89], %316 {strides = array<i32>} : memref<8x8x128xbf16, #tpu.memory_space<vmem>>, vector<1x8x128xbf16>,
    %c8_i32 = arith.constant 8 : i32
    %c0_90 = arith.constant 0 : index
    %c0_91 = arith.constant 0 : index
    %c0_92 = arith.constant 0 : index
    %317 = vector.load %arg9[%c0_90, %c0_91, %c0_92] : memref<8x8x128xbf16, #tpu.memory_space<vmem>>, vector<8x8x128xbf16>
    %318 = arith.extf %317 : vector<8x8x128xbf16> to vector<8x8x128xf32>
    %319 = vector.shape_cast %318 : vector<8x8x128xf32> to vector<64x128xf32>
    %320 = arith.truncf %319 : vector<64x128xf32> to vector<64x128xbf16>
    %c0_93 = arith.constant 0 : index
    %c0_94 = arith.constant 0 : index
    %321 = vector.load %arg5[%c0_93, %c0_94] : memref<128x128xbf16, #tpu.memory_space<vmem>>, vector<128x128xbf16>
    %cst_95 = arith.constant dense<0.000000e+00> : vector<64x128xf32>
    %322 = tpu.matmul %320, %321, %cst_95 {dimension_numbers = #tpu.dot_dimension_numbers<[1], [0], [0], [1], [0, 0, 1, 1], [], []>} : vector<64x128xbf16>, vector<128x128xbf16>, vector<64x128xf32> -> vector<64x128xf32>
    %c0_96 = arith.constant 0 : index
    %c0_97 = arith.constant 0 : index
    %323 = vector.load %arg6[%c0_96, %c0_97] : memref<1x128xf32, #tpu.memory_space<vmem>>, vector<1x128xf32>
    %324 = vector.broadcast %323 : vector<1x128xf32> to vector<64x128xf32>
    %325 = arith.addf %322, %324 : vector<64x128xf32>
    %326 = vector.shape_cast %325 : vector<64x128xf32> to vector<8x8x128xf32>
    %c0_98 = arith.constant 0 : index
    %c0_99 = arith.constant 0 : index
    %c0_100 = arith.constant 0 : index
    %327 = vector.load %arg7[%c0_98, %c0_99, %c0_100] : memref<8x8x128xf32, #tpu.memory_space<vmem>>, vector<8x8x128xf32>
    tpu.vector_store %arg7[%c0_98, %c0_99, %c0_100], %326 {strides = array<i32>} : memref<8x8x128xf32, #tpu.memory_space<vmem>>, vector<8x8x128xf32>,
    return
  }
  func.func @transform_0(%arg0: i32) -> (i32, i32, i32) {
    %c0_i32 = arith.constant 0 : i32
    %c0_i32_0 = arith.constant 0 : i32
    %c0_i32_1 = arith.constant 0 : i32
    return %c0_i32, %arg0, %c0_i32_0 : i32, i32, i32
  }
  func.func @transform_1(%arg0: i32) -> (i32, i32) {
    %c0_i32 = arith.constant 0 : i32
    %c0_i32_0 = arith.constant 0 : i32
    %c0_i32_1 = arith.constant 0 : i32
    return %c0_i32, %c0_i32_0 : i32, i32
  }
  func.func @transform_2(%arg0: i32) -> (i32, i32) {
    %c0_i32 = arith.constant 0 : i32
    %c0_i32_0 = arith.constant 0 : i32
    %c0_i32_1 = arith.constant 0 : i32
    return %c0_i32, %c0_i32_0 : i32, i32
  }
  func.func @transform_3(%arg0: i32) -> (i32, i32) {
    %c0_i32 = arith.constant 0 : i32
    %c0_i32_0 = arith.constant 0 : i32
    %c0_i32_1 = arith.constant 0 : i32
    return %c0_i32, %c0_i32_0 : i32, i32
  }
  func.func @transform_4(%arg0: i32) -> (i32, i32) {
    %c0_i32 = arith.constant 0 : i32
    %c0_i32_0 = arith.constant 0 : i32
    %c0_i32_1 = arith.constant 0 : i32
    return %c0_i32, %c0_i32_0 : i32, i32
  }
  func.func @transform_5(%arg0: i32) -> (i32, i32) {
    %c0_i32 = arith.constant 0 : i32
    %c0_i32_0 = arith.constant 0 : i32
    %c0_i32_1 = arith.constant 0 : i32
    return %c0_i32, %c0_i32_0 : i32, i32
  }
  func.func @transform_6(%arg0: i32) -> (i32, i32, i32) {
    %c0_i32 = arith.constant 0 : i32
    %c0_i32_0 = arith.constant 0 : i32
    %c0_i32_1 = arith.constant 0 : i32
    return %c0_i32, %arg0, %c0_i32_0 : i32, i32, i32
  }
}

</mosaic_0001>

<llo_original>
// kernel: tpu_custom_call.1
$region0: #{tpu_custom_call.1}
  #allocation0 [shape = 'u32[]', space=smem, size = 0x4, offset = 0x4, fixed_abs, tag = 'smem constant byte address 0x4 - core index']
  #allocation1 [shape = 'u32[72,128]{1,0:T(1,128)}', space=vmem, size = 0x9000, scoped, tag = 'internal scratch']
  #allocation2 [shape = 'bf16[8,8,512]{2,1,0:T(8,128)(2,1)}', space=vmem, size = 0x10000, scoped, tag = 'scratch operand']
  #allocation3 [shape = 'bf16[8,8,128]{2,1,0:T(8,128)(2,1)}', space=vmem, size = 0x4000, scoped, tag = 'scratch operand']
  %s0 = inlined_call_operand.hbm [shape: bf16[8,8,32], index: 0, kind: input, shape index: {}]
  %s1 = inlined_call_operand.hbm [shape: bf16[32,512], index: 1, kind: input, shape index: {}]
  %s2 = inlined_call_operand.hbm [shape: bf16[128,512], index: 2, kind: input, shape index: {}]
  %s3 = inlined_call_operand.hbm [shape: f32[1,512], index: 3, kind: input, shape index: {}]
  %s4 = inlined_call_operand.hbm [shape: bf16[128,128], index: 4, kind: input, shape index: {}]
  %s5 = inlined_call_operand.vmem [shape: f32[1,128], index: 5, kind: input, shape index: {}]
  %s6 = inlined_call_operand.hbm [shape: f32[8,8,128], index: 6, kind: output, shape index: {}]
  %s7 = sld [smem:[#allocation0]]
  $region54: #{tpu_custom_call.1} parent=0
    _
  %s9 = ssub.s32 1, %s7
  %s10 = scalar_select 0, %s9, %s7
  $region1: #{tpu_custom_call.1} parent=0
    #allocation4 [shape = 'u8[16384]{0}', space=vmem, size = 0x4000, scoped, tag = 'input window, operand 0, single buffered']
    #allocation5 [shape = 's32[1]{0}', space=sflag, size = 0x4, scoped, tag = 'scoped memory for tpu_custom_call.1']
    #allocation6 [shape = 's32[1]{0}', space=sflag, size = 0x4, scoped, tag = 'scoped memory for tpu_custom_call.1']
    #allocation7 [shape = 'u8[32768]{0}', space=vmem, size = 0x8000, scoped, tag = 'input window, operand 1, single buffered']
    #allocation8 [shape = 's32[1]{0}', space=sflag, size = 0x4, scoped, tag = 'scoped memory for tpu_custom_call.1']
    #allocation9 [shape = 'u8[131072]{0}', space=vmem, size = 0x20000, scoped, tag = 'input window, operand 2, single buffered']
    #allocation10 [shape = 'u8[2048]{0}', space=vmem, size = 0x800, scoped, tag = 'input window, operand 3, single buffered']
    #allocation11 [shape = 's32[1]{0}', space=sflag, size = 0x4, scoped, tag = 'scoped memory for tpu_custom_call.1']
    #allocation12 [shape = 'u8[32768]{0}', space=vmem, size = 0x8000, scoped, tag = 'input window, operand 4, single buffered']
    #allocation13 [shape = 'u8[32768]{0}', space=vmem, size = 0x8000, scoped, tag = 'output window, operand 0, single buffered']
    %11 = vsyncpa [#allocation5], 0
    %12 = vsyncpa [#allocation8], 0
    %13 = vsyncpa [#allocation11], 0
    %14 = vsyncpa [#allocation6], 0
    // Predicated region
    $region2: #{tpu_custom_call.1} parent=1 // pred_check
      _
    $region3: #{tpu_custom_call.1} parent=1 // pred_check_branch
      %16 = sbr.rel (0) target = $region5
    $region4: #{tpu_custom_call.1} parent=1 // pred_region
      %18 = vsyncadd [#allocation5], 0
      %s19 = sshll.u32 %s0, 4
      %s20 = int_to_ptr.hbm [resolvable:$true] %s19
      %s21 = sshll.u32 [#allocation4], 4
      %s22 = int_to_ptr.vmem [resolvable:$true] %s21
      %27 = dma.hbm_to_vmem [thread:$0]  %s20, 512, %s22, [#allocation5], 64, 64, 4
    $region5: #{tpu_custom_call.1} parent=1 // pred_fallthru
      _
    // Predicated region
    $region6: #{tpu_custom_call.1} parent=1 // pred_check
      _
    $region7: #{tpu_custom_call.1} parent=1 // pred_check_branch
      %29 = sbr.rel (0) target = $region9
    $region8: #{tpu_custom_call.1} parent=1 // pred_region
      %31 = vsyncadd [#allocation8], 0
      %s32 = sshll.u32 %s1, 4
      %s33 = int_to_ptr.hbm [resolvable:$true] %s32
      %s34 = sshll.u32 [#allocation7], 4
      %s35 = int_to_ptr.vmem [resolvable:$true] %s34
      %40 = dma.hbm_to_vmem [thread:$0]  %s33, 1024, %s35, [#allocation8], 256, 256, 16
    $region9: #{tpu_custom_call.1} parent=1 // pred_fallthru
      _
    // Predicated region
    $region10: #{tpu_custom_call.1} parent=1 // pred_check
      _
    $region11: #{tpu_custom_call.1} parent=1 // pred_check_branch
      %42 = sbr.rel (0) target = $region13
    $region12: #{tpu_custom_call.1} parent=1 // pred_region
      %44 = vsyncadd [#allocation8], 0
      %s45 = sshll.u32 %s2, 4
      %s46 = int_to_ptr.hbm [resolvable:$true] %s45
      %s47 = sshll.u32 [#allocation9], 4
      %s48 = int_to_ptr.vmem [resolvable:$true] %s47
      %53 = dma.hbm_to_vmem [thread:$0]  %s46, 4096, %s48, [#allocation8], 256, 256, 16
    $region13: #{tpu_custom_call.1} parent=1 // pred_fallthru
      _
    // Predicated region
    $region14: #{tpu_custom_call.1} parent=1 // pred_check
      _
    $region15: #{tpu_custom_call.1} parent=1 // pred_check_branch
      %55 = sbr.rel (0) target = $region17
    $region16: #{tpu_custom_call.1} parent=1 // pred_region
      %57 = vsyncadd [#allocation11], 0
      %s59 = sshll.u32 %s3, 4
      %s60 = int_to_ptr.hbm [resolvable:$true] %s59
      %s61 = sshll.u32 [#allocation10], 4
      %s62 = int_to_ptr.vmem [resolvable:$true] %s61
      %64 = dma.hbm_to_vmem [thread:$0]  %s60, 64, %s62, [#allocation11]
    $region17: #{tpu_custom_call.1} parent=1 // pred_fallthru
      _
    // Predicated region
    $region18: #{tpu_custom_call.1} parent=1 // pred_check
      _
    $region19: #{tpu_custom_call.1} parent=1 // pred_check_branch
      %66 = sbr.rel (0) target = $region21
    $region20: #{tpu_custom_call.1} parent=1 // pred_region
      %68 = vsyncadd [#allocation11], 0
      %s69 = sshll.u32 %s4, 4
      %s70 = int_to_ptr.hbm [resolvable:$true] %s69
      %s71 = sshll.u32 [#allocation12], 4
      %s72 = int_to_ptr.vmem [resolvable:$true] %s71
      %77 = dma.hbm_to_vmem [thread:$0]  %s70, 1024, %s72, [#allocation11], 64, 64, 4
    $region21: #{tpu_custom_call.1} parent=1 // pred_fallthru
      _
    // Predicated region
    $region22: #{tpu_custom_call.1} parent=1 // pred_check
      _
    $region23: #{tpu_custom_call.1} parent=1 // pred_check_branch
      %79 = sbr.rel (0) target = $region25
    $region24: #{tpu_custom_call.1} parent=1 // pred_region
      _
    $region25: #{tpu_custom_call.1} parent=1 // pred_fallthru
      _
    // Predicated region
    $region26: #{tpu_custom_call.1} parent=1 // pred_check
      _
    $region27: #{tpu_custom_call.1} parent=1 // pred_check_branch
      %81 = sbr.rel (0) target = $region29
    $region28: #{tpu_custom_call.1} parent=1 // pred_region
      %83 = dma.done [#allocation5], 512
    $region29: #{tpu_custom_call.1} parent=1 // pred_fallthru
      _
    // Predicated region
    $region30: #{tpu_custom_call.1} parent=1 // pred_check
      _
    $region31: #{tpu_custom_call.1} parent=1 // pred_check_branch
      %85 = sbr.rel (0) target = $region33
    $region32: #{tpu_custom_call.1} parent=1 // pred_region
      %87 = dma.done [#allocation8], 1024
    $region33: #{tpu_custom_call.1} parent=1 // pred_fallthru
      _
    // Predicated region
    $region34: #{tpu_custom_call.1} parent=1 // pred_check
      _
    $region35: #{tpu_custom_call.1} parent=1 // pred_check_branch
      %89 = sbr.rel (0) target = $region37
    $region36: #{tpu_custom_call.1} parent=1 // pred_region
      %91 = dma.done [#allocation8], 4096
    $region37: #{tpu_custom_call.1} parent=1 // pred_fallthru
      _
    // Predicated region
    $region38: #{tpu_custom_call.1} parent=1 // pred_check
      _
    $region39: #{tpu_custom_call.1} parent=1 // pred_check_branch
      %93 = sbr.rel (0) target = $region41
    $region40: #{tpu_custom_call.1} parent=1 // pred_region
      %95 = dma.done [#allocation11], 64
    $region41: #{tpu_custom_call.1} parent=1 // pred_fallthru
      _
    // Predicated region
    $region42: #{tpu_custom_call.1} parent=1 // pred_check
      _
    $region43: #{tpu_custom_call.1} parent=1 // pred_check_branch
      %97 = sbr.rel (0) target = $region45
    $region44: #{tpu_custom_call.1} parent=1 // pred_region
      %99 = dma.done [#allocation11], 1024
    $region45: #{tpu_custom_call.1} parent=1 // pred_fallthru
      _
    %v101 = vld [vmem:[#allocation4] sm:$0xf]
    %v102 = vld [vmem:[#allocation4 + $0x4] sm:$0xf]
    %v103 = vld [vmem:[#allocation4 + $0x8] sm:$0xf]
    %v104 = vld [vmem:[#allocation4 + $0xc] sm:$0xf]
    %v105 = vld [vmem:[#allocation4 + $0x10] sm:$0xf]
    %v106 = vld [vmem:[#allocation4 + $0x14] sm:$0xf]
    %v107 = vld [vmem:[#allocation4 + $0x18] sm:$0xf]
    %v108 = vld [vmem:[#allocation4 + $0x1c] sm:$0xf]
    %v109 = vunpack.c.l.bf16 %v101
    %v110 = vunpack.c.l.bf16 %v102
    %v111 = vunpack.c.l.bf16 %v103
    %v112 = vunpack.c.l.bf16 %v104
    %v113 = vunpack.c.l.bf16 %v105
    %v114 = vunpack.c.l.bf16 %v106
    %v115 = vunpack.c.l.bf16 %v107
    %v116 = vunpack.c.l.bf16 %v108
    %v117 = vpack.c.bf16 %v110, %v109
    %v118 = vpack.c.bf16 %v112, %v111
    %v119 = vpack.c.bf16 %v114, %v113
    %v120 = vpack.c.bf16 %v116, %v115
    %v121 = vld [vmem:[#allocation7] sm:$0xff]
    %v122 = vld [vmem:[#allocation7 + $0x8] sm:$0xff]
    %v123 = vld [vmem:[#allocation7 + $0x10] sm:$0xff]
    %v124 = vld [vmem:[#allocation7 + $0x18] sm:$0xff]
    %v125 = vld [vmem:[#allocation7 + $0x20] sm:$0xff]
    %v126 = vld [vmem:[#allocation7 + $0x28] sm:$0xff]
    %v127 = vld [vmem:[#allocation7 + $0x30] sm:$0xff]
    %v128 = vld [vmem:[#allocation7 + $0x38] sm:$0xff]
    %v129 = vld [vmem:[#allocation10] sm:$0xf]
    %v131 = vperm.slane %v129, 0
    %v132 = vperm.slane %v129, 1
    %v133 = vperm.slane %v129, 2
    %v134 = vperm.slane %v129, 3
    %v147 = vunpack.c.l.b16 %v121
    %v148 = vunpack.c.h.b16 %v121
    %v149 = vunpack.c.l.b16 %v122
    %v150 = vunpack.c.h.b16 %v122
    %v151 = vunpack.c.l.b16 %v123
    %v152 = vunpack.c.h.b16 %v123
    %v153 = vunpack.c.l.b16 %v124
    %v154 = vunpack.c.h.b16 %v124
    %v155 = vunpack.c.l.b16 %v125
    %v156 = vunpack.c.h.b16 %v125
    %v157 = vunpack.c.l.b16 %v126
    %v158 = vunpack.c.h.b16 %v126
    %v159 = vunpack.c.l.b16 %v127
    %v160 = vunpack.c.h.b16 %v127
    %v161 = vunpack.c.l.b16 %v128
    %v162 = vunpack.c.h.b16 %v128
    %v163 = vpack.c.b16 %v151, %v147
    %v164 = vpack.c.b16 %v152, %v148
    %v165 = vpack.c.b16 %v153, %v149
    %v166 = vpack.c.b16 %v154, %v150
    %v167 = vpack.c.b16 %v159, %v155
    %v168 = vpack.c.b16 %v160, %v156
    %v169 = vpack.c.b16 %v161, %v157
    %v170 = vpack.c.b16 %v162, %v158
    %vm179 = vcmask 261120
    %v181 = vsel %vm179, %v117, 0
    %v184 = vsel %vm179, %v118, 0
    %v187 = vsel %vm179, %v119, 0
    %v190 = vsel %vm179, %v120, 0
    %192 = vmatpush.bf16.msra.mxu0 0
    %193 = vmatpush.bf16.msra.mxu0 0
    %194 = vmatpush.bf16.msra.mxu0 0
    %195 = vmatpush.bf16.msra.mxu0 0
    %196 = vmatpush.bf16.msra.mxu0 0
    %197 = vmatpush.bf16.msra.mxu0 0
    %198 = vmatpush.bf16.msra.mxu0 %v167
    %199 = vmatpush.bf16.msra.mxu0 %v163
    %200 = vmatmul.bf16.gmra.mxu0 %v181
    %v201 = vpop.f32.mrf.mxu0
    %v202 = vadd.f32 %v131, %v201
    %v203 = vpop.f32.mrf.mxu0
    %v204 = vadd.f32 %v131, %v203
    %205 = vmatmul.bf16.gmra.mxu0 %v184
    %v206 = vpop.f32.mrf.mxu0
    %v207 = vadd.f32 %v131, %v206
    %v208 = vpop.f32.mrf.mxu0
    %v209 = vadd.f32 %v131, %v208
    %210 = vmatmul.bf16.gmra.mxu0 %v187
    %v211 = vpop.f32.mrf.mxu0
    %v212 = vadd.f32 %v131, %v211
    %v213 = vpop.f32.mrf.mxu0
    %v214 = vadd.f32 %v131, %v213
    %215 = vmatmul.bf16.gmra.mxu0 %v190
    %v216 = vpop.f32.mrf.mxu0
    %v217 = vadd.f32 %v131, %v216
    %v218 = vpop.f32.mrf.mxu0
    %v219 = vadd.f32 %v131, %v218
    %220 = vdwg.mxu0
    %221 = vmatpush.bf16.msra.mxu0 0
    %222 = vmatpush.bf16.msra.mxu0 0
    %223 = vmatpush.bf16.msra.mxu0 0
    %224 = vmatpush.bf16.msra.mxu0 0
    %225 = vmatpush.bf16.msra.mxu0 0
    %226 = vmatpush.bf16.msra.mxu0 0
    %227 = vmatpush.bf16.msra.mxu0 %v168
    %228 = vmatpush.bf16.msra.mxu0 %v164
    %229 = vmatmul.bf16.gmra.mxu0 %v181
    %v230 = vpop.f32.mrf.mxu0
    %v231 = vadd.f32 %v132, %v230
    %v232 = vpop.f32.mrf.mxu0
    %v233 = vadd.f32 %v132, %v232
    %234 = vmatmul.bf16.gmra.mxu0 %v184
    %v235 = vpop.f32.mrf.mxu0
    %v236 = vadd.f32 %v132, %v235
    %v237 = vpop.f32.mrf.mxu0
    %v238 = vadd.f32 %v132, %v237
    %239 = vmatmul.bf16.gmra.mxu0 %v187
    %v240 = vpop.f32.mrf.mxu0
    %v241 = vadd.f32 %v132, %v240
    %v242 = vpop.f32.mrf.mxu0
    %v243 = vadd.f32 %v132, %v242
    %244 = vmatmul.bf16.gmra.mxu0 %v190
    %v245 = vpop.f32.mrf.mxu0
    %v246 = vadd.f32 %v132, %v245
    %v247 = vpop.f32.mrf.mxu0
    %v248 = vadd.f32 %v132, %v247
    %249 = vdwg.mxu0
    %250 = vmatpush.bf16.msra.mxu0 0
    %251 = vmatpush.bf16.msra.mxu0 0
    %252 = vmatpush.bf16.msra.mxu0 0
    %253 = vmatpush.bf16.msra.mxu0 0
    %254 = vmatpush.bf16.msra.mxu0 0
    %255 = vmatpush.bf16.msra.mxu0 0
    %256 = vmatpush.bf16.msra.mxu0 %v169
    %257 = vmatpush.bf16.msra.mxu0 %v165
    %258 = vmatmul.bf16.gmra.mxu0 %v181
    %v259 = vpop.f32.mrf.mxu0
    %v260 = vadd.f32 %v133, %v259
    %v261 = vpop.f32.mrf.mxu0
    %v262 = vadd.f32 %v133, %v261
    %263 = vmatmul.bf16.gmra.mxu0 %v184
    %v264 = vpop.f32.mrf.mxu0
    %v265 = vadd.f32 %v133, %v264
    %v266 = vpop.f32.mrf.mxu0
    %v267 = vadd.f32 %v133, %v266
    %268 = vmatmul.bf16.gmra.mxu0 %v187
    %v269 = vpop.f32.mrf.mxu0
    %v270 = vadd.f32 %v133, %v269
    %v271 = vpop.f32.mrf.mxu0
    %v272 = vadd.f32 %v133, %v271
    %273 = vmatmul.bf16.gmra.mxu0 %v190
    %v274 = vpop.f32.mrf.mxu0
    %v275 = vadd.f32 %v133, %v274
    %v276 = vpop.f32.mrf.mxu0
    %v277 = vadd.f32 %v133, %v276
    %278 = vdwg.mxu0
    %279 = vmatpush.bf16.msra.mxu0 0
    %280 = vmatpush.bf16.msra.mxu0 0
    %281 = vmatpush.bf16.msra.mxu0 0
    %282 = vmatpush.bf16.msra.mxu0 0
    %283 = vmatpush.bf16.msra.mxu0 0
    %284 = vmatpush.bf16.msra.mxu0 0
    %285 = vmatpush.bf16.msra.mxu0 %v170
    %286 = vmatpush.bf16.msra.mxu0 %v166
    %287 = vmatmul.bf16.gmra.mxu0 %v181
    %v288 = vpop.f32.mrf.mxu0
    %v289 = vadd.f32 %v134, %v288
    %v290 = vpop.f32.mrf.mxu0
    %v291 = vadd.f32 %v134, %v290
    %292 = vmatmul.bf16.gmra.mxu0 %v184
    %v293 = vpop.f32.mrf.mxu0
    %v294 = vadd.f32 %v134, %v293
    %v295 = vpop.f32.mrf.mxu0
    %v296 = vadd.f32 %v134, %v295
    %297 = vmatmul.bf16.gmra.mxu0 %v187
    %v298 = vpop.f32.mrf.mxu0
    %v299 = vadd.f32 %v134, %v298
    %v300 = vpop.f32.mrf.mxu0
    %v301 = vadd.f32 %v134, %v300
    %302 = vmatmul.bf16.gmra.mxu0 %v190
    %v303 = vpop.f32.mrf.mxu0
    %v304 = vadd.f32 %v134, %v303
    %v305 = vpop.f32.mrf.mxu0
    %v306 = vadd.f32 %v134, %v305
    %307 = vdwg.mxu0
    %v308 = vpack.c.bf16 %v231, %v202
    %v309 = vpack.c.bf16 %v289, %v260
    %v310 = vpack.c.bf16 %v233, %v204
    %v311 = vpack.c.bf16 %v291, %v262
    %v312 = vpack.c.bf16 %v236, %v207
    %v313 = vpack.c.bf16 %v294, %v265
    %v314 = vpack.c.bf16 %v238, %v209
    %v315 = vpack.c.bf16 %v296, %v267
    %v316 = vpack.c.bf16 %v241, %v212
    %v317 = vpack.c.bf16 %v299, %v270
    %v318 = vpack.c.bf16 %v243, %v214
    %v319 = vpack.c.bf16 %v301, %v272
    %v320 = vpack.c.bf16 %v246, %v217
    %v321 = vpack.c.bf16 %v304, %v275
    %v322 = vpack.c.bf16 %v248, %v219
    %v323 = vpack.c.bf16 %v306, %v277
    %324 = vst [vmem:[#allocation2] sm:$0xff] %v308
    %325 = vst [vmem:[#allocation2 + $0x8] sm:$0xff] %v309
    %326 = vst [vmem:[#allocation2 + $0x10] sm:$0xff] %v310
    %327 = vst [vmem:[#allocation2 + $0x18] sm:$0xff] %v311
    %328 = vst [vmem:[#allocation2 + $0x20] sm:$0xff] %v312
    %329 = vst [vmem:[#allocation2 + $0x28] sm:$0xff] %v313
    %330 = vst [vmem:[#allocation2 + $0x30] sm:$0xff] %v314
    %331 = vst [vmem:[#allocation2 + $0x38] sm:$0xff] %v315
    %332 = vst [vmem:[#allocation2 + $0x40] sm:$0xff] %v316
    %333 = vst [vmem:[#allocation2 + $0x48] sm:$0xff] %v317
    %334 = vst [vmem:[#allocation2 + $0x50] sm:$0xff] %v318
    %335 = vst [vmem:[#allocation2 + $0x58] sm:$0xff] %v319
    %336 = vst [vmem:[#allocation2 + $0x60] sm:$0xff] %v320
    %337 = vst [vmem:[#allocation2 + $0x68] sm:$0xff] %v321
    %338 = vst [vmem:[#allocation2 + $0x70] sm:$0xff] %v322
    %339 = vst [vmem:[#allocation2 + $0x78] sm:$0xff] %v323
    %v340 = vld [vmem:[#allocation2] sm:$0xff]
    %v341 = vld [vmem:[#allocation2 + $0x8] sm:$0xff]
    %v342 = vunpack.c.l.bf16 %v340
    %v343 = vunpack.c.h.bf16 %v340
    %v344 = vunpack.c.l.bf16 %v341
    %v345 = vunpack.c.h.bf16 %v341
    %v346 = vld [vmem:[#allocation9] sm:$0xff]
    %v347 = vld [vmem:[#allocation9 + $0x8] sm:$0xff]
    %v348 = vld [vmem:[#allocation9 + $0x10] sm:$0xff]
    %v349 = vld [vmem:[#allocation9 + $0x18] sm:$0xff]
    %v350 = vld [vmem:[#allocation9 + $0x20] sm:$0xff]
    %v351 = vld [vmem:[#allocation9 + $0x28] sm:$0xff]
    %v352 = vld [vmem:[#allocation9 + $0x30] sm:$0xff]
    %v353 = vld [vmem:[#allocation9 + $0x38] sm:$0xff]
    %v354 = vld [vmem:[#allocation9 + $0x40] sm:$0xff]
    %v355 = vld [vmem:[#allocation9 + $0x48] sm:$0xff]
    %v356 = vld [vmem:[#allocation9 + $0x50] sm:$0xff]
    %v357 = vld [vmem:[#allocation9 + $0x58] sm:$0xff]
    %v358 = vld [vmem:[#allocation9 + $0x60] sm:$0xff]
    %v359 = vld [vmem:[#allocation9 + $0x68] sm:$0xff]
    %v360 = vld [vmem:[#allocation9 + $0x70] sm:$0xff]
    %v361 = vld [vmem:[#allocation9 + $0x78] sm:$0xff]
    %v362 = vld [vmem:[#allocation9 + $0x80] sm:$0xff]
    %v363 = vld [vmem:[#allocation9 + $0x88] sm:$0xff]
    %v364 = vld [vmem:[#allocation9 + $0x90] sm:$0xff]
    %v365 = vld [vmem:[#allocation9 + $0x98] sm:$0xff]
    %v366 = vld [vmem:[#allocation9 + $0xa0] sm:$0xff]
    %v367 = vld [vmem:[#allocation9 + $0xa8] sm:$0xff]
    %v368 = vld [vmem:[#allocation9 + $0xb0] sm:$0xff]
    %v369 = vld [vmem:[#allocation9 + $0xb8] sm:$0xff]
    %v370 = vld [vmem:[#allocation9 + $0xc0] sm:$0xff]
    %v371 = vld [vmem:[#allocation9 + $0xc8] sm:$0xff]
    %v372 = vld [vmem:[#allocation9 + $0xd0] sm:$0xff]
    %v373 = vld [vmem:[#allocation9 + $0xd8] sm:$0xff]
    %v374 = vld [vmem:[#allocation9 + $0xe0] sm:$0xff]
    %v375 = vld [vmem:[#allocation9 + $0xe8] sm:$0xff]
    %v376 = vld [vmem:[#allocation9 + $0xf0] sm:$0xff]
    %v377 = vld [vmem:[#allocation9 + $0xf8] sm:$0xff]
    %v410 = vunpack.c.l.b16 %v346
    %v411 = vunpack.c.h.b16 %v346
    %v412 = vunpack.c.l.b16 %v347
    %v413 = vunpack.c.h.b16 %v347
    %v414 = vunpack.c.l.b16 %v348
    %v415 = vunpack.c.h.b16 %v348
    %v416 = vunpack.c.l.b16 %v349
    %v417 = vunpack.c.h.b16 %v349
    %v418 = vunpack.c.l.b16 %v350
    %v419 = vunpack.c.h.b16 %v350
    %v420 = vunpack.c.l.b16 %v351
    %v421 = vunpack.c.h.b16 %v351
    %v422 = vunpack.c.l.b16 %v352
    %v423 = vunpack.c.h.b16 %v352
    %v424 = vunpack.c.l.b16 %v353
    %v425 = vunpack.c.h.b16 %v353
    %v426 = vunpack.c.l.b16 %v354
    %v427 = vunpack.c.h.b16 %v354
    %v428 = vunpack.c.l.b16 %v355
    %v429 = vunpack.c.h.b16 %v355
    %v430 = vunpack.c.l.b16 %v356
    %v431 = vunpack.c.h.b16 %v356
    %v432 = vunpack.c.l.b16 %v357
    %v433 = vunpack.c.h.b16 %v357
    %v434 = vunpack.c.l.b16 %v358
    %v435 = vunpack.c.h.b16 %v358
    %v436 = vunpack.c.l.b16 %v359
    %v437 = vunpack.c.h.b16 %v359
    %v438 = vunpack.c.l.b16 %v360
    %v439 = vunpack.c.h.b16 %v360
    %v440 = vunpack.c.l.b16 %v361
    %v441 = vunpack.c.h.b16 %v361
    %v442 = vunpack.c.l.b16 %v362
    %v443 = vunpack.c.h.b16 %v362
    %v444 = vunpack.c.l.b16 %v363
    %v445 = vunpack.c.h.b16 %v363
    %v446 = vunpack.c.l.b16 %v364
    %v447 = vunpack.c.h.b16 %v364
    %v448 = vunpack.c.l.b16 %v365
    %v449 = vunpack.c.h.b16 %v365
    %v450 = vunpack.c.l.b16 %v366
    %v451 = vunpack.c.h.b16 %v366
    %v452 = vunpack.c.l.b16 %v367
    %v453 = vunpack.c.h.b16 %v367
    %v454 = vunpack.c.l.b16 %v368
    %v455 = vunpack.c.h.b16 %v368
    %v456 = vunpack.c.l.b16 %v369
    %v457 = vunpack.c.h.b16 %v369
    %v458 = vunpack.c.l.b16 %v370
    %v459 = vunpack.c.h.b16 %v370
    %v460 = vunpack.c.l.b16 %v371
    %v461 = vunpack.c.h.b16 %v371
    %v462 = vunpack.c.l.b16 %v372
    %v463 = vunpack.c.h.b16 %v372
    %v464 = vunpack.c.l.b16 %v373
    %v465 = vunpack.c.h.b16 %v373
    %v466 = vunpack.c.l.b16 %v374
    %v467 = vunpack.c.h.b16 %v374
    %v468 = vunpack.c.l.b16 %v375
    %v469 = vunpack.c.h.b16 %v375
    %v470 = vunpack.c.l.b16 %v376
    %v471 = vunpack.c.h.b16 %v376
    %v472 = vunpack.c.l.b16 %v377
    %v473 = vunpack.c.h.b16 %v377
    %v474 = vpack.c.b16 %v414, %v410
    %v475 = vpack.c.b16 %v415, %v411
    %v476 = vpack.c.b16 %v416, %v412
    %v477 = vpack.c.b16 %v417, %v413
    %v478 = vpack.c.b16 %v422, %v418
    %v479 = vpack.c.b16 %v423, %v419
    %v480 = vpack.c.b16 %v424, %v420
    %v481 = vpack.c.b16 %v425, %v421
    %v482 = vpack.c.b16 %v430, %v426
    %v483 = vpack.c.b16 %v431, %v427
    %v484 = vpack.c.b16 %v432, %v428
    %v485 = vpack.c.b16 %v433, %v429
    %v486 = vpack.c.b16 %v438, %v434
    %v487 = vpack.c.b16 %v439, %v435
    %v488 = vpack.c.b16 %v440, %v436
    %v489 = vpack.c.b16 %v441, %v437
    %v490 = vpack.c.b16 %v446, %v442
    %v491 = vpack.c.b16 %v447, %v443
    %v492 = vpack.c.b16 %v448, %v444
    %v493 = vpack.c.b16 %v449, %v445
    %v494 = vpack.c.b16 %v454, %v450
    %v495 = vpack.c.b16 %v455, %v451
    %v496 = vpack.c.b16 %v456, %v452
    %v497 = vpack.c.b16 %v457, %v453
    %v498 = vpack.c.b16 %v462, %v458
    %v499 = vpack.c.b16 %v463, %v459
    %v500 = vpack.c.b16 %v464, %v460
    %v501 = vpack.c.b16 %v465, %v461
    %v502 = vpack.c.b16 %v470, %v466
    %v503 = vpack.c.b16 %v471, %v467
    %v504 = vpack.c.b16 %v472, %v468
    %v505 = vpack.c.b16 %v473, %v469
    %538 = vmatpush.bf16.msra.mxu0 %v502
    %539 = vmatpush.bf16.msra.mxu0 %v498
    %540 = vmatpush.bf16.msra.mxu0 %v494
    %541 = vmatpush.bf16.msra.mxu0 %v490
    %542 = vmatpush.bf16.msra.mxu0 %v486
    %543 = vmatpush.bf16.msra.mxu0 %v482
    %544 = vmatpush.bf16.msra.mxu0 %v478
    %545 = vmatpush.bf16.msra.mxu0 %v474
    %546 = vmatmul.bf16.gmra.mxu0 0
    %v547 = vpop.f32.mrf.mxu0
    %v548 = vadd.f32 0.0, %v547
    %v549 = vpop.f32.mrf.mxu0
    %550 = vdwg.mxu0
    %551 = vmatpush.bf16.msra.mxu0 %v503
    %552 = vmatpush.bf16.msra.mxu0 %v499
    %553 = vmatpush.bf16.msra.mxu0 %v495
    %554 = vmatpush.bf16.msra.mxu0 %v491
    %555 = vmatpush.bf16.msra.mxu0 %v487
    %556 = vmatpush.bf16.msra.mxu0 %v483
    %557 = vmatpush.bf16.msra.mxu0 %v479
    %558 = vmatpush.bf16.msra.mxu0 %v475
    %559 = vmatmul.bf16.gmra.mxu0 0
    %v560 = vpop.f32.mrf.mxu0
    %v561 = vadd.f32 0.0, %v560
    %v562 = vpop.f32.mrf.mxu0
    %563 = vdwg.mxu0
    %564 = vmatpush.bf16.msra.mxu0 %v504
    %565 = vmatpush.bf16.msra.mxu0 %v500
    %566 = vmatpush.bf16.msra.mxu0 %v496
    %567 = vmatpush.bf16.msra.mxu0 %v492
    %568 = vmatpush.bf16.msra.mxu0 %v488
    %569 = vmatpush.bf16.msra.mxu0 %v484
    %570 = vmatpush.bf16.msra.mxu0 %v480
    %571 = vmatpush.bf16.msra.mxu0 %v476
    %572 = vmatmul.bf16.gmra.mxu0 0
    %v573 = vpop.f32.mrf.mxu0
    %v574 = vadd.f32 0.0, %v573
    %v575 = vpop.f32.mrf.mxu0
    %576 = vdwg.mxu0
    %577 = vmatpush.bf16.msra.mxu0 %v505
    %578 = vmatpush.bf16.msra.mxu0 %v501
    %579 = vmatpush.bf16.msra.mxu0 %v497
    %580 = vmatpush.bf16.msra.mxu0 %v493
    %581 = vmatpush.bf16.msra.mxu0 %v489
    %582 = vmatpush.bf16.msra.mxu0 %v485
    %583 = vmatpush.bf16.msra.mxu0 %v481
    %584 = vmatpush.bf16.msra.mxu0 %v477
    %585 = vmatmul.bf16.gmra.mxu0 0
    %v586 = vpop.f32.mrf.mxu0
    %v587 = vadd.f32 0.0, %v586
    %v588 = vpop.f32.mrf.mxu0
    %589 = vdwg.mxu0
    %v590 = vadd.f32 %v342, %v548
    %v591 = vadd.f32 %v343, %v561
    %v592 = vadd.f32 %v344, %v574
    %v593 = vadd.f32 %v345, %v587
    %v594 = vxor.u32 %v590, 2147483648
    %v595 = vmul.f32 %v594, 1.442695
    %v596 = vpow.pop %v595
    %v597 = vadd.f32 %v596, 1.0
    %v598 = vrcp.pop %v597
    %v599 = vmul.f32 %v597, %v598
    %v600 = vsub.f32 1.0, %v599
    %v601 = vmul.f32 %v598, %v600
    %v602 = vadd.f32 %v598, %v601
    %vm603 = vweird.f32 %v597
    %vm604 = vweird.f32 %v598
    %vm605 = vmor %vm603, %vm604
    %v606 = vsel %vm605, %v598, %v602
    %v607 = vand.u32 2147483647, %v597
    %vm608 = vcmp.eq.f32.partialorder %v607, 8.507059e+37
    %v609 = vand.u32 %v597, 2147483648
    %v610 = vor.u32 1.1754944e-38, %v609
    %v611 = vsel %vm608, %v610, %v606
    %v612 = vmul.f32 1.0, %v611
    %v613 = vxor.u32 %v591, 2147483648
    %v614 = vmul.f32 %v613, 1.442695
    %v615 = vpow.pop %v614
    %v616 = vadd.f32 %v615, 1.0
    %v617 = vrcp.pop %v616
    %v618 = vmul.f32 %v616, %v617
    %v619 = vsub.f32 1.0, %v618
    %v620 = vmul.f32 %v617, %v619
    %v621 = vadd.f32 %v617, %v620
    %vm622 = vweird.f32 %v616
    %vm623 = vweird.f32 %v617
    %vm624 = vmor %vm622, %vm623
    %v625 = vsel %vm624, %v617, %v621
    %v626 = vand.u32 2147483647, %v616
    %vm627 = vcmp.eq.f32.partialorder %v626, 8.507059e+37
    %v628 = vand.u32 %v616, 2147483648
    %v629 = vor.u32 1.1754944e-38, %v628
    %v630 = vsel %vm627, %v629, %v625
    %v631 = vmul.f32 1.0, %v630
    %v632 = vtanh.pop %v592
    %v633 = vxor.u32 %v593, 2147483648
    %v634 = vmul.f32 %v633, 1.442695
    %v635 = vpow.pop %v634
    %v636 = vadd.f32 %v635, 1.0
    %v637 = vrcp.pop %v636
    %v638 = vmul.f32 %v636, %v637
    %v639 = vsub.f32 1.0, %v638
    %v640 = vmul.f32 %v637, %v639
    %v641 = vadd.f32 %v637, %v640
    %vm642 = vweird.f32 %v636
    %vm643 = vweird.f32 %v637
    %vm644 = vmor %vm642, %vm643
    %v645 = vsel %vm644, %v637, %v641
    %v646 = vand.u32 2147483647, %v636
    %vm647 = vcmp.eq.f32.partialorder %v646, 8.507059e+37
    %v648 = vand.u32 %v636, 2147483648
    %v649 = vor.u32 1.1754944e-38, %v648
    %v650 = vsel %vm647, %v649, %v645
    %v651 = vmul.f32 1.0, %v650
    %v652 = vmul.f32 %v631, 0.0
    %v653 = vmul.f32 %v612, %v632
    %v654 = vadd.f32 %v652, %v653
    %v655 = vtanh.pop %v654
    %v656 = vmul.f32 %v651, %v655
    %v657 = vpack.c.bf16 %v656, %v656
    %658 = vst [vmem:[#allocation3] sm:$0xf] %v657
    %s659 = scalar_lea.vmem [#allocation2], 16
    %v660 = vld [vmem:[%s659] sm:$0xff]
    %v661 = vld [vmem:[%s659 + $0x8] sm:$0xff]
    %v662 = vunpack.c.l.bf16 %v660
    %v663 = vunpack.c.h.bf16 %v660
    %v664 = vunpack.c.l.bf16 %v661
    %v665 = vunpack.c.h.bf16 %v661
    %v666 = vld [vmem:[#allocation9] sm:$0xff]
    %v667 = vld [vmem:[#allocation9 + $0x8] sm:$0xff]
    %v668 = vld [vmem:[#allocation9 + $0x10] sm:$0xff]
    %v669 = vld [vmem:[#allocation9 + $0x18] sm:$0xff]
    %v670 = vld [vmem:[#allocation9 + $0x20] sm:$0xff]
    %v671 = vld [vmem:[#allocation9 + $0x28] sm:$0xff]
    %v672 = vld [vmem:[#allocation9 + $0x30] sm:$0xff]
    %v673 = vld [vmem:[#allocation9 + $0x38] sm:$0xff]
    %v674 = vld [vmem:[#allocation9 + $0x40] sm:$0xff]
    %v675 = vld [vmem:[#allocation9 + $0x48] sm:$0xff]
    %v676 = vld [vmem:[#allocation9 + $0x50] sm:$0xff]
    %v677 = vld [vmem:[#allocation9 + $0x58] sm:$0xff]
    %v678 = vld [vmem:[#allocation9 + $0x60] sm:$0xff]
    %v679 = vld [vmem:[#allocation9 + $0x68] sm:$0xff]
    %v680 = vld [vmem:[#allocation9 + $0x70] sm:$0xff]
    %v681 = vld [vmem:[#allocation9 + $0x78] sm:$0xff]
    %v682 = vld [vmem:[#allocation9 + $0x80] sm:$0xff]
    %v683 = vld [vmem:[#allocation9 + $0x88] sm:$0xff]
    %v684 = vld [vmem:[#allocation9 + $0x90] sm:$0xff]
    %v685 = vld [vmem:[#allocation9 + $0x98] sm:$0xff]
    %v686 = vld [vmem:[#allocation9 + $0xa0] sm:$0xff]
    %v687 = vld [vmem:[#allocation9 + $0xa8] sm:$0xff]
    %v688 = vld [vmem:[#allocation9 + $0xb0] sm:$0xff]
    %v689 = vld [vmem:[#allocation9 + $0xb8] sm:$0xff]
    %v690 = vld [vmem:[#allocation9 + $0xc0] sm:$0xff]
    %v691 = vld [vmem:[#allocation9 + $0xc8] sm:$0xff]
    %v692 = vld [vmem:[#allocation9 + $0xd0] sm:$0xff]
    %v693 = vld [vmem:[#allocation9 + $0xd8] sm:$0xff]
    %v694 = vld [vmem:[#allocation9 + $0xe0] sm:$0xff]
    %v695 = vld [vmem:[#allocation9 + $0xe8] sm:$0xff]
    %v696 = vld [vmem:[#allocation9 + $0xf0] sm:$0xff]
    %v697 = vld [vmem:[#allocation9 + $0xf8] sm:$0xff]
    %v730 = vunpack.c.l.b16 %v666
    %v731 = vunpack.c.h.b16 %v666
    %v732 = vunpack.c.l.b16 %v667
    %v733 = vunpack.c.h.b16 %v667
    %v734 = vunpack.c.l.b16 %v668
    %v735 = vunpack.c.h.b16 %v668
    %v736 = vunpack.c.l.b16 %v669
    %v737 = vunpack.c.h.b16 %v669
    %v738 = vunpack.c.l.b16 %v670
    %v739 = vunpack.c.h.b16 %v670
    %v740 = vunpack.c.l.b16 %v671
    %v741 = vunpack.c.h.b16 %v671
    %v742 = vunpack.c.l.b16 %v672
    %v743 = vunpack.c.h.b16 %v672
    %v744 = vunpack.c.l.b16 %v673
    %v745 = vunpack.c.h.b16 %v673
    %v746 = vunpack.c.l.b16 %v674
    %v747 = vunpack.c.h.b16 %v674
    %v748 = vunpack.c.l.b16 %v675
    %v749 = vunpack.c.h.b16 %v675
    %v750 = vunpack.c.l.b16 %v676
    %v751 = vunpack.c.h.b16 %v676
    %v752 = vunpack.c.l.b16 %v677
    %v753 = vunpack.c.h.b16 %v677
    %v754 = vunpack.c.l.b16 %v678
    %v755 = vunpack.c.h.b16 %v678
    %v756 = vunpack.c.l.b16 %v679
    %v757 = vunpack.c.h.b16 %v679
    %v758 = vunpack.c.l.b16 %v680
    %v759 = vunpack.c.h.b16 %v680
    %v760 = vunpack.c.l.b16 %v681
    %v761 = vunpack.c.h.b16 %v681
    %v762 = vunpack.c.l.b16 %v682
    %v763 = vunpack.c.h.b16 %v682
    %v764 = vunpack.c.l.b16 %v683
    %v765 = vunpack.c.h.b16 %v683
    %v766 = vunpack.c.l.b16 %v684
    %v767 = vunpack.c.h.b16 %v684
    %v768 = vunpack.c.l.b16 %v685
    %v769 = vunpack.c.h.b16 %v685
    %v770 = vunpack.c.l.b16 %v686
    %v771 = vunpack.c.h.b16 %v686
    %v772 = vunpack.c.l.b16 %v687
    %v773 = vunpack.c.h.b16 %v687
    %v774 = vunpack.c.l.b16 %v688
    %v775 = vunpack.c.h.b16 %v688
    %v776 = vunpack.c.l.b16 %v689
    %v777 = vunpack.c.h.b16 %v689
    %v778 = vunpack.c.l.b16 %v690
    %v779 = vunpack.c.h.b16 %v690
    %v780 = vunpack.c.l.b16 %v691
    %v781 = vunpack.c.h.b16 %v691
    %v782 = vunpack.c.l.b16 %v692
    %v783 = vunpack.c.h.b16 %v692
    %v784 = vunpack.c.l.b16 %v693
    %v785 = vunpack.c.h.b16 %v693
    %v786 = vunpack.c.l.b16 %v694
    %v787 = vunpack.c.h.b16 %v694
    %v788 = vunpack.c.l.b16 %v695
    %v789 = vunpack.c.h.b16 %v695
    %v790 = vunpack.c.l.b16 %v696
    %v791 = vunpack.c.h.b16 %v696
    %v792 = vunpack.c.l.b16 %v697
    %v793 = vunpack.c.h.b16 %v697
    %v794 = vpack.c.b16 %v734, %v730
    %v795 = vpack.c.b16 %v735, %v731
    %v796 = vpack.c.b16 %v736, %v732
    %v797 = vpack.c.b16 %v737, %v733
    %v798 = vpack.c.b16 %v742, %v738
    %v799 = vpack.c.b16 %v743, %v739
    %v800 = vpack.c.b16 %v744, %v740
    %v801 = vpack.c.b16 %v745, %v741
    %v802 = vpack.c.b16 %v750, %v746
    %v803 = vpack.c.b16 %v751, %v747
    %v804 = vpack.c.b16 %v752, %v748
    %v805 = vpack.c.b16 %v753, %v749
    %v806 = vpack.c.b16 %v758, %v754
    %v807 = vpack.c.b16 %v759, %v755
    %v808 = vpack.c.b16 %v760, %v756
    %v809 = vpack.c.b16 %v761, %v757
    %v810 = vpack.c.b16 %v766, %v762
    %v811 = vpack.c.b16 %v767, %v763
    %v812 = vpack.c.b16 %v768, %v764
    %v813 = vpack.c.b16 %v769, %v765
    %v814 = vpack.c.b16 %v774, %v770
    %v815 = vpack.c.b16 %v775, %v771
    %v816 = vpack.c.b16 %v776, %v772
    %v817 = vpack.c.b16 %v777, %v773
    %v818 = vpack.c.b16 %v782, %v778
    %v819 = vpack.c.b16 %v783, %v779
    %v820 = vpack.c.b16 %v784, %v780
    %v821 = vpack.c.b16 %v785, %v781
    %v822 = vpack.c.b16 %v790, %v786
    %v823 = vpack.c.b16 %v791, %v787
    %v824 = vpack.c.b16 %v792, %v788
    %v825 = vpack.c.b16 %v793, %v789
    %858 = vmatpush.bf16.msra.mxu0 %v822
    %859 = vmatpush.bf16.msra.mxu0 %v818
    %860 = vmatpush.bf16.msra.mxu0 %v814
    %861 = vmatpush.bf16.msra.mxu0 %v810
    %862 = vmatpush.bf16.msra.mxu0 %v806
    %863 = vmatpush.bf16.msra.mxu0 %v802
    %864 = vmatpush.bf16.msra.mxu0 %v798
    %865 = vmatpush.bf16.msra.mxu0 %v794
    %866 = vmatmul.bf16.gmra.mxu0 %v657
    %v867 = vpop.f32.mrf.mxu0
    %v868 = vadd.f32 0.0, %v867
    %v869 = vpop.f32.mrf.mxu0
    %870 = vdwg.mxu0
    %871 = vmatpush.bf16.msra.mxu0 %v823
    %872 = vmatpush.bf16.msra.mxu0 %v819
    %873 = vmatpush.bf16.msra.mxu0 %v815
    %874 = vmatpush.bf16.msra.mxu0 %v811
    %875 = vmatpush.bf16.msra.mxu0 %v807
    %876 = vmatpush.bf16.msra.mxu0 %v803
    %877 = vmatpush.bf16.msra.mxu0 %v799
    %878 = vmatpush.bf16.msra.mxu0 %v795
    %879 = vmatmul.bf16.gmra.mxu0 %v657
    %v880 = vpop.f32.mrf.mxu0
    %v881 = vadd.f32 0.0, %v880
    %v882 = vpop.f32.mrf.mxu0
    %883 = vdwg.mxu0
    %884 = vmatpush.bf16.msra.mxu0 %v824
    %885 = vmatpush.bf16.msra.mxu0 %v820
    %886 = vmatpush.bf16.msra.mxu0 %v816
    %887 = vmatpush.bf16.msra.mxu0 %v812
    %888 = vmatpush.bf16.msra.mxu0 %v808
    %889 = vmatpush.bf16.msra.mxu0 %v804
    %890 = vmatpush.bf16.msra.mxu0 %v800
    %891 = vmatpush.bf16.msra.mxu0 %v796
    %892 = vmatmul.bf16.gmra.mxu0 %v657
    %v893 = vpop.f32.mrf.mxu0
    %v894 = vadd.f32 0.0, %v893
    %v895 = vpop.f32.mrf.mxu0
    %896 = vdwg.mxu0
    %897 = vmatpush.bf16.msra.mxu0 %v825
    %898 = vmatpush.bf16.msra.mxu0 %v821
    %899 = vmatpush.bf16.msra.mxu0 %v817
    %900 = vmatpush.bf16.msra.mxu0 %v813
    %901 = vmatpush.bf16.msra.mxu0 %v809
    %902 = vmatpush.bf16.msra.mxu0 %v805
    %903 = vmatpush.bf16.msra.mxu0 %v801
    %904 = vmatpush.bf16.msra.mxu0 %v797
    %905 = vmatmul.bf16.gmra.mxu0 %v657
    %v906 = vpop.f32.mrf.mxu0
    %v907 = vadd.f32 0.0, %v906
    %v908 = vpop.f32.mrf.mxu0
    %909 = vdwg.mxu0
    %v910 = vadd.f32 %v662, %v868
    %v911 = vadd.f32 %v663, %v881
    %v912 = vadd.f32 %v664, %v894
    %v913 = vadd.f32 %v665, %v907
    %v914 = vxor.u32 %v910, 2147483648
    %v915 = vmul.f32 %v914, 1.442695
    %v916 = vpow.pop %v915
    %v917 = vadd.f32 %v916, 1.0
    %v918 = vrcp.pop %v917
    %v919 = vmul.f32 %v917, %v918
    %v920 = vsub.f32 1.0, %v919
    %v921 = vmul.f32 %v918, %v920
    %v922 = vadd.f32 %v918, %v921
    %vm923 = vweird.f32 %v917
    %vm924 = vweird.f32 %v918
    %vm925 = vmor %vm923, %vm924
    %v926 = vsel %vm925, %v918, %v922
    %v927 = vand.u32 2147483647, %v917
    %vm928 = vcmp.eq.f32.partialorder %v927, 8.507059e+37
    %v929 = vand.u32 %v917, 2147483648
    %v930 = vor.u32 1.1754944e-38, %v929
    %v931 = vsel %vm928, %v930, %v926
    %v932 = vmul.f32 1.0, %v931
    %v933 = vxor.u32 %v911, 2147483648
    %v934 = vmul.f32 %v933, 1.442695
    %v935 = vpow.pop %v934
    %v936 = vadd.f32 %v935, 1.0
    %v937 = vrcp.pop %v936
    %v938 = vmul.f32 %v936, %v937
    %v939 = vsub.f32 1.0, %v938
    %v940 = vmul.f32 %v937, %v939
    %v941 = vadd.f32 %v937, %v940
    %vm942 = vweird.f32 %v936
    %vm943 = vweird.f32 %v937
    %vm944 = vmor %vm942, %vm943
    %v945 = vsel %vm944, %v937, %v941
    %v946 = vand.u32 2147483647, %v936
    %vm947 = vcmp.eq.f32.partialorder %v946, 8.507059e+37
    %v948 = vand.u32 %v936, 2147483648
    %v949 = vor.u32 1.1754944e-38, %v948
    %v950 = vsel %vm947, %v949, %v945
    %v951 = vmul.f32 1.0, %v950
    %v952 = vtanh.pop %v912
    %v953 = vxor.u32 %v913, 2147483648
    %v954 = vmul.f32 %v953, 1.442695
    %v955 = vpow.pop %v954
    %v956 = vadd.f32 %v955, 1.0
    %v957 = vrcp.pop %v956
    %v958 = vmul.f32 %v956, %v957
    %v959 = vsub.f32 1.0, %v958
    %v960 = vmul.f32 %v957, %v959
    %v961 = vadd.f32 %v957, %v960
    %vm962 = vweird.f32 %v956
    %vm963 = vweird.f32 %v957
    %vm964 = vmor %vm962, %vm963
    %v965 = vsel %vm964, %v957, %v961
    %v966 = vand.u32 2147483647, %v956
    %vm967 = vcmp.eq.f32.partialorder %v966, 8.507059e+37
    %v968 = vand.u32 %v956, 2147483648
    %v969 = vor.u32 1.1754944e-38, %v968
    %v970 = vsel %vm967, %v969, %v965
    %v971 = vmul.f32 1.0, %v970
    %v972 = vmul.f32 %v951, %v654
    %v973 = vmul.f32 %v932, %v952
    %v974 = vadd.f32 %v972, %v973
    %v975 = vtanh.pop %v974
    %v976 = vmul.f32 %v971, %v975
    %v977 = vpack.c.bf16 %v976, %v976
    %s978 = scalar_lea.vmem [#allocation3], 4
    %979 = vst [vmem:[%s978] sm:$0xf] %v977
    %s980 = scalar_lea.vmem [#allocation2], 32
    %v981 = vld [vmem:[%s980] sm:$0xff]
    %v982 = vld [vmem:[%s980 + $0x8] sm:$0xff]
    %v983 = vunpack.c.l.bf16 %v981
    %v984 = vunpack.c.h.bf16 %v981
    %v985 = vunpack.c.l.bf16 %v982
    %v986 = vunpack.c.h.bf16 %v982
    %v987 = vld [vmem:[#allocation9] sm:$0xff]
    %v988 = vld [vmem:[#allocation9 + $0x8] sm:$0xff]
    %v989 = vld [vmem:[#allocation9 + $0x10] sm:$0xff]
    %v990 = vld [vmem:[#allocation9 + $0x18] sm:$0xff]
    %v991 = vld [vmem:[#allocation9 + $0x20] sm:$0xff]
    %v992 = vld [vmem:[#allocation9 + $0x28] sm:$0xff]
    %v993 = vld [vmem:[#allocation9 + $0x30] sm:$0xff]
    %v994 = vld [vmem:[#allocation9 + $0x38] sm:$0xff]
    %v995 = vld [vmem:[#allocation9 + $0x40] sm:$0xff]
    %v996 = vld [vmem:[#allocation9 + $0x48] sm:$0xff]
    %v997 = vld [vmem:[#allocation9 + $0x50] sm:$0xff]
    %v998 = vld [vmem:[#allocation9 + $0x58] sm:$0xff]
    %v999 = vld [vmem:[#allocation9 + $0x60] sm:$0xff]
    %v1000 = vld [vmem:[#allocation9 + $0x68] sm:$0xff]
    %v1001 = vld [vmem:[#allocation9 + $0x70] sm:$0xff]
    %v1002 = vld [vmem:[#allocation9 + $0x78] sm:$0xff]
    %v1003 = vld [vmem:[#allocation9 + $0x80] sm:$0xff]
    %v1004 = vld [vmem:[#allocation9 + $0x88] sm:$0xff]
    %v1005 = vld [vmem:[#allocation9 + $0x90] sm:$0xff]
    %v1006 = vld [vmem:[#allocation9 + $0x98] sm:$0xff]
    %v1007 = vld [vmem:[#allocation9 + $0xa0] sm:$0xff]
    %v1008 = vld [vmem:[#allocation9 + $0xa8] sm:$0xff]
    %v1009 = vld [vmem:[#allocation9 + $0xb0] sm:$0xff]
    %v1010 = vld [vmem:[#allocation9 + $0xb8] sm:$0xff]
    %v1011 = vld [vmem:[#allocation9 + $0xc0] sm:$0xff]
    %v1012 = vld [vmem:[#allocation9 + $0xc8] sm:$0xff]
    %v1013 = vld [vmem:[#allocation9 + $0xd0] sm:$0xff]
    %v1014 = vld [vmem:[#allocation9 + $0xd8] sm:$0xff]
    %v1015 = vld [vmem:[#allocation9 + $0xe0] sm:$0xff]
    %v1016 = vld [vmem:[#allocation9 + $0xe8] sm:$0xff]
    %v1017 = vld [vmem:[#allocation9 + $0xf0] sm:$0xff]
    %v1018 = vld [vmem:[#allocation9 + $0xf8] sm:$0xff]
    %v1051 = vunpack.c.l.b16 %v987
    %v1052 = vunpack.c.h.b16 %v987
    %v1053 = vunpack.c.l.b16 %v988
    %v1054 = vunpack.c.h.b16 %v988
    %v1055 = vunpack.c.l.b16 %v989
    %v1056 = vunpack.c.h.b16 %v989
    %v1057 = vunpack.c.l.b16 %v990
    %v1058 = vunpack.c.h.b16 %v990
    %v1059 = vunpack.c.l.b16 %v991
    %v1060 = vunpack.c.h.b16 %v991
    %v1061 = vunpack.c.l.b16 %v992
    %v1062 = vunpack.c.h.b16 %v992
    %v1063 = vunpack.c.l.b16 %v993
    %v1064 = vunpack.c.h.b16 %v993
    %v1065 = vunpack.c.l.b16 %v994
    %v1066 = vunpack.c.h.b16 %v994
    %v1067 = vunpack.c.l.b16 %v995
    %v1068 = vunpack.c.h.b16 %v995
    %v1069 = vunpack.c.l.b16 %v996
    %v1070 = vunpack.c.h.b16 %v996
    %v1071 = vunpack.c.l.b16 %v997
    %v1072 = vunpack.c.h.b16 %v997
    %v1073 = vunpack.c.l.b16 %v998
    %v1074 = vunpack.c.h.b16 %v998
    %v1075 = vunpack.c.l.b16 %v999
    %v1076 = vunpack.c.h.b16 %v999
    %v1077 = vunpack.c.l.b16 %v1000
    %v1078 = vunpack.c.h.b16 %v1000
    %v1079 = vunpack.c.l.b16 %v1001
    %v1080 = vunpack.c.h.b16 %v1001
    %v1081 = vunpack.c.l.b16 %v1002
    %v1082 = vunpack.c.h.b16 %v1002
    %v1083 = vunpack.c.l.b16 %v1003
    %v1084 = vunpack.c.h.b16 %v1003
    %v1085 = vunpack.c.l.b16 %v1004
    %v1086 = vunpack.c.h.b16 %v1004
    %v1087 = vunpack.c.l.b16 %v1005
    %v1088 = vunpack.c.h.b16 %v1005
    %v1089 = vunpack.c.l.b16 %v1006
    %v1090 = vunpack.c.h.b16 %v1006
    %v1091 = vunpack.c.l.b16 %v1007
    %v1092 = vunpack.c.h.b16 %v1007
    %v1093 = vunpack.c.l.b16 %v1008
    %v1094 = vunpack.c.h.b16 %v1008
    %v1095 = vunpack.c.l.b16 %v1009
    %v1096 = vunpack.c.h.b16 %v1009
    %v1097 = vunpack.c.l.b16 %v1010
    %v1098 = vunpack.c.h.b16 %v1010
    %v1099 = vunpack.c.l.b16 %v1011
    %v1100 = vunpack.c.h.b16 %v1011
    %v1101 = vunpack.c.l.b16 %v1012
    %v1102 = vunpack.c.h.b16 %v1012
    %v1103 = vunpack.c.l.b16 %v1013
    %v1104 = vunpack.c.h.b16 %v1013
    %v1105 = vunpack.c.l.b16 %v1014
    %v1106 = vunpack.c.h.b16 %v1014
    %v1107 = vunpack.c.l.b16 %v1015
    %v1108 = vunpack.c.h.b16 %v1015
    %v1109 = vunpack.c.l.b16 %v1016
    %v1110 = vunpack.c.h.b16 %v1016
    %v1111 = vunpack.c.l.b16 %v1017
    %v1112 = vunpack.c.h.b16 %v1017
    %v1113 = vunpack.c.l.b16 %v1018
    %v1114 = vunpack.c.h.b16 %v1018
    %v1115 = vpack.c.b16 %v1055, %v1051
    %v1116 = vpack.c.b16 %v1056, %v1052
    %v1117 = vpack.c.b16 %v1057, %v1053
    %v1118 = vpack.c.b16 %v1058, %v1054
    %v1119 = vpack.c.b16 %v1063, %v1059
    %v1120 = vpack.c.b16 %v1064, %v1060
    %v1121 = vpack.c.b16 %v1065, %v1061
    %v1122 = vpack.c.b16 %v1066, %v1062
    %v1123 = vpack.c.b16 %v1071, %v1067
    %v1124 = vpack.c.b16 %v1072, %v1068
    %v1125 = vpack.c.b16 %v1073, %v1069
    %v1126 = vpack.c.b16 %v1074, %v1070
    %v1127 = vpack.c.b16 %v1079, %v1075
    %v1128 = vpack.c.b16 %v1080, %v1076
    %v1129 = vpack.c.b16 %v1081, %v1077
    %v1130 = vpack.c.b16 %v1082, %v1078
    %v1131 = vpack.c.b16 %v1087, %v1083
    %v1132 = vpack.c.b16 %v1088, %v1084
    %v1133 = vpack.c.b16 %v1089, %v1085
    %v1134 = vpack.c.b16 %v1090, %v1086
    %v1135 = vpack.c.b16 %v1095, %v1091
    %v1136 = vpack.c.b16 %v1096, %v1092
    %v1137 = vpack.c.b16 %v1097, %v1093
    %v1138 = vpack.c.b16 %v1098, %v1094
    %v1139 = vpack.c.b16 %v1103, %v1099
    %v1140 = vpack.c.b16 %v1104, %v1100
    %v1141 = vpack.c.b16 %v1105, %v1101
    %v1142 = vpack.c.b16 %v1106, %v1102
    %v1143 = vpack.c.b16 %v1111, %v1107
    %v1144 = vpack.c.b16 %v1112, %v1108
    %v1145 = vpack.c.b16 %v1113, %v1109
    %v1146 = vpack.c.b16 %v1114, %v1110
    %1179 = vmatpush.bf16.msra.mxu0 %v1143
    %1180 = vmatpush.bf16.msra.mxu0 %v1139
    %1181 = vmatpush.bf16.msra.mxu0 %v1135
    %1182 = vmatpush.bf16.msra.mxu0 %v1131
    %1183 = vmatpush.bf16.msra.mxu0 %v1127
    %1184 = vmatpush.bf16.msra.mxu0 %v1123
    %1185 = vmatpush.bf16.msra.mxu0 %v1119
    %1186 = vmatpush.bf16.msra.mxu0 %v1115
    %1187 = vmatmul.bf16.gmra.mxu0 %v977
    %v1188 = vpop.f32.mrf.mxu0
    %v1189 = vadd.f32 0.0, %v1188
    %v1190 = vpop.f32.mrf.mxu0
    %1191 = vdwg.mxu0
    %1192 = vmatpush.bf16.msra.mxu0 %v1144
    %1193 = vmatpush.bf16.msra.mxu0 %v1140
    %1194 = vmatpush.bf16.msra.mxu0 %v1136
    %1195 = vmatpush.bf16.msra.mxu0 %v1132
    %1196 = vmatpush.bf16.msra.mxu0 %v1128
    %1197 = vmatpush.bf16.msra.mxu0 %v1124
    %1198 = vmatpush.bf16.msra.mxu0 %v1120
    %1199 = vmatpush.bf16.msra.mxu0 %v1116
    %1200 = vmatmul.bf16.gmra.mxu0 %v977
    %v1201 = vpop.f32.mrf.mxu0
    %v1202 = vadd.f32 0.0, %v1201
    %v1203 = vpop.f32.mrf.mxu0
    %1204 = vdwg.mxu0
    %1205 = vmatpush.bf16.msra.mxu0 %v1145
    %1206 = vmatpush.bf16.msra.mxu0 %v1141
    %1207 = vmatpush.bf16.msra.mxu0 %v1137
    %1208 = vmatpush.bf16.msra.mxu0 %v1133
    %1209 = vmatpush.bf16.msra.mxu0 %v1129
    %1210 = vmatpush.bf16.msra.mxu0 %v1125
    %1211 = vmatpush.bf16.msra.mxu0 %v1121
    %1212 = vmatpush.bf16.msra.mxu0 %v1117
    %1213 = vmatmul.bf16.gmra.mxu0 %v977
    %v1214 = vpop.f32.mrf.mxu0
    %v1215 = vadd.f32 0.0, %v1214
    %v1216 = vpop.f32.mrf.mxu0
    %1217 = vdwg.mxu0
    %1218 = vmatpush.bf16.msra.mxu0 %v1146
    %1219 = vmatpush.bf16.msra.mxu0 %v1142
    %1220 = vmatpush.bf16.msra.mxu0 %v1138
    %1221 = vmatpush.bf16.msra.mxu0 %v1134
    %1222 = vmatpush.bf16.msra.mxu0 %v1130
    %1223 = vmatpush.bf16.msra.mxu0 %v1126
    %1224 = vmatpush.bf16.msra.mxu0 %v1122
    %1225 = vmatpush.bf16.msra.mxu0 %v1118
    %1226 = vmatmul.bf16.gmra.mxu0 %v977
    %v1227 = vpop.f32.mrf.mxu0
    %v1228 = vadd.f32 0.0, %v1227
    %v1229 = vpop.f32.mrf.mxu0
    %1230 = vdwg.mxu0
    %v1231 = vadd.f32 %v983, %v1189
    %v1232 = vadd.f32 %v984, %v1202
    %v1233 = vadd.f32 %v985, %v1215
    %v1234 = vadd.f32 %v986, %v1228
    %v1235 = vxor.u32 %v1231, 2147483648
    %v1236 = vmul.f32 %v1235, 1.442695
    %v1237 = vpow.pop %v1236
    %v1238 = vadd.f32 %v1237, 1.0
    %v1239 = vrcp.pop %v1238
    %v1240 = vmul.f32 %v1238, %v1239
    %v1241 = vsub.f32 1.0, %v1240
    %v1242 = vmul.f32 %v1239, %v1241
    %v1243 = vadd.f32 %v1239, %v1242
    %vm1244 = vweird.f32 %v1238
    %vm1245 = vweird.f32 %v1239
    %vm1246 = vmor %vm1244, %vm1245
    %v1247 = vsel %vm1246, %v1239, %v1243
    %v1248 = vand.u32 2147483647, %v1238
    %vm1249 = vcmp.eq.f32.partialorder %v1248, 8.507059e+37
    %v1250 = vand.u32 %v1238, 2147483648
    %v1251 = vor.u32 1.1754944e-38, %v1250
    %v1252 = vsel %vm1249, %v1251, %v1247
    %v1253 = vmul.f32 1.0, %v1252
    %v1254 = vxor.u32 %v1232, 2147483648
    %v1255 = vmul.f32 %v1254, 1.442695
    %v1256 = vpow.pop %v1255
    %v1257 = vadd.f32 %v1256, 1.0
    %v1258 = vrcp.pop %v1257
    %v1259 = vmul.f32 %v1257, %v1258
    %v1260 = vsub.f32 1.0, %v1259
    %v1261 = vmul.f32 %v1258, %v1260
    %v1262 = vadd.f32 %v1258, %v1261
    %vm1263 = vweird.f32 %v1257
    %vm1264 = vweird.f32 %v1258
    %vm1265 = vmor %vm1263, %vm1264
    %v1266 = vsel %vm1265, %v1258, %v1262
    %v1267 = vand.u32 2147483647, %v1257
    %vm1268 = vcmp.eq.f32.partialorder %v1267, 8.507059e+37
    %v1269 = vand.u32 %v1257, 2147483648
    %v1270 = vor.u32 1.1754944e-38, %v1269
    %v1271 = vsel %vm1268, %v1270, %v1266
    %v1272 = vmul.f32 1.0, %v1271
    %v1273 = vtanh.pop %v1233
    %v1274 = vxor.u32 %v1234, 2147483648
    %v1275 = vmul.f32 %v1274, 1.442695
    %v1276 = vpow.pop %v1275
    %v1277 = vadd.f32 %v1276, 1.0
    %v1278 = vrcp.pop %v1277
    %v1279 = vmul.f32 %v1277, %v1278
    %v1280 = vsub.f32 1.0, %v1279
    %v1281 = vmul.f32 %v1278, %v1280
    %v1282 = vadd.f32 %v1278, %v1281
    %vm1283 = vweird.f32 %v1277
    %vm1284 = vweird.f32 %v1278
    %vm1285 = vmor %vm1283, %vm1284
    %v1286 = vsel %vm1285, %v1278, %v1282
    %v1287 = vand.u32 2147483647, %v1277
    %vm1288 = vcmp.eq.f32.partialorder %v1287, 8.507059e+37
    %v1289 = vand.u32 %v1277, 2147483648
    %v1290 = vor.u32 1.1754944e-38, %v1289
    %v1291 = vsel %vm1288, %v1290, %v1286
    %v1292 = vmul.f32 1.0, %v1291
    %v1293 = vmul.f32 %v1272, %v974
    %v1294 = vmul.f32 %v1253, %v1273
    %v1295 = vadd.f32 %v1293, %v1294
    %v1296 = vtanh.pop %v1295
    %v1297 = vmul.f32 %v1292, %v1296
    %v1298 = vpack.c.bf16 %v1297, %v1297
    %s1299 = scalar_lea.vmem [#allocation3], 8
    %1300 = vst [vmem:[%s1299] sm:$0xf] %v1298
    %s1301 = scalar_lea.vmem [#allocation2], 48
    %v1302 = vld [vmem:[%s1301] sm:$0xff]
    %v1303 = vld [vmem:[%s1301 + $0x8] sm:$0xff]
    %v1304 = vunpack.c.l.bf16 %v1302
    %v1305 = vunpack.c.h.bf16 %v1302
    %v1306 = vunpack.c.l.bf16 %v1303
    %v1307 = vunpack.c.h.bf16 %v1303
    %v1308 = vld [vmem:[#allocation9] sm:$0xff]
    %v1309 = vld [vmem:[#allocation9 + $0x8] sm:$0xff]
    %v1310 = vld [vmem:[#allocation9 + $0x10] sm:$0xff]
    %v1311 = vld [vmem:[#allocation9 + $0x18] sm:$0xff]
    %v1312 = vld [vmem:[#allocation9 + $0x20] sm:$0xff]
    %v1313 = vld [vmem:[#allocation9 + $0x28] sm:$0xff]
    %v1314 = vld [vmem:[#allocation9 + $0x30] sm:$0xff]
    %v1315 = vld [vmem:[#allocation9 + $0x38] sm:$0xff]
    %v1316 = vld [vmem:[#allocation9 + $0x40] sm:$0xff]
    %v1317 = vld [vmem:[#allocation9 + $0x48] sm:$0xff]
    %v1318 = vld [vmem:[#allocation9 + $0x50] sm:$0xff]
    %v1319 = vld [vmem:[#allocation9 + $0x58] sm:$0xff]
    %v1320 = vld [vmem:[#allocation9 + $0x60] sm:$0xff]
    %v1321 = vld [vmem:[#allocation9 + $0x68] sm:$0xff]
    %v1322 = vld [vmem:[#allocation9 + $0x70] sm:$0xff]
    %v1323 = vld [vmem:[#allocation9 + $0x78] sm:$0xff]
    %v1324 = vld [vmem:[#allocation9 + $0x80] sm:$0xff]
    %v1325 = vld [vmem:[#allocation9 + $0x88] sm:$0xff]
    %v1326 = vld [vmem:[#allocation9 + $0x90] sm:$0xff]
    %v1327 = vld [vmem:[#allocation9 + $0x98] sm:$0xff]
    %v1328 = vld [vmem:[#allocation9 + $0xa0] sm:$0xff]
    %v1329 = vld [vmem:[#allocation9 + $0xa8] sm:$0xff]
    %v1330 = vld [vmem:[#allocation9 + $0xb0] sm:$0xff]
    %v1331 = vld [vmem:[#allocation9 + $0xb8] sm:$0xff]
    %v1332 = vld [vmem:[#allocation9 + $0xc0] sm:$0xff]
    %v1333 = vld [vmem:[#allocation9 + $0xc8] sm:$0xff]
    %v1334 = vld [vmem:[#allocation9 + $0xd0] sm:$0xff]
    %v1335 = vld [vmem:[#allocation9 + $0xd8] sm:$0xff]
    %v1336 = vld [vmem:[#allocation9 + $0xe0] sm:$0xff]
    %v1337 = vld [vmem:[#allocation9 + $0xe8] sm:$0xff]
    %v1338 = vld [vmem:[#allocation9 + $0xf0] sm:$0xff]
    %v1339 = vld [vmem:[#allocation9 + $0xf8] sm:$0xff]
    %v1372 = vunpack.c.l.b16 %v1308
    %v1373 = vunpack.c.h.b16 %v1308
    %v1374 = vunpack.c.l.b16 %v1309
    %v1375 = vunpack.c.h.b16 %v1309
    %v1376 = vunpack.c.l.b16 %v1310
    %v1377 = vunpack.c.h.b16 %v1310
    %v1378 = vunpack.c.l.b16 %v1311
    %v1379 = vunpack.c.h.b16 %v1311
    %v1380 = vunpack.c.l.b16 %v1312
    %v1381 = vunpack.c.h.b16 %v1312
    %v1382 = vunpack.c.l.b16 %v1313
    %v1383 = vunpack.c.h.b16 %v1313
    %v1384 = vunpack.c.l.b16 %v1314
    %v1385 = vunpack.c.h.b16 %v1314
    %v1386 = vunpack.c.l.b16 %v1315
    %v1387 = vunpack.c.h.b16 %v1315
    %v1388 = vunpack.c.l.b16 %v1316
    %v1389 = vunpack.c.h.b16 %v1316
    %v1390 = vunpack.c.l.b16 %v1317
    %v1391 = vunpack.c.h.b16 %v1317
    %v1392 = vunpack.c.l.b16 %v1318
    %v1393 = vunpack.c.h.b16 %v1318
    %v1394 = vunpack.c.l.b16 %v1319
    %v1395 = vunpack.c.h.b16 %v1319
    %v1396 = vunpack.c.l.b16 %v1320
    %v1397 = vunpack.c.h.b16 %v1320
    %v1398 = vunpack.c.l.b16 %v1321
    %v1399 = vunpack.c.h.b16 %v1321
    %v1400 = vunpack.c.l.b16 %v1322
    %v1401 = vunpack.c.h.b16 %v1322
    %v1402 = vunpack.c.l.b16 %v1323
    %v1403 = vunpack.c.h.b16 %v1323
    %v1404 = vunpack.c.l.b16 %v1324
    %v1405 = vunpack.c.h.b16 %v1324
    %v1406 = vunpack.c.l.b16 %v1325
    %v1407 = vunpack.c.h.b16 %v1325
    %v1408 = vunpack.c.l.b16 %v1326
    %v1409 = vunpack.c.h.b16 %v1326
    %v1410 = vunpack.c.l.b16 %v1327
    %v1411 = vunpack.c.h.b16 %v1327
    %v1412 = vunpack.c.l.b16 %v1328
    %v1413 = vunpack.c.h.b16 %v1328
    %v1414 = vunpack.c.l.b16 %v1329
    %v1415 = vunpack.c.h.b16 %v1329
    %v1416 = vunpack.c.l.b16 %v1330
    %v1417 = vunpack.c.h.b16 %v1330
    %v1418 = vunpack.c.l.b16 %v1331
    %v1419 = vunpack.c.h.b16 %v1331
    %v1420 = vunpack.c.l.b16 %v1332
    %v1421 = vunpack.c.h.b16 %v1332
    %v1422 = vunpack.c.l.b16 %v1333
    %v1423 = vunpack.c.h.b16 %v1333
    %v1424 = vunpack.c.l.b16 %v1334
    %v1425 = vunpack.c.h.b16 %v1334
    %v1426 = vunpack.c.l.b16 %v1335
    %v1427 = vunpack.c.h.b16 %v1335
    %v1428 = vunpack.c.l.b16 %v1336
    %v1429 = vunpack.c.h.b16 %v1336
    %v1430 = vunpack.c.l.b16 %v1337
    %v1431 = vunpack.c.h.b16 %v1337
    %v1432 = vunpack.c.l.b16 %v1338
    %v1433 = vunpack.c.h.b16 %v1338
    %v1434 = vunpack.c.l.b16 %v1339
    %v1435 = vunpack.c.h.b16 %v1339
    %v1436 = vpack.c.b16 %v1376, %v1372
    %v1437 = vpack.c.b16 %v1377, %v1373
    %v1438 = vpack.c.b16 %v1378, %v1374
    %v1439 = vpack.c.b16 %v1379, %v1375
    %v1440 = vpack.c.b16 %v1384, %v1380
    %v1441 = vpack.c.b16 %v1385, %v1381
    %v1442 = vpack.c.b16 %v1386, %v1382
    %v1443 = vpack.c.b16 %v1387, %v1383
    %v1444 = vpack.c.b16 %v1392, %v1388
    %v1445 = vpack.c.b16 %v1393, %v1389
    %v1446 = vpack.c.b16 %v1394, %v1390
    %v1447 = vpack.c.b16 %v1395, %v1391
    %v1448 = vpack.c.b16 %v1400, %v1396
    %v1449 = vpack.c.b16 %v1401, %v1397
    %v1450 = vpack.c.b16 %v1402, %v1398
    %v1451 = vpack.c.b16 %v1403, %v1399
    %v1452 = vpack.c.b16 %v1408, %v1404
    %v1453 = vpack.c.b16 %v1409, %v1405
    %v1454 = vpack.c.b16 %v1410, %v1406
    %v1455 = vpack.c.b16 %v1411, %v1407
    %v1456 = vpack.c.b16 %v1416, %v1412
    %v1457 = vpack.c.b16 %v1417, %v1413
    %v1458 = vpack.c.b16 %v1418, %v1414
    %v1459 = vpack.c.b16 %v1419, %v1415
    %v1460 = vpack.c.b16 %v1424, %v1420
    %v1461 = vpack.c.b16 %v1425, %v1421
    %v1462 = vpack.c.b16 %v1426, %v1422
    %v1463 = vpack.c.b16 %v1427, %v1423
    %v1464 = vpack.c.b16 %v1432, %v1428
    %v1465 = vpack.c.b16 %v1433, %v1429
    %v1466 = vpack.c.b16 %v1434, %v1430
    %v1467 = vpack.c.b16 %v1435, %v1431
    %1500 = vmatpush.bf16.msra.mxu0 %v1464
    %1501 = vmatpush.bf16.msra.mxu0 %v1460
    %1502 = vmatpush.bf16.msra.mxu0 %v1456
    %1503 = vmatpush.bf16.msra.mxu0 %v1452
    %1504 = vmatpush.bf16.msra.mxu0 %v1448
    %1505 = vmatpush.bf16.msra.mxu0 %v1444
    %1506 = vmatpush.bf16.msra.mxu0 %v1440
    %1507 = vmatpush.bf16.msra.mxu0 %v1436
    %1508 = vmatmul.bf16.gmra.mxu0 %v1298
    %v1509 = vpop.f32.mrf.mxu0
    %v1510 = vadd.f32 0.0, %v1509
    %v1511 = vpop.f32.mrf.mxu0
    %1512 = vdwg.mxu0
    %1513 = vmatpush.bf16.msra.mxu0 %v1465
    %1514 = vmatpush.bf16.msra.mxu0 %v1461
    %1515 = vmatpush.bf16.msra.mxu0 %v1457
    %1516 = vmatpush.bf16.msra.mxu0 %v1453
    %1517 = vmatpush.bf16.msra.mxu0 %v1449
    %1518 = vmatpush.bf16.msra.mxu0 %v1445
    %1519 = vmatpush.bf16.msra.mxu0 %v1441
    %1520 = vmatpush.bf16.msra.mxu0 %v1437
    %1521 = vmatmul.bf16.gmra.mxu0 %v1298
    %v1522 = vpop.f32.mrf.mxu0
    %v1523 = vadd.f32 0.0, %v1522
    %v1524 = vpop.f32.mrf.mxu0
    %1525 = vdwg.mxu0
    %1526 = vmatpush.bf16.msra.mxu0 %v1466
    %1527 = vmatpush.bf16.msra.mxu0 %v1462
    %1528 = vmatpush.bf16.msra.mxu0 %v1458
    %1529 = vmatpush.bf16.msra.mxu0 %v1454
    %1530 = vmatpush.bf16.msra.mxu0 %v1450
    %1531 = vmatpush.bf16.msra.mxu0 %v1446
    %1532 = vmatpush.bf16.msra.mxu0 %v1442
    %1533 = vmatpush.bf16.msra.mxu0 %v1438
    %1534 = vmatmul.bf16.gmra.mxu0 %v1298
    %v1535 = vpop.f32.mrf.mxu0
    %v1536 = vadd.f32 0.0, %v1535
    %v1537 = vpop.f32.mrf.mxu0
    %1538 = vdwg.mxu0
    %1539 = vmatpush.bf16.msra.mxu0 %v1467
    %1540 = vmatpush.bf16.msra.mxu0 %v1463
    %1541 = vmatpush.bf16.msra.mxu0 %v1459
    %1542 = vmatpush.bf16.msra.mxu0 %v1455
    %1543 = vmatpush.bf16.msra.mxu0 %v1451
    %1544 = vmatpush.bf16.msra.mxu0 %v1447
    %1545 = vmatpush.bf16.msra.mxu0 %v1443
    %1546 = vmatpush.bf16.msra.mxu0 %v1439
    %1547 = vmatmul.bf16.gmra.mxu0 %v1298
    %v1548 = vpop.f32.mrf.mxu0
    %v1549 = vadd.f32 0.0, %v1548
    %v1550 = vpop.f32.mrf.mxu0
    %1551 = vdwg.mxu0
    %v1552 = vadd.f32 %v1304, %v1510
    %v1553 = vadd.f32 %v1305, %v1523
    %v1554 = vadd.f32 %v1306, %v1536
    %v1555 = vadd.f32 %v1307, %v1549
    %v1556 = vxor.u32 %v1552, 2147483648
    %v1557 = vmul.f32 %v1556, 1.442695
    %v1558 = vpow.pop %v1557
    %v1559 = vadd.f32 %v1558, 1.0
    %v1560 = vrcp.pop %v1559
    %v1561 = vmul.f32 %v1559, %v1560
    %v1562 = vsub.f32 1.0, %v1561
    %v1563 = vmul.f32 %v1560, %v1562
    %v1564 = vadd.f32 %v1560, %v1563
    %vm1565 = vweird.f32 %v1559
    %vm1566 = vweird.f32 %v1560
    %vm1567 = vmor %vm1565, %vm1566
    %v1568 = vsel %vm1567, %v1560, %v1564
    %v1569 = vand.u32 2147483647, %v1559
    %vm1570 = vcmp.eq.f32.partialorder %v1569, 8.507059e+37
    %v1571 = vand.u32 %v1559, 2147483648
    %v1572 = vor.u32 1.1754944e-38, %v1571
    %v1573 = vsel %vm1570, %v1572, %v1568
    %v1574 = vmul.f32 1.0, %v1573
    %v1575 = vxor.u32 %v1553, 2147483648
    %v1576 = vmul.f32 %v1575, 1.442695
    %v1577 = vpow.pop %v1576
    %v1578 = vadd.f32 %v1577, 1.0
    %v1579 = vrcp.pop %v1578
    %v1580 = vmul.f32 %v1578, %v1579
    %v1581 = vsub.f32 1.0, %v1580
    %v1582 = vmul.f32 %v1579, %v1581
    %v1583 = vadd.f32 %v1579, %v1582
    %vm1584 = vweird.f32 %v1578
    %vm1585 = vweird.f32 %v1579
    %vm1586 = vmor %vm1584, %vm1585
    %v1587 = vsel %vm1586, %v1579, %v1583
    %v1588 = vand.u32 2147483647, %v1578
    %vm1589 = vcmp.eq.f32.partialorder %v1588, 8.507059e+37
    %v1590 = vand.u32 %v1578, 2147483648
    %v1591 = vor.u32 1.1754944e-38, %v1590
    %v1592 = vsel %vm1589, %v1591, %v1587
    %v1593 = vmul.f32 1.0, %v1592
    %v1594 = vtanh.pop %v1554
    %v1595 = vxor.u32 %v1555, 2147483648
    %v1596 = vmul.f32 %v1595, 1.442695
    %v1597 = vpow.pop %v1596
    %v1598 = vadd.f32 %v1597, 1.0
    %v1599 = vrcp.pop %v1598
    %v1600 = vmul.f32 %v1598, %v1599
    %v1601 = vsub.f32 1.0, %v1600
    %v1602 = vmul.f32 %v1599, %v1601
    %v1603 = vadd.f32 %v1599, %v1602
    %vm1604 = vweird.f32 %v1598
    %vm1605 = vweird.f32 %v1599
    %vm1606 = vmor %vm1604, %vm1605
    %v1607 = vsel %vm1606, %v1599, %v1603
    %v1608 = vand.u32 2147483647, %v1598
    %vm1609 = vcmp.eq.f32.partialorder %v1608, 8.507059e+37
    %v1610 = vand.u32 %v1598, 2147483648
    %v1611 = vor.u32 1.1754944e-38, %v1610
    %v1612 = vsel %vm1609, %v1611, %v1607
    %v1613 = vmul.f32 1.0, %v1612
    %v1614 = vmul.f32 %v1593, %v1295
    %v1615 = vmul.f32 %v1574, %v1594
    %v1616 = vadd.f32 %v1614, %v1615
    %v1617 = vtanh.pop %v1616
    %v1618 = vmul.f32 %v1613, %v1617
    %v1619 = vpack.c.bf16 %v1618, %v1618
    %s1620 = scalar_lea.vmem [#allocation3], 12
    %1621 = vst [vmem:[%s1620] sm:$0xf] %v1619
    %s1622 = scalar_lea.vmem [#allocation2], 64
    %v1623 = vld [vmem:[%s1622] sm:$0xff]
    %v1624 = vld [vmem:[%s1622 + $0x8] sm:$0xff]
    %v1625 = vunpack.c.l.bf16 %v1623
    %v1626 = vunpack.c.h.bf16 %v1623
    %v1627 = vunpack.c.l.bf16 %v1624
    %v1628 = vunpack.c.h.bf16 %v1624
    %v1629 = vld [vmem:[#allocation9] sm:$0xff]
    %v1630 = vld [vmem:[#allocation9 + $0x8] sm:$0xff]
    %v1631 = vld [vmem:[#allocation9 + $0x10] sm:$0xff]
    %v1632 = vld [vmem:[#allocation9 + $0x18] sm:$0xff]
    %v1633 = vld [vmem:[#allocation9 + $0x20] sm:$0xff]
    %v1634 = vld [vmem:[#allocation9 + $0x28] sm:$0xff]
    %v1635 = vld [vmem:[#allocation9 + $0x30] sm:$0xff]
    %v1636 = vld [vmem:[#allocation9 + $0x38] sm:$0xff]
    %v1637 = vld [vmem:[#allocation9 + $0x40] sm:$0xff]
    %v1638 = vld [vmem:[#allocation9 + $0x48] sm:$0xff]
    %v1639 = vld [vmem:[#allocation9 + $0x50] sm:$0xff]
    %v1640 = vld [vmem:[#allocation9 + $0x58] sm:$0xff]
    %v1641 = vld [vmem:[#allocation9 + $0x60] sm:$0xff]
    %v1642 = vld [vmem:[#allocation9 + $0x68] sm:$0xff]
    %v1643 = vld [vmem:[#allocation9 + $0x70] sm:$0xff]
    %v1644 = vld [vmem:[#allocation9 + $0x78] sm:$0xff]
    %v1645 = vld [vmem:[#allocation9 + $0x80] sm:$0xff]
    %v1646 = vld [vmem:[#allocation9 + $0x88] sm:$0xff]
    %v1647 = vld [vmem:[#allocation9 + $0x90] sm:$0xff]
    %v1648 = vld [vmem:[#allocation9 + $0x98] sm:$0xff]
    %v1649 = vld [vmem:[#allocation9 + $0xa0] sm:$0xff]
    %v1650 = vld [vmem:[#allocation9 + $0xa8] sm:$0xff]
    %v1651 = vld [vmem:[#allocation9 + $0xb0] sm:$0xff]
    %v1652 = vld [vmem:[#allocation9 + $0xb8] sm:$0xff]
    %v1653 = vld [vmem:[#allocation9 + $0xc0] sm:$0xff]
    %v1654 = vld [vmem:[#allocation9 + $0xc8] sm:$0xff]
    %v1655 = vld [vmem:[#allocation9 + $0xd0] sm:$0xff]
    %v1656 = vld [vmem:[#allocation9 + $0xd8] sm:$0xff]
    %v1657 = vld [vmem:[#allocation9 + $0xe0] sm:$0xff]
    %v1658 = vld [vmem:[#allocation9 + $0xe8] sm:$0xff]
    %v1659 = vld [vmem:[#allocation9 + $0xf0] sm:$0xff]
    %v1660 = vld [vmem:[#allocation9 + $0xf8] sm:$0xff]
    %v1693 = vunpack.c.l.b16 %v1629
    %v1694 = vunpack.c.h.b16 %v1629
    %v1695 = vunpack.c.l.b16 %v1630
    %v1696 = vunpack.c.h.b16 %v1630
    %v1697 = vunpack.c.l.b16 %v1631
    %v1698 = vunpack.c.h.b16 %v1631
    %v1699 = vunpack.c.l.b16 %v1632
    %v1700 = vunpack.c.h.b16 %v1632
    %v1701 = vunpack.c.l.b16 %v1633
    %v1702 = vunpack.c.h.b16 %v1633
    %v1703 = vunpack.c.l.b16 %v1634
    %v1704 = vunpack.c.h.b16 %v1634
    %v1705 = vunpack.c.l.b16 %v1635
    %v1706 = vunpack.c.h.b16 %v1635
    %v1707 = vunpack.c.l.b16 %v1636
    %v1708 = vunpack.c.h.b16 %v1636
    %v1709 = vunpack.c.l.b16 %v1637
    %v1710 = vunpack.c.h.b16 %v1637
    %v1711 = vunpack.c.l.b16 %v1638
    %v1712 = vunpack.c.h.b16 %v1638
    %v1713 = vunpack.c.l.b16 %v1639
    %v1714 = vunpack.c.h.b16 %v1639
    %v1715 = vunpack.c.l.b16 %v1640
    %v1716 = vunpack.c.h.b16 %v1640
    %v1717 = vunpack.c.l.b16 %v1641
    %v1718 = vunpack.c.h.b16 %v1641
    %v1719 = vunpack.c.l.b16 %v1642
    %v1720 = vunpack.c.h.b16 %v1642
    %v1721 = vunpack.c.l.b16 %v1643
    %v1722 = vunpack.c.h.b16 %v1643
    %v1723 = vunpack.c.l.b16 %v1644
    %v1724 = vunpack.c.h.b16 %v1644
    %v1725 = vunpack.c.l.b16 %v1645
    %v1726 = vunpack.c.h.b16 %v1645
    %v1727 = vunpack.c.l.b16 %v1646
    %v1728 = vunpack.c.h.b16 %v1646
    %v1729 = vunpack.c.l.b16 %v1647
    %v1730 = vunpack.c.h.b16 %v1647
    %v1731 = vunpack.c.l.b16 %v1648
    %v1732 = vunpack.c.h.b16 %v1648
    %v1733 = vunpack.c.l.b16 %v1649
    %v1734 = vunpack.c.h.b16 %v1649
    %v1735 = vunpack.c.l.b16 %v1650
    %v1736 = vunpack.c.h.b16 %v1650
    %v1737 = vunpack.c.l.b16 %v1651
    %v1738 = vunpack.c.h.b16 %v1651
    %v1739 = vunpack.c.l.b16 %v1652
    %v1740 = vunpack.c.h.b16 %v1652
    %v1741 = vunpack.c.l.b16 %v1653
    %v1742 = vunpack.c.h.b16 %v1653
    %v1743 = vunpack.c.l.b16 %v1654
    %v1744 = vunpack.c.h.b16 %v1654
    %v1745 = vunpack.c.l.b16 %v1655
    %v1746 = vunpack.c.h.b16 %v1655
    %v1747 = vunpack.c.l.b16 %v1656
    %v1748 = vunpack.c.h.b16 %v1656
    %v1749 = vunpack.c.l.b16 %v1657
    %v1750 = vunpack.c.h.b16 %v1657
    %v1751 = vunpack.c.l.b16 %v1658
    %v1752 = vunpack.c.h.b16 %v1658
    %v1753 = vunpack.c.l.b16 %v1659
    %v1754 = vunpack.c.h.b16 %v1659
    %v1755 = vunpack.c.l.b16 %v1660
    %v1756 = vunpack.c.h.b16 %v1660
    %v1757 = vpack.c.b16 %v1697, %v1693
    %v1758 = vpack.c.b16 %v1698, %v1694
    %v1759 = vpack.c.b16 %v1699, %v1695
    %v1760 = vpack.c.b16 %v1700, %v1696
    %v1761 = vpack.c.b16 %v1705, %v1701
    %v1762 = vpack.c.b16 %v1706, %v1702
    %v1763 = vpack.c.b16 %v1707, %v1703
    %v1764 = vpack.c.b16 %v1708, %v1704
    %v1765 = vpack.c.b16 %v1713, %v1709
    %v1766 = vpack.c.b16 %v1714, %v1710
    %v1767 = vpack.c.b16 %v1715, %v1711
    %v1768 = vpack.c.b16 %v1716, %v1712
    %v1769 = vpack.c.b16 %v1721, %v1717
    %v1770 = vpack.c.b16 %v1722, %v1718
    %v1771 = vpack.c.b16 %v1723, %v1719
    %v1772 = vpack.c.b16 %v1724, %v1720
    %v1773 = vpack.c.b16 %v1729, %v1725
    %v1774 = vpack.c.b16 %v1730, %v1726
    %v1775 = vpack.c.b16 %v1731, %v1727
    %v1776 = vpack.c.b16 %v1732, %v1728
    %v1777 = vpack.c.b16 %v1737, %v1733
    %v1778 = vpack.c.b16 %v1738, %v1734
    %v1779 = vpack.c.b16 %v1739, %v1735
    %v1780 = vpack.c.b16 %v1740, %v1736
    %v1781 = vpack.c.b16 %v1745, %v1741
    %v1782 = vpack.c.b16 %v1746, %v1742
    %v1783 = vpack.c.b16 %v1747, %v1743
    %v1784 = vpack.c.b16 %v1748, %v1744
    %v1785 = vpack.c.b16 %v1753, %v1749
    %v1786 = vpack.c.b16 %v1754, %v1750
    %v1787 = vpack.c.b16 %v1755, %v1751
    %v1788 = vpack.c.b16 %v1756, %v1752
    %1821 = vmatpush.bf16.msra.mxu0 %v1785
    %1822 = vmatpush.bf16.msra.mxu0 %v1781
    %1823 = vmatpush.bf16.msra.mxu0 %v1777
    %1824 = vmatpush.bf16.msra.mxu0 %v1773
    %1825 = vmatpush.bf16.msra.mxu0 %v1769
    %1826 = vmatpush.bf16.msra.mxu0 %v1765
    %1827 = vmatpush.bf16.msra.mxu0 %v1761
    %1828 = vmatpush.bf16.msra.mxu0 %v1757
    %1829 = vmatmul.bf16.gmra.mxu0 %v1619
    %v1830 = vpop.f32.mrf.mxu0
    %v1831 = vadd.f32 0.0, %v1830
    %v1832 = vpop.f32.mrf.mxu0
    %1833 = vdwg.mxu0
    %1834 = vmatpush.bf16.msra.mxu0 %v1786
    %1835 = vmatpush.bf16.msra.mxu0 %v1782
    %1836 = vmatpush.bf16.msra.mxu0 %v1778
    %1837 = vmatpush.bf16.msra.mxu0 %v1774
    %1838 = vmatpush.bf16.msra.mxu0 %v1770
    %1839 = vmatpush.bf16.msra.mxu0 %v1766
    %1840 = vmatpush.bf16.msra.mxu0 %v1762
    %1841 = vmatpush.bf16.msra.mxu0 %v1758
    %1842 = vmatmul.bf16.gmra.mxu0 %v1619
    %v1843 = vpop.f32.mrf.mxu0
    %v1844 = vadd.f32 0.0, %v1843
    %v1845 = vpop.f32.mrf.mxu0
    %1846 = vdwg.mxu0
    %1847 = vmatpush.bf16.msra.mxu0 %v1787
    %1848 = vmatpush.bf16.msra.mxu0 %v1783
    %1849 = vmatpush.bf16.msra.mxu0 %v1779
    %1850 = vmatpush.bf16.msra.mxu0 %v1775
    %1851 = vmatpush.bf16.msra.mxu0 %v1771
    %1852 = vmatpush.bf16.msra.mxu0 %v1767
    %1853 = vmatpush.bf16.msra.mxu0 %v1763
    %1854 = vmatpush.bf16.msra.mxu0 %v1759
    %1855 = vmatmul.bf16.gmra.mxu0 %v1619
    %v1856 = vpop.f32.mrf.mxu0
    %v1857 = vadd.f32 0.0, %v1856
    %v1858 = vpop.f32.mrf.mxu0
    %1859 = vdwg.mxu0
    %1860 = vmatpush.bf16.msra.mxu0 %v1788
    %1861 = vmatpush.bf16.msra.mxu0 %v1784
    %1862 = vmatpush.bf16.msra.mxu0 %v1780
    %1863 = vmatpush.bf16.msra.mxu0 %v1776
    %1864 = vmatpush.bf16.msra.mxu0 %v1772
    %1865 = vmatpush.bf16.msra.mxu0 %v1768
    %1866 = vmatpush.bf16.msra.mxu0 %v1764
    %1867 = vmatpush.bf16.msra.mxu0 %v1760
    %1868 = vmatmul.bf16.gmra.mxu0 %v1619
    %v1869 = vpop.f32.mrf.mxu0
    %v1870 = vadd.f32 0.0, %v1869
    %v1871 = vpop.f32.mrf.mxu0
    %1872 = vdwg.mxu0
    %v1873 = vadd.f32 %v1625, %v1831
    %v1874 = vadd.f32 %v1626, %v1844
    %v1875 = vadd.f32 %v1627, %v1857
    %v1876 = vadd.f32 %v1628, %v1870
    %v1877 = vxor.u32 %v1873, 2147483648
    %v1878 = vmul.f32 %v1877, 1.442695
    %v1879 = vpow.pop %v1878
    %v1880 = vadd.f32 %v1879, 1.0
    %v1881 = vrcp.pop %v1880
    %v1882 = vmul.f32 %v1880, %v1881
    %v1883 = vsub.f32 1.0, %v1882
    %v1884 = vmul.f32 %v1881, %v1883
    %v1885 = vadd.f32 %v1881, %v1884
    %vm1886 = vweird.f32 %v1880
    %vm1887 = vweird.f32 %v1881
    %vm1888 = vmor %vm1886, %vm1887
    %v1889 = vsel %vm1888, %v1881, %v1885
    %v1890 = vand.u32 2147483647, %v1880
    %vm1891 = vcmp.eq.f32.partialorder %v1890, 8.507059e+37
    %v1892 = vand.u32 %v1880, 2147483648
    %v1893 = vor.u32 1.1754944e-38, %v1892
    %v1894 = vsel %vm1891, %v1893, %v1889
    %v1895 = vmul.f32 1.0, %v1894
    %v1896 = vxor.u32 %v1874, 2147483648
    %v1897 = vmul.f32 %v1896, 1.442695
    %v1898 = vpow.pop %v1897
    %v1899 = vadd.f32 %v1898, 1.0
    %v1900 = vrcp.pop %v1899
    %v1901 = vmul.f32 %v1899, %v1900
    %v1902 = vsub.f32 1.0, %v1901
    %v1903 = vmul.f32 %v1900, %v1902
    %v1904 = vadd.f32 %v1900, %v1903
    %vm1905 = vweird.f32 %v1899
    %vm1906 = vweird.f32 %v1900
    %vm1907 = vmor %vm1905, %vm1906
    %v1908 = vsel %vm1907, %v1900, %v1904
    %v1909 = vand.u32 2147483647, %v1899
    %vm1910 = vcmp.eq.f32.partialorder %v1909, 8.507059e+37
    %v1911 = vand.u32 %v1899, 2147483648
    %v1912 = vor.u32 1.1754944e-38, %v1911
    %v1913 = vsel %vm1910, %v1912, %v1908
    %v1914 = vmul.f32 1.0, %v1913
    %v1915 = vtanh.pop %v1875
    %v1916 = vxor.u32 %v1876, 2147483648
    %v1917 = vmul.f32 %v1916, 1.442695
    %v1918 = vpow.pop %v1917
    %v1919 = vadd.f32 %v1918, 1.0
    %v1920 = vrcp.pop %v1919
    %v1921 = vmul.f32 %v1919, %v1920
    %v1922 = vsub.f32 1.0, %v1921
    %v1923 = vmul.f32 %v1920, %v1922
    %v1924 = vadd.f32 %v1920, %v1923
    %vm1925 = vweird.f32 %v1919
    %vm1926 = vweird.f32 %v1920
    %vm1927 = vmor %vm1925, %vm1926
    %v1928 = vsel %vm1927, %v1920, %v1924
    %v1929 = vand.u32 2147483647, %v1919
    %vm1930 = vcmp.eq.f32.partialorder %v1929, 8.507059e+37
    %v1931 = vand.u32 %v1919, 2147483648
    %v1932 = vor.u32 1.1754944e-38, %v1931
    %v1933 = vsel %vm1930, %v1932, %v1928
    %v1934 = vmul.f32 1.0, %v1933
    %v1935 = vmul.f32 %v1914, %v1616
    %v1936 = vmul.f32 %v1895, %v1915
    %v1937 = vadd.f32 %v1935, %v1936
    %v1938 = vtanh.pop %v1937
    %v1939 = vmul.f32 %v1934, %v1938
    %v1940 = vpack.c.bf16 %v1939, %v1939
    %s1941 = scalar_lea.vmem [#allocation3], 16
    %1942 = vst [vmem:[%s1941] sm:$0xf] %v1940
    %s1943 = scalar_lea.vmem [#allocation2], 80
    %v1944 = vld [vmem:[%s1943] sm:$0xff]
    %v1945 = vld [vmem:[%s1943 + $0x8] sm:$0xff]
    %v1946 = vunpack.c.l.bf16 %v1944
    %v1947 = vunpack.c.h.bf16 %v1944
    %v1948 = vunpack.c.l.bf16 %v1945
    %v1949 = vunpack.c.h.bf16 %v1945
    %v1950 = vld [vmem:[#allocation9] sm:$0xff]
    %v1951 = vld [vmem:[#allocation9 + $0x8] sm:$0xff]
    %v1952 = vld [vmem:[#allocation9 + $0x10] sm:$0xff]
    %v1953 = vld [vmem:[#allocation9 + $0x18] sm:$0xff]
    %v1954 = vld [vmem:[#allocation9 + $0x20] sm:$0xff]
    %v1955 = vld [vmem:[#allocation9 + $0x28] sm:$0xff]
    %v1956 = vld [vmem:[#allocation9 + $0x30] sm:$0xff]
    %v1957 = vld [vmem:[#allocation9 + $0x38] sm:$0xff]
    %v1958 = vld [vmem:[#allocation9 + $0x40] sm:$0xff]
    %v1959 = vld [vmem:[#allocation9 + $0x48] sm:$0xff]
    %v1960 = vld [vmem:[#allocation9 + $0x50] sm:$0xff]
    %v1961 = vld [vmem:[#allocation9 + $0x58] sm:$0xff]
    %v1962 = vld [vmem:[#allocation9 + $0x60] sm:$0xff]
    %v1963 = vld [vmem:[#allocation9 + $0x68] sm:$0xff]
    %v1964 = vld [vmem:[#allocation9 + $0x70] sm:$0xff]
    %v1965 = vld [vmem:[#allocation9 + $0x78] sm:$0xff]
    %v1966 = vld [vmem:[#allocation9 + $0x80] sm:$0xff]
    %v1967 = vld [vmem:[#allocation9 + $0x88] sm:$0xff]
    %v1968 = vld [vmem:[#allocation9 + $0x90] sm:$0xff]
    %v1969 = vld [vmem:[#allocation9 + $0x98] sm:$0xff]
    %v1970 = vld [vmem:[#allocation9 + $0xa0] sm:$0xff]
    %v1971 = vld [vmem:[#allocation9 + $0xa8] sm:$0xff]
    %v1972 = vld [vmem:[#allocation9 + $0xb0] sm:$0xff]
    %v1973 = vld [vmem:[#allocation9 + $0xb8] sm:$0xff]
    %v1974 = vld [vmem:[#allocation9 + $0xc0] sm:$0xff]
    %v1975 = vld [vmem:[#allocation9 + $0xc8] sm:$0xff]
    %v1976 = vld [vmem:[#allocation9 + $0xd0] sm:$0xff]
    %v1977 = vld [vmem:[#allocation9 + $0xd8] sm:$0xff]
    %v1978 = vld [vmem:[#allocation9 + $0xe0] sm:$0xff]
    %v1979 = vld [vmem:[#allocation9 + $0xe8] sm:$0xff]
    %v1980 = vld [vmem:[#allocation9 + $0xf0] sm:$0xff]
    %v1981 = vld [vmem:[#allocation9 + $0xf8] sm:$0xff]
    %v2014 = vunpack.c.l.b16 %v1950
    %v2015 = vunpack.c.h.b16 %v1950
    %v2016 = vunpack.c.l.b16 %v1951
    %v2017 = vunpack.c.h.b16 %v1951
    %v2018 = vunpack.c.l.b16 %v1952
    %v2019 = vunpack.c.h.b16 %v1952
    %v2020 = vunpack.c.l.b16 %v1953
    %v2021 = vunpack.c.h.b16 %v1953
    %v2022 = vunpack.c.l.b16 %v1954
    %v2023 = vunpack.c.h.b16 %v1954
    %v2024 = vunpack.c.l.b16 %v1955
    %v2025 = vunpack.c.h.b16 %v1955
    %v2026 = vunpack.c.l.b16 %v1956
    %v2027 = vunpack.c.h.b16 %v1956
    %v2028 = vunpack.c.l.b16 %v1957
    %v2029 = vunpack.c.h.b16 %v1957
    %v2030 = vunpack.c.l.b16 %v1958
    %v2031 = vunpack.c.h.b16 %v1958
    %v2032 = vunpack.c.l.b16 %v1959
    %v2033 = vunpack.c.h.b16 %v1959
    %v2034 = vunpack.c.l.b16 %v1960
    %v2035 = vunpack.c.h.b16 %v1960
    %v2036 = vunpack.c.l.b16 %v1961
    %v2037 = vunpack.c.h.b16 %v1961
    %v2038 = vunpack.c.l.b16 %v1962
    %v2039 = vunpack.c.h.b16 %v1962
    %v2040 = vunpack.c.l.b16 %v1963
    %v2041 = vunpack.c.h.b16 %v1963
    %v2042 = vunpack.c.l.b16 %v1964
    %v2043 = vunpack.c.h.b16 %v1964
    %v2044 = vunpack.c.l.b16 %v1965
    %v2045 = vunpack.c.h.b16 %v1965
    %v2046 = vunpack.c.l.b16 %v1966
    %v2047 = vunpack.c.h.b16 %v1966
    %v2048 = vunpack.c.l.b16 %v1967
    %v2049 = vunpack.c.h.b16 %v1967
    %v2050 = vunpack.c.l.b16 %v1968
    %v2051 = vunpack.c.h.b16 %v1968
    %v2052 = vunpack.c.l.b16 %v1969
    %v2053 = vunpack.c.h.b16 %v1969
    %v2054 = vunpack.c.l.b16 %v1970
    %v2055 = vunpack.c.h.b16 %v1970
    %v2056 = vunpack.c.l.b16 %v1971
    %v2057 = vunpack.c.h.b16 %v1971
    %v2058 = vunpack.c.l.b16 %v1972
    %v2059 = vunpack.c.h.b16 %v1972
    %v2060 = vunpack.c.l.b16 %v1973
    %v2061 = vunpack.c.h.b16 %v1973
    %v2062 = vunpack.c.l.b16 %v1974
    %v2063 = vunpack.c.h.b16 %v1974
    %v2064 = vunpack.c.l.b16 %v1975
    %v2065 = vunpack.c.h.b16 %v1975
    %v2066 = vunpack.c.l.b16 %v1976
    %v2067 = vunpack.c.h.b16 %v1976
    %v2068 = vunpack.c.l.b16 %v1977
    %v2069 = vunpack.c.h.b16 %v1977
    %v2070 = vunpack.c.l.b16 %v1978
    %v2071 = vunpack.c.h.b16 %v1978
    %v2072 = vunpack.c.l.b16 %v1979
    %v2073 = vunpack.c.h.b16 %v1979
    %v2074 = vunpack.c.l.b16 %v1980
    %v2075 = vunpack.c.h.b16 %v1980
    %v2076 = vunpack.c.l.b16 %v1981
    %v2077 = vunpack.c.h.b16 %v1981
    %v2078 = vpack.c.b16 %v2018, %v2014
    %v2079 = vpack.c.b16 %v2019, %v2015
    %v2080 = vpack.c.b16 %v2020, %v2016
    %v2081 = vpack.c.b16 %v2021, %v2017
    %v2082 = vpack.c.b16 %v2026, %v2022
    %v2083 = vpack.c.b16 %v2027, %v2023
    %v2084 = vpack.c.b16 %v2028, %v2024
    %v2085 = vpack.c.b16 %v2029, %v2025
    %v2086 = vpack.c.b16 %v2034, %v2030
    %v2087 = vpack.c.b16 %v2035, %v2031
    %v2088 = vpack.c.b16 %v2036, %v2032
    %v2089 = vpack.c.b16 %v2037, %v2033
    %v2090 = vpack.c.b16 %v2042, %v2038
    %v2091 = vpack.c.b16 %v2043, %v2039
    %v2092 = vpack.c.b16 %v2044, %v2040
    %v2093 = vpack.c.b16 %v2045, %v2041
    %v2094 = vpack.c.b16 %v2050, %v2046
    %v2095 = vpack.c.b16 %v2051, %v2047
    %v2096 = vpack.c.b16 %v2052, %v2048
    %v2097 = vpack.c.b16 %v2053, %v2049
    %v2098 = vpack.c.b16 %v2058, %v2054
    %v2099 = vpack.c.b16 %v2059, %v2055
    %v2100 = vpack.c.b16 %v2060, %v2056
    %v2101 = vpack.c.b16 %v2061, %v2057
    %v2102 = vpack.c.b16 %v2066, %v2062
    %v2103 = vpack.c.b16 %v2067, %v2063
    %v2104 = vpack.c.b16 %v2068, %v2064
    %v2105 = vpack.c.b16 %v2069, %v2065
    %v2106 = vpack.c.b16 %v2074, %v2070
    %v2107 = vpack.c.b16 %v2075, %v2071
    %v2108 = vpack.c.b16 %v2076, %v2072
    %v2109 = vpack.c.b16 %v2077, %v2073
    %2142 = vmatpush.bf16.msra.mxu0 %v2106
    %2143 = vmatpush.bf16.msra.mxu0 %v2102
    %2144 = vmatpush.bf16.msra.mxu0 %v2098
    %2145 = vmatpush.bf16.msra.mxu0 %v2094
    %2146 = vmatpush.bf16.msra.mxu0 %v2090
    %2147 = vmatpush.bf16.msra.mxu0 %v2086
    %2148 = vmatpush.bf16.msra.mxu0 %v2082
    %2149 = vmatpush.bf16.msra.mxu0 %v2078
    %2150 = vmatmul.bf16.gmra.mxu0 %v1940
    %v2151 = vpop.f32.mrf.mxu0
    %v2152 = vadd.f32 0.0, %v2151
    %v2153 = vpop.f32.mrf.mxu0
    %2154 = vdwg.mxu0
    %2155 = vmatpush.bf16.msra.mxu0 %v2107
    %2156 = vmatpush.bf16.msra.mxu0 %v2103
    %2157 = vmatpush.bf16.msra.mxu0 %v2099
    %2158 = vmatpush.bf16.msra.mxu0 %v2095
    %2159 = vmatpush.bf16.msra.mxu0 %v2091
    %2160 = vmatpush.bf16.msra.mxu0 %v2087
    %2161 = vmatpush.bf16.msra.mxu0 %v2083
    %2162 = vmatpush.bf16.msra.mxu0 %v2079
    %2163 = vmatmul.bf16.gmra.mxu0 %v1940
    %v2164 = vpop.f32.mrf.mxu0
    %v2165 = vadd.f32 0.0, %v2164
    %v2166 = vpop.f32.mrf.mxu0
    %2167 = vdwg.mxu0
    %2168 = vmatpush.bf16.msra.mxu0 %v2108
    %2169 = vmatpush.bf16.msra.mxu0 %v2104
    %2170 = vmatpush.bf16.msra.mxu0 %v2100
    %2171 = vmatpush.bf16.msra.mxu0 %v2096
    %2172 = vmatpush.bf16.msra.mxu0 %v2092
    %2173 = vmatpush.bf16.msra.mxu0 %v2088
    %2174 = vmatpush.bf16.msra.mxu0 %v2084
    %2175 = vmatpush.bf16.msra.mxu0 %v2080
    %2176 = vmatmul.bf16.gmra.mxu0 %v1940
    %v2177 = vpop.f32.mrf.mxu0
    %v2178 = vadd.f32 0.0, %v2177
    %v2179 = vpop.f32.mrf.mxu0
    %2180 = vdwg.mxu0
    %2181 = vmatpush.bf16.msra.mxu0 %v2109
    %2182 = vmatpush.bf16.msra.mxu0 %v2105
    %2183 = vmatpush.bf16.msra.mxu0 %v2101
    %2184 = vmatpush.bf16.msra.mxu0 %v2097
    %2185 = vmatpush.bf16.msra.mxu0 %v2093
    %2186 = vmatpush.bf16.msra.mxu0 %v2089
    %2187 = vmatpush.bf16.msra.mxu0 %v2085
    %2188 = vmatpush.bf16.msra.mxu0 %v2081
    %2189 = vmatmul.bf16.gmra.mxu0 %v1940
    %v2190 = vpop.f32.mrf.mxu0
    %v2191 = vadd.f32 0.0, %v2190
    %v2192 = vpop.f32.mrf.mxu0
    %2193 = vdwg.mxu0
    %v2194 = vadd.f32 %v1946, %v2152
    %v2195 = vadd.f32 %v1947, %v2165
    %v2196 = vadd.f32 %v1948, %v2178
    %v2197 = vadd.f32 %v1949, %v2191
    %v2198 = vxor.u32 %v2194, 2147483648
    %v2199 = vmul.f32 %v2198, 1.442695
    %v2200 = vpow.pop %v2199
    %v2201 = vadd.f32 %v2200, 1.0
    %v2202 = vrcp.pop %v2201
    %v2203 = vmul.f32 %v2201, %v2202
    %v2204 = vsub.f32 1.0, %v2203
    %v2205 = vmul.f32 %v2202, %v2204
    %v2206 = vadd.f32 %v2202, %v2205
    %vm2207 = vweird.f32 %v2201
    %vm2208 = vweird.f32 %v2202
    %vm2209 = vmor %vm2207, %vm2208
    %v2210 = vsel %vm2209, %v2202, %v2206
    %v2211 = vand.u32 2147483647, %v2201
    %vm2212 = vcmp.eq.f32.partialorder %v2211, 8.507059e+37
    %v2213 = vand.u32 %v2201, 2147483648
    %v2214 = vor.u32 1.1754944e-38, %v2213
    %v2215 = vsel %vm2212, %v2214, %v2210
    %v2216 = vmul.f32 1.0, %v2215
    %v2217 = vxor.u32 %v2195, 2147483648
    %v2218 = vmul.f32 %v2217, 1.442695
    %v2219 = vpow.pop %v2218
    %v2220 = vadd.f32 %v2219, 1.0
    %v2221 = vrcp.pop %v2220
    %v2222 = vmul.f32 %v2220, %v2221
    %v2223 = vsub.f32 1.0, %v2222
    %v2224 = vmul.f32 %v2221, %v2223
    %v2225 = vadd.f32 %v2221, %v2224
    %vm2226 = vweird.f32 %v2220
    %vm2227 = vweird.f32 %v2221
    %vm2228 = vmor %vm2226, %vm2227
    %v2229 = vsel %vm2228, %v2221, %v2225
    %v2230 = vand.u32 2147483647, %v2220
    %vm2231 = vcmp.eq.f32.partialorder %v2230, 8.507059e+37
    %v2232 = vand.u32 %v2220, 2147483648
    %v2233 = vor.u32 1.1754944e-38, %v2232
    %v2234 = vsel %vm2231, %v2233, %v2229
    %v2235 = vmul.f32 1.0, %v2234
    %v2236 = vtanh.pop %v2196
    %v2237 = vxor.u32 %v2197, 2147483648
    %v2238 = vmul.f32 %v2237, 1.442695
    %v2239 = vpow.pop %v2238
    %v2240 = vadd.f32 %v2239, 1.0
    %v2241 = vrcp.pop %v2240
    %v2242 = vmul.f32 %v2240, %v2241
    %v2243 = vsub.f32 1.0, %v2242
    %v2244 = vmul.f32 %v2241, %v2243
    %v2245 = vadd.f32 %v2241, %v2244
    %vm2246 = vweird.f32 %v2240
    %vm2247 = vweird.f32 %v2241
    %vm2248 = vmor %vm2246, %vm2247
    %v2249 = vsel %vm2248, %v2241, %v2245
    %v2250 = vand.u32 2147483647, %v2240
    %vm2251 = vcmp.eq.f32.partialorder %v2250, 8.507059e+37
    %v2252 = vand.u32 %v2240, 2147483648
    %v2253 = vor.u32 1.1754944e-38, %v2252
    %v2254 = vsel %vm2251, %v2253, %v2249
    %v2255 = vmul.f32 1.0, %v2254
    %v2256 = vmul.f32 %v2235, %v1937
    %v2257 = vmul.f32 %v2216, %v2236
    %v2258 = vadd.f32 %v2256, %v2257
    %v2259 = vtanh.pop %v2258
    %v2260 = vmul.f32 %v2255, %v2259
    %v2261 = vpack.c.bf16 %v2260, %v2260
    %s2262 = scalar_lea.vmem [#allocation3], 20
    %2263 = vst [vmem:[%s2262] sm:$0xf] %v2261
    %s2264 = scalar_lea.vmem [#allocation2], 96
    %v2265 = vld [vmem:[%s2264] sm:$0xff]
    %v2266 = vld [vmem:[%s2264 + $0x8] sm:$0xff]
    %v2267 = vunpack.c.l.bf16 %v2265
    %v2268 = vunpack.c.h.bf16 %v2265
    %v2269 = vunpack.c.l.bf16 %v2266
    %v2270 = vunpack.c.h.bf16 %v2266
    %v2271 = vld [vmem:[#allocation9] sm:$0xff]
    %v2272 = vld [vmem:[#allocation9 + $0x8] sm:$0xff]
    %v2273 = vld [vmem:[#allocation9 + $0x10] sm:$0xff]
    %v2274 = vld [vmem:[#allocation9 + $0x18] sm:$0xff]
    %v2275 = vld [vmem:[#allocation9 + $0x20] sm:$0xff]
    %v2276 = vld [vmem:[#allocation9 + $0x28] sm:$0xff]
    %v2277 = vld [vmem:[#allocation9 + $0x30] sm:$0xff]
    %v2278 = vld [vmem:[#allocation9 + $0x38] sm:$0xff]
    %v2279 = vld [vmem:[#allocation9 + $0x40] sm:$0xff]
    %v2280 = vld [vmem:[#allocation9 + $0x48] sm:$0xff]
    %v2281 = vld [vmem:[#allocation9 + $0x50] sm:$0xff]
    %v2282 = vld [vmem:[#allocation9 + $0x58] sm:$0xff]
    %v2283 = vld [vmem:[#allocation9 + $0x60] sm:$0xff]
    %v2284 = vld [vmem:[#allocation9 + $0x68] sm:$0xff]
    %v2285 = vld [vmem:[#allocation9 + $0x70] sm:$0xff]
    %v2286 = vld [vmem:[#allocation9 + $0x78] sm:$0xff]
    %v2287 = vld [vmem:[#allocation9 + $0x80] sm:$0xff]
    %v2288 = vld [vmem:[#allocation9 + $0x88] sm:$0xff]
    %v2289 = vld [vmem:[#allocation9 + $0x90] sm:$0xff]
    %v2290 = vld [vmem:[#allocation9 + $0x98] sm:$0xff]
    %v2291 = vld [vmem:[#allocation9 + $0xa0] sm:$0xff]
    %v2292 = vld [vmem:[#allocation9 + $0xa8] sm:$0xff]
    %v2293 = vld [vmem:[#allocation9 + $0xb0] sm:$0xff]
    %v2294 = vld [vmem:[#allocation9 + $0xb8] sm:$0xff]
    %v2295 = vld [vmem:[#allocation9 + $0xc0] sm:$0xff]
    %v2296 = vld [vmem:[#allocation9 + $0xc8] sm:$0xff]
    %v2297 = vld [vmem:[#allocation9 + $0xd0] sm:$0xff]
    %v2298 = vld [vmem:[#allocation9 + $0xd8] sm:$0xff]
    %v2299 = vld [vmem:[#allocation9 + $0xe0] sm:$0xff]
    %v2300 = vld [vmem:[#allocation9 + $0xe8] sm:$0xff]
    %v2301 = vld [vmem:[#allocation9 + $0xf0] sm:$0xff]
    %v2302 = vld [vmem:[#allocation9 + $0xf8] sm:$0xff]
    %v2335 = vunpack.c.l.b16 %v2271
    %v2336 = vunpack.c.h.b16 %v2271
    %v2337 = vunpack.c.l.b16 %v2272
    %v2338 = vunpack.c.h.b16 %v2272
    %v2339 = vunpack.c.l.b16 %v2273
    %v2340 = vunpack.c.h.b16 %v2273
    %v2341 = vunpack.c.l.b16 %v2274
    %v2342 = vunpack.c.h.b16 %v2274
    %v2343 = vunpack.c.l.b16 %v2275
    %v2344 = vunpack.c.h.b16 %v2275
    %v2345 = vunpack.c.l.b16 %v2276
    %v2346 = vunpack.c.h.b16 %v2276
    %v2347 = vunpack.c.l.b16 %v2277
    %v2348 = vunpack.c.h.b16 %v2277
    %v2349 = vunpack.c.l.b16 %v2278
    %v2350 = vunpack.c.h.b16 %v2278
    %v2351 = vunpack.c.l.b16 %v2279
    %v2352 = vunpack.c.h.b16 %v2279
    %v2353 = vunpack.c.l.b16 %v2280
    %v2354 = vunpack.c.h.b16 %v2280
    %v2355 = vunpack.c.l.b16 %v2281
    %v2356 = vunpack.c.h.b16 %v2281
    %v2357 = vunpack.c.l.b16 %v2282
    %v2358 = vunpack.c.h.b16 %v2282
    %v2359 = vunpack.c.l.b16 %v2283
    %v2360 = vunpack.c.h.b16 %v2283
    %v2361 = vunpack.c.l.b16 %v2284
    %v2362 = vunpack.c.h.b16 %v2284
    %v2363 = vunpack.c.l.b16 %v2285
    %v2364 = vunpack.c.h.b16 %v2285
    %v2365 = vunpack.c.l.b16 %v2286
    %v2366 = vunpack.c.h.b16 %v2286
    %v2367 = vunpack.c.l.b16 %v2287
    %v2368 = vunpack.c.h.b16 %v2287
    %v2369 = vunpack.c.l.b16 %v2288
    %v2370 = vunpack.c.h.b16 %v2288
    %v2371 = vunpack.c.l.b16 %v2289
    %v2372 = vunpack.c.h.b16 %v2289
    %v2373 = vunpack.c.l.b16 %v2290
    %v2374 = vunpack.c.h.b16 %v2290
    %v2375 = vunpack.c.l.b16 %v2291
    %v2376 = vunpack.c.h.b16 %v2291
    %v2377 = vunpack.c.l.b16 %v2292
    %v2378 = vunpack.c.h.b16 %v2292
    %v2379 = vunpack.c.l.b16 %v2293
    %v2380 = vunpack.c.h.b16 %v2293
    %v2381 = vunpack.c.l.b16 %v2294
    %v2382 = vunpack.c.h.b16 %v2294
    %v2383 = vunpack.c.l.b16 %v2295
    %v2384 = vunpack.c.h.b16 %v2295
    %v2385 = vunpack.c.l.b16 %v2296
    %v2386 = vunpack.c.h.b16 %v2296
    %v2387 = vunpack.c.l.b16 %v2297
    %v2388 = vunpack.c.h.b16 %v2297
    %v2389 = vunpack.c.l.b16 %v2298
    %v2390 = vunpack.c.h.b16 %v2298
    %v2391 = vunpack.c.l.b16 %v2299
    %v2392 = vunpack.c.h.b16 %v2299
    %v2393 = vunpack.c.l.b16 %v2300
    %v2394 = vunpack.c.h.b16 %v2300
    %v2395 = vunpack.c.l.b16 %v2301
    %v2396 = vunpack.c.h.b16 %v2301
    %v2397 = vunpack.c.l.b16 %v2302
    %v2398 = vunpack.c.h.b16 %v2302
    %v2399 = vpack.c.b16 %v2339, %v2335
    %v2400 = vpack.c.b16 %v2340, %v2336
    %v2401 = vpack.c.b16 %v2341, %v2337
    %v2402 = vpack.c.b16 %v2342, %v2338
    %v2403 = vpack.c.b16 %v2347, %v2343
    %v2404 = vpack.c.b16 %v2348, %v2344
    %v2405 = vpack.c.b16 %v2349, %v2345
    %v2406 = vpack.c.b16 %v2350, %v2346
    %v2407 = vpack.c.b16 %v2355, %v2351
    %v2408 = vpack.c.b16 %v2356, %v2352
    %v2409 = vpack.c.b16 %v2357, %v2353
    %v2410 = vpack.c.b16 %v2358, %v2354
    %v2411 = vpack.c.b16 %v2363, %v2359
    %v2412 = vpack.c.b16 %v2364, %v2360
    %v2413 = vpack.c.b16 %v2365, %v2361
    %v2414 = vpack.c.b16 %v2366, %v2362
    %v2415 = vpack.c.b16 %v2371, %v2367
    %v2416 = vpack.c.b16 %v2372, %v2368
    %v2417 = vpack.c.b16 %v2373, %v2369
    %v2418 = vpack.c.b16 %v2374, %v2370
    %v2419 = vpack.c.b16 %v2379, %v2375
    %v2420 = vpack.c.b16 %v2380, %v2376
    %v2421 = vpack.c.b16 %v2381, %v2377
    %v2422 = vpack.c.b16 %v2382, %v2378
    %v2423 = vpack.c.b16 %v2387, %v2383
    %v2424 = vpack.c.b16 %v2388, %v2384
    %v2425 = vpack.c.b16 %v2389, %v2385
    %v2426 = vpack.c.b16 %v2390, %v2386
    %v2427 = vpack.c.b16 %v2395, %v2391
    %v2428 = vpack.c.b16 %v2396, %v2392
    %v2429 = vpack.c.b16 %v2397, %v2393
    %v2430 = vpack.c.b16 %v2398, %v2394
    %2463 = vmatpush.bf16.msra.mxu0 %v2427
    %2464 = vmatpush.bf16.msra.mxu0 %v2423
    %2465 = vmatpush.bf16.msra.mxu0 %v2419
    %2466 = vmatpush.bf16.msra.mxu0 %v2415
    %2467 = vmatpush.bf16.msra.mxu0 %v2411
    %2468 = vmatpush.bf16.msra.mxu0 %v2407
    %2469 = vmatpush.bf16.msra.mxu0 %v2403
    %2470 = vmatpush.bf16.msra.mxu0 %v2399
    %2471 = vmatmul.bf16.gmra.mxu0 %v2261
    %v2472 = vpop.f32.mrf.mxu0
    %v2473 = vadd.f32 0.0, %v2472
    %v2474 = vpop.f32.mrf.mxu0
    %2475 = vdwg.mxu0
    %2476 = vmatpush.bf16.msra.mxu0 %v2428
    %2477 = vmatpush.bf16.msra.mxu0 %v2424
    %2478 = vmatpush.bf16.msra.mxu0 %v2420
    %2479 = vmatpush.bf16.msra.mxu0 %v2416
    %2480 = vmatpush.bf16.msra.mxu0 %v2412
    %2481 = vmatpush.bf16.msra.mxu0 %v2408
    %2482 = vmatpush.bf16.msra.mxu0 %v2404
    %2483 = vmatpush.bf16.msra.mxu0 %v2400
    %2484 = vmatmul.bf16.gmra.mxu0 %v2261
    %v2485 = vpop.f32.mrf.mxu0
    %v2486 = vadd.f32 0.0, %v2485
    %v2487 = vpop.f32.mrf.mxu0
    %2488 = vdwg.mxu0
    %2489 = vmatpush.bf16.msra.mxu0 %v2429
    %2490 = vmatpush.bf16.msra.mxu0 %v2425
    %2491 = vmatpush.bf16.msra.mxu0 %v2421
    %2492 = vmatpush.bf16.msra.mxu0 %v2417
    %2493 = vmatpush.bf16.msra.mxu0 %v2413
    %2494 = vmatpush.bf16.msra.mxu0 %v2409
    %2495 = vmatpush.bf16.msra.mxu0 %v2405
    %2496 = vmatpush.bf16.msra.mxu0 %v2401
    %2497 = vmatmul.bf16.gmra.mxu0 %v2261
    %v2498 = vpop.f32.mrf.mxu0
    %v2499 = vadd.f32 0.0, %v2498
    %v2500 = vpop.f32.mrf.mxu0
    %2501 = vdwg.mxu0
    %2502 = vmatpush.bf16.msra.mxu0 %v2430
    %2503 = vmatpush.bf16.msra.mxu0 %v2426
    %2504 = vmatpush.bf16.msra.mxu0 %v2422
    %2505 = vmatpush.bf16.msra.mxu0 %v2418
    %2506 = vmatpush.bf16.msra.mxu0 %v2414
    %2507 = vmatpush.bf16.msra.mxu0 %v2410
    %2508 = vmatpush.bf16.msra.mxu0 %v2406
    %2509 = vmatpush.bf16.msra.mxu0 %v2402
    %2510 = vmatmul.bf16.gmra.mxu0 %v2261
    %v2511 = vpop.f32.mrf.mxu0
    %v2512 = vadd.f32 0.0, %v2511
    %v2513 = vpop.f32.mrf.mxu0
    %2514 = vdwg.mxu0
    %v2515 = vadd.f32 %v2267, %v2473
    %v2516 = vadd.f32 %v2268, %v2486
    %v2517 = vadd.f32 %v2269, %v2499
    %v2518 = vadd.f32 %v2270, %v2512
    %v2519 = vxor.u32 %v2515, 2147483648
    %v2520 = vmul.f32 %v2519, 1.442695
    %v2521 = vpow.pop %v2520
    %v2522 = vadd.f32 %v2521, 1.0
    %v2523 = vrcp.pop %v2522
    %v2524 = vmul.f32 %v2522, %v2523
    %v2525 = vsub.f32 1.0, %v2524
    %v2526 = vmul.f32 %v2523, %v2525
    %v2527 = vadd.f32 %v2523, %v2526
    %vm2528 = vweird.f32 %v2522
    %vm2529 = vweird.f32 %v2523
    %vm2530 = vmor %vm2528, %vm2529
    %v2531 = vsel %vm2530, %v2523, %v2527
    %v2532 = vand.u32 2147483647, %v2522
    %vm2533 = vcmp.eq.f32.partialorder %v2532, 8.507059e+37
    %v2534 = vand.u32 %v2522, 2147483648
    %v2535 = vor.u32 1.1754944e-38, %v2534
    %v2536 = vsel %vm2533, %v2535, %v2531
    %v2537 = vmul.f32 1.0, %v2536
    %v2538 = vxor.u32 %v2516, 2147483648
    %v2539 = vmul.f32 %v2538, 1.442695
    %v2540 = vpow.pop %v2539
    %v2541 = vadd.f32 %v2540, 1.0
    %v2542 = vrcp.pop %v2541
    %v2543 = vmul.f32 %v2541, %v2542
    %v2544 = vsub.f32 1.0, %v2543
    %v2545 = vmul.f32 %v2542, %v2544
    %v2546 = vadd.f32 %v2542, %v2545
    %vm2547 = vweird.f32 %v2541
    %vm2548 = vweird.f32 %v2542
    %vm2549 = vmor %vm2547, %vm2548
    %v2550 = vsel %vm2549, %v2542, %v2546
    %v2551 = vand.u32 2147483647, %v2541
    %vm2552 = vcmp.eq.f32.partialorder %v2551, 8.507059e+37
    %v2553 = vand.u32 %v2541, 2147483648
    %v2554 = vor.u32 1.1754944e-38, %v2553
    %v2555 = vsel %vm2552, %v2554, %v2550
    %v2556 = vmul.f32 1.0, %v2555
    %v2557 = vtanh.pop %v2517
    %v2558 = vxor.u32 %v2518, 2147483648
    %v2559 = vmul.f32 %v2558, 1.442695
    %v2560 = vpow.pop %v2559
    %v2561 = vadd.f32 %v2560, 1.0
    %v2562 = vrcp.pop %v2561
    %v2563 = vmul.f32 %v2561, %v2562
    %v2564 = vsub.f32 1.0, %v2563
    %v2565 = vmul.f32 %v2562, %v2564
    %v2566 = vadd.f32 %v2562, %v2565
    %vm2567 = vweird.f32 %v2561
    %vm2568 = vweird.f32 %v2562
    %vm2569 = vmor %vm2567, %vm2568
    %v2570 = vsel %vm2569, %v2562, %v2566
    %v2571 = vand.u32 2147483647, %v2561
    %vm2572 = vcmp.eq.f32.partialorder %v2571, 8.507059e+37
    %v2573 = vand.u32 %v2561, 2147483648
    %v2574 = vor.u32 1.1754944e-38, %v2573
    %v2575 = vsel %vm2572, %v2574, %v2570
    %v2576 = vmul.f32 1.0, %v2575
    %v2577 = vmul.f32 %v2556, %v2258
    %v2578 = vmul.f32 %v2537, %v2557
    %v2579 = vadd.f32 %v2577, %v2578
    %v2580 = vtanh.pop %v2579
    %v2581 = vmul.f32 %v2576, %v2580
    %v2582 = vpack.c.bf16 %v2581, %v2581
    %s2583 = scalar_lea.vmem [#allocation3], 24
    %2584 = vst [vmem:[%s2583] sm:$0xf] %v2582
    %s2585 = scalar_lea.vmem [#allocation2], 112
    %v2586 = vld [vmem:[%s2585] sm:$0xff]
    %v2587 = vld [vmem:[%s2585 + $0x8] sm:$0xff]
    %v2588 = vunpack.c.l.bf16 %v2586
    %v2589 = vunpack.c.h.bf16 %v2586
    %v2590 = vunpack.c.l.bf16 %v2587
    %v2591 = vunpack.c.h.bf16 %v2587
    %v2592 = vld [vmem:[#allocation9] sm:$0xff]
    %v2593 = vld [vmem:[#allocation9 + $0x8] sm:$0xff]
    %v2594 = vld [vmem:[#allocation9 + $0x10] sm:$0xff]
    %v2595 = vld [vmem:[#allocation9 + $0x18] sm:$0xff]
    %v2596 = vld [vmem:[#allocation9 + $0x20] sm:$0xff]
    %v2597 = vld [vmem:[#allocation9 + $0x28] sm:$0xff]
    %v2598 = vld [vmem:[#allocation9 + $0x30] sm:$0xff]
    %v2599 = vld [vmem:[#allocation9 + $0x38] sm:$0xff]
    %v2600 = vld [vmem:[#allocation9 + $0x40] sm:$0xff]
    %v2601 = vld [vmem:[#allocation9 + $0x48] sm:$0xff]
    %v2602 = vld [vmem:[#allocation9 + $0x50] sm:$0xff]
    %v2603 = vld [vmem:[#allocation9 + $0x58] sm:$0xff]
    %v2604 = vld [vmem:[#allocation9 + $0x60] sm:$0xff]
    %v2605 = vld [vmem:[#allocation9 + $0x68] sm:$0xff]
    %v2606 = vld [vmem:[#allocation9 + $0x70] sm:$0xff]
    %v2607 = vld [vmem:[#allocation9 + $0x78] sm:$0xff]
    %v2608 = vld [vmem:[#allocation9 + $0x80] sm:$0xff]
    %v2609 = vld [vmem:[#allocation9 + $0x88] sm:$0xff]
    %v2610 = vld [vmem:[#allocation9 + $0x90] sm:$0xff]
    %v2611 = vld [vmem:[#allocation9 + $0x98] sm:$0xff]
    %v2612 = vld [vmem:[#allocation9 + $0xa0] sm:$0xff]
    %v2613 = vld [vmem:[#allocation9 + $0xa8] sm:$0xff]
    %v2614 = vld [vmem:[#allocation9 + $0xb0] sm:$0xff]
    %v2615 = vld [vmem:[#allocation9 + $0xb8] sm:$0xff]
    %v2616 = vld [vmem:[#allocation9 + $0xc0] sm:$0xff]
    %v2617 = vld [vmem:[#allocation9 + $0xc8] sm:$0xff]
    %v2618 = vld [vmem:[#allocation9 + $0xd0] sm:$0xff]
    %v2619 = vld [vmem:[#allocation9 + $0xd8] sm:$0xff]
    %v2620 = vld [vmem:[#allocation9 + $0xe0] sm:$0xff]
    %v2621 = vld [vmem:[#allocation9 + $0xe8] sm:$0xff]
    %v2622 = vld [vmem:[#allocation9 + $0xf0] sm:$0xff]
    %v2623 = vld [vmem:[#allocation9 + $0xf8] sm:$0xff]
    %v2656 = vunpack.c.l.b16 %v2592
    %v2657 = vunpack.c.h.b16 %v2592
    %v2658 = vunpack.c.l.b16 %v2593
    %v2659 = vunpack.c.h.b16 %v2593
    %v2660 = vunpack.c.l.b16 %v2594
    %v2661 = vunpack.c.h.b16 %v2594
    %v2662 = vunpack.c.l.b16 %v2595
    %v2663 = vunpack.c.h.b16 %v2595
    %v2664 = vunpack.c.l.b16 %v2596
    %v2665 = vunpack.c.h.b16 %v2596
    %v2666 = vunpack.c.l.b16 %v2597
    %v2667 = vunpack.c.h.b16 %v2597
    %v2668 = vunpack.c.l.b16 %v2598
    %v2669 = vunpack.c.h.b16 %v2598
    %v2670 = vunpack.c.l.b16 %v2599
    %v2671 = vunpack.c.h.b16 %v2599
    %v2672 = vunpack.c.l.b16 %v2600
    %v2673 = vunpack.c.h.b16 %v2600
    %v2674 = vunpack.c.l.b16 %v2601
    %v2675 = vunpack.c.h.b16 %v2601
    %v2676 = vunpack.c.l.b16 %v2602
    %v2677 = vunpack.c.h.b16 %v2602
    %v2678 = vunpack.c.l.b16 %v2603
    %v2679 = vunpack.c.h.b16 %v2603
    %v2680 = vunpack.c.l.b16 %v2604
    %v2681 = vunpack.c.h.b16 %v2604
    %v2682 = vunpack.c.l.b16 %v2605
    %v2683 = vunpack.c.h.b16 %v2605
    %v2684 = vunpack.c.l.b16 %v2606
    %v2685 = vunpack.c.h.b16 %v2606
    %v2686 = vunpack.c.l.b16 %v2607
    %v2687 = vunpack.c.h.b16 %v2607
    %v2688 = vunpack.c.l.b16 %v2608
    %v2689 = vunpack.c.h.b16 %v2608
    %v2690 = vunpack.c.l.b16 %v2609
    %v2691 = vunpack.c.h.b16 %v2609
    %v2692 = vunpack.c.l.b16 %v2610
    %v2693 = vunpack.c.h.b16 %v2610
    %v2694 = vunpack.c.l.b16 %v2611
    %v2695 = vunpack.c.h.b16 %v2611
    %v2696 = vunpack.c.l.b16 %v2612
    %v2697 = vunpack.c.h.b16 %v2612
    %v2698 = vunpack.c.l.b16 %v2613
    %v2699 = vunpack.c.h.b16 %v2613
    %v2700 = vunpack.c.l.b16 %v2614
    %v2701 = vunpack.c.h.b16 %v2614
    %v2702 = vunpack.c.l.b16 %v2615
    %v2703 = vunpack.c.h.b16 %v2615
    %v2704 = vunpack.c.l.b16 %v2616
    %v2705 = vunpack.c.h.b16 %v2616
    %v2706 = vunpack.c.l.b16 %v2617
    %v2707 = vunpack.c.h.b16 %v2617
    %v2708 = vunpack.c.l.b16 %v2618
    %v2709 = vunpack.c.h.b16 %v2618
    %v2710 = vunpack.c.l.b16 %v2619
    %v2711 = vunpack.c.h.b16 %v2619
    %v2712 = vunpack.c.l.b16 %v2620
    %v2713 = vunpack.c.h.b16 %v2620
    %v2714 = vunpack.c.l.b16 %v2621
    %v2715 = vunpack.c.h.b16 %v2621
    %v2716 = vunpack.c.l.b16 %v2622
    %v2717 = vunpack.c.h.b16 %v2622
    %v2718 = vunpack.c.l.b16 %v2623
    %v2719 = vunpack.c.h.b16 %v2623
    %v2720 = vpack.c.b16 %v2660, %v2656
    %v2721 = vpack.c.b16 %v2661, %v2657
    %v2722 = vpack.c.b16 %v2662, %v2658
    %v2723 = vpack.c.b16 %v2663, %v2659
    %v2724 = vpack.c.b16 %v2668, %v2664
    %v2725 = vpack.c.b16 %v2669, %v2665
    %v2726 = vpack.c.b16 %v2670, %v2666
    %v2727 = vpack.c.b16 %v2671, %v2667
    %v2728 = vpack.c.b16 %v2676, %v2672
    %v2729 = vpack.c.b16 %v2677, %v2673
    %v2730 = vpack.c.b16 %v2678, %v2674
    %v2731 = vpack.c.b16 %v2679, %v2675
    %v2732 = vpack.c.b16 %v2684, %v2680
    %v2733 = vpack.c.b16 %v2685, %v2681
    %v2734 = vpack.c.b16 %v2686, %v2682
    %v2735 = vpack.c.b16 %v2687, %v2683
    %v2736 = vpack.c.b16 %v2692, %v2688
    %v2737 = vpack.c.b16 %v2693, %v2689
    %v2738 = vpack.c.b16 %v2694, %v2690
    %v2739 = vpack.c.b16 %v2695, %v2691
    %v2740 = vpack.c.b16 %v2700, %v2696
    %v2741 = vpack.c.b16 %v2701, %v2697
    %v2742 = vpack.c.b16 %v2702, %v2698
    %v2743 = vpack.c.b16 %v2703, %v2699
    %v2744 = vpack.c.b16 %v2708, %v2704
    %v2745 = vpack.c.b16 %v2709, %v2705
    %v2746 = vpack.c.b16 %v2710, %v2706
    %v2747 = vpack.c.b16 %v2711, %v2707
    %v2748 = vpack.c.b16 %v2716, %v2712
    %v2749 = vpack.c.b16 %v2717, %v2713
    %v2750 = vpack.c.b16 %v2718, %v2714
    %v2751 = vpack.c.b16 %v2719, %v2715
    %2784 = vmatpush.bf16.msra.mxu0 %v2748
    %2785 = vmatpush.bf16.msra.mxu0 %v2744
    %2786 = vmatpush.bf16.msra.mxu0 %v2740
    %2787 = vmatpush.bf16.msra.mxu0 %v2736
    %2788 = vmatpush.bf16.msra.mxu0 %v2732
    %2789 = vmatpush.bf16.msra.mxu0 %v2728
    %2790 = vmatpush.bf16.msra.mxu0 %v2724
    %2791 = vmatpush.bf16.msra.mxu0 %v2720
    %2792 = vmatmul.bf16.gmra.mxu0 %v2582
    %v2793 = vpop.f32.mrf.mxu0
    %v2794 = vadd.f32 0.0, %v2793
    %v2795 = vpop.f32.mrf.mxu0
    %2796 = vdwg.mxu0
    %2797 = vmatpush.bf16.msra.mxu0 %v2749
    %2798 = vmatpush.bf16.msra.mxu0 %v2745
    %2799 = vmatpush.bf16.msra.mxu0 %v2741
    %2800 = vmatpush.bf16.msra.mxu0 %v2737
    %2801 = vmatpush.bf16.msra.mxu0 %v2733
    %2802 = vmatpush.bf16.msra.mxu0 %v2729
    %2803 = vmatpush.bf16.msra.mxu0 %v2725
    %2804 = vmatpush.bf16.msra.mxu0 %v2721
    %2805 = vmatmul.bf16.gmra.mxu0 %v2582
    %v2806 = vpop.f32.mrf.mxu0
    %v2807 = vadd.f32 0.0, %v2806
    %v2808 = vpop.f32.mrf.mxu0
    %2809 = vdwg.mxu0
    %2810 = vmatpush.bf16.msra.mxu0 %v2750
    %2811 = vmatpush.bf16.msra.mxu0 %v2746
    %2812 = vmatpush.bf16.msra.mxu0 %v2742
    %2813 = vmatpush.bf16.msra.mxu0 %v2738
    %2814 = vmatpush.bf16.msra.mxu0 %v2734
    %2815 = vmatpush.bf16.msra.mxu0 %v2730
    %2816 = vmatpush.bf16.msra.mxu0 %v2726
    %2817 = vmatpush.bf16.msra.mxu0 %v2722
    %2818 = vmatmul.bf16.gmra.mxu0 %v2582
    %v2819 = vpop.f32.mrf.mxu0
    %v2820 = vadd.f32 0.0, %v2819
    %v2821 = vpop.f32.mrf.mxu0
    %2822 = vdwg.mxu0
    %2823 = vmatpush.bf16.msra.mxu0 %v2751
    %2824 = vmatpush.bf16.msra.mxu0 %v2747
    %2825 = vmatpush.bf16.msra.mxu0 %v2743
    %2826 = vmatpush.bf16.msra.mxu0 %v2739
    %2827 = vmatpush.bf16.msra.mxu0 %v2735
    %2828 = vmatpush.bf16.msra.mxu0 %v2731
    %2829 = vmatpush.bf16.msra.mxu0 %v2727
    %2830 = vmatpush.bf16.msra.mxu0 %v2723
    %2831 = vmatmul.bf16.gmra.mxu0 %v2582
    %v2832 = vpop.f32.mrf.mxu0
    %v2833 = vadd.f32 0.0, %v2832
    %v2834 = vpop.f32.mrf.mxu0
    %2835 = vdwg.mxu0
    %v2836 = vadd.f32 %v2588, %v2794
    %v2837 = vadd.f32 %v2589, %v2807
    %v2838 = vadd.f32 %v2590, %v2820
    %v2839 = vadd.f32 %v2591, %v2833
    %v2840 = vxor.u32 %v2836, 2147483648
    %v2841 = vmul.f32 %v2840, 1.442695
    %v2842 = vpow.pop %v2841
    %v2843 = vadd.f32 %v2842, 1.0
    %v2844 = vrcp.pop %v2843
    %v2845 = vmul.f32 %v2843, %v2844
    %v2846 = vsub.f32 1.0, %v2845
    %v2847 = vmul.f32 %v2844, %v2846
    %v2848 = vadd.f32 %v2844, %v2847
    %vm2849 = vweird.f32 %v2843
    %vm2850 = vweird.f32 %v2844
    %vm2851 = vmor %vm2849, %vm2850
    %v2852 = vsel %vm2851, %v2844, %v2848
    %v2853 = vand.u32 2147483647, %v2843
    %vm2854 = vcmp.eq.f32.partialorder %v2853, 8.507059e+37
    %v2855 = vand.u32 %v2843, 2147483648
    %v2856 = vor.u32 1.1754944e-38, %v2855
    %v2857 = vsel %vm2854, %v2856, %v2852
    %v2858 = vmul.f32 1.0, %v2857
    %v2859 = vxor.u32 %v2837, 2147483648
    %v2860 = vmul.f32 %v2859, 1.442695
    %v2861 = vpow.pop %v2860
    %v2862 = vadd.f32 %v2861, 1.0
    %v2863 = vrcp.pop %v2862
    %v2864 = vmul.f32 %v2862, %v2863
    %v2865 = vsub.f32 1.0, %v2864
    %v2866 = vmul.f32 %v2863, %v2865
    %v2867 = vadd.f32 %v2863, %v2866
    %vm2868 = vweird.f32 %v2862
    %vm2869 = vweird.f32 %v2863
    %vm2870 = vmor %vm2868, %vm2869
    %v2871 = vsel %vm2870, %v2863, %v2867
    %v2872 = vand.u32 2147483647, %v2862
    %vm2873 = vcmp.eq.f32.partialorder %v2872, 8.507059e+37
    %v2874 = vand.u32 %v2862, 2147483648
    %v2875 = vor.u32 1.1754944e-38, %v2874
    %v2876 = vsel %vm2873, %v2875, %v2871
    %v2877 = vmul.f32 1.0, %v2876
    %v2878 = vtanh.pop %v2838
    %v2879 = vxor.u32 %v2839, 2147483648
    %v2880 = vmul.f32 %v2879, 1.442695
    %v2881 = vpow.pop %v2880
    %v2882 = vadd.f32 %v2881, 1.0
    %v2883 = vrcp.pop %v2882
    %v2884 = vmul.f32 %v2882, %v2883
    %v2885 = vsub.f32 1.0, %v2884
    %v2886 = vmul.f32 %v2883, %v2885
    %v2887 = vadd.f32 %v2883, %v2886
    %vm2888 = vweird.f32 %v2882
    %vm2889 = vweird.f32 %v2883
    %vm2890 = vmor %vm2888, %vm2889
    %v2891 = vsel %vm2890, %v2883, %v2887
    %v2892 = vand.u32 2147483647, %v2882
    %vm2893 = vcmp.eq.f32.partialorder %v2892, 8.507059e+37
    %v2894 = vand.u32 %v2882, 2147483648
    %v2895 = vor.u32 1.1754944e-38, %v2894
    %v2896 = vsel %vm2893, %v2895, %v2891
    %v2897 = vmul.f32 1.0, %v2896
    %v2898 = vmul.f32 %v2877, %v2579
    %v2899 = vmul.f32 %v2858, %v2878
    %v2900 = vadd.f32 %v2898, %v2899
    %v2901 = vtanh.pop %v2900
    %v2902 = vmul.f32 %v2897, %v2901
    %v2903 = vpack.c.bf16 %v2902, %v2902
    %s2904 = scalar_lea.vmem [#allocation3], 28
    %2905 = vst [vmem:[%s2904] sm:$0xf] %v2903
    %v2906 = vld [vmem:[#allocation3] sm:$0xf]
    %v2907 = vld [vmem:[#allocation3 + $0x4] sm:$0xf]
    %v2908 = vld [vmem:[#allocation3 + $0x8] sm:$0xf]
    %v2909 = vld [vmem:[#allocation3 + $0xc] sm:$0xf]
    %v2910 = vld [vmem:[#allocation3 + $0x10] sm:$0xf]
    %v2911 = vld [vmem:[#allocation3 + $0x14] sm:$0xf]
    %v2912 = vld [vmem:[#allocation3 + $0x18] sm:$0xf]
    %v2913 = vld [vmem:[#allocation3 + $0x1c] sm:$0xf]
    %v2914 = vunpack.c.l.bf16 %v2906
    %v2915 = vunpack.c.l.bf16 %v2907
    %v2916 = vunpack.c.l.bf16 %v2908
    %v2917 = vunpack.c.l.bf16 %v2909
    %v2918 = vunpack.c.l.bf16 %v2910
    %v2919 = vunpack.c.l.bf16 %v2911
    %v2920 = vunpack.c.l.bf16 %v2912
    %v2921 = vunpack.c.l.bf16 %v2913
    %v2922 = vpack.c.bf16 %v2915, %v2914
    %v2923 = vpack.c.bf16 %v2917, %v2916
    %v2924 = vpack.c.bf16 %v2919, %v2918
    %v2925 = vpack.c.bf16 %v2921, %v2920
    %v2926 = vld [vmem:[#allocation12] sm:$0xf]
    %v2927 = vld [vmem:[#allocation12 + $0x4] sm:$0xf]
    %v2928 = vld [vmem:[#allocation12 + $0x8] sm:$0xf]
    %v2929 = vld [vmem:[#allocation12 + $0xc] sm:$0xf]
    %v2930 = vld [vmem:[#allocation12 + $0x10] sm:$0xf]
    %v2931 = vld [vmem:[#allocation12 + $0x14] sm:$0xf]
    %v2932 = vld [vmem:[#allocation12 + $0x18] sm:$0xf]
    %v2933 = vld [vmem:[#allocation12 + $0x1c] sm:$0xf]
    %v2934 = vld [vmem:[#allocation12 + $0x20] sm:$0xf]
    %v2935 = vld [vmem:[#allocation12 + $0x24] sm:$0xf]
    %v2936 = vld [vmem:[#allocation12 + $0x28] sm:$0xf]
    %v2937 = vld [vmem:[#allocation12 + $0x2c] sm:$0xf]
    %v2938 = vld [vmem:[#allocation12 + $0x30] sm:$0xf]
    %v2939 = vld [vmem:[#allocation12 + $0x34] sm:$0xf]
    %v2940 = vld [vmem:[#allocation12 + $0x38] sm:$0xf]
    %v2941 = vld [vmem:[#allocation12 + $0x3c] sm:$0xf]
    %v2942 = vld [vmem:[%s5] sm:$0x1]
    %v2944 = vperm.slane %v2942, 0
    %v2962 = vunpack.c.l.b16 %v2926
    %v2963 = vunpack.c.l.b16 %v2927
    %v2964 = vunpack.c.l.b16 %v2928
    %v2965 = vunpack.c.l.b16 %v2929
    %v2966 = vunpack.c.l.b16 %v2930
    %v2967 = vunpack.c.l.b16 %v2931
    %v2968 = vunpack.c.l.b16 %v2932
    %v2969 = vunpack.c.l.b16 %v2933
    %v2970 = vunpack.c.l.b16 %v2934
    %v2971 = vunpack.c.l.b16 %v2935
    %v2972 = vunpack.c.l.b16 %v2936
    %v2973 = vunpack.c.l.b16 %v2937
    %v2974 = vunpack.c.l.b16 %v2938
    %v2975 = vunpack.c.l.b16 %v2939
    %v2976 = vunpack.c.l.b16 %v2940
    %v2977 = vunpack.c.l.b16 %v2941
    %v2978 = vpack.c.b16 %v2963, %v2962
    %v2979 = vpack.c.b16 %v2965, %v2964
    %v2980 = vpack.c.b16 %v2967, %v2966
    %v2981 = vpack.c.b16 %v2969, %v2968
    %v2982 = vpack.c.b16 %v2971, %v2970
    %v2983 = vpack.c.b16 %v2973, %v2972
    %v2984 = vpack.c.b16 %v2975, %v2974
    %v2985 = vpack.c.b16 %v2977, %v2976
    %2994 = vmatpush.bf16.msra.mxu0 %v2985
    %2995 = vmatpush.bf16.msra.mxu0 %v2984
    %2996 = vmatpush.bf16.msra.mxu0 %v2983
    %2997 = vmatpush.bf16.msra.mxu0 %v2982
    %2998 = vmatpush.bf16.msra.mxu0 %v2981
    %2999 = vmatpush.bf16.msra.mxu0 %v2980
    %3000 = vmatpush.bf16.msra.mxu0 %v2979
    %3001 = vmatpush.bf16.msra.mxu0 %v2978
    %3002 = vmatmul.bf16.gmra.mxu0 %v2922
    %v3003 = vpop.f32.mrf.mxu0
    %v3004 = vadd.f32 %v2944, %v3003
    %v3005 = vpop.f32.mrf.mxu0
    %v3006 = vadd.f32 %v2944, %v3005
    %3007 = vmatmul.bf16.gmra.mxu0 %v2923
    %v3008 = vpop.f32.mrf.mxu0
    %v3009 = vadd.f32 %v2944, %v3008
    %v3010 = vpop.f32.mrf.mxu0
    %v3011 = vadd.f32 %v2944, %v3010
    %3012 = vmatmul.bf16.gmra.mxu0 %v2924
    %v3013 = vpop.f32.mrf.mxu0
    %v3014 = vadd.f32 %v2944, %v3013
    %v3015 = vpop.f32.mrf.mxu0
    %v3016 = vadd.f32 %v2944, %v3015
    %3017 = vmatmul.bf16.gmra.mxu0 %v2925
    %v3018 = vpop.f32.mrf.mxu0
    %v3019 = vadd.f32 %v2944, %v3018
    %v3020 = vpop.f32.mrf.mxu0
    %v3021 = vadd.f32 %v2944, %v3020
    %3022 = vdwg.mxu0
    %3023 = vst [vmem:[#allocation13] sm:$0xff] %v3004
    %3024 = vst [vmem:[#allocation13 + $0x8] sm:$0xff] %v3006
    %3025 = vst [vmem:[#allocation13 + $0x10] sm:$0xff] %v3009
    %3026 = vst [vmem:[#allocation13 + $0x18] sm:$0xff] %v3011
    %3027 = vst [vmem:[#allocation13 + $0x20] sm:$0xff] %v3014
    %3028 = vst [vmem:[#allocation13 + $0x28] sm:$0xff] %v3016
    %3029 = vst [vmem:[#allocation13 + $0x30] sm:$0xff] %v3019
    %3030 = vst [vmem:[#allocation13 + $0x38] sm:$0xff] %v3021
    // Predicated region
    $region46: #{tpu_custom_call.1} parent=1 // pred_check
      _
    $region47: #{tpu_custom_call.1} parent=1 // pred_check_branch
      %3032 = sbr.rel (0) target = $region49
    $region48: #{tpu_custom_call.1} parent=1 // pred_region
      %3034 = vsyncadd [#allocation6], 0
      %s3035 = sshll.u32 [#allocation13], 4
      %s3036 = int_to_ptr.vmem [resolvable:$true] %s3035
      %s3037 = sshll.u32 %s6, 4
      %s3038 = int_to_ptr.hbm [resolvable:$true] %s3037
      %3043 = dma.vmem_to_hbm [thread:$0]  %s3036, 1024, %s3038, [#allocation6], 128, 128, 8
    $region49: #{tpu_custom_call.1} parent=1 // pred_fallthru
      _
    // Predicated region
    $region50: #{tpu_custom_call.1} parent=1 // pred_check
      _
    $region51: #{tpu_custom_call.1} parent=1 // pred_check_branch
      %3045 = sbr.rel (0) target = $region53
    $region52: #{tpu_custom_call.1} parent=1 // pred_region
      %3047 = dma.done [#allocation6], 1024
    $region53: #{tpu_custom_call.1} parent=1 // pred_fallthru
      _
    %3048 = vsyncpa [#allocation5], 1
    %3049 = vsyncpa [#allocation8], 1
    %3050 = vsyncpa [#allocation11], 1
    %3051 = vsyncpa [#allocation6], 1

// kernel: tpu_custom_call.1
$region0: #{tpu_custom_call.1}
  #allocation0 [shape = 'u32[]', space=smem, size = 0x4, offset = 0x4, fixed_abs, tag = 'smem constant byte address 0x4 - core index']
  #allocation1 [shape = 'u32[72,128]{1,0:T(1,128)}', space=vmem, size = 0x9000, scoped, tag = 'internal scratch']
  #allocation2 [shape = 'bf16[8,8,512]{2,1,0:T(8,128)(2,1)}', space=vmem, size = 0x10000, scoped, tag = 'scratch operand']
  #allocation3 [shape = 'bf16[8,8,128]{2,1,0:T(8,128)(2,1)}', space=vmem, size = 0x4000, scoped, tag = 'scratch operand']
  %s0 = inlined_call_operand.hbm [shape: bf16[8,8,32], index: 0, kind: input, shape index: {}]
  %s1 = inlined_call_operand.hbm [shape: bf16[32,512], index: 1, kind: input, shape index: {}]
  %s2 = inlined_call_operand.hbm [shape: bf16[128,512], index: 2, kind: input, shape index: {}]
  %s3 = inlined_call_operand.hbm [shape: f32[1,512], index: 3, kind: input, shape index: {}]
  %s4 = inlined_call_operand.hbm [shape: bf16[128,128], index: 4, kind: input, shape index: {}]
  %s5 = inlined_call_operand.vmem [shape: f32[1,128], index: 5, kind: input, shape index: {}]
  %s6 = inlined_call_operand.hbm [shape: f32[8,8,128], index: 6, kind: output, shape index: {}]
  %s7 = sld [smem:[#allocation0]]
  $region54: #{tpu_custom_call.1} parent=0
    _
  %s9 = ssub.s32 1, %s7
  %s10 = scalar_select 0, %s9, %s7
  $region1: #{tpu_custom_call.1} parent=0
    #allocation4 [shape = 'u8[16384]{0}', space=vmem, size = 0x4000, scoped, tag = 'input window, operand 0, single buffered']
    #allocation5 [shape = 's32[1]{0}', space=sflag, size = 0x4, scoped, tag = 'scoped memory for tpu_custom_call.1']
    #allocation6 [shape = 's32[1]{0}', space=sflag, size = 0x4, scoped, tag = 'scoped memory for tpu_custom_call.1']
    #allocation7 [shape = 'u8[32768]{0}', space=vmem, size = 0x8000, scoped, tag = 'input window, operand 1, single buffered']
    #allocation8 [shape = 's32[1]{0}', space=sflag, size = 0x4, scoped, tag = 'scoped memory for tpu_custom_call.1']
    #allocation9 [shape = 'u8[131072]{0}', space=vmem, size = 0x20000, scoped, tag = 'input window, operand 2, single buffered']
    #allocation10 [shape = 'u8[2048]{0}', space=vmem, size = 0x800, scoped, tag = 'input window, operand 3, single buffered']
    #allocation11 [shape = 's32[1]{0}', space=sflag, size = 0x4, scoped, tag = 'scoped memory for tpu_custom_call.1']
    #allocation12 [shape = 'u8[32768]{0}', space=vmem, size = 0x8000, scoped, tag = 'input window, operand 4, single buffered']
    #allocation13 [shape = 'u8[32768]{0}', space=vmem, size = 0x8000, scoped, tag = 'output window, operand 0, single buffered']
    %11 = vsyncpa [#allocation5], 0
    %12 = vsyncpa [#allocation8], 0
    %13 = vsyncpa [#allocation11], 0
    %14 = vsyncpa [#allocation6], 0
    // Predicated region
    $region2: #{tpu_custom_call.1} parent=1 // pred_check
      _
    $region3: #{tpu_custom_call.1} parent=1 // pred_check_branch
      %16 = sbr.rel (0) target = $region5
    $region4: #{tpu_custom_call.1} parent=1 // pred_region
      %18 = vsyncadd [#allocation5], 0
      %s19 = sshll.u32 %s0, 4
      %s20 = int_to_ptr.hbm [resolvable:$true] %s19
      %s21 = sshll.u32 [#allocation4], 4
      %s22 = int_to_ptr.vmem [resolvable:$true] %s21
      %27 = dma.hbm_to_vmem [thread:$0]  %s20, 512, %s22, [#allocation5], 64, 64, 4
    $region5: #{tpu_custom_call.1} parent=1 // pred_fallthru
      _
    // Predicated region
    $region6: #{tpu_custom_call.1} parent=1 // pred_check
      _
    $region7: #{tpu_custom_call.1} parent=1 // pred_check_branch
      %29 = sbr.rel (0) target = $region9
    $region8: #{tpu_custom_call.1} parent=1 // pred_region
      %31 = vsyncadd [#allocation8], 0
      %s32 = sshll.u32 %s1, 4
      %s33 = int_to_ptr.hbm [resolvable:$true] %s32
      %s34 = sshll.u32 [#allocation7], 4
      %s35 = int_to_ptr.vmem [resolvable:$true] %s34
      %40 = dma.hbm_to_vmem [thread:$0]  %s33, 1024, %s35, [#allocation8], 256, 256, 16
    $region9: #{tpu_custom_call.1} parent=1 // pred_fallthru
      _
    // Predicated region
    $region10: #{tpu_custom_call.1} parent=1 // pred_check
      _
    $region11: #{tpu_custom_call.1} parent=1 // pred_check_branch
      %42 = sbr.rel (0) target = $region13
    $region12: #{tpu_custom_call.1} parent=1 // pred_region
      %44 = vsyncadd [#allocation8], 0
      %s45 = sshll.u32 %s2, 4
      %s46 = int_to_ptr.hbm [resolvable:$true] %s45
      %s47 = sshll.u32 [#allocation9], 4
      %s48 = int_to_ptr.vmem [resolvable:$true] %s47
      %53 = dma.hbm_to_vmem [thread:$0]  %s46, 4096, %s48, [#allocation8], 256, 256, 16
    $region13: #{tpu_custom_call.1} parent=1 // pred_fallthru
      _
    // Predicated region
    $region14: #{tpu_custom_call.1} parent=1 // pred_check
      _
    $region15: #{tpu_custom_call.1} parent=1 // pred_check_branch
      %55 = sbr.rel (0) target = $region17
    $region16: #{tpu_custom_call.1} parent=1 // pred_region
      %57 = vsyncadd [#allocation11], 0
      %s59 = sshll.u32 %s3, 4
      %s60 = int_to_ptr.hbm [resolvable:$true] %s59
      %s61 = sshll.u32 [#allocation10], 4
      %s62 = int_to_ptr.vmem [resolvable:$true] %s61
      %64 = dma.hbm_to_vmem [thread:$0]  %s60, 64, %s62, [#allocation11]
    $region17: #{tpu_custom_call.1} parent=1 // pred_fallthru
      _
    // Predicated region
    $region18: #{tpu_custom_call.1} parent=1 // pred_check
      _
    $region19: #{tpu_custom_call.1} parent=1 // pred_check_branch
      %66 = sbr.rel (0) target = $region21
    $region20: #{tpu_custom_call.1} parent=1 // pred_region
      %68 = vsyncadd [#allocation11], 0
      %s69 = sshll.u32 %s4, 4
      %s70 = int_to_ptr.hbm [resolvable:$true] %s69
      %s71 = sshll.u32 [#allocation12], 4
      %s72 = int_to_ptr.vmem [resolvable:$true] %s71
      %77 = dma.hbm_to_vmem [thread:$0]  %s70, 1024, %s72, [#allocation11], 64, 64, 4
    $region21: #{tpu_custom_call.1} parent=1 // pred_fallthru
      _
    // Predicated region
    $region22: #{tpu_custom_call.1} parent=1 // pred_check
      _
    $region23: #{tpu_custom_call.1} parent=1 // pred_check_branch
      %79 = sbr.rel (0) target = $region25
    $region24: #{tpu_custom_call.1} parent=1 // pred_region
      _
    $region25: #{tpu_custom_call.1} parent=1 // pred_fallthru
      _
    // Predicated region
    $region26: #{tpu_custom_call.1} parent=1 // pred_check
      _
    $region27: #{tpu_custom_call.1} parent=1 // pred_check_branch
      %81 = sbr.rel (0) target = $region29
    $region28: #{tpu_custom_call.1} parent=1 // pred_region
      %83 = dma.done [#allocation5], 512
    $region29: #{tpu_custom_call.1} parent=1 // pred_fallthru
      _
    // Predicated region
    $region30: #{tpu_custom_call.1} parent=1 // pred_check
      _
    $region31: #{tpu_custom_call.1} parent=1 // pred_check_branch
      %85 = sbr.rel (0) target = $region33
    $region32: #{tpu_custom_call.1} parent=1 // pred_region
      %87 = dma.done [#allocation8], 1024
    $region33: #{tpu_custom_call.1} parent=1 // pred_fallthru
      _
    // Predicated region
    $region34: #{tpu_custom_call.1} parent=1 // pred_check
      _
    $region35: #{tpu_custom_call.1} parent=1 // pred_check_branch
      %89 = sbr.rel (0) target = $region37
    $region36: #{tpu_custom_call.1} parent=1 // pred_region
      %91 = dma.done [#allocation8], 4096
    $region37: #{tpu_custom_call.1} parent=1 // pred_fallthru
      _
    // Predicated region
    $region38: #{tpu_custom_call.1} parent=1 // pred_check
      _
    $region39: #{tpu_custom_call.1} parent=1 // pred_check_branch
      %93 = sbr.rel (0) target = $region41
    $region40: #{tpu_custom_call.1} parent=1 // pred_region
      %95 = dma.done [#allocation11], 64
    $region41: #{tpu_custom_call.1} parent=1 // pred_fallthru
      _
    // Predicated region
    $region42: #{tpu_custom_call.1} parent=1 // pred_check
      _
    $region43: #{tpu_custom_call.1} parent=1 // pred_check_branch
      %97 = sbr.rel (0) target = $region45
    $region44: #{tpu_custom_call.1} parent=1 // pred_region
      %99 = dma.done [#allocation11], 1024
    $region45: #{tpu_custom_call.1} parent=1 // pred_fallthru
      _
    %v101 = vld [vmem:[#allocation4] sm:$0xf]
    %v102 = vld [vmem:[#allocation4 + $0x4] sm:$0xf]
    %v103 = vld [vmem:[#allocation4 + $0x8] sm:$0xf]
    %v104 = vld [vmem:[#allocation4 + $0xc] sm:$0xf]
    %v105 = vld [vmem:[#allocation4 + $0x10] sm:$0xf]
    %v106 = vld [vmem:[#allocation4 + $0x14] sm:$0xf]
    %v107 = vld [vmem:[#allocation4 + $0x18] sm:$0xf]
    %v108 = vld [vmem:[#allocation4 + $0x1c] sm:$0xf]
    %v109 = vunpack.c.l.bf16 %v101
    %v110 = vunpack.c.l.bf16 %v102
    %v111 = vunpack.c.l.bf16 %v103
    %v112 = vunpack.c.l.bf16 %v104
    %v113 = vunpack.c.l.bf16 %v105
    %v114 = vunpack.c.l.bf16 %v106
    %v115 = vunpack.c.l.bf16 %v107
    %v116 = vunpack.c.l.bf16 %v108
    %v117 = vpack.c.bf16 %v110, %v109
    %v118 = vpack.c.bf16 %v112, %v111
    %v119 = vpack.c.bf16 %v114, %v113
    %v120 = vpack.c.bf16 %v116, %v115
    %v121 = vld [vmem:[#allocation7] sm:$0xff]
    %v122 = vld [vmem:[#allocation7 + $0x8] sm:$0xff]
    %v123 = vld [vmem:[#allocation7 + $0x10] sm:$0xff]
    %v124 = vld [vmem:[#allocation7 + $0x18] sm:$0xff]
    %v125 = vld [vmem:[#allocation7 + $0x20] sm:$0xff]
    %v126 = vld [vmem:[#allocation7 + $0x28] sm:$0xff]
    %v127 = vld [vmem:[#allocation7 + $0x30] sm:$0xff]
    %v128 = vld [vmem:[#allocation7 + $0x38] sm:$0xff]
    %v129 = vld [vmem:[#allocation10] sm:$0xf]
    %v131 = vperm.slane %v129, 0
    %v132 = vperm.slane %v129, 1
    %v133 = vperm.slane %v129, 2
    %v134 = vperm.slane %v129, 3
    %v147 = vunpack.c.l.b16 %v121
    %v148 = vunpack.c.h.b16 %v121
    %v149 = vunpack.c.l.b16 %v122
    %v150 = vunpack.c.h.b16 %v122
    %v151 = vunpack.c.l.b16 %v123
    %v152 = vunpack.c.h.b16 %v123
    %v153 = vunpack.c.l.b16 %v124
    %v154 = vunpack.c.h.b16 %v124
    %v155 = vunpack.c.l.b16 %v125
    %v156 = vunpack.c.h.b16 %v125
    %v157 = vunpack.c.l.b16 %v126
    %v158 = vunpack.c.h.b16 %v126
    %v159 = vunpack.c.l.b16 %v127
    %v160 = vunpack.c.h.b16 %v127
    %v161 = vunpack.c.l.b16 %v128
    %v162 = vunpack.c.h.b16 %v128
    %v163 = vpack.c.b16 %v151, %v147
    %v164 = vpack.c.b16 %v152, %v148
    %v165 = vpack.c.b16 %v153, %v149
    %v166 = vpack.c.b16 %v154, %v150
    %v167 = vpack.c.b16 %v159, %v155
    %v168 = vpack.c.b16 %v160, %v156
    %v169 = vpack.c.b16 %v161, %v157
    %v170 = vpack.c.b16 %v162, %v158
    %vm179 = vcmask 261120
    %v181 = vsel %vm179, %v117, 0
    %v184 = vsel %vm179, %v118, 0
    %v187 = vsel %vm179, %v119, 0
    %v190 = vsel %vm179, %v120, 0
    %192 = vmatpush.bf16.msra.mxu0 0
    %193 = vmatpush.bf16.msra.mxu0 0
    %194 = vmatpush.bf16.msra.mxu0 0
    %195 = vmatpush.bf16.msra.mxu0 0
    %196 = vmatpush.bf16.msra.mxu0 0
    %197 = vmatpush.bf16.msra.mxu0 0
    %198 = vmatpush.bf16.msra.mxu0 %v167
    %199 = vmatpush.bf16.msra.mxu0 %v163
    %200 = vmatmul.bf16.gmra.mxu0 %v181
    %v201 = vpop.f32.mrf.mxu0
    %v202 = vadd.f32 %v131, %v201
    %v203 = vpop.f32.mrf.mxu0
    %v204 = vadd.f32 %v131, %v203
    %205 = vmatmul.bf16.gmra.mxu0 %v184
    %v206 = vpop.f32.mrf.mxu0
    %v207 = vadd.f32 %v131, %v206
    %v208 = vpop.f32.mrf.mxu0
    %v209 = vadd.f32 %v131, %v208
    %210 = vmatmul.bf16.gmra.mxu0 %v187
    %v211 = vpop.f32.mrf.mxu0
    %v212 = vadd.f32 %v131, %v211
    %v213 = vpop.f32.mrf.mxu0
    %v214 = vadd.f32 %v131, %v213
    %215 = vmatmul.bf16.gmra.mxu0 %v190
    %v216 = vpop.f32.mrf.mxu0
    %v217 = vadd.f32 %v131, %v216
    %v218 = vpop.f32.mrf.mxu0
    %v219 = vadd.f32 %v131, %v218
    %220 = vdwg.mxu0
    %221 = vmatpush.bf16.msra.mxu0 0
    %222 = vmatpush.bf16.msra.mxu0 0
    %223 = vmatpush.bf16.msra.mxu0 0
    %224 = vmatpush.bf16.msra.mxu0 0
    %225 = vmatpush.bf16.msra.mxu0 0
    %226 = vmatpush.bf16.msra.mxu0 0
    %227 = vmatpush.bf16.msra.mxu0 %v168
    %228 = vmatpush.bf16.msra.mxu0 %v164
    %229 = vmatmul.bf16.gmra.mxu0 %v181
    %v230 = vpop.f32.mrf.mxu0
    %v231 = vadd.f32 %v132, %v230
    %v232 = vpop.f32.mrf.mxu0
    %v233 = vadd.f32 %v132, %v232
    %234 = vmatmul.bf16.gmra.mxu0 %v184
    %v235 = vpop.f32.mrf.mxu0
    %v236 = vadd.f32 %v132, %v235
    %v237 = vpop.f32.mrf.mxu0
    %v238 = vadd.f32 %v132, %v237
    %239 = vmatmul.bf16.gmra.mxu0 %v187
    %v240 = vpop.f32.mrf.mxu0
    %v241 = vadd.f32 %v132, %v240
    %v242 = vpop.f32.mrf.mxu0
    %v243 = vadd.f32 %v132, %v242
    %244 = vmatmul.bf16.gmra.mxu0 %v190
    %v245 = vpop.f32.mrf.mxu0
    %v246 = vadd.f32 %v132, %v245
    %v247 = vpop.f32.mrf.mxu0
    %v248 = vadd.f32 %v132, %v247
    %249 = vdwg.mxu0
    %250 = vmatpush.bf16.msra.mxu0 0
    %251 = vmatpush.bf16.msra.mxu0 0
    %252 = vmatpush.bf16.msra.mxu0 0
    %253 = vmatpush.bf16.msra.mxu0 0
    %254 = vmatpush.bf16.msra.mxu0 0
    %255 = vmatpush.bf16.msra.mxu0 0
    %256 = vmatpush.bf16.msra.mxu0 %v169
    %257 = vmatpush.bf16.msra.mxu0 %v165
    %258 = vmatmul.bf16.gmra.mxu0 %v181
    %v259 = vpop.f32.mrf.mxu0
    %v260 = vadd.f32 %v133, %v259
    %v261 = vpop.f32.mrf.mxu0
    %v262 = vadd.f32 %v133, %v261
    %263 = vmatmul.bf16.gmra.mxu0 %v184
    %v264 = vpop.f32.mrf.mxu0
    %v265 = vadd.f32 %v133, %v264
    %v266 = vpop.f32.mrf.mxu0
    %v267 = vadd.f32 %v133, %v266
    %268 = vmatmul.bf16.gmra.mxu0 %v187
    %v269 = vpop.f32.mrf.mxu0
    %v270 = vadd.f32 %v133, %v269
    %v271 = vpop.f32.mrf.mxu0
    %v272 = vadd.f32 %v133, %v271
    %273 = vmatmul.bf16.gmra.mxu0 %v190
    %v274 = vpop.f32.mrf.mxu0
    %v275 = vadd.f32 %v133, %v274
    %v276 = vpop.f32.mrf.mxu0
    %v277 = vadd.f32 %v133, %v276
    %278 = vdwg.mxu0
    %279 = vmatpush.bf16.msra.mxu0 0
    %280 = vmatpush.bf16.msra.mxu0 0
    %281 = vmatpush.bf16.msra.mxu0 0
    %282 = vmatpush.bf16.msra.mxu0 0
    %283 = vmatpush.bf16.msra.mxu0 0
    %284 = vmatpush.bf16.msra.mxu0 0
    %285 = vmatpush.bf16.msra.mxu0 %v170
    %286 = vmatpush.bf16.msra.mxu0 %v166
    %287 = vmatmul.bf16.gmra.mxu0 %v181
    %v288 = vpop.f32.mrf.mxu0
    %v289 = vadd.f32 %v134, %v288
    %v290 = vpop.f32.mrf.mxu0
    %v291 = vadd.f32 %v134, %v290
    %292 = vmatmul.bf16.gmra.mxu0 %v184
    %v293 = vpop.f32.mrf.mxu0
    %v294 = vadd.f32 %v134, %v293
    %v295 = vpop.f32.mrf.mxu0
    %v296 = vadd.f32 %v134, %v295
    %297 = vmatmul.bf16.gmra.mxu0 %v187
    %v298 = vpop.f32.mrf.mxu0
    %v299 = vadd.f32 %v134, %v298
    %v300 = vpop.f32.mrf.mxu0
    %v301 = vadd.f32 %v134, %v300
    %302 = vmatmul.bf16.gmra.mxu0 %v190
    %v303 = vpop.f32.mrf.mxu0
    %v304 = vadd.f32 %v134, %v303
    %v305 = vpop.f32.mrf.mxu0
    %v306 = vadd.f32 %v134, %v305
    %307 = vdwg.mxu0
    %v308 = vpack.c.bf16 %v231, %v202
    %v309 = vpack.c.bf16 %v289, %v260
    %v310 = vpack.c.bf16 %v233, %v204
    %v311 = vpack.c.bf16 %v291, %v262
    %v312 = vpack.c.bf16 %v236, %v207
    %v313 = vpack.c.bf16 %v294, %v265
    %v314 = vpack.c.bf16 %v238, %v209
    %v315 = vpack.c.bf16 %v296, %v267
    %v316 = vpack.c.bf16 %v241, %v212
    %v317 = vpack.c.bf16 %v299, %v270
    %v318 = vpack.c.bf16 %v243, %v214
    %v319 = vpack.c.bf16 %v301, %v272
    %v320 = vpack.c.bf16 %v246, %v217
    %v321 = vpack.c.bf16 %v304, %v275
    %v322 = vpack.c.bf16 %v248, %v219
    %v323 = vpack.c.bf16 %v306, %v277
    %324 = vst [vmem:[#allocation2] sm:$0xff] %v308
    %325 = vst [vmem:[#allocation2 + $0x8] sm:$0xff] %v309
    %326 = vst [vmem:[#allocation2 + $0x10] sm:$0xff] %v310
    %327 = vst [vmem:[#allocation2 + $0x18] sm:$0xff] %v311
    %328 = vst [vmem:[#allocation2 + $0x20] sm:$0xff] %v312
    %329 = vst [vmem:[#allocation2 + $0x28] sm:$0xff] %v313
    %330 = vst [vmem:[#allocation2 + $0x30] sm:$0xff] %v314
    %331 = vst [vmem:[#allocation2 + $0x38] sm:$0xff] %v315
    %332 = vst [vmem:[#allocation2 + $0x40] sm:$0xff] %v316
    %333 = vst [vmem:[#allocation2 + $0x48] sm:$0xff] %v317
    %334 = vst [vmem:[#allocation2 + $0x50] sm:$0xff] %v318
    %335 = vst [vmem:[#allocation2 + $0x58] sm:$0xff] %v319
    %336 = vst [vmem:[#allocation2 + $0x60] sm:$0xff] %v320
    %337 = vst [vmem:[#allocation2 + $0x68] sm:$0xff] %v321
    %338 = vst [vmem:[#allocation2 + $0x70] sm:$0xff] %v322
    %339 = vst [vmem:[#allocation2 + $0x78] sm:$0xff] %v323
    %v340 = vld [vmem:[#allocation2] sm:$0xff]
    %v341 = vld [vmem:[#allocation2 + $0x8] sm:$0xff]
    %v342 = vunpack.c.l.bf16 %v340
    %v343 = vunpack.c.h.bf16 %v340
    %v344 = vunpack.c.l.bf16 %v341
    %v345 = vunpack.c.h.bf16 %v341
    %v346 = vld [vmem:[#allocation9] sm:$0xff]
    %v347 = vld [vmem:[#allocation9 + $0x8] sm:$0xff]
    %v348 = vld [vmem:[#allocation9 + $0x10] sm:$0xff]
    %v349 = vld [vmem:[#allocation9 + $0x18] sm:$0xff]
    %v350 = vld [vmem:[#allocation9 + $0x20] sm:$0xff]
    %v351 = vld [vmem:[#allocation9 + $0x28] sm:$0xff]
    %v352 = vld [vmem:[#allocation9 + $0x30] sm:$0xff]
    %v353 = vld [vmem:[#allocation9 + $0x38] sm:$0xff]
    %v354 = vld [vmem:[#allocation9 + $0x40] sm:$0xff]
    %v355 = vld [vmem:[#allocation9 + $0x48] sm:$0xff]
    %v356 = vld [vmem:[#allocation9 + $0x50] sm:$0xff]
    %v357 = vld [vmem:[#allocation9 + $0x58] sm:$0xff]
    %v358 = vld [vmem:[#allocation9 + $0x60] sm:$0xff]
    %v359 = vld [vmem:[#allocation9 + $0x68] sm:$0xff]
    %v360 = vld [vmem:[#allocation9 + $0x70] sm:$0xff]
    %v361 = vld [vmem:[#allocation9 + $0x78] sm:$0xff]
    %v362 = vld [vmem:[#allocation9 + $0x80] sm:$0xff]
    %v363 = vld [vmem:[#allocation9 + $0x88] sm:$0xff]
    %v364 = vld [vmem:[#allocation9 + $0x90] sm:$0xff]
    %v365 = vld [vmem:[#allocation9 + $0x98] sm:$0xff]
    %v366 = vld [vmem:[#allocation9 + $0xa0] sm:$0xff]
    %v367 = vld [vmem:[#allocation9 + $0xa8] sm:$0xff]
    %v368 = vld [vmem:[#allocation9 + $0xb0] sm:$0xff]
    %v369 = vld [vmem:[#allocation9 + $0xb8] sm:$0xff]
    %v370 = vld [vmem:[#allocation9 + $0xc0] sm:$0xff]
    %v371 = vld [vmem:[#allocation9 + $0xc8] sm:$0xff]
    %v372 = vld [vmem:[#allocation9 + $0xd0] sm:$0xff]
    %v373 = vld [vmem:[#allocation9 + $0xd8] sm:$0xff]
    %v374 = vld [vmem:[#allocation9 + $0xe0] sm:$0xff]
    %v375 = vld [vmem:[#allocation9 + $0xe8] sm:$0xff]
    %v376 = vld [vmem:[#allocation9 + $0xf0] sm:$0xff]
    %v377 = vld [vmem:[#allocation9 + $0xf8] sm:$0xff]
    %v410 = vunpack.c.l.b16 %v346
    %v411 = vunpack.c.h.b16 %v346
    %v412 = vunpack.c.l.b16 %v347
    %v413 = vunpack.c.h.b16 %v347
    %v414 = vunpack.c.l.b16 %v348
    %v415 = vunpack.c.h.b16 %v348
    %v416 = vunpack.c.l.b16 %v349
    %v417 = vunpack.c.h.b16 %v349
    %v418 = vunpack.c.l.b16 %v350
    %v419 = vunpack.c.h.b16 %v350
    %v420 = vunpack.c.l.b16 %v351
    %v421 = vunpack.c.h.b16 %v351
    %v422 = vunpack.c.l.b16 %v352
    %v423 = vunpack.c.h.b16 %v352
    %v424 = vunpack.c.l.b16 %v353
    %v425 = vunpack.c.h.b16 %v353
    %v426 = vunpack.c.l.b16 %v354
    %v427 = vunpack.c.h.b16 %v354
    %v428 = vunpack.c.l.b16 %v355
    %v429 = vunpack.c.h.b16 %v355
    %v430 = vunpack.c.l.b16 %v356
    %v431 = vunpack.c.h.b16 %v356
    %v432 = vunpack.c.l.b16 %v357
    %v433 = vunpack.c.h.b16 %v357
    %v434 = vunpack.c.l.b16 %v358
    %v435 = vunpack.c.h.b16 %v358
    %v436 = vunpack.c.l.b16 %v359
    %v437 = vunpack.c.h.b16 %v359
    %v438 = vunpack.c.l.b16 %v360
    %v439 = vunpack.c.h.b16 %v360
    %v440 = vunpack.c.l.b16 %v361
    %v441 = vunpack.c.h.b16 %v361
    %v442 = vunpack.c.l.b16 %v362
    %v443 = vunpack.c.h.b16 %v362
    %v444 = vunpack.c.l.b16 %v363
    %v445 = vunpack.c.h.b16 %v363
    %v446 = vunpack.c.l.b16 %v364
    %v447 = vunpack.c.h.b16 %v364
    %v448 = vunpack.c.l.b16 %v365
    %v449 = vunpack.c.h.b16 %v365
    %v450 = vunpack.c.l.b16 %v366
    %v451 = vunpack.c.h.b16 %v366
    %v452 = vunpack.c.l.b16 %v367
    %v453 = vunpack.c.h.b16 %v367
    %v454 = vunpack.c.l.b16 %v368
    %v455 = vunpack.c.h.b16 %v368
    %v456 = vunpack.c.l.b16 %v369
    %v457 = vunpack.c.h.b16 %v369
    %v458 = vunpack.c.l.b16 %v370
    %v459 = vunpack.c.h.b16 %v370
    %v460 = vunpack.c.l.b16 %v371
    %v461 = vunpack.c.h.b16 %v371
    %v462 = vunpack.c.l.b16 %v372
    %v463 = vunpack.c.h.b16 %v372
    %v464 = vunpack.c.l.b16 %v373
    %v465 = vunpack.c.h.b16 %v373
    %v466 = vunpack.c.l.b16 %v374
    %v467 = vunpack.c.h.b16 %v374
    %v468 = vunpack.c.l.b16 %v375
    %v469 = vunpack.c.h.b16 %v375
    %v470 = vunpack.c.l.b16 %v376
    %v471 = vunpack.c.h.b16 %v376
    %v472 = vunpack.c.l.b16 %v377
    %v473 = vunpack.c.h.b16 %v377
    %v474 = vpack.c.b16 %v414, %v410
    %v475 = vpack.c.b16 %v415, %v411
    %v476 = vpack.c.b16 %v416, %v412
    %v477 = vpack.c.b16 %v417, %v413
    %v478 = vpack.c.b16 %v422, %v418
    %v479 = vpack.c.b16 %v423, %v419
    %v480 = vpack.c.b16 %v424, %v420
    %v481 = vpack.c.b16 %v425, %v421
    %v482 = vpack.c.b16 %v430, %v426
    %v483 = vpack.c.b16 %v431, %v427
    %v484 = vpack.c.b16 %v432, %v428
    %v485 = vpack.c.b16 %v433, %v429
    %v486 = vpack.c.b16 %v438, %v434
    %v487 = vpack.c.b16 %v439, %v435
    %v488 = vpack.c.b16 %v440, %v436
    %v489 = vpack.c.b16 %v441, %v437
    %v490 = vpack.c.b16 %v446, %v442
    %v491 = vpack.c.b16 %v447, %v443
    %v492 = vpack.c.b16 %v448, %v444
    %v493 = vpack.c.b16 %v449, %v445
    %v494 = vpack.c.b16 %v454, %v450
    %v495 = vpack.c.b16 %v455, %v451
    %v496 = vpack.c.b16 %v456, %v452
    %v497 = vpack.c.b16 %v457, %v453
    %v498 = vpack.c.b16 %v462, %v458
    %v499 = vpack.c.b16 %v463, %v459
    %v500 = vpack.c.b16 %v464, %v460
    %v501 = vpack.c.b16 %v465, %v461
    %v502 = vpack.c.b16 %v470, %v466
    %v503 = vpack.c.b16 %v471, %v467
    %v504 = vpack.c.b16 %v472, %v468
    %v505 = vpack.c.b16 %v473, %v469
    %538 = vmatpush.bf16.msra.mxu0 %v502
    %539 = vmatpush.bf16.msra.mxu0 %v498
    %540 = vmatpush.bf16.msra.mxu0 %v494
    %541 = vmatpush.bf16.msra.mxu0 %v490
    %542 = vmatpush.bf16.msra.mxu0 %v486
    %543 = vmatpush.bf16.msra.mxu0 %v482
    %544 = vmatpush.bf16.msra.mxu0 %v478
    %545 = vmatpush.bf16.msra.mxu0 %v474
    %546 = vmatmul.bf16.gmra.mxu0 0
    %v547 = vpop.f32.mrf.mxu0
    %v548 = vadd.f32 0.0, %v547
    %v549 = vpop.f32.mrf.mxu0
    %550 = vdwg.mxu0
    %551 = vmatpush.bf16.msra.mxu0 %v503
    %552 = vmatpush.bf16.msra.mxu0 %v499
    %553 = vmatpush.bf16.msra.mxu0 %v495
    %554 = vmatpush.bf16.msra.mxu0 %v491
    %555 = vmatpush.bf16.msra.mxu0 %v487
    %556 = vmatpush.bf16.msra.mxu0 %v483
    %557 = vmatpush.bf16.msra.mxu0 %v479
    %558 = vmatpush.bf16.msra.mxu0 %v475
    %559 = vmatmul.bf16.gmra.mxu0 0
    %v560 = vpop.f32.mrf.mxu0
    %v561 = vadd.f32 0.0, %v560
    %v562 = vpop.f32.mrf.mxu0
    %563 = vdwg.mxu0
    %564 = vmatpush.bf16.msra.mxu0 %v504
    %565 = vmatpush.bf16.msra.mxu0 %v500
    %566 = vmatpush.bf16.msra.mxu0 %v496
    %567 = vmatpush.bf16.msra.mxu0 %v492
    %568 = vmatpush.bf16.msra.mxu0 %v488
    %569 = vmatpush.bf16.msra.mxu0 %v484
    %570 = vmatpush.bf16.msra.mxu0 %v480
    %571 = vmatpush.bf16.msra.mxu0 %v476
    %572 = vmatmul.bf16.gmra.mxu0 0
    %v573 = vpop.f32.mrf.mxu0
    %v574 = vadd.f32 0.0, %v573
    %v575 = vpop.f32.mrf.mxu0
    %576 = vdwg.mxu0
    %577 = vmatpush.bf16.msra.mxu0 %v505
    %578 = vmatpush.bf16.msra.mxu0 %v501
    %579 = vmatpush.bf16.msra.mxu0 %v497
    %580 = vmatpush.bf16.msra.mxu0 %v493
    %581 = vmatpush.bf16.msra.mxu0 %v489
    %582 = vmatpush.bf16.msra.mxu0 %v485
    %583 = vmatpush.bf16.msra.mxu0 %v481
    %584 = vmatpush.bf16.msra.mxu0 %v477
    %585 = vmatmul.bf16.gmra.mxu0 0
    %v586 = vpop.f32.mrf.mxu0
    %v587 = vadd.f32 0.0, %v586
    %v588 = vpop.f32.mrf.mxu0
    %589 = vdwg.mxu0
    %v590 = vadd.f32 %v342, %v548
    %v591 = vadd.f32 %v343, %v561
    %v592 = vadd.f32 %v344, %v574
    %v593 = vadd.f32 %v345, %v587
    %v594 = vxor.u32 %v590, 2147483648
    %v595 = vmul.f32 %v594, 1.442695
    %v596 = vpow.pop %v595
    %v597 = vadd.f32 %v596, 1.0
    %v598 = vrcp.pop %v597
    %v599 = vmul.f32 %v597, %v598
    %v600 = vsub.f32 1.0, %v599
    %v601 = vmul.f32 %v598, %v600
    %v602 = vadd.f32 %v598, %v601
    %vm603 = vweird.f32 %v597
    %vm604 = vweird.f32 %v598
    %vm605 = vmor %vm603, %vm604
    %v606 = vsel %vm605, %v598, %v602
    %v607 = vand.u32 2147483647, %v597
    %vm608 = vcmp.eq.f32.partialorder %v607, 8.507059e+37
    %v609 = vand.u32 %v597, 2147483648
    %v610 = vor.u32 1.1754944e-38, %v609
    %v611 = vsel %vm608, %v610, %v606
    %v612 = vmul.f32 1.0, %v611
    %v613 = vxor.u32 %v591, 2147483648
    %v614 = vmul.f32 %v613, 1.442695
    %v615 = vpow.pop %v614
    %v616 = vadd.f32 %v615, 1.0
    %v617 = vrcp.pop %v616
    %v618 = vmul.f32 %v616, %v617
    %v619 = vsub.f32 1.0, %v618
    %v620 = vmul.f32 %v617, %v619
    %v621 = vadd.f32 %v617, %v620
    %vm622 = vweird.f32 %v616
    %vm623 = vweird.f32 %v617
    %vm624 = vmor %vm622, %vm623
    %v625 = vsel %vm624, %v617, %v621
    %v626 = vand.u32 2147483647, %v616
    %vm627 = vcmp.eq.f32.partialorder %v626, 8.507059e+37
    %v628 = vand.u32 %v616, 2147483648
    %v629 = vor.u32 1.1754944e-38, %v628
    %v630 = vsel %vm627, %v629, %v625
    %v631 = vmul.f32 1.0, %v630
    %v632 = vtanh.pop %v592
    %v633 = vxor.u32 %v593, 2147483648
    %v634 = vmul.f32 %v633, 1.442695
    %v635 = vpow.pop %v634
    %v636 = vadd.f32 %v635, 1.0
    %v637 = vrcp.pop %v636
    %v638 = vmul.f32 %v636, %v637
    %v639 = vsub.f32 1.0, %v638
    %v640 = vmul.f32 %v637, %v639
    %v641 = vadd.f32 %v637, %v640
    %vm642 = vweird.f32 %v636
    %vm643 = vweird.f32 %v637
    %vm644 = vmor %vm642, %vm643
    %v645 = vsel %vm644, %v637, %v641
    %v646 = vand.u32 2147483647, %v636
    %vm647 = vcmp.eq.f32.partialorder %v646, 8.507059e+37
    %v648 = vand.u32 %v636, 2147483648
    %v649 = vor.u32 1.1754944e-38, %v648
    %v650 = vsel %vm647, %v649, %v645
    %v651 = vmul.f32 1.0, %v650
    %v652 = vmul.f32 %v631, 0.0
    %v653 = vmul.f32 %v612, %v632
    %v654 = vadd.f32 %v652, %v653
    %v655 = vtanh.pop %v654
    %v656 = vmul.f32 %v651, %v655
    %v657 = vpack.c.bf16 %v656, %v656
    %658 = vst [vmem:[#allocation3] sm:$0xf] %v657
    %s659 = scalar_lea.vmem [#allocation2], 16
    %v660 = vld [vmem:[%s659] sm:$0xff]
    %v661 = vld [vmem:[%s659 + $0x8] sm:$0xff]
    %v662 = vunpack.c.l.bf16 %v660
    %v663 = vunpack.c.h.bf16 %v660
    %v664 = vunpack.c.l.bf16 %v661
    %v665 = vunpack.c.h.bf16 %v661
    %v666 = vld [vmem:[#allocation9] sm:$0xff]
    %v667 = vld [vmem:[#allocation9 + $0x8] sm:$0xff]
    %v668 = vld [vmem:[#allocation9 + $0x10] sm:$0xff]
    %v669 = vld [vmem:[#allocation9 + $0x18] sm:$0xff]
    %v670 = vld [vmem:[#allocation9 + $0x20] sm:$0xff]
    %v671 = vld [vmem:[#allocation9 + $0x28] sm:$0xff]
    %v672 = vld [vmem:[#allocation9 + $0x30] sm:$0xff]
    %v673 = vld [vmem:[#allocation9 + $0x38] sm:$0xff]
    %v674 = vld [vmem:[#allocation9 + $0x40] sm:$0xff]
    %v675 = vld [vmem:[#allocation9 + $0x48] sm:$0xff]
    %v676 = vld [vmem:[#allocation9 + $0x50] sm:$0xff]
    %v677 = vld [vmem:[#allocation9 + $0x58] sm:$0xff]
    %v678 = vld [vmem:[#allocation9 + $0x60] sm:$0xff]
    %v679 = vld [vmem:[#allocation9 + $0x68] sm:$0xff]
    %v680 = vld [vmem:[#allocation9 + $0x70] sm:$0xff]
    %v681 = vld [vmem:[#allocation9 + $0x78] sm:$0xff]
    %v682 = vld [vmem:[#allocation9 + $0x80] sm:$0xff]
    %v683 = vld [vmem:[#allocation9 + $0x88] sm:$0xff]
    %v684 = vld [vmem:[#allocation9 + $0x90] sm:$0xff]
    %v685 = vld [vmem:[#allocation9 + $0x98] sm:$0xff]
    %v686 = vld [vmem:[#allocation9 + $0xa0] sm:$0xff]
    %v687 = vld [vmem:[#allocation9 + $0xa8] sm:$0xff]
    %v688 = vld [vmem:[#allocation9 + $0xb0] sm:$0xff]
    %v689 = vld [vmem:[#allocation9 + $0xb8] sm:$0xff]
    %v690 = vld [vmem:[#allocation9 + $0xc0] sm:$0xff]
    %v691 = vld [vmem:[#allocation9 + $0xc8] sm:$0xff]
    %v692 = vld [vmem:[#allocation9 + $0xd0] sm:$0xff]
    %v693 = vld [vmem:[#allocation9 + $0xd8] sm:$0xff]
    %v694 = vld [vmem:[#allocation9 + $0xe0] sm:$0xff]
    %v695 = vld [vmem:[#allocation9 + $0xe8] sm:$0xff]
    %v696 = vld [vmem:[#allocation9 + $0xf0] sm:$0xff]
    %v697 = vld [vmem:[#allocation9 + $0xf8] sm:$0xff]
    %v730 = vunpack.c.l.b16 %v666
    %v731 = vunpack.c.h.b16 %v666
    %v732 = vunpack.c.l.b16 %v667
    %v733 = vunpack.c.h.b16 %v667
    %v734 = vunpack.c.l.b16 %v668
    %v735 = vunpack.c.h.b16 %v668
    %v736 = vunpack.c.l.b16 %v669
    %v737 = vunpack.c.h.b16 %v669
    %v738 = vunpack.c.l.b16 %v670
    %v739 = vunpack.c.h.b16 %v670
    %v740 = vunpack.c.l.b16 %v671
    %v741 = vunpack.c.h.b16 %v671
    %v742 = vunpack.c.l.b16 %v672
    %v743 = vunpack.c.h.b16 %v672
    %v744 = vunpack.c.l.b16 %v673
    %v745 = vunpack.c.h.b16 %v673
    %v746 = vunpack.c.l.b16 %v674
    %v747 = vunpack.c.h.b16 %v674
    %v748 = vunpack.c.l.b16 %v675
    %v749 = vunpack.c.h.b16 %v675
    %v750 = vunpack.c.l.b16 %v676
    %v751 = vunpack.c.h.b16 %v676
    %v752 = vunpack.c.l.b16 %v677
    %v753 = vunpack.c.h.b16 %v677
    %v754 = vunpack.c.l.b16 %v678
    %v755 = vunpack.c.h.b16 %v678
    %v756 = vunpack.c.l.b16 %v679
    %v757 = vunpack.c.h.b16 %v679
    %v758 = vunpack.c.l.b16 %v680
    %v759 = vunpack.c.h.b16 %v680
    %v760 = vunpack.c.l.b16 %v681
    %v761 = vunpack.c.h.b16 %v681
    %v762 = vunpack.c.l.b16 %v682
    %v763 = vunpack.c.h.b16 %v682
    %v764 = vunpack.c.l.b16 %v683
    %v765 = vunpack.c.h.b16 %v683
    %v766 = vunpack.c.l.b16 %v684
    %v767 = vunpack.c.h.b16 %v684
    %v768 = vunpack.c.l.b16 %v685
    %v769 = vunpack.c.h.b16 %v685
    %v770 = vunpack.c.l.b16 %v686
    %v771 = vunpack.c.h.b16 %v686
    %v772 = vunpack.c.l.b16 %v687
    %v773 = vunpack.c.h.b16 %v687
    %v774 = vunpack.c.l.b16 %v688
    %v775 = vunpack.c.h.b16 %v688
    %v776 = vunpack.c.l.b16 %v689
    %v777 = vunpack.c.h.b16 %v689
    %v778 = vunpack.c.l.b16 %v690
    %v779 = vunpack.c.h.b16 %v690
    %v780 = vunpack.c.l.b16 %v691
    %v781 = vunpack.c.h.b16 %v691
    %v782 = vunpack.c.l.b16 %v692
    %v783 = vunpack.c.h.b16 %v692
    %v784 = vunpack.c.l.b16 %v693
    %v785 = vunpack.c.h.b16 %v693
    %v786 = vunpack.c.l.b16 %v694
    %v787 = vunpack.c.h.b16 %v694
    %v788 = vunpack.c.l.b16 %v695
    %v789 = vunpack.c.h.b16 %v695
    %v790 = vunpack.c.l.b16 %v696
    %v791 = vunpack.c.h.b16 %v696
    %v792 = vunpack.c.l.b16 %v697
    %v793 = vunpack.c.h.b16 %v697
    %v794 = vpack.c.b16 %v734, %v730
    %v795 = vpack.c.b16 %v735, %v731
    %v796 = vpack.c.b16 %v736, %v732
    %v797 = vpack.c.b16 %v737, %v733
    %v798 = vpack.c.b16 %v742, %v738
    %v799 = vpack.c.b16 %v743, %v739
    %v800 = vpack.c.b16 %v744, %v740
    %v801 = vpack.c.b16 %v745, %v741
    %v802 = vpack.c.b16 %v750, %v746
    %v803 = vpack.c.b16 %v751, %v747
    %v804 = vpack.c.b16 %v752, %v748
    %v805 = vpack.c.b16 %v753, %v749
    %v806 = vpack.c.b16 %v758, %v754
    %v807 = vpack.c.b16 %v759, %v755
    %v808 = vpack.c.b16 %v760, %v756
    %v809 = vpack.c.b16 %v761, %v757
    %v810 = vpack.c.b16 %v766, %v762
    %v811 = vpack.c.b16 %v767, %v763
    %v812 = vpack.c.b16 %v768, %v764
    %v813 = vpack.c.b16 %v769, %v765
    %v814 = vpack.c.b16 %v774, %v770
    %v815 = vpack.c.b16 %v775, %v771
    %v816 = vpack.c.b16 %v776, %v772
    %v817 = vpack.c.b16 %v777, %v773
    %v818 = vpack.c.b16 %v782, %v778
    %v819 = vpack.c.b16 %v783, %v779
    %v820 = vpack.c.b16 %v784, %v780
    %v821 = vpack.c.b16 %v785, %v781
    %v822 = vpack.c.b16 %v790, %v786
    %v823 = vpack.c.b16 %v791, %v787
    %v824 = vpack.c.b16 %v792, %v788
    %v825 = vpack.c.b16 %v793, %v789
    %858 = vmatpush.bf16.msra.mxu0 %v822
    %859 = vmatpush.bf16.msra.mxu0 %v818
    %860 = vmatpush.bf16.msra.mxu0 %v814
    %861 = vmatpush.bf16.msra.mxu0 %v810
    %862 = vmatpush.bf16.msra.mxu0 %v806
    %863 = vmatpush.bf16.msra.mxu0 %v802
    %864 = vmatpush.bf16.msra.mxu0 %v798
    %865 = vmatpush.bf16.msra.mxu0 %v794
    %866 = vmatmul.bf16.gmra.mxu0 %v657
    %v867 = vpop.f32.mrf.mxu0
    %v868 = vadd.f32 0.0, %v867
    %v869 = vpop.f32.mrf.mxu0
    %870 = vdwg.mxu0
    %871 = vmatpush.bf16.msra.mxu0 %v823
    %872 = vmatpush.bf16.msra.mxu0 %v819
    %873 = vmatpush.bf16.msra.mxu0 %v815
    %874 = vmatpush.bf16.msra.mxu0 %v811
    %875 = vmatpush.bf16.msra.mxu0 %v807
    %876 = vmatpush.bf16.msra.mxu0 %v803
    %877 = vmatpush.bf16.msra.mxu0 %v799
    %878 = vmatpush.bf16.msra.mxu0 %v795
    %879 = vmatmul.bf16.gmra.mxu0 %v657
    %v880 = vpop.f32.mrf.mxu0
    %v881 = vadd.f32 0.0, %v880
    %v882 = vpop.f32.mrf.mxu0
    %883 = vdwg.mxu0
    %884 = vmatpush.bf16.msra.mxu0 %v824
    %885 = vmatpush.bf16.msra.mxu0 %v820
    %886 = vmatpush.bf16.msra.mxu0 %v816
    %887 = vmatpush.bf16.msra.mxu0 %v812
    %888 = vmatpush.bf16.msra.mxu0 %v808
    %889 = vmatpush.bf16.msra.mxu0 %v804
    %890 = vmatpush.bf16.msra.mxu0 %v800
    %891 = vmatpush.bf16.msra.mxu0 %v796
    %892 = vmatmul.bf16.gmra.mxu0 %v657
    %v893 = vpop.f32.mrf.mxu0
    %v894 = vadd.f32 0.0, %v893
    %v895 = vpop.f32.mrf.mxu0
    %896 = vdwg.mxu0
    %897 = vmatpush.bf16.msra.mxu0 %v825
    %898 = vmatpush.bf16.msra.mxu0 %v821
    %899 = vmatpush.bf16.msra.mxu0 %v817
    %900 = vmatpush.bf16.msra.mxu0 %v813
    %901 = vmatpush.bf16.msra.mxu0 %v809
    %902 = vmatpush.bf16.msra.mxu0 %v805
    %903 = vmatpush.bf16.msra.mxu0 %v801
    %904 = vmatpush.bf16.msra.mxu0 %v797
    %905 = vmatmul.bf16.gmra.mxu0 %v657
    %v906 = vpop.f32.mrf.mxu0
    %v907 = vadd.f32 0.0, %v906
    %v908 = vpop.f32.mrf.mxu0
    %909 = vdwg.mxu0
    %v910 = vadd.f32 %v662, %v868
    %v911 = vadd.f32 %v663, %v881
    %v912 = vadd.f32 %v664, %v894
    %v913 = vadd.f32 %v665, %v907
    %v914 = vxor.u32 %v910, 2147483648
    %v915 = vmul.f32 %v914, 1.442695
    %v916 = vpow.pop %v915
    %v917 = vadd.f32 %v916, 1.0
    %v918 = vrcp.pop %v917
    %v919 = vmul.f32 %v917, %v918
    %v920 = vsub.f32 1.0, %v919
    %v921 = vmul.f32 %v918, %v920
    %v922 = vadd.f32 %v918, %v921
    %vm923 = vweird.f32 %v917
    %vm924 = vweird.f32 %v918
    %vm925 = vmor %vm923, %vm924
    %v926 = vsel %vm925, %v918, %v922
    %v927 = vand.u32 2147483647, %v917
    %vm928 = vcmp.eq.f32.partialorder %v927, 8.507059e+37
    %v929 = vand.u32 %v917, 2147483648
    %v930 = vor.u32 1.1754944e-38, %v929
    %v931 = vsel %vm928, %v930, %v926
    %v932 = vmul.f32 1.0, %v931
    %v933 = vxor.u32 %v911, 2147483648
    %v934 = vmul.f32 %v933, 1.442695
    %v935 = vpow.pop %v934
    %v936 = vadd.f32 %v935, 1.0
    %v937 = vrcp.pop %v936
    %v938 = vmul.f32 %v936, %v937
    %v939 = vsub.f32 1.0, %v938
    %v940 = vmul.f32 %v937, %v939
    %v941 = vadd.f32 %v937, %v940
    %vm942 = vweird.f32 %v936
    %vm943 = vweird.f32 %v937
    %vm944 = vmor %vm942, %vm943
    %v945 = vsel %vm944, %v937, %v941
    %v946 = vand.u32 2147483647, %v936
    %vm947 = vcmp.eq.f32.partialorder %v946, 8.507059e+37
    %v948 = vand.u32 %v936, 2147483648
    %v949 = vor.u32 1.1754944e-38, %v948
    %v950 = vsel %vm947, %v949, %v945
    %v951 = vmul.f32 1.0, %v950
    %v952 = vtanh.pop %v912
    %v953 = vxor.u32 %v913, 2147483648
    %v954 = vmul.f32 %v953, 1.442695
    %v955 = vpow.pop %v954
    %v956 = vadd.f32 %v955, 1.0
    %v957 = vrcp.pop %v956
    %v958 = vmul.f32 %v956, %v957
    %v959 = vsub.f32 1.0, %v958
    %v960 = vmul.f32 %v957, %v959
    %v961 = vadd.f32 %v957, %v960
    %vm962 = vweird.f32 %v956
    %vm963 = vweird.f32 %v957
    %vm964 = vmor %vm962, %vm963
    %v965 = vsel %vm964, %v957, %v961
    %v966 = vand.u32 2147483647, %v956
    %vm967 = vcmp.eq.f32.partialorder %v966, 8.507059e+37
    %v968 = vand.u32 %v956, 2147483648
    %v969 = vor.u32 1.1754944e-38, %v968
    %v970 = vsel %vm967, %v969, %v965
    %v971 = vmul.f32 1.0, %v970
    %v972 = vmul.f32 %v951, %v654
    %v973 = vmul.f32 %v932, %v952
    %v974 = vadd.f32 %v972, %v973
    %v975 = vtanh.pop %v974
    %v976 = vmul.f32 %v971, %v975
    %v977 = vpack.c.bf16 %v976, %v976
    %s978 = scalar_lea.vmem [#allocation3], 4
    %979 = vst [vmem:[%s978] sm:$0xf] %v977
    %s980 = scalar_lea.vmem [#allocation2], 32
    %v981 = vld [vmem:[%s980] sm:$0xff]
    %v982 = vld [vmem:[%s980 + $0x8] sm:$0xff]
    %v983 = vunpack.c.l.bf16 %v981
    %v984 = vunpack.c.h.bf16 %v981
    %v985 = vunpack.c.l.bf16 %v982
    %v986 = vunpack.c.h.bf16 %v982
    %v987 = vld [vmem:[#allocation9] sm:$0xff]
    %v988 = vld [vmem:[#allocation9 + $0x8] sm:$0xff]
    %v989 = vld [vmem:[#allocation9 + $0x10] sm:$0xff]
    %v990 = vld [vmem:[#allocation9 + $0x18] sm:$0xff]
    %v991 = vld [vmem:[#allocation9 + $0x20] sm:$0xff]
    %v992 = vld [vmem:[#allocation9 + $0x28] sm:$0xff]
    %v993 = vld [vmem:[#allocation9 + $0x30] sm:$0xff]
    %v994 = vld [vmem:[#allocation9 + $0x38] sm:$0xff]
    %v995 = vld [vmem:[#allocation9 + $0x40] sm:$0xff]
    %v996 = vld [vmem:[#allocation9 + $0x48] sm:$0xff]
    %v997 = vld [vmem:[#allocation9 + $0x50] sm:$0xff]
    %v998 = vld [vmem:[#allocation9 + $0x58] sm:$0xff]
    %v999 = vld [vmem:[#allocation9 + $0x60] sm:$0xff]
    %v1000 = vld [vmem:[#allocation9 + $0x68] sm:$0xff]
    %v1001 = vld [vmem:[#allocation9 + $0x70] sm:$0xff]
    %v1002 = vld [vmem:[#allocation9 + $0x78] sm:$0xff]
    %v1003 = vld [vmem:[#allocation9 + $0x80] sm:$0xff]
    %v1004 = vld [vmem:[#allocation9 + $0x88] sm:$0xff]
    %v1005 = vld [vmem:[#allocation9 + $0x90] sm:$0xff]
    %v1006 = vld [vmem:[#allocation9 + $0x98] sm:$0xff]
    %v1007 = vld [vmem:[#allocation9 + $0xa0] sm:$0xff]
    %v1008 = vld [vmem:[#allocation9 + $0xa8] sm:$0xff]
    %v1009 = vld [vmem:[#allocation9 + $0xb0] sm:$0xff]
    %v1010 = vld [vmem:[#allocation9 + $0xb8] sm:$0xff]
    %v1011 = vld [vmem:[#allocation9 + $0xc0] sm:$0xff]
    %v1012 = vld [vmem:[#allocation9 + $0xc8] sm:$0xff]
    %v1013 = vld [vmem:[#allocation9 + $0xd0] sm:$0xff]
    %v1014 = vld [vmem:[#allocation9 + $0xd8] sm:$0xff]
    %v1015 = vld [vmem:[#allocation9 + $0xe0] sm:$0xff]
    %v1016 = vld [vmem:[#allocation9 + $0xe8] sm:$0xff]
    %v1017 = vld [vmem:[#allocation9 + $0xf0] sm:$0xff]
    %v1018 = vld [vmem:[#allocation9 + $0xf8] sm:$0xff]
    %v1051 = vunpack.c.l.b16 %v987
    %v1052 = vunpack.c.h.b16 %v987
    %v1053 = vunpack.c.l.b16 %v988
    %v1054 = vunpack.c.h.b16 %v988
    %v1055 = vunpack.c.l.b16 %v989
    %v1056 = vunpack.c.h.b16 %v989
    %v1057 = vunpack.c.l.b16 %v990
    %v1058 = vunpack.c.h.b16 %v990
    %v1059 = vunpack.c.l.b16 %v991
    %v1060 = vunpack.c.h.b16 %v991
    %v1061 = vunpack.c.l.b16 %v992
    %v1062 = vunpack.c.h.b16 %v992
    %v1063 = vunpack.c.l.b16 %v993
    %v1064 = vunpack.c.h.b16 %v993
    %v1065 = vunpack.c.l.b16 %v994
    %v1066 = vunpack.c.h.b16 %v994
    %v1067 = vunpack.c.l.b16 %v995
    %v1068 = vunpack.c.h.b16 %v995
    %v1069 = vunpack.c.l.b16 %v996
    %v1070 = vunpack.c.h.b16 %v996
    %v1071 = vunpack.c.l.b16 %v997
    %v1072 = vunpack.c.h.b16 %v997
    %v1073 = vunpack.c.l.b16 %v998
    %v1074 = vunpack.c.h.b16 %v998
    %v1075 = vunpack.c.l.b16 %v999
    %v1076 = vunpack.c.h.b16 %v999
    %v1077 = vunpack.c.l.b16 %v1000
    %v1078 = vunpack.c.h.b16 %v1000
    %v1079 = vunpack.c.l.b16 %v1001
    %v1080 = vunpack.c.h.b16 %v1001
    %v1081 = vunpack.c.l.b16 %v1002
    %v1082 = vunpack.c.h.b16 %v1002
    %v1083 = vunpack.c.l.b16 %v1003
    %v1084 = vunpack.c.h.b16 %v1003
    %v1085 = vunpack.c.l.b16 %v1004
    %v1086 = vunpack.c.h.b16 %v1004
    %v1087 = vunpack.c.l.b16 %v1005
    %v1088 = vunpack.c.h.b16 %v1005
    %v1089 = vunpack.c.l.b16 %v1006
    %v1090 = vunpack.c.h.b16 %v1006
    %v1091 = vunpack.c.l.b16 %v1007
    %v1092 = vunpack.c.h.b16 %v1007
    %v1093 = vunpack.c.l.b16 %v1008
    %v1094 = vunpack.c.h.b16 %v1008
    %v1095 = vunpack.c.l.b16 %v1009
    %v1096 = vunpack.c.h.b16 %v1009
    %v1097 = vunpack.c.l.b16 %v1010
    %v1098 = vunpack.c.h.b16 %v1010
    %v1099 = vunpack.c.l.b16 %v1011
    %v1100 = vunpack.c.h.b16 %v1011
    %v1101 = vunpack.c.l.b16 %v1012
    %v1102 = vunpack.c.h.b16 %v1012
    %v1103 = vunpack.c.l.b16 %v1013
    %v1104 = vunpack.c.h.b16 %v1013
    %v1105 = vunpack.c.l.b16 %v1014
    %v1106 = vunpack.c.h.b16 %v1014
    %v1107 = vunpack.c.l.b16 %v1015
    %v1108 = vunpack.c.h.b16 %v1015
    %v1109 = vunpack.c.l.b16 %v1016
    %v1110 = vunpack.c.h.b16 %v1016
    %v1111 = vunpack.c.l.b16 %v1017
    %v1112 = vunpack.c.h.b16 %v1017
    %v1113 = vunpack.c.l.b16 %v1018
    %v1114 = vunpack.c.h.b16 %v1018
    %v1115 = vpack.c.b16 %v1055, %v1051
    %v1116 = vpack.c.b16 %v1056, %v1052
    %v1117 = vpack.c.b16 %v1057, %v1053
    %v1118 = vpack.c.b16 %v1058, %v1054
    %v1119 = vpack.c.b16 %v1063, %v1059
    %v1120 = vpack.c.b16 %v1064, %v1060
    %v1121 = vpack.c.b16 %v1065, %v1061
    %v1122 = vpack.c.b16 %v1066, %v1062
    %v1123 = vpack.c.b16 %v1071, %v1067
    %v1124 = vpack.c.b16 %v1072, %v1068
    %v1125 = vpack.c.b16 %v1073, %v1069
    %v1126 = vpack.c.b16 %v1074, %v1070
    %v1127 = vpack.c.b16 %v1079, %v1075
    %v1128 = vpack.c.b16 %v1080, %v1076
    %v1129 = vpack.c.b16 %v1081, %v1077
    %v1130 = vpack.c.b16 %v1082, %v1078
    %v1131 = vpack.c.b16 %v1087, %v1083
    %v1132 = vpack.c.b16 %v1088, %v1084
    %v1133 = vpack.c.b16 %v1089, %v1085
    %v1134 = vpack.c.b16 %v1090, %v1086
    %v1135 = vpack.c.b16 %v1095, %v1091
    %v1136 = vpack.c.b16 %v1096, %v1092
    %v1137 = vpack.c.b16 %v1097, %v1093
    %v1138 = vpack.c.b16 %v1098, %v1094
    %v1139 = vpack.c.b16 %v1103, %v1099
    %v1140 = vpack.c.b16 %v1104, %v1100
    %v1141 = vpack.c.b16 %v1105, %v1101
    %v1142 = vpack.c.b16 %v1106, %v1102
    %v1143 = vpack.c.b16 %v1111, %v1107
    %v1144 = vpack.c.b16 %v1112, %v1108
    %v1145 = vpack.c.b16 %v1113, %v1109
    %v1146 = vpack.c.b16 %v1114, %v1110
    %1179 = vmatpush.bf16.msra.mxu0 %v1143
    %1180 = vmatpush.bf16.msra.mxu0 %v1139
    %1181 = vmatpush.bf16.msra.mxu0 %v1135
    %1182 = vmatpush.bf16.msra.mxu0 %v1131
    %1183 = vmatpush.bf16.msra.mxu0 %v1127
    %1184 = vmatpush.bf16.msra.mxu0 %v1123
    %1185 = vmatpush.bf16.msra.mxu0 %v1119
    %1186 = vmatpush.bf16.msra.mxu0 %v1115
    %1187 = vmatmul.bf16.gmra.mxu0 %v977
    %v1188 = vpop.f32.mrf.mxu0
    %v1189 = vadd.f32 0.0, %v1188
    %v1190 = vpop.f32.mrf.mxu0
    %1191 = vdwg.mxu0
    %1192 = vmatpush.bf16.msra.mxu0 %v1144
    %1193 = vmatpush.bf16.msra.mxu0 %v1140
    %1194 = vmatpush.bf16.msra.mxu0 %v1136
    %1195 = vmatpush.bf16.msra.mxu0 %v1132
    %1196 = vmatpush.bf16.msra.mxu0 %v1128
    %1197 = vmatpush.bf16.msra.mxu0 %v1124
    %1198 = vmatpush.bf16.msra.mxu0 %v1120
    %1199 = vmatpush.bf16.msra.mxu0 %v1116
    %1200 = vmatmul.bf16.gmra.mxu0 %v977
    %v1201 = vpop.f32.mrf.mxu0
    %v1202 = vadd.f32 0.0, %v1201
    %v1203 = vpop.f32.mrf.mxu0
    %1204 = vdwg.mxu0
    %1205 = vmatpush.bf16.msra.mxu0 %v1145
    %1206 = vmatpush.bf16.msra.mxu0 %v1141
    %1207 = vmatpush.bf16.msra.mxu0 %v1137
    %1208 = vmatpush.bf16.msra.mxu0 %v1133
    %1209 = vmatpush.bf16.msra.mxu0 %v1129
    %1210 = vmatpush.bf16.msra.mxu0 %v1125
    %1211 = vmatpush.bf16.msra.mxu0 %v1121
    %1212 = vmatpush.bf16.msra.mxu0 %v1117
    %1213 = vmatmul.bf16.gmra.mxu0 %v977
    %v1214 = vpop.f32.mrf.mxu0
    %v1215 = vadd.f32 0.0, %v1214
    %v1216 = vpop.f32.mrf.mxu0
    %1217 = vdwg.mxu0
    %1218 = vmatpush.bf16.msra.mxu0 %v1146
    %1219 = vmatpush.bf16.msra.mxu0 %v1142
    %1220 = vmatpush.bf16.msra.mxu0 %v1138
    %1221 = vmatpush.bf16.msra.mxu0 %v1134
    %1222 = vmatpush.bf16.msra.mxu0 %v1130
    %1223 = vmatpush.bf16.msra.mxu0 %v1126
    %1224 = vmatpush.bf16.msra.mxu0 %v1122
    %1225 = vmatpush.bf16.msra.mxu0 %v1118
    %1226 = vmatmul.bf16.gmra.mxu0 %v977
    %v1227 = vpop.f32.mrf.mxu0
    %v1228 = vadd.f32 0.0, %v1227
    %v1229 = vpop.f32.mrf.mxu0
    %1230 = vdwg.mxu0
    %v1231 = vadd.f32 %v983, %v1189
    %v1232 = vadd.f32 %v984, %v1202
    %v1233 = vadd.f32 %v985, %v1215
    %v1234 = vadd.f32 %v986, %v1228
    %v1235 = vxor.u32 %v1231, 2147483648
    %v1236 = vmul.f32 %v1235, 1.442695
    %v1237 = vpow.pop %v1236
    %v1238 = vadd.f32 %v1237, 1.0
    %v1239 = vrcp.pop %v1238
    %v1240 = vmul.f32 %v1238, %v1239
    %v1241 = vsub.f32 1.0, %v1240
    %v1242 = vmul.f32 %v1239, %v1241
    %v1243 = vadd.f32 %v1239, %v1242
    %vm1244 = vweird.f32 %v1238
    %vm1245 = vweird.f32 %v1239
    %vm1246 = vmor %vm1244, %vm1245
    %v1247 = vsel %vm1246, %v1239, %v1243
    %v1248 = vand.u32 2147483647, %v1238
    %vm1249 = vcmp.eq.f32.partialorder %v1248, 8.507059e+37
    %v1250 = vand.u32 %v1238, 2147483648
    %v1251 = vor.u32 1.1754944e-38, %v1250
    %v1252 = vsel %vm1249, %v1251, %v1247
    %v1253 = vmul.f32 1.0, %v1252
    %v1254 = vxor.u32 %v1232, 2147483648
    %v1255 = vmul.f32 %v1254, 1.442695
    %v1256 = vpow.pop %v1255
    %v1257 = vadd.f32 %v1256, 1.0
    %v1258 = vrcp.pop %v1257
    %v1259 = vmul.f32 %v1257, %v1258
    %v1260 = vsub.f32 1.0, %v1259
    %v1261 = vmul.f32 %v1258, %v1260
    %v1262 = vadd.f32 %v1258, %v1261
    %vm1263 = vweird.f32 %v1257
    %vm1264 = vweird.f32 %v1258
    %vm1265 = vmor %vm1263, %vm1264
    %v1266 = vsel %vm1265, %v1258, %v1262
    %v1267 = vand.u32 2147483647, %v1257
    %vm1268 = vcmp.eq.f32.partialorder %v1267, 8.507059e+37
    %v1269 = vand.u32 %v1257, 2147483648
    %v1270 = vor.u32 1.1754944e-38, %v1269
    %v1271 = vsel %vm1268, %v1270, %v1266
    %v1272 = vmul.f32 1.0, %v1271
    %v1273 = vtanh.pop %v1233
    %v1274 = vxor.u32 %v1234, 2147483648
    %v1275 = vmul.f32 %v1274, 1.442695
    %v1276 = vpow.pop %v1275
    %v1277 = vadd.f32 %v1276, 1.0
    %v1278 = vrcp.pop %v1277
    %v1279 = vmul.f32 %v1277, %v1278
    %v1280 = vsub.f32 1.0, %v1279
    %v1281 = vmul.f32 %v1278, %v1280
    %v1282 = vadd.f32 %v1278, %v1281
    %vm1283 = vweird.f32 %v1277
    %vm1284 = vweird.f32 %v1278
    %vm1285 = vmor %vm1283, %vm1284
    %v1286 = vsel %vm1285, %v1278, %v1282
    %v1287 = vand.u32 2147483647, %v1277
    %vm1288 = vcmp.eq.f32.partialorder %v1287, 8.507059e+37
    %v1289 = vand.u32 %v1277, 2147483648
    %v1290 = vor.u32 1.1754944e-38, %v1289
    %v1291 = vsel %vm1288, %v1290, %v1286
    %v1292 = vmul.f32 1.0, %v1291
    %v1293 = vmul.f32 %v1272, %v974
    %v1294 = vmul.f32 %v1253, %v1273
    %v1295 = vadd.f32 %v1293, %v1294
    %v1296 = vtanh.pop %v1295
    %v1297 = vmul.f32 %v1292, %v1296
    %v1298 = vpack.c.bf16 %v1297, %v1297
    %s1299 = scalar_lea.vmem [#allocation3], 8
    %1300 = vst [vmem:[%s1299] sm:$0xf] %v1298
    %s1301 = scalar_lea.vmem [#allocation2], 48
    %v1302 = vld [vmem:[%s1301] sm:$0xff]
    %v1303 = vld [vmem:[%s1301 + $0x8] sm:$0xff]
    %v1304 = vunpack.c.l.bf16 %v1302
    %v1305 = vunpack.c.h.bf16 %v1302
    %v1306 = vunpack.c.l.bf16 %v1303
    %v1307 = vunpack.c.h.bf16 %v1303
    %v1308 = vld [vmem:[#allocation9] sm:$0xff]
    %v1309 = vld [vmem:[#allocation9 + $0x8] sm:$0xff]
    %v1310 = vld [vmem:[#allocation9 + $0x10] sm:$0xff]
    %v1311 = vld [vmem:[#allocation9 + $0x18] sm:$0xff]
    %v1312 = vld [vmem:[#allocation9 + $0x20] sm:$0xff]
    %v1313 = vld [vmem:[#allocation9 + $0x28] sm:$0xff]
    %v1314 = vld [vmem:[#allocation9 + $0x30] sm:$0xff]
    %v1315 = vld [vmem:[#allocation9 + $0x38] sm:$0xff]
    %v1316 = vld [vmem:[#allocation9 + $0x40] sm:$0xff]
    %v1317 = vld [vmem:[#allocation9 + $0x48] sm:$0xff]
    %v1318 = vld [vmem:[#allocation9 + $0x50] sm:$0xff]
    %v1319 = vld [vmem:[#allocation9 + $0x58] sm:$0xff]
    %v1320 = vld [vmem:[#allocation9 + $0x60] sm:$0xff]
    %v1321 = vld [vmem:[#allocation9 + $0x68] sm:$0xff]
    %v1322 = vld [vmem:[#allocation9 + $0x70] sm:$0xff]
    %v1323 = vld [vmem:[#allocation9 + $0x78] sm:$0xff]
    %v1324 = vld [vmem:[#allocation9 + $0x80] sm:$0xff]
    %v1325 = vld [vmem:[#allocation9 + $0x88] sm:$0xff]
    %v1326 = vld [vmem:[#allocation9 + $0x90] sm:$0xff]
    %v1327 = vld [vmem:[#allocation9 + $0x98] sm:$0xff]
    %v1328 = vld [vmem:[#allocation9 + $0xa0] sm:$0xff]
    %v1329 = vld [vmem:[#allocation9 + $0xa8] sm:$0xff]
    %v1330 = vld [vmem:[#allocation9 + $0xb0] sm:$0xff]
    %v1331 = vld [vmem:[#allocation9 + $0xb8] sm:$0xff]
    %v1332 = vld [vmem:[#allocation9 + $0xc0] sm:$0xff]
    %v1333 = vld [vmem:[#allocation9 + $0xc8] sm:$0xff]
    %v1334 = vld [vmem:[#allocation9 + $0xd0] sm:$0xff]
    %v1335 = vld [vmem:[#allocation9 + $0xd8] sm:$0xff]
    %v1336 = vld [vmem:[#allocation9 + $0xe0] sm:$0xff]
    %v1337 = vld [vmem:[#allocation9 + $0xe8] sm:$0xff]
    %v1338 = vld [vmem:[#allocation9 + $0xf0] sm:$0xff]
    %v1339 = vld [vmem:[#allocation9 + $0xf8] sm:$0xff]
    %v1372 = vunpack.c.l.b16 %v1308
    %v1373 = vunpack.c.h.b16 %v1308
    %v1374 = vunpack.c.l.b16 %v1309
    %v1375 = vunpack.c.h.b16 %v1309
    %v1376 = vunpack.c.l.b16 %v1310
    %v1377 = vunpack.c.h.b16 %v1310
    %v1378 = vunpack.c.l.b16 %v1311
    %v1379 = vunpack.c.h.b16 %v1311
    %v1380 = vunpack.c.l.b16 %v1312
    %v1381 = vunpack.c.h.b16 %v1312
    %v1382 = vunpack.c.l.b16 %v1313
    %v1383 = vunpack.c.h.b16 %v1313
    %v1384 = vunpack.c.l.b16 %v1314
    %v1385 = vunpack.c.h.b16 %v1314
    %v1386 = vunpack.c.l.b16 %v1315
    %v1387 = vunpack.c.h.b16 %v1315
    %v1388 = vunpack.c.l.b16 %v1316
    %v1389 = vunpack.c.h.b16 %v1316
    %v1390 = vunpack.c.l.b16 %v1317
    %v1391 = vunpack.c.h.b16 %v1317
    %v1392 = vunpack.c.l.b16 %v1318
    %v1393 = vunpack.c.h.b16 %v1318
    %v1394 = vunpack.c.l.b16 %v1319
    %v1395 = vunpack.c.h.b16 %v1319
    %v1396 = vunpack.c.l.b16 %v1320
    %v1397 = vunpack.c.h.b16 %v1320
    %v1398 = vunpack.c.l.b16 %v1321
    %v1399 = vunpack.c.h.b16 %v1321
    %v1400 = vunpack.c.l.b16 %v1322
    %v1401 = vunpack.c.h.b16 %v1322
    %v1402 = vunpack.c.l.b16 %v1323
    %v1403 = vunpack.c.h.b16 %v1323
    %v1404 = vunpack.c.l.b16 %v1324
    %v1405 = vunpack.c.h.b16 %v1324
    %v1406 = vunpack.c.l.b16 %v1325
    %v1407 = vunpack.c.h.b16 %v1325
    %v1408 = vunpack.c.l.b16 %v1326
    %v1409 = vunpack.c.h.b16 %v1326
    %v1410 = vunpack.c.l.b16 %v1327
    %v1411 = vunpack.c.h.b16 %v1327
    %v1412 = vunpack.c.l.b16 %v1328
    %v1413 = vunpack.c.h.b16 %v1328
    %v1414 = vunpack.c.l.b16 %v1329
    %v1415 = vunpack.c.h.b16 %v1329
    %v1416 = vunpack.c.l.b16 %v1330
    %v1417 = vunpack.c.h.b16 %v1330
    %v1418 = vunpack.c.l.b16 %v1331
    %v1419 = vunpack.c.h.b16 %v1331
    %v1420 = vunpack.c.l.b16 %v1332
    %v1421 = vunpack.c.h.b16 %v1332
    %v1422 = vunpack.c.l.b16 %v1333
    %v1423 = vunpack.c.h.b16 %v1333
    %v1424 = vunpack.c.l.b16 %v1334
    %v1425 = vunpack.c.h.b16 %v1334
    %v1426 = vunpack.c.l.b16 %v1335
    %v1427 = vunpack.c.h.b16 %v1335
    %v1428 = vunpack.c.l.b16 %v1336
    %v1429 = vunpack.c.h.b16 %v1336
    %v1430 = vunpack.c.l.b16 %v1337
    %v1431 = vunpack.c.h.b16 %v1337
    %v1432 = vunpack.c.l.b16 %v1338
    %v1433 = vunpack.c.h.b16 %v1338
    %v1434 = vunpack.c.l.b16 %v1339
    %v1435 = vunpack.c.h.b16 %v1339
    %v1436 = vpack.c.b16 %v1376, %v1372
    %v1437 = vpack.c.b16 %v1377, %v1373
    %v1438 = vpack.c.b16 %v1378, %v1374
    %v1439 = vpack.c.b16 %v1379, %v1375
    %v1440 = vpack.c.b16 %v1384, %v1380
    %v1441 = vpack.c.b16 %v1385, %v1381
    %v1442 = vpack.c.b16 %v1386, %v1382
    %v1443 = vpack.c.b16 %v1387, %v1383
    %v1444 = vpack.c.b16 %v1392, %v1388
    %v1445 = vpack.c.b16 %v1393, %v1389
    %v1446 = vpack.c.b16 %v1394, %v1390
    %v1447 = vpack.c.b16 %v1395, %v1391
    %v1448 = vpack.c.b16 %v1400, %v1396
    %v1449 = vpack.c.b16 %v1401, %v1397
    %v1450 = vpack.c.b16 %v1402, %v1398
    %v1451 = vpack.c.b16 %v1403, %v1399
    %v1452 = vpack.c.b16 %v1408, %v1404
    %v1453 = vpack.c.b16 %v1409, %v1405
    %v1454 = vpack.c.b16 %v1410, %v1406
    %v1455 = vpack.c.b16 %v1411, %v1407
    %v1456 = vpack.c.b16 %v1416, %v1412
    %v1457 = vpack.c.b16 %v1417, %v1413
    %v1458 = vpack.c.b16 %v1418, %v1414
    %v1459 = vpack.c.b16 %v1419, %v1415
    %v1460 = vpack.c.b16 %v1424, %v1420
    %v1461 = vpack.c.b16 %v1425, %v1421
    %v1462 = vpack.c.b16 %v1426, %v1422
    %v1463 = vpack.c.b16 %v1427, %v1423
    %v1464 = vpack.c.b16 %v1432, %v1428
    %v1465 = vpack.c.b16 %v1433, %v1429
    %v1466 = vpack.c.b16 %v1434, %v1430
    %v1467 = vpack.c.b16 %v1435, %v1431
    %1500 = vmatpush.bf16.msra.mxu0 %v1464
    %1501 = vmatpush.bf16.msra.mxu0 %v1460
    %1502 = vmatpush.bf16.msra.mxu0 %v1456
    %1503 = vmatpush.bf16.msra.mxu0 %v1452
    %1504 = vmatpush.bf16.msra.mxu0 %v1448
    %1505 = vmatpush.bf16.msra.mxu0 %v1444
    %1506 = vmatpush.bf16.msra.mxu0 %v1440
    %1507 = vmatpush.bf16.msra.mxu0 %v1436
    %1508 = vmatmul.bf16.gmra.mxu0 %v1298
    %v1509 = vpop.f32.mrf.mxu0
    %v1510 = vadd.f32 0.0, %v1509
    %v1511 = vpop.f32.mrf.mxu0
    %1512 = vdwg.mxu0
    %1513 = vmatpush.bf16.msra.mxu0 %v1465
    %1514 = vmatpush.bf16.msra.mxu0 %v1461
    %1515 = vmatpush.bf16.msra.mxu0 %v1457
    %1516 = vmatpush.bf16.msra.mxu0 %v1453
    %1517 = vmatpush.bf16.msra.mxu0 %v1449
    %1518 = vmatpush.bf16.msra.mxu0 %v1445
    %1519 = vmatpush.bf16.msra.mxu0 %v1441
    %1520 = vmatpush.bf16.msra.mxu0 %v1437
    %1521 = vmatmul.bf16.gmra.mxu0 %v1298
    %v1522 = vpop.f32.mrf.mxu0
    %v1523 = vadd.f32 0.0, %v1522
    %v1524 = vpop.f32.mrf.mxu0
    %1525 = vdwg.mxu0
    %1526 = vmatpush.bf16.msra.mxu0 %v1466
    %1527 = vmatpush.bf16.msra.mxu0 %v1462
    %1528 = vmatpush.bf16.msra.mxu0 %v1458
    %1529 = vmatpush.bf16.msra.mxu0 %v1454
    %1530 = vmatpush.bf16.msra.mxu0 %v1450
    %1531 = vmatpush.bf16.msra.mxu0 %v1446
    %1532 = vmatpush.bf16.msra.mxu0 %v1442
    %1533 = vmatpush.bf16.msra.mxu0 %v1438
    %1534 = vmatmul.bf16.gmra.mxu0 %v1298
    %v1535 = vpop.f32.mrf.mxu0
    %v1536 = vadd.f32 0.0, %v1535
    %v1537 = vpop.f32.mrf.mxu0
    %1538 = vdwg.mxu0
    %1539 = vmatpush.bf16.msra.mxu0 %v1467
    %1540 = vmatpush.bf16.msra.mxu0 %v1463
    %1541 = vmatpush.bf16.msra.mxu0 %v1459
    %1542 = vmatpush.bf16.msra.mxu0 %v1455
    %1543 = vmatpush.bf16.msra.mxu0 %v1451
    %1544 = vmatpush.bf16.msra.mxu0 %v1447
    %1545 = vmatpush.bf16.msra.mxu0 %v1443
    %1546 = vmatpush.bf16.msra.mxu0 %v1439
    %1547 = vmatmul.bf16.gmra.mxu0 %v1298
    %v1548 = vpop.f32.mrf.mxu0
    %v1549 = vadd.f32 0.0, %v1548
    %v1550 = vpop.f32.mrf.mxu0
    %1551 = vdwg.mxu0
    %v1552 = vadd.f32 %v1304, %v1510
    %v1553 = vadd.f32 %v1305, %v1523
    %v1554 = vadd.f32 %v1306, %v1536
    %v1555 = vadd.f32 %v1307, %v1549
    %v1556 = vxor.u32 %v1552, 2147483648
    %v1557 = vmul.f32 %v1556, 1.442695
    %v1558 = vpow.pop %v1557
    %v1559 = vadd.f32 %v1558, 1.0
    %v1560 = vrcp.pop %v1559
    %v1561 = vmul.f32 %v1559, %v1560
    %v1562 = vsub.f32 1.0, %v1561
    %v1563 = vmul.f32 %v1560, %v1562
    %v1564 = vadd.f32 %v1560, %v1563
    %vm1565 = vweird.f32 %v1559
    %vm1566 = vweird.f32 %v1560
    %vm1567 = vmor %vm1565, %vm1566
    %v1568 = vsel %vm1567, %v1560, %v1564
    %v1569 = vand.u32 2147483647, %v1559
    %vm1570 = vcmp.eq.f32.partialorder %v1569, 8.507059e+37
    %v1571 = vand.u32 %v1559, 2147483648
    %v1572 = vor.u32 1.1754944e-38, %v1571
    %v1573 = vsel %vm1570, %v1572, %v1568
    %v1574 = vmul.f32 1.0, %v1573
    %v1575 = vxor.u32 %v1553, 2147483648
    %v1576 = vmul.f32 %v1575, 1.442695
    %v1577 = vpow.pop %v1576
    %v1578 = vadd.f32 %v1577, 1.0
    %v1579 = vrcp.pop %v1578
    %v1580 = vmul.f32 %v1578, %v1579
    %v1581 = vsub.f32 1.0, %v1580
    %v1582 = vmul.f32 %v1579, %v1581
    %v1583 = vadd.f32 %v1579, %v1582
    %vm1584 = vweird.f32 %v1578
    %vm1585 = vweird.f32 %v1579
    %vm1586 = vmor %vm1584, %vm1585
    %v1587 = vsel %vm1586, %v1579, %v1583
    %v1588 = vand.u32 2147483647, %v1578
    %vm1589 = vcmp.eq.f32.partialorder %v1588, 8.507059e+37
    %v1590 = vand.u32 %v1578, 2147483648
    %v1591 = vor.u32 1.1754944e-38, %v1590
    %v1592 = vsel %vm1589, %v1591, %v1587
    %v1593 = vmul.f32 1.0, %v1592
    %v1594 = vtanh.pop %v1554
    %v1595 = vxor.u32 %v1555, 2147483648
    %v1596 = vmul.f32 %v1595, 1.442695
    %v1597 = vpow.pop %v1596
    %v1598 = vadd.f32 %v1597, 1.0
    %v1599 = vrcp.pop %v1598
    %v1600 = vmul.f32 %v1598, %v1599
    %v1601 = vsub.f32 1.0, %v1600
    %v1602 = vmul.f32 %v1599, %v1601
    %v1603 = vadd.f32 %v1599, %v1602
    %vm1604 = vweird.f32 %v1598
    %vm1605 = vweird.f32 %v1599
    %vm1606 = vmor %vm1604, %vm1605
    %v1607 = vsel %vm1606, %v1599, %v1603
    %v1608 = vand.u32 2147483647, %v1598
    %vm1609 = vcmp.eq.f32.partialorder %v1608, 8.507059e+37
    %v1610 = vand.u32 %v1598, 2147483648
    %v1611 = vor.u32 1.1754944e-38, %v1610
    %v1612 = vsel %vm1609, %v1611, %v1607
    %v1613 = vmul.f32 1.0, %v1612
    %v1614 = vmul.f32 %v1593, %v1295
    %v1615 = vmul.f32 %v1574, %v1594
    %v1616 = vadd.f32 %v1614, %v1615
    %v1617 = vtanh.pop %v1616
    %v1618 = vmul.f32 %v1613, %v1617
    %v1619 = vpack.c.bf16 %v1618, %v1618
    %s1620 = scalar_lea.vmem [#allocation3], 12
    %1621 = vst [vmem:[%s1620] sm:$0xf] %v1619
    %s1622 = scalar_lea.vmem [#allocation2], 64
    %v1623 = vld [vmem:[%s1622] sm:$0xff]
    %v1624 = vld [vmem:[%s1622 + $0x8] sm:$0xff]
    %v1625 = vunpack.c.l.bf16 %v1623
    %v1626 = vunpack.c.h.bf16 %v1623
    %v1627 = vunpack.c.l.bf16 %v1624
    %v1628 = vunpack.c.h.bf16 %v1624
    %v1629 = vld [vmem:[#allocation9] sm:$0xff]
    %v1630 = vld [vmem:[#allocation9 + $0x8] sm:$0xff]
    %v1631 = vld [vmem:[#allocation9 + $0x10] sm:$0xff]
    %v1632 = vld [vmem:[#allocation9 + $0x18] sm:$0xff]
    %v1633 = vld [vmem:[#allocation9 + $0x20] sm:$0xff]
    %v1634 = vld [vmem:[#allocation9 + $0x28] sm:$0xff]
    %v1635 = vld [vmem:[#allocation9 + $0x30] sm:$0xff]
    %v1636 = vld [vmem:[#allocation9 + $0x38] sm:$0xff]
    %v1637 = vld [vmem:[#allocation9 + $0x40] sm:$0xff]
    %v1638 = vld [vmem:[#allocation9 + $0x48] sm:$0xff]
    %v1639 = vld [vmem:[#allocation9 + $0x50] sm:$0xff]
    %v1640 = vld [vmem:[#allocation9 + $0x58] sm:$0xff]
    %v1641 = vld [vmem:[#allocation9 + $0x60] sm:$0xff]
    %v1642 = vld [vmem:[#allocation9 + $0x68] sm:$0xff]
    %v1643 = vld [vmem:[#allocation9 + $0x70] sm:$0xff]
    %v1644 = vld [vmem:[#allocation9 + $0x78] sm:$0xff]
    %v1645 = vld [vmem:[#allocation9 + $0x80] sm:$0xff]
    %v1646 = vld [vmem:[#allocation9 + $0x88] sm:$0xff]
    %v1647 = vld [vmem:[#allocation9 + $0x90] sm:$0xff]
    %v1648 = vld [vmem:[#allocation9 + $0x98] sm:$0xff]
    %v1649 = vld [vmem:[#allocation9 + $0xa0] sm:$0xff]
    %v1650 = vld [vmem:[#allocation9 + $0xa8] sm:$0xff]
    %v1651 = vld [vmem:[#allocation9 + $0xb0] sm:$0xff]
    %v1652 = vld [vmem:[#allocation9 + $0xb8] sm:$0xff]
    %v1653 = vld [vmem:[#allocation9 + $0xc0] sm:$0xff]
    %v1654 = vld [vmem:[#allocation9 + $0xc8] sm:$0xff]
    %v1655 = vld [vmem:[#allocation9 + $0xd0] sm:$0xff]
    %v1656 = vld [vmem:[#allocation9 + $0xd8] sm:$0xff]
    %v1657 = vld [vmem:[#allocation9 + $0xe0] sm:$0xff]
    %v1658 = vld [vmem:[#allocation9 + $0xe8] sm:$0xff]
    %v1659 = vld [vmem:[#allocation9 + $0xf0] sm:$0xff]
    %v1660 = vld [vmem:[#allocation9 + $0xf8] sm:$0xff]
    %v1693 = vunpack.c.l.b16 %v1629
    %v1694 = vunpack.c.h.b16 %v1629
    %v1695 = vunpack.c.l.b16 %v1630
    %v1696 = vunpack.c.h.b16 %v1630
    %v1697 = vunpack.c.l.b16 %v1631
    %v1698 = vunpack.c.h.b16 %v1631
    %v1699 = vunpack.c.l.b16 %v1632
    %v1700 = vunpack.c.h.b16 %v1632
    %v1701 = vunpack.c.l.b16 %v1633
    %v1702 = vunpack.c.h.b16 %v1633
    %v1703 = vunpack.c.l.b16 %v1634
    %v1704 = vunpack.c.h.b16 %v1634
    %v1705 = vunpack.c.l.b16 %v1635
    %v1706 = vunpack.c.h.b16 %v1635
    %v1707 = vunpack.c.l.b16 %v1636
    %v1708 = vunpack.c.h.b16 %v1636
    %v1709 = vunpack.c.l.b16 %v1637
    %v1710 = vunpack.c.h.b16 %v1637
    %v1711 = vunpack.c.l.b16 %v1638
    %v1712 = vunpack.c.h.b16 %v1638
    %v1713 = vunpack.c.l.b16 %v1639
    %v1714 = vunpack.c.h.b16 %v1639
    %v1715 = vunpack.c.l.b16 %v1640
    %v1716 = vunpack.c.h.b16 %v1640
    %v1717 = vunpack.c.l.b16 %v1641
    %v1718 = vunpack.c.h.b16 %v1641
    %v1719 = vunpack.c.l.b16 %v1642
    %v1720 = vunpack.c.h.b16 %v1642
    %v1721 = vunpack.c.l.b16 %v1643
    %v1722 = vunpack.c.h.b16 %v1643
    %v1723 = vunpack.c.l.b16 %v1644
    %v1724 = vunpack.c.h.b16 %v1644
    %v1725 = vunpack.c.l.b16 %v1645
    %v1726 = vunpack.c.h.b16 %v1645
    %v1727 = vunpack.c.l.b16 %v1646
    %v1728 = vunpack.c.h.b16 %v1646
    %v1729 = vunpack.c.l.b16 %v1647
    %v1730 = vunpack.c.h.b16 %v1647
    %v1731 = vunpack.c.l.b16 %v1648
    %v1732 = vunpack.c.h.b16 %v1648
    %v1733 = vunpack.c.l.b16 %v1649
    %v1734 = vunpack.c.h.b16 %v1649
    %v1735 = vunpack.c.l.b16 %v1650
    %v1736 = vunpack.c.h.b16 %v1650
    %v1737 = vunpack.c.l.b16 %v1651
    %v1738 = vunpack.c.h.b16 %v1651
    %v1739 = vunpack.c.l.b16 %v1652
    %v1740 = vunpack.c.h.b16 %v1652
    %v1741 = vunpack.c.l.b16 %v1653
    %v1742 = vunpack.c.h.b16 %v1653
    %v1743 = vunpack.c.l.b16 %v1654
    %v1744 = vunpack.c.h.b16 %v1654
    %v1745 = vunpack.c.l.b16 %v1655
    %v1746 = vunpack.c.h.b16 %v1655
    %v1747 = vunpack.c.l.b16 %v1656
    %v1748 = vunpack.c.h.b16 %v1656
    %v1749 = vunpack.c.l.b16 %v1657
    %v1750 = vunpack.c.h.b16 %v1657
    %v1751 = vunpack.c.l.b16 %v1658
    %v1752 = vunpack.c.h.b16 %v1658
    %v1753 = vunpack.c.l.b16 %v1659
    %v1754 = vunpack.c.h.b16 %v1659
    %v1755 = vunpack.c.l.b16 %v1660
    %v1756 = vunpack.c.h.b16 %v1660
    %v1757 = vpack.c.b16 %v1697, %v1693
    %v1758 = vpack.c.b16 %v1698, %v1694
    %v1759 = vpack.c.b16 %v1699, %v1695
    %v1760 = vpack.c.b16 %v1700, %v1696
    %v1761 = vpack.c.b16 %v1705, %v1701
    %v1762 = vpack.c.b16 %v1706, %v1702
    %v1763 = vpack.c.b16 %v1707, %v1703
    %v1764 = vpack.c.b16 %v1708, %v1704
    %v1765 = vpack.c.b16 %v1713, %v1709
    %v1766 = vpack.c.b16 %v1714, %v1710
    %v1767 = vpack.c.b16 %v1715, %v1711
    %v1768 = vpack.c.b16 %v1716, %v1712
    %v1769 = vpack.c.b16 %v1721, %v1717
    %v1770 = vpack.c.b16 %v1722, %v1718
    %v1771 = vpack.c.b16 %v1723, %v1719
    %v1772 = vpack.c.b16 %v1724, %v1720
    %v1773 = vpack.c.b16 %v1729, %v1725
    %v1774 = vpack.c.b16 %v1730, %v1726
    %v1775 = vpack.c.b16 %v1731, %v1727
    %v1776 = vpack.c.b16 %v1732, %v1728
    %v1777 = vpack.c.b16 %v1737, %v1733
    %v1778 = vpack.c.b16 %v1738, %v1734
    %v1779 = vpack.c.b16 %v1739, %v1735
    %v1780 = vpack.c.b16 %v1740, %v1736
    %v1781 = vpack.c.b16 %v1745, %v1741
    %v1782 = vpack.c.b16 %v1746, %v1742
    %v1783 = vpack.c.b16 %v1747, %v1743
    %v1784 = vpack.c.b16 %v1748, %v1744
    %v1785 = vpack.c.b16 %v1753, %v1749
    %v1786 = vpack.c.b16 %v1754, %v1750
    %v1787 = vpack.c.b16 %v1755, %v1751
    %v1788 = vpack.c.b16 %v1756, %v1752
    %1821 = vmatpush.bf16.msra.mxu0 %v1785
    %1822 = vmatpush.bf16.msra.mxu0 %v1781
    %1823 = vmatpush.bf16.msra.mxu0 %v1777
    %1824 = vmatpush.bf16.msra.mxu0 %v1773
    %1825 = vmatpush.bf16.msra.mxu0 %v1769
    %1826 = vmatpush.bf16.msra.mxu0 %v1765
    %1827 = vmatpush.bf16.msra.mxu0 %v1761
    %1828 = vmatpush.bf16.msra.mxu0 %v1757
    %1829 = vmatmul.bf16.gmra.mxu0 %v1619
    %v1830 = vpop.f32.mrf.mxu0
    %v1831 = vadd.f32 0.0, %v1830
    %v1832 = vpop.f32.mrf.mxu0
    %1833 = vdwg.mxu0
    %1834 = vmatpush.bf16.msra.mxu0 %v1786
    %1835 = vmatpush.bf16.msra.mxu0 %v1782
    %1836 = vmatpush.bf16.msra.mxu0 %v1778
    %1837 = vmatpush.bf16.msra.mxu0 %v1774
    %1838 = vmatpush.bf16.msra.mxu0 %v1770
    %1839 = vmatpush.bf16.msra.mxu0 %v1766
    %1840 = vmatpush.bf16.msra.mxu0 %v1762
    %1841 = vmatpush.bf16.msra.mxu0 %v1758
    %1842 = vmatmul.bf16.gmra.mxu0 %v1619
    %v1843 = vpop.f32.mrf.mxu0
    %v1844 = vadd.f32 0.0, %v1843
    %v1845 = vpop.f32.mrf.mxu0
    %1846 = vdwg.mxu0
    %1847 = vmatpush.bf16.msra.mxu0 %v1787
    %1848 = vmatpush.bf16.msra.mxu0 %v1783
    %1849 = vmatpush.bf16.msra.mxu0 %v1779
    %1850 = vmatpush.bf16.msra.mxu0 %v1775
    %1851 = vmatpush.bf16.msra.mxu0 %v1771
    %1852 = vmatpush.bf16.msra.mxu0 %v1767
    %1853 = vmatpush.bf16.msra.mxu0 %v1763
    %1854 = vmatpush.bf16.msra.mxu0 %v1759
    %1855 = vmatmul.bf16.gmra.mxu0 %v1619
    %v1856 = vpop.f32.mrf.mxu0
    %v1857 = vadd.f32 0.0, %v1856
    %v1858 = vpop.f32.mrf.mxu0
    %1859 = vdwg.mxu0
    %1860 = vmatpush.bf16.msra.mxu0 %v1788
    %1861 = vmatpush.bf16.msra.mxu0 %v1784
    %1862 = vmatpush.bf16.msra.mxu0 %v1780
    %1863 = vmatpush.bf16.msra.mxu0 %v1776
    %1864 = vmatpush.bf16.msra.mxu0 %v1772
    %1865 = vmatpush.bf16.msra.mxu0 %v1768
    %1866 = vmatpush.bf16.msra.mxu0 %v1764
    %1867 = vmatpush.bf16.msra.mxu0 %v1760
    %1868 = vmatmul.bf16.gmra.mxu0 %v1619
    %v1869 = vpop.f32.mrf.mxu0
    %v1870 = vadd.f32 0.0, %v1869
    %v1871 = vpop.f32.mrf.mxu0
    %1872 = vdwg.mxu0
    %v1873 = vadd.f32 %v1625, %v1831
    %v1874 = vadd.f32 %v1626, %v1844
    %v1875 = vadd.f32 %v1627, %v1857
    %v1876 = vadd.f32 %v1628, %v1870
    %v1877 = vxor.u32 %v1873, 2147483648
    %v1878 = vmul.f32 %v1877, 1.442695
    %v1879 = vpow.pop %v1878
    %v1880 = vadd.f32 %v1879, 1.0
    %v1881 = vrcp.pop %v1880
    %v1882 = vmul.f32 %v1880, %v1881
    %v1883 = vsub.f32 1.0, %v1882
    %v1884 = vmul.f32 %v1881, %v1883
    %v1885 = vadd.f32 %v1881, %v1884
    %vm1886 = vweird.f32 %v1880
    %vm1887 = vweird.f32 %v1881
    %vm1888 = vmor %vm1886, %vm1887
    %v1889 = vsel %vm1888, %v1881, %v1885
    %v1890 = vand.u32 2147483647, %v1880
    %vm1891 = vcmp.eq.f32.partialorder %v1890, 8.507059e+37
    %v1892 = vand.u32 %v1880, 2147483648
    %v1893 = vor.u32 1.1754944e-38, %v1892
    %v1894 = vsel %vm1891, %v1893, %v1889
    %v1895 = vmul.f32 1.0, %v1894
    %v1896 = vxor.u32 %v1874, 2147483648
    %v1897 = vmul.f32 %v1896, 1.442695
    %v1898 = vpow.pop %v1897
    %v1899 = vadd.f32 %v1898, 1.0
    %v1900 = vrcp.pop %v1899
    %v1901 = vmul.f32 %v1899, %v1900
    %v1902 = vsub.f32 1.0, %v1901
    %v1903 = vmul.f32 %v1900, %v1902
    %v1904 = vadd.f32 %v1900, %v1903
    %vm1905 = vweird.f32 %v1899
    %vm1906 = vweird.f32 %v1900
    %vm1907 = vmor %vm1905, %vm1906
    %v1908 = vsel %vm1907, %v1900, %v1904
    %v1909 = vand.u32 2147483647, %v1899
    %vm1910 = vcmp.eq.f32.partialorder %v1909, 8.507059e+37
    %v1911 = vand.u32 %v1899, 2147483648
    %v1912 = vor.u32 1.1754944e-38, %v1911
    %v1913 = vsel %vm1910, %v1912, %v1908
    %v1914 = vmul.f32 1.0, %v1913
    %v1915 = vtanh.pop %v1875
    %v1916 = vxor.u32 %v1876, 2147483648
    %v1917 = vmul.f32 %v1916, 1.442695
    %v1918 = vpow.pop %v1917
    %v1919 = vadd.f32 %v1918, 1.0
    %v1920 = vrcp.pop %v1919
    %v1921 = vmul.f32 %v1919, %v1920
    %v1922 = vsub.f32 1.0, %v1921
    %v1923 = vmul.f32 %v1920, %v1922
    %v1924 = vadd.f32 %v1920, %v1923
    %vm1925 = vweird.f32 %v1919
    %vm1926 = vweird.f32 %v1920
    %vm1927 = vmor %vm1925, %vm1926
    %v1928 = vsel %vm1927, %v1920, %v1924
    %v1929 = vand.u32 2147483647, %v1919
    %vm1930 = vcmp.eq.f32.partialorder %v1929, 8.507059e+37
    %v1931 = vand.u32 %v1919, 2147483648
    %v1932 = vor.u32 1.1754944e-38, %v1931
    %v1933 = vsel %vm1930, %v1932, %v1928
    %v1934 = vmul.f32 1.0, %v1933
    %v1935 = vmul.f32 %v1914, %v1616
    %v1936 = vmul.f32 %v1895, %v1915
    %v1937 = vadd.f32 %v1935, %v1936
    %v1938 = vtanh.pop %v1937
    %v1939 = vmul.f32 %v1934, %v1938
    %v1940 = vpack.c.bf16 %v1939, %v1939
    %s1941 = scalar_lea.vmem [#allocation3], 16
    %1942 = vst [vmem:[%s1941] sm:$0xf] %v1940
    %s1943 = scalar_lea.vmem [#allocation2], 80
    %v1944 = vld [vmem:[%s1943] sm:$0xff]
    %v1945 = vld [vmem:[%s1943 + $0x8] sm:$0xff]
    %v1946 = vunpack.c.l.bf16 %v1944
    %v1947 = vunpack.c.h.bf16 %v1944
    %v1948 = vunpack.c.l.bf16 %v1945
    %v1949 = vunpack.c.h.bf16 %v1945
    %v1950 = vld [vmem:[#allocation9] sm:$0xff]
    %v1951 = vld [vmem:[#allocation9 + $0x8] sm:$0xff]
    %v1952 = vld [vmem:[#allocation9 + $0x10] sm:$0xff]
    %v1953 = vld [vmem:[#allocation9 + $0x18] sm:$0xff]
    %v1954 = vld [vmem:[#allocation9 + $0x20] sm:$0xff]
    %v1955 = vld [vmem:[#allocation9 + $0x28] sm:$0xff]
    %v1956 = vld [vmem:[#allocation9 + $0x30] sm:$0xff]
    %v1957 = vld [vmem:[#allocation9 + $0x38] sm:$0xff]
    %v1958 = vld [vmem:[#allocation9 + $0x40] sm:$0xff]
    %v1959 = vld [vmem:[#allocation9 + $0x48] sm:$0xff]
    %v1960 = vld [vmem:[#allocation9 + $0x50] sm:$0xff]
    %v1961 = vld [vmem:[#allocation9 + $0x58] sm:$0xff]
    %v1962 = vld [vmem:[#allocation9 + $0x60] sm:$0xff]
    %v1963 = vld [vmem:[#allocation9 + $0x68] sm:$0xff]
    %v1964 = vld [vmem:[#allocation9 + $0x70] sm:$0xff]
    %v1965 = vld [vmem:[#allocation9 + $0x78] sm:$0xff]
    %v1966 = vld [vmem:[#allocation9 + $0x80] sm:$0xff]
    %v1967 = vld [vmem:[#allocation9 + $0x88] sm:$0xff]
    %v1968 = vld [vmem:[#allocation9 + $0x90] sm:$0xff]
    %v1969 = vld [vmem:[#allocation9 + $0x98] sm:$0xff]
    %v1970 = vld [vmem:[#allocation9 + $0xa0] sm:$0xff]
    %v1971 = vld [vmem:[#allocation9 + $0xa8] sm:$0xff]
    %v1972 = vld [vmem:[#allocation9 + $0xb0] sm:$0xff]
    %v1973 = vld [vmem:[#allocation9 + $0xb8] sm:$0xff]
    %v1974 = vld [vmem:[#allocation9 + $0xc0] sm:$0xff]
    %v1975 = vld [vmem:[#allocation9 + $0xc8] sm:$0xff]
    %v1976 = vld [vmem:[#allocation9 + $0xd0] sm:$0xff]
    %v1977 = vld [vmem:[#allocation9 + $0xd8] sm:$0xff]
    %v1978 = vld [vmem:[#allocation9 + $0xe0] sm:$0xff]
    %v1979 = vld [vmem:[#allocation9 + $0xe8] sm:$0xff]
    %v1980 = vld [vmem:[#allocation9 + $0xf0] sm:$0xff]
    %v1981 = vld [vmem:[#allocation9 + $0xf8] sm:$0xff]
    %v2014 = vunpack.c.l.b16 %v1950
    %v2015 = vunpack.c.h.b16 %v1950
    %v2016 = vunpack.c.l.b16 %v1951
    %v2017 = vunpack.c.h.b16 %v1951
    %v2018 = vunpack.c.l.b16 %v1952
    %v2019 = vunpack.c.h.b16 %v1952
    %v2020 = vunpack.c.l.b16 %v1953
    %v2021 = vunpack.c.h.b16 %v1953
    %v2022 = vunpack.c.l.b16 %v1954
    %v2023 = vunpack.c.h.b16 %v1954
    %v2024 = vunpack.c.l.b16 %v1955
    %v2025 = vunpack.c.h.b16 %v1955
    %v2026 = vunpack.c.l.b16 %v1956
    %v2027 = vunpack.c.h.b16 %v1956
    %v2028 = vunpack.c.l.b16 %v1957
    %v2029 = vunpack.c.h.b16 %v1957
    %v2030 = vunpack.c.l.b16 %v1958
    %v2031 = vunpack.c.h.b16 %v1958
    %v2032 = vunpack.c.l.b16 %v1959
    %v2033 = vunpack.c.h.b16 %v1959
    %v2034 = vunpack.c.l.b16 %v1960
    %v2035 = vunpack.c.h.b16 %v1960
    %v2036 = vunpack.c.l.b16 %v1961
    %v2037 = vunpack.c.h.b16 %v1961
    %v2038 = vunpack.c.l.b16 %v1962
    %v2039 = vunpack.c.h.b16 %v1962
    %v2040 = vunpack.c.l.b16 %v1963
    %v2041 = vunpack.c.h.b16 %v1963
    %v2042 = vunpack.c.l.b16 %v1964
    %v2043 = vunpack.c.h.b16 %v1964
    %v2044 = vunpack.c.l.b16 %v1965
    %v2045 = vunpack.c.h.b16 %v1965
    %v2046 = vunpack.c.l.b16 %v1966
    %v2047 = vunpack.c.h.b16 %v1966
    %v2048 = vunpack.c.l.b16 %v1967
    %v2049 = vunpack.c.h.b16 %v1967
    %v2050 = vunpack.c.l.b16 %v1968
    %v2051 = vunpack.c.h.b16 %v1968
    %v2052 = vunpack.c.l.b16 %v1969
    %v2053 = vunpack.c.h.b16 %v1969
    %v2054 = vunpack.c.l.b16 %v1970
    %v2055 = vunpack.c.h.b16 %v1970
    %v2056 = vunpack.c.l.b16 %v1971
    %v2057 = vunpack.c.h.b16 %v1971
    %v2058 = vunpack.c.l.b16 %v1972
    %v2059 = vunpack.c.h.b16 %v1972
    %v2060 = vunpack.c.l.b16 %v1973
    %v2061 = vunpack.c.h.b16 %v1973
    %v2062 = vunpack.c.l.b16 %v1974
    %v2063 = vunpack.c.h.b16 %v1974
    %v2064 = vunpack.c.l.b16 %v1975
    %v2065 = vunpack.c.h.b16 %v1975
    %v2066 = vunpack.c.l.b16 %v1976
    %v2067 = vunpack.c.h.b16 %v1976
    %v2068 = vunpack.c.l.b16 %v1977
    %v2069 = vunpack.c.h.b16 %v1977
    %v2070 = vunpack.c.l.b16 %v1978
    %v2071 = vunpack.c.h.b16 %v1978
    %v2072 = vunpack.c.l.b16 %v1979
    %v2073 = vunpack.c.h.b16 %v1979
    %v2074 = vunpack.c.l.b16 %v1980
    %v2075 = vunpack.c.h.b16 %v1980
    %v2076 = vunpack.c.l.b16 %v1981
    %v2077 = vunpack.c.h.b16 %v1981
    %v2078 = vpack.c.b16 %v2018, %v2014
    %v2079 = vpack.c.b16 %v2019, %v2015
    %v2080 = vpack.c.b16 %v2020, %v2016
    %v2081 = vpack.c.b16 %v2021, %v2017
    %v2082 = vpack.c.b16 %v2026, %v2022
    %v2083 = vpack.c.b16 %v2027, %v2023
    %v2084 = vpack.c.b16 %v2028, %v2024
    %v2085 = vpack.c.b16 %v2029, %v2025
    %v2086 = vpack.c.b16 %v2034, %v2030
    %v2087 = vpack.c.b16 %v2035, %v2031
    %v2088 = vpack.c.b16 %v2036, %v2032
    %v2089 = vpack.c.b16 %v2037, %v2033
    %v2090 = vpack.c.b16 %v2042, %v2038
    %v2091 = vpack.c.b16 %v2043, %v2039
    %v2092 = vpack.c.b16 %v2044, %v2040
    %v2093 = vpack.c.b16 %v2045, %v2041
    %v2094 = vpack.c.b16 %v2050, %v2046
    %v2095 = vpack.c.b16 %v2051, %v2047
    %v2096 = vpack.c.b16 %v2052, %v2048
    %v2097 = vpack.c.b16 %v2053, %v2049
    %v2098 = vpack.c.b16 %v2058, %v2054
    %v2099 = vpack.c.b16 %v2059, %v2055
    %v2100 = vpack.c.b16 %v2060, %v2056
    %v2101 = vpack.c.b16 %v2061, %v2057
    %v2102 = vpack.c.b16 %v2066, %v2062
    %v2103 = vpack.c.b16 %v2067, %v2063
    %v2104 = vpack.c.b16 %v2068, %v2064
    %v2105 = vpack.c.b16 %v2069, %v2065
    %v2106 = vpack.c.b16 %v2074, %v2070
    %v2107 = vpack.c.b16 %v2075, %v2071
    %v2108 = vpack.c.b16 %v2076, %v2072
    %v2109 = vpack.c.b16 %v2077, %v2073
    %2142 = vmatpush.bf16.msra.mxu0 %v2106
    %2143 = vmatpush.bf16.msra.mxu0 %v2102
    %2144 = vmatpush.bf16.msra.mxu0 %v2098
    %2145 = vmatpush.bf16.msra.mxu0 %v2094
    %2146 = vmatpush.bf16.msra.mxu0 %v2090
    %2147 = vmatpush.bf16.msra.mxu0 %v2086
    %2148 = vmatpush.bf16.msra.mxu0 %v2082
    %2149 = vmatpush.bf16.msra.mxu0 %v2078
    %2150 = vmatmul.bf16.gmra.mxu0 %v1940
    %v2151 = vpop.f32.mrf.mxu0
    %v2152 = vadd.f32 0.0, %v2151
    %v2153 = vpop.f32.mrf.mxu0
    %2154 = vdwg.mxu0
    %2155 = vmatpush.bf16.msra.mxu0 %v2107
    %2156 = vmatpush.bf16.msra.mxu0 %v2103
    %2157 = vmatpush.bf16.msra.mxu0 %v2099
    %2158 = vmatpush.bf16.msra.mxu0 %v2095
    %2159 = vmatpush.bf16.msra.mxu0 %v2091
    %2160 = vmatpush.bf16.msra.mxu0 %v2087
    %2161 = vmatpush.bf16.msra.mxu0 %v2083
    %2162 = vmatpush.bf16.msra.mxu0 %v2079
    %2163 = vmatmul.bf16.gmra.mxu0 %v1940
    %v2164 = vpop.f32.mrf.mxu0
    %v2165 = vadd.f32 0.0, %v2164
    %v2166 = vpop.f32.mrf.mxu0
    %2167 = vdwg.mxu0
    %2168 = vmatpush.bf16.msra.mxu0 %v2108
    %2169 = vmatpush.bf16.msra.mxu0 %v2104
    %2170 = vmatpush.bf16.msra.mxu0 %v2100
    %2171 = vmatpush.bf16.msra.mxu0 %v2096
    %2172 = vmatpush.bf16.msra.mxu0 %v2092
    %2173 = vmatpush.bf16.msra.mxu0 %v2088
    %2174 = vmatpush.bf16.msra.mxu0 %v2084
    %2175 = vmatpush.bf16.msra.mxu0 %v2080
    %2176 = vmatmul.bf16.gmra.mxu0 %v1940
    %v2177 = vpop.f32.mrf.mxu0
    %v2178 = vadd.f32 0.0, %v2177
    %v2179 = vpop.f32.mrf.mxu0
    %2180 = vdwg.mxu0
    %2181 = vmatpush.bf16.msra.mxu0 %v2109
    %2182 = vmatpush.bf16.msra.mxu0 %v2105
    %2183 = vmatpush.bf16.msra.mxu0 %v2101
    %2184 = vmatpush.bf16.msra.mxu0 %v2097
    %2185 = vmatpush.bf16.msra.mxu0 %v2093
    %2186 = vmatpush.bf16.msra.mxu0 %v2089
    %2187 = vmatpush.bf16.msra.mxu0 %v2085
    %2188 = vmatpush.bf16.msra.mxu0 %v2081
    %2189 = vmatmul.bf16.gmra.mxu0 %v1940
    %v2190 = vpop.f32.mrf.mxu0
    %v2191 = vadd.f32 0.0, %v2190
    %v2192 = vpop.f32.mrf.mxu0
    %2193 = vdwg.mxu0
    %v2194 = vadd.f32 %v1946, %v2152
    %v2195 = vadd.f32 %v1947, %v2165
    %v2196 = vadd.f32 %v1948, %v2178
    %v2197 = vadd.f32 %v1949, %v2191
    %v2198 = vxor.u32 %v2194, 2147483648
    %v2199 = vmul.f32 %v2198, 1.442695
    %v2200 = vpow.pop %v2199
    %v2201 = vadd.f32 %v2200, 1.0
    %v2202 = vrcp.pop %v2201
    %v2203 = vmul.f32 %v2201, %v2202
    %v2204 = vsub.f32 1.0, %v2203
    %v2205 = vmul.f32 %v2202, %v2204
    %v2206 = vadd.f32 %v2202, %v2205
    %vm2207 = vweird.f32 %v2201
    %vm2208 = vweird.f32 %v2202
    %vm2209 = vmor %vm2207, %vm2208
    %v2210 = vsel %vm2209, %v2202, %v2206
    %v2211 = vand.u32 2147483647, %v2201
    %vm2212 = vcmp.eq.f32.partialorder %v2211, 8.507059e+37
    %v2213 = vand.u32 %v2201, 2147483648
    %v2214 = vor.u32 1.1754944e-38, %v2213
    %v2215 = vsel %vm2212, %v2214, %v2210
    %v2216 = vmul.f32 1.0, %v2215
    %v2217 = vxor.u32 %v2195, 2147483648
    %v2218 = vmul.f32 %v2217, 1.442695
    %v2219 = vpow.pop %v2218
    %v2220 = vadd.f32 %v2219, 1.0
    %v2221 = vrcp.pop %v2220
    %v2222 = vmul.f32 %v2220, %v2221
    %v2223 = vsub.f32 1.0, %v2222
    %v2224 = vmul.f32 %v2221, %v2223
    %v2225 = vadd.f32 %v2221, %v2224
    %vm2226 = vweird.f32 %v2220
    %vm2227 = vweird.f32 %v2221
    %vm2228 = vmor %vm2226, %vm2227
    %v2229 = vsel %vm2228, %v2221, %v2225
    %v2230 = vand.u32 2147483647, %v2220
    %vm2231 = vcmp.eq.f32.partialorder %v2230, 8.507059e+37
    %v2232 = vand.u32 %v2220, 2147483648
    %v2233 = vor.u32 1.1754944e-38, %v2232
    %v2234 = vsel %vm2231, %v2233, %v2229
    %v2235 = vmul.f32 1.0, %v2234
    %v2236 = vtanh.pop %v2196
    %v2237 = vxor.u32 %v2197, 2147483648
    %v2238 = vmul.f32 %v2237, 1.442695
    %v2239 = vpow.pop %v2238
    %v2240 = vadd.f32 %v2239, 1.0
    %v2241 = vrcp.pop %v2240
    %v2242 = vmul.f32 %v2240, %v2241
    %v2243 = vsub.f32 1.0, %v2242
    %v2244 = vmul.f32 %v2241, %v2243
    %v2245 = vadd.f32 %v2241, %v2244
    %vm2246 = vweird.f32 %v2240
    %vm2247 = vweird.f32 %v2241
    %vm2248 = vmor %vm2246, %vm2247
    %v2249 = vsel %vm2248, %v2241, %v2245
    %v2250 = vand.u32 2147483647, %v2240
    %vm2251 = vcmp.eq.f32.partialorder %v2250, 8.507059e+37
    %v2252 = vand.u32 %v2240, 2147483648
    %v2253 = vor.u32 1.1754944e-38, %v2252
    %v2254 = vsel %vm2251, %v2253, %v2249
    %v2255 = vmul.f32 1.0, %v2254
    %v2256 = vmul.f32 %v2235, %v1937
    %v2257 = vmul.f32 %v2216, %v2236
    %v2258 = vadd.f32 %v2256, %v2257
    %v2259 = vtanh.pop %v2258
    %v2260 = vmul.f32 %v2255, %v2259
    %v2261 = vpack.c.bf16 %v2260, %v2260
    %s2262 = scalar_lea.vmem [#allocation3], 20
    %2263 = vst [vmem:[%s2262] sm:$0xf] %v2261
    %s2264 = scalar_lea.vmem [#allocation2], 96
    %v2265 = vld [vmem:[%s2264] sm:$0xff]
    %v2266 = vld [vmem:[%s2264 + $0x8] sm:$0xff]
    %v2267 = vunpack.c.l.bf16 %v2265
    %v2268 = vunpack.c.h.bf16 %v2265
    %v2269 = vunpack.c.l.bf16 %v2266
    %v2270 = vunpack.c.h.bf16 %v2266
    %v2271 = vld [vmem:[#allocation9] sm:$0xff]
    %v2272 = vld [vmem:[#allocation9 + $0x8] sm:$0xff]
    %v2273 = vld [vmem:[#allocation9 + $0x10] sm:$0xff]
    %v2274 = vld [vmem:[#allocation9 + $0x18] sm:$0xff]
    %v2275 = vld [vmem:[#allocation9 + $0x20] sm:$0xff]
    %v2276 = vld [vmem:[#allocation9 + $0x28] sm:$0xff]
    %v2277 = vld [vmem:[#allocation9 + $0x30] sm:$0xff]
    %v2278 = vld [vmem:[#allocation9 + $0x38] sm:$0xff]
    %v2279 = vld [vmem:[#allocation9 + $0x40] sm:$0xff]
    %v2280 = vld [vmem:[#allocation9 + $0x48] sm:$0xff]
    %v2281 = vld [vmem:[#allocation9 + $0x50] sm:$0xff]
    %v2282 = vld [vmem:[#allocation9 + $0x58] sm:$0xff]
    %v2283 = vld [vmem:[#allocation9 + $0x60] sm:$0xff]
    %v2284 = vld [vmem:[#allocation9 + $0x68] sm:$0xff]
    %v2285 = vld [vmem:[#allocation9 + $0x70] sm:$0xff]
    %v2286 = vld [vmem:[#allocation9 + $0x78] sm:$0xff]
    %v2287 = vld [vmem:[#allocation9 + $0x80] sm:$0xff]
    %v2288 = vld [vmem:[#allocation9 + $0x88] sm:$0xff]
    %v2289 = vld [vmem:[#allocation9 + $0x90] sm:$0xff]
    %v2290 = vld [vmem:[#allocation9 + $0x98] sm:$0xff]
    %v2291 = vld [vmem:[#allocation9 + $0xa0] sm:$0xff]
    %v2292 = vld [vmem:[#allocation9 + $0xa8] sm:$0xff]
    %v2293 = vld [vmem:[#allocation9 + $0xb0] sm:$0xff]
    %v2294 = vld [vmem:[#allocation9 + $0xb8] sm:$0xff]
    %v2295 = vld [vmem:[#allocation9 + $0xc0] sm:$0xff]
    %v2296 = vld [vmem:[#allocation9 + $0xc8] sm:$0xff]
    %v2297 = vld [vmem:[#allocation9 + $0xd0] sm:$0xff]
    %v2298 = vld [vmem:[#allocation9 + $0xd8] sm:$0xff]
    %v2299 = vld [vmem:[#allocation9 + $0xe0] sm:$0xff]
    %v2300 = vld [vmem:[#allocation9 + $0xe8] sm:$0xff]
    %v2301 = vld [vmem:[#allocation9 + $0xf0] sm:$0xff]
    %v2302 = vld [vmem:[#allocation9 + $0xf8] sm:$0xff]
    %v2335 = vunpack.c.l.b16 %v2271
    %v2336 = vunpack.c.h.b16 %v2271
    %v2337 = vunpack.c.l.b16 %v2272
    %v2338 = vunpack.c.h.b16 %v2272
    %v2339 = vunpack.c.l.b16 %v2273
    %v2340 = vunpack.c.h.b16 %v2273
    %v2341 = vunpack.c.l.b16 %v2274
    %v2342 = vunpack.c.h.b16 %v2274
    %v2343 = vunpack.c.l.b16 %v2275
    %v2344 = vunpack.c.h.b16 %v2275
    %v2345 = vunpack.c.l.b16 %v2276
    %v2346 = vunpack.c.h.b16 %v2276
    %v2347 = vunpack.c.l.b16 %v2277
    %v2348 = vunpack.c.h.b16 %v2277
    %v2349 = vunpack.c.l.b16 %v2278
    %v2350 = vunpack.c.h.b16 %v2278
    %v2351 = vunpack.c.l.b16 %v2279
    %v2352 = vunpack.c.h.b16 %v2279
    %v2353 = vunpack.c.l.b16 %v2280
    %v2354 = vunpack.c.h.b16 %v2280
    %v2355 = vunpack.c.l.b16 %v2281
    %v2356 = vunpack.c.h.b16 %v2281
    %v2357 = vunpack.c.l.b16 %v2282
    %v2358 = vunpack.c.h.b16 %v2282
    %v2359 = vunpack.c.l.b16 %v2283
    %v2360 = vunpack.c.h.b16 %v2283
    %v2361 = vunpack.c.l.b16 %v2284
    %v2362 = vunpack.c.h.b16 %v2284
    %v2363 = vunpack.c.l.b16 %v2285
    %v2364 = vunpack.c.h.b16 %v2285
    %v2365 = vunpack.c.l.b16 %v2286
    %v2366 = vunpack.c.h.b16 %v2286
    %v2367 = vunpack.c.l.b16 %v2287
    %v2368 = vunpack.c.h.b16 %v2287
    %v2369 = vunpack.c.l.b16 %v2288
    %v2370 = vunpack.c.h.b16 %v2288
    %v2371 = vunpack.c.l.b16 %v2289
    %v2372 = vunpack.c.h.b16 %v2289
    %v2373 = vunpack.c.l.b16 %v2290
    %v2374 = vunpack.c.h.b16 %v2290
    %v2375 = vunpack.c.l.b16 %v2291
    %v2376 = vunpack.c.h.b16 %v2291
    %v2377 = vunpack.c.l.b16 %v2292
    %v2378 = vunpack.c.h.b16 %v2292
    %v2379 = vunpack.c.l.b16 %v2293
    %v2380 = vunpack.c.h.b16 %v2293
    %v2381 = vunpack.c.l.b16 %v2294
    %v2382 = vunpack.c.h.b16 %v2294
    %v2383 = vunpack.c.l.b16 %v2295
    %v2384 = vunpack.c.h.b16 %v2295
    %v2385 = vunpack.c.l.b16 %v2296
    %v2386 = vunpack.c.h.b16 %v2296
    %v2387 = vunpack.c.l.b16 %v2297
    %v2388 = vunpack.c.h.b16 %v2297
    %v2389 = vunpack.c.l.b16 %v2298
    %v2390 = vunpack.c.h.b16 %v2298
    %v2391 = vunpack.c.l.b16 %v2299
    %v2392 = vunpack.c.h.b16 %v2299
    %v2393 = vunpack.c.l.b16 %v2300
    %v2394 = vunpack.c.h.b16 %v2300
    %v2395 = vunpack.c.l.b16 %v2301
    %v2396 = vunpack.c.h.b16 %v2301
    %v2397 = vunpack.c.l.b16 %v2302
    %v2398 = vunpack.c.h.b16 %v2302
    %v2399 = vpack.c.b16 %v2339, %v2335
    %v2400 = vpack.c.b16 %v2340, %v2336
    %v2401 = vpack.c.b16 %v2341, %v2337
    %v2402 = vpack.c.b16 %v2342, %v2338
    %v2403 = vpack.c.b16 %v2347, %v2343
    %v2404 = vpack.c.b16 %v2348, %v2344
    %v2405 = vpack.c.b16 %v2349, %v2345
    %v2406 = vpack.c.b16 %v2350, %v2346
    %v2407 = vpack.c.b16 %v2355, %v2351
    %v2408 = vpack.c.b16 %v2356, %v2352
    %v2409 = vpack.c.b16 %v2357, %v2353
    %v2410 = vpack.c.b16 %v2358, %v2354
    %v2411 = vpack.c.b16 %v2363, %v2359
    %v2412 = vpack.c.b16 %v2364, %v2360
    %v2413 = vpack.c.b16 %v2365, %v2361
    %v2414 = vpack.c.b16 %v2366, %v2362
    %v2415 = vpack.c.b16 %v2371, %v2367
    %v2416 = vpack.c.b16 %v2372, %v2368
    %v2417 = vpack.c.b16 %v2373, %v2369
    %v2418 = vpack.c.b16 %v2374, %v2370
    %v2419 = vpack.c.b16 %v2379, %v2375
    %v2420 = vpack.c.b16 %v2380, %v2376
    %v2421 = vpack.c.b16 %v2381, %v2377
    %v2422 = vpack.c.b16 %v2382, %v2378
    %v2423 = vpack.c.b16 %v2387, %v2383
    %v2424 = vpack.c.b16 %v2388, %v2384
    %v2425 = vpack.c.b16 %v2389, %v2385
    %v2426 = vpack.c.b16 %v2390, %v2386
    %v2427 = vpack.c.b16 %v2395, %v2391
    %v2428 = vpack.c.b16 %v2396, %v2392
    %v2429 = vpack.c.b16 %v2397, %v2393
    %v2430 = vpack.c.b16 %v2398, %v2394
    %2463 = vmatpush.bf16.msra.mxu0 %v2427
    %2464 = vmatpush.bf16.msra.mxu0 %v2423
    %2465 = vmatpush.bf16.msra.mxu0 %v2419
    %2466 = vmatpush.bf16.msra.mxu0 %v2415
    %2467 = vmatpush.bf16.msra.mxu0 %v2411
    %2468 = vmatpush.bf16.msra.mxu0 %v2407
    %2469 = vmatpush.bf16.msra.mxu0 %v2403
    %2470 = vmatpush.bf16.msra.mxu0 %v2399
    %2471 = vmatmul.bf16.gmra.mxu0 %v2261
    %v2472 = vpop.f32.mrf.mxu0
    %v2473 = vadd.f32 0.0, %v2472
    %v2474 = vpop.f32.mrf.mxu0
    %2475 = vdwg.mxu0
    %2476 = vmatpush.bf16.msra.mxu0 %v2428
    %2477 = vmatpush.bf16.msra.mxu0 %v2424
    %2478 = vmatpush.bf16.msra.mxu0 %v2420
    %2479 = vmatpush.bf16.msra.mxu0 %v2416
    %2480 = vmatpush.bf16.msra.mxu0 %v2412
    %2481 = vmatpush.bf16.msra.mxu0 %v2408
    %2482 = vmatpush.bf16.msra.mxu0 %v2404
    %2483 = vmatpush.bf16.msra.mxu0 %v2400
    %2484 = vmatmul.bf16.gmra.mxu0 %v2261
    %v2485 = vpop.f32.mrf.mxu0
    %v2486 = vadd.f32 0.0, %v2485
    %v2487 = vpop.f32.mrf.mxu0
    %2488 = vdwg.mxu0
    %2489 = vmatpush.bf16.msra.mxu0 %v2429
    %2490 = vmatpush.bf16.msra.mxu0 %v2425
    %2491 = vmatpush.bf16.msra.mxu0 %v2421
    %2492 = vmatpush.bf16.msra.mxu0 %v2417
    %2493 = vmatpush.bf16.msra.mxu0 %v2413
    %2494 = vmatpush.bf16.msra.mxu0 %v2409
    %2495 = vmatpush.bf16.msra.mxu0 %v2405
    %2496 = vmatpush.bf16.msra.mxu0 %v2401
    %2497 = vmatmul.bf16.gmra.mxu0 %v2261
    %v2498 = vpop.f32.mrf.mxu0
    %v2499 = vadd.f32 0.0, %v2498
    %v2500 = vpop.f32.mrf.mxu0
    %2501 = vdwg.mxu0
    %2502 = vmatpush.bf16.msra.mxu0 %v2430
    %2503 = vmatpush.bf16.msra.mxu0 %v2426
    %2504 = vmatpush.bf16.msra.mxu0 %v2422
    %2505 = vmatpush.bf16.msra.mxu0 %v2418
    %2506 = vmatpush.bf16.msra.mxu0 %v2414
    %2507 = vmatpush.bf16.msra.mxu0 %v2410
    %2508 = vmatpush.bf16.msra.mxu0 %v2406
    %2509 = vmatpush.bf16.msra.mxu0 %v2402
    %2510 = vmatmul.bf16.gmra.mxu0 %v2261
    %v2511 = vpop.f32.mrf.mxu0
    %v2512 = vadd.f32 0.0, %v2511
    %v2513 = vpop.f32.mrf.mxu0
    %2514 = vdwg.mxu0
    %v2515 = vadd.f32 %v2267, %v2473
    %v2516 = vadd.f32 %v2268, %v2486
    %v2517 = vadd.f32 %v2269, %v2499
    %v2518 = vadd.f32 %v2270, %v2512
    %v2519 = vxor.u32 %v2515, 2147483648
    %v2520 = vmul.f32 %v2519, 1.442695
    %v2521 = vpow.pop %v2520
    %v2522 = vadd.f32 %v2521, 1.0
    %v2523 = vrcp.pop %v2522
    %v2524 = vmul.f32 %v2522, %v2523
    %v2525 = vsub.f32 1.0, %v2524
    %v2526 = vmul.f32 %v2523, %v2525
    %v2527 = vadd.f32 %v2523, %v2526
    %vm2528 = vweird.f32 %v2522
    %vm2529 = vweird.f32 %v2523
    %vm2530 = vmor %vm2528, %vm2529
    %v2531 = vsel %vm2530, %v2523, %v2527
    %v2532 = vand.u32 2147483647, %v2522
    %vm2533 = vcmp.eq.f32.partialorder %v2532, 8.507059e+37
    %v2534 = vand.u32 %v2522, 2147483648
    %v2535 = vor.u32 1.1754944e-38, %v2534
    %v2536 = vsel %vm2533, %v2535, %v2531
    %v2537 = vmul.f32 1.0, %v2536
    %v2538 = vxor.u32 %v2516, 2147483648
    %v2539 = vmul.f32 %v2538, 1.442695
    %v2540 = vpow.pop %v2539
    %v2541 = vadd.f32 %v2540, 1.0
    %v2542 = vrcp.pop %v2541
    %v2543 = vmul.f32 %v2541, %v2542
    %v2544 = vsub.f32 1.0, %v2543
    %v2545 = vmul.f32 %v2542, %v2544
    %v2546 = vadd.f32 %v2542, %v2545
    %vm2547 = vweird.f32 %v2541
    %vm2548 = vweird.f32 %v2542
    %vm2549 = vmor %vm2547, %vm2548
    %v2550 = vsel %vm2549, %v2542, %v2546
    %v2551 = vand.u32 2147483647, %v2541
    %vm2552 = vcmp.eq.f32.partialorder %v2551, 8.507059e+37
    %v2553 = vand.u32 %v2541, 2147483648
    %v2554 = vor.u32 1.1754944e-38, %v2553
    %v2555 = vsel %vm2552, %v2554, %v2550
    %v2556 = vmul.f32 1.0, %v2555
    %v2557 = vtanh.pop %v2517
    %v2558 = vxor.u32 %v2518, 2147483648
    %v2559 = vmul.f32 %v2558, 1.442695
    %v2560 = vpow.pop %v2559
    %v2561 = vadd.f32 %v2560, 1.0
    %v2562 = vrcp.pop %v2561
    %v2563 = vmul.f32 %v2561, %v2562
    %v2564 = vsub.f32 1.0, %v2563
    %v2565 = vmul.f32 %v2562, %v2564
    %v2566 = vadd.f32 %v2562, %v2565
    %vm2567 = vweird.f32 %v2561
    %vm2568 = vweird.f32 %v2562
    %vm2569 = vmor %vm2567, %vm2568
    %v2570 = vsel %vm2569, %v2562, %v2566
    %v2571 = vand.u32 2147483647, %v2561
    %vm2572 = vcmp.eq.f32.partialorder %v2571, 8.507059e+37
    %v2573 = vand.u32 %v2561, 2147483648
    %v2574 = vor.u32 1.1754944e-38, %v2573
    %v2575 = vsel %vm2572, %v2574, %v2570
    %v2576 = vmul.f32 1.0, %v2575
    %v2577 = vmul.f32 %v2556, %v2258
    %v2578 = vmul.f32 %v2537, %v2557
    %v2579 = vadd.f32 %v2577, %v2578
    %v2580 = vtanh.pop %v2579
    %v2581 = vmul.f32 %v2576, %v2580
    %v2582 = vpack.c.bf16 %v2581, %v2581
    %s2583 = scalar_lea.vmem [#allocation3], 24
    %2584 = vst [vmem:[%s2583] sm:$0xf] %v2582
    %s2585 = scalar_lea.vmem [#allocation2], 112
    %v2586 = vld [vmem:[%s2585] sm:$0xff]
    %v2587 = vld [vmem:[%s2585 + $0x8] sm:$0xff]
    %v2588 = vunpack.c.l.bf16 %v2586
    %v2589 = vunpack.c.h.bf16 %v2586
    %v2590 = vunpack.c.l.bf16 %v2587
    %v2591 = vunpack.c.h.bf16 %v2587
    %v2592 = vld [vmem:[#allocation9] sm:$0xff]
    %v2593 = vld [vmem:[#allocation9 + $0x8] sm:$0xff]
    %v2594 = vld [vmem:[#allocation9 + $0x10] sm:$0xff]
    %v2595 = vld [vmem:[#allocation9 + $0x18] sm:$0xff]
    %v2596 = vld [vmem:[#allocation9 + $0x20] sm:$0xff]
    %v2597 = vld [vmem:[#allocation9 + $0x28] sm:$0xff]
    %v2598 = vld [vmem:[#allocation9 + $0x30] sm:$0xff]
    %v2599 = vld [vmem:[#allocation9 + $0x38] sm:$0xff]
    %v2600 = vld [vmem:[#allocation9 + $0x40] sm:$0xff]
    %v2601 = vld [vmem:[#allocation9 + $0x48] sm:$0xff]
    %v2602 = vld [vmem:[#allocation9 + $0x50] sm:$0xff]
    %v2603 = vld [vmem:[#allocation9 + $0x58] sm:$0xff]
    %v2604 = vld [vmem:[#allocation9 + $0x60] sm:$0xff]
    %v2605 = vld [vmem:[#allocation9 + $0x68] sm:$0xff]
    %v2606 = vld [vmem:[#allocation9 + $0x70] sm:$0xff]
    %v2607 = vld [vmem:[#allocation9 + $0x78] sm:$0xff]
    %v2608 = vld [vmem:[#allocation9 + $0x80] sm:$0xff]
    %v2609 = vld [vmem:[#allocation9 + $0x88] sm:$0xff]
    %v2610 = vld [vmem:[#allocation9 + $0x90] sm:$0xff]
    %v2611 = vld [vmem:[#allocation9 + $0x98] sm:$0xff]
    %v2612 = vld [vmem:[#allocation9 + $0xa0] sm:$0xff]
    %v2613 = vld [vmem:[#allocation9 + $0xa8] sm:$0xff]
    %v2614 = vld [vmem:[#allocation9 + $0xb0] sm:$0xff]
    %v2615 = vld [vmem:[#allocation9 + $0xb8] sm:$0xff]
    %v2616 = vld [vmem:[#allocation9 + $0xc0] sm:$0xff]
    %v2617 = vld [vmem:[#allocation9 + $0xc8] sm:$0xff]
    %v2618 = vld [vmem:[#allocation9 + $0xd0] sm:$0xff]
    %v2619 = vld [vmem:[#allocation9 + $0xd8] sm:$0xff]
    %v2620 = vld [vmem:[#allocation9 + $0xe0] sm:$0xff]
    %v2621 = vld [vmem:[#allocation9 + $0xe8] sm:$0xff]
    %v2622 = vld [vmem:[#allocation9 + $0xf0] sm:$0xff]
    %v2623 = vld [vmem:[#allocation9 + $0xf8] sm:$0xff]
    %v2656 = vunpack.c.l.b16 %v2592
    %v2657 = vunpack.c.h.b16 %v2592
    %v2658 = vunpack.c.l.b16 %v2593
    %v2659 = vunpack.c.h.b16 %v2593
    %v2660 = vunpack.c.l.b16 %v2594
    %v2661 = vunpack.c.h.b16 %v2594
    %v2662 = vunpack.c.l.b16 %v2595
    %v2663 = vunpack.c.h.b16 %v2595
    %v2664 = vunpack.c.l.b16 %v2596
    %v2665 = vunpack.c.h.b16 %v2596
    %v2666 = vunpack.c.l.b16 %v2597
    %v2667 = vunpack.c.h.b16 %v2597
    %v2668 = vunpack.c.l.b16 %v2598
    %v2669 = vunpack.c.h.b16 %v2598
    %v2670 = vunpack.c.l.b16 %v2599
    %v2671 = vunpack.c.h.b16 %v2599
    %v2672 = vunpack.c.l.b16 %v2600
    %v2673 = vunpack.c.h.b16 %v2600
    %v2674 = vunpack.c.l.b16 %v2601
    %v2675 = vunpack.c.h.b16 %v2601
    %v2676 = vunpack.c.l.b16 %v2602
    %v2677 = vunpack.c.h.b16 %v2602
    %v2678 = vunpack.c.l.b16 %v2603
    %v2679 = vunpack.c.h.b16 %v2603
    %v2680 = vunpack.c.l.b16 %v2604
    %v2681 = vunpack.c.h.b16 %v2604
    %v2682 = vunpack.c.l.b16 %v2605
    %v2683 = vunpack.c.h.b16 %v2605
    %v2684 = vunpack.c.l.b16 %v2606
    %v2685 = vunpack.c.h.b16 %v2606
    %v2686 = vunpack.c.l.b16 %v2607
    %v2687 = vunpack.c.h.b16 %v2607
    %v2688 = vunpack.c.l.b16 %v2608
    %v2689 = vunpack.c.h.b16 %v2608
    %v2690 = vunpack.c.l.b16 %v2609
    %v2691 = vunpack.c.h.b16 %v2609
    %v2692 = vunpack.c.l.b16 %v2610
    %v2693 = vunpack.c.h.b16 %v2610
    %v2694 = vunpack.c.l.b16 %v2611
    %v2695 = vunpack.c.h.b16 %v2611
    %v2696 = vunpack.c.l.b16 %v2612
    %v2697 = vunpack.c.h.b16 %v2612
    %v2698 = vunpack.c.l.b16 %v2613
    %v2699 = vunpack.c.h.b16 %v2613
    %v2700 = vunpack.c.l.b16 %v2614
    %v2701 = vunpack.c.h.b16 %v2614
    %v2702 = vunpack.c.l.b16 %v2615
    %v2703 = vunpack.c.h.b16 %v2615
    %v2704 = vunpack.c.l.b16 %v2616
    %v2705 = vunpack.c.h.b16 %v2616
    %v2706 = vunpack.c.l.b16 %v2617
    %v2707 = vunpack.c.h.b16 %v2617
    %v2708 = vunpack.c.l.b16 %v2618
    %v2709 = vunpack.c.h.b16 %v2618
    %v2710 = vunpack.c.l.b16 %v2619
    %v2711 = vunpack.c.h.b16 %v2619
    %v2712 = vunpack.c.l.b16 %v2620
    %v2713 = vunpack.c.h.b16 %v2620
    %v2714 = vunpack.c.l.b16 %v2621
    %v2715 = vunpack.c.h.b16 %v2621
    %v2716 = vunpack.c.l.b16 %v2622
    %v2717 = vunpack.c.h.b16 %v2622
    %v2718 = vunpack.c.l.b16 %v2623
    %v2719 = vunpack.c.h.b16 %v2623
    %v2720 = vpack.c.b16 %v2660, %v2656
    %v2721 = vpack.c.b16 %v2661, %v2657
    %v2722 = vpack.c.b16 %v2662, %v2658
    %v2723 = vpack.c.b16 %v2663, %v2659
    %v2724 = vpack.c.b16 %v2668, %v2664
    %v2725 = vpack.c.b16 %v2669, %v2665
    %v2726 = vpack.c.b16 %v2670, %v2666
    %v2727 = vpack.c.b16 %v2671, %v2667
    %v2728 = vpack.c.b16 %v2676, %v2672
    %v2729 = vpack.c.b16 %v2677, %v2673
    %v2730 = vpack.c.b16 %v2678, %v2674
    %v2731 = vpack.c.b16 %v2679, %v2675
    %v2732 = vpack.c.b16 %v2684, %v2680
    %v2733 = vpack.c.b16 %v2685, %v2681
    %v2734 = vpack.c.b16 %v2686, %v2682
    %v2735 = vpack.c.b16 %v2687, %v2683
    %v2736 = vpack.c.b16 %v2692, %v2688
    %v2737 = vpack.c.b16 %v2693, %v2689
    %v2738 = vpack.c.b16 %v2694, %v2690
    %v2739 = vpack.c.b16 %v2695, %v2691
    %v2740 = vpack.c.b16 %v2700, %v2696
    %v2741 = vpack.c.b16 %v2701, %v2697
    %v2742 = vpack.c.b16 %v2702, %v2698
    %v2743 = vpack.c.b16 %v2703, %v2699
    %v2744 = vpack.c.b16 %v2708, %v2704
    %v2745 = vpack.c.b16 %v2709, %v2705
    %v2746 = vpack.c.b16 %v2710, %v2706
    %v2747 = vpack.c.b16 %v2711, %v2707
    %v2748 = vpack.c.b16 %v2716, %v2712
    %v2749 = vpack.c.b16 %v2717, %v2713
    %v2750 = vpack.c.b16 %v2718, %v2714
    %v2751 = vpack.c.b16 %v2719, %v2715
    %2784 = vmatpush.bf16.msra.mxu0 %v2748
    %2785 = vmatpush.bf16.msra.mxu0 %v2744
    %2786 = vmatpush.bf16.msra.mxu0 %v2740
    %2787 = vmatpush.bf16.msra.mxu0 %v2736
    %2788 = vmatpush.bf16.msra.mxu0 %v2732
    %2789 = vmatpush.bf16.msra.mxu0 %v2728
    %2790 = vmatpush.bf16.msra.mxu0 %v2724
    %2791 = vmatpush.bf16.msra.mxu0 %v2720
    %2792 = vmatmul.bf16.gmra.mxu0 %v2582
    %v2793 = vpop.f32.mrf.mxu0
    %v2794 = vadd.f32 0.0, %v2793
    %v2795 = vpop.f32.mrf.mxu0
    %2796 = vdwg.mxu0
    %2797 = vmatpush.bf16.msra.mxu0 %v2749
    %2798 = vmatpush.bf16.msra.mxu0 %v2745
    %2799 = vmatpush.bf16.msra.mxu0 %v2741
    %2800 = vmatpush.bf16.msra.mxu0 %v2737
    %2801 = vmatpush.bf16.msra.mxu0 %v2733
    %2802 = vmatpush.bf16.msra.mxu0 %v2729
    %2803 = vmatpush.bf16.msra.mxu0 %v2725
    %2804 = vmatpush.bf16.msra.mxu0 %v2721
    %2805 = vmatmul.bf16.gmra.mxu0 %v2582
    %v2806 = vpop.f32.mrf.mxu0
    %v2807 = vadd.f32 0.0, %v2806
    %v2808 = vpop.f32.mrf.mxu0
    %2809 = vdwg.mxu0
    %2810 = vmatpush.bf16.msra.mxu0 %v2750
    %2811 = vmatpush.bf16.msra.mxu0 %v2746
    %2812 = vmatpush.bf16.msra.mxu0 %v2742
    %2813 = vmatpush.bf16.msra.mxu0 %v2738
    %2814 = vmatpush.bf16.msra.mxu0 %v2734
    %2815 = vmatpush.bf16.msra.mxu0 %v2730
    %2816 = vmatpush.bf16.msra.mxu0 %v2726
    %2817 = vmatpush.bf16.msra.mxu0 %v2722
    %2818 = vmatmul.bf16.gmra.mxu0 %v2582
    %v2819 = vpop.f32.mrf.mxu0
    %v2820 = vadd.f32 0.0, %v2819
    %v2821 = vpop.f32.mrf.mxu0
    %2822 = vdwg.mxu0
    %2823 = vmatpush.bf16.msra.mxu0 %v2751
    %2824 = vmatpush.bf16.msra.mxu0 %v2747
    %2825 = vmatpush.bf16.msra.mxu0 %v2743
    %2826 = vmatpush.bf16.msra.mxu0 %v2739
    %2827 = vmatpush.bf16.msra.mxu0 %v2735
    %2828 = vmatpush.bf16.msra.mxu0 %v2731
    %2829 = vmatpush.bf16.msra.mxu0 %v2727
    %2830 = vmatpush.bf16.msra.mxu0 %v2723
    %2831 = vmatmul.bf16.gmra.mxu0 %v2582
    %v2832 = vpop.f32.mrf.mxu0
    %v2833 = vadd.f32 0.0, %v2832
    %v2834 = vpop.f32.mrf.mxu0
    %2835 = vdwg.mxu0
    %v2836 = vadd.f32 %v2588, %v2794
    %v2837 = vadd.f32 %v2589, %v2807
    %v2838 = vadd.f32 %v2590, %v2820
    %v2839 = vadd.f32 %v2591, %v2833
    %v2840 = vxor.u32 %v2836, 2147483648
    %v2841 = vmul.f32 %v2840, 1.442695
    %v2842 = vpow.pop %v2841
    %v2843 = vadd.f32 %v2842, 1.0
    %v2844 = vrcp.pop %v2843
    %v2845 = vmul.f32 %v2843, %v2844
    %v2846 = vsub.f32 1.0, %v2845
    %v2847 = vmul.f32 %v2844, %v2846
    %v2848 = vadd.f32 %v2844, %v2847
    %vm2849 = vweird.f32 %v2843
    %vm2850 = vweird.f32 %v2844
    %vm2851 = vmor %vm2849, %vm2850
    %v2852 = vsel %vm2851, %v2844, %v2848
    %v2853 = vand.u32 2147483647, %v2843
    %vm2854 = vcmp.eq.f32.partialorder %v2853, 8.507059e+37
    %v2855 = vand.u32 %v2843, 2147483648
    %v2856 = vor.u32 1.1754944e-38, %v2855
    %v2857 = vsel %vm2854, %v2856, %v2852
    %v2858 = vmul.f32 1.0, %v2857
    %v2859 = vxor.u32 %v2837, 2147483648
    %v2860 = vmul.f32 %v2859, 1.442695
    %v2861 = vpow.pop %v2860
    %v2862 = vadd.f32 %v2861, 1.0
    %v2863 = vrcp.pop %v2862
    %v2864 = vmul.f32 %v2862, %v2863
    %v2865 = vsub.f32 1.0, %v2864
    %v2866 = vmul.f32 %v2863, %v2865
    %v2867 = vadd.f32 %v2863, %v2866
    %vm2868 = vweird.f32 %v2862
    %vm2869 = vweird.f32 %v2863
    %vm2870 = vmor %vm2868, %vm2869
    %v2871 = vsel %vm2870, %v2863, %v2867
    %v2872 = vand.u32 2147483647, %v2862
    %vm2873 = vcmp.eq.f32.partialorder %v2872, 8.507059e+37
    %v2874 = vand.u32 %v2862, 2147483648
    %v2875 = vor.u32 1.1754944e-38, %v2874
    %v2876 = vsel %vm2873, %v2875, %v2871
    %v2877 = vmul.f32 1.0, %v2876
    %v2878 = vtanh.pop %v2838
    %v2879 = vxor.u32 %v2839, 2147483648
    %v2880 = vmul.f32 %v2879, 1.442695
    %v2881 = vpow.pop %v2880
    %v2882 = vadd.f32 %v2881, 1.0
    %v2883 = vrcp.pop %v2882
    %v2884 = vmul.f32 %v2882, %v2883
    %v2885 = vsub.f32 1.0, %v2884
    %v2886 = vmul.f32 %v2883, %v2885
    %v2887 = vadd.f32 %v2883, %v2886
    %vm2888 = vweird.f32 %v2882
    %vm2889 = vweird.f32 %v2883
    %vm2890 = vmor %vm2888, %vm2889
    %v2891 = vsel %vm2890, %v2883, %v2887
    %v2892 = vand.u32 2147483647, %v2882
    %vm2893 = vcmp.eq.f32.partialorder %v2892, 8.507059e+37
    %v2894 = vand.u32 %v2882, 2147483648
    %v2895 = vor.u32 1.1754944e-38, %v2894
    %v2896 = vsel %vm2893, %v2895, %v2891
    %v2897 = vmul.f32 1.0, %v2896
    %v2898 = vmul.f32 %v2877, %v2579
    %v2899 = vmul.f32 %v2858, %v2878
    %v2900 = vadd.f32 %v2898, %v2899
    %v2901 = vtanh.pop %v2900
    %v2902 = vmul.f32 %v2897, %v2901
    %v2903 = vpack.c.bf16 %v2902, %v2902
    %s2904 = scalar_lea.vmem [#allocation3], 28
    %2905 = vst [vmem:[%s2904] sm:$0xf] %v2903
    %v2906 = vld [vmem:[#allocation3] sm:$0xf]
    %v2907 = vld [vmem:[#allocation3 + $0x4] sm:$0xf]
    %v2908 = vld [vmem:[#allocation3 + $0x8] sm:$0xf]
    %v2909 = vld [vmem:[#allocation3 + $0xc] sm:$0xf]
    %v2910 = vld [vmem:[#allocation3 + $0x10] sm:$0xf]
    %v2911 = vld [vmem:[#allocation3 + $0x14] sm:$0xf]
    %v2912 = vld [vmem:[#allocation3 + $0x18] sm:$0xf]
    %v2913 = vld [vmem:[#allocation3 + $0x1c] sm:$0xf]
    %v2914 = vunpack.c.l.bf16 %v2906
    %v2915 = vunpack.c.l.bf16 %v2907
    %v2916 = vunpack.c.l.bf16 %v2908
    %v2917 = vunpack.c.l.bf16 %v2909
    %v2918 = vunpack.c.l.bf16 %v2910
    %v2919 = vunpack.c.l.bf16 %v2911
    %v2920 = vunpack.c.l.bf16 %v2912
    %v2921 = vunpack.c.l.bf16 %v2913
    %v2922 = vpack.c.bf16 %v2915, %v2914
    %v2923 = vpack.c.bf16 %v2917, %v2916
    %v2924 = vpack.c.bf16 %v2919, %v2918
    %v2925 = vpack.c.bf16 %v2921, %v2920
    %v2926 = vld [vmem:[#allocation12] sm:$0xf]
    %v2927 = vld [vmem:[#allocation12 + $0x4] sm:$0xf]
    %v2928 = vld [vmem:[#allocation12 + $0x8] sm:$0xf]
    %v2929 = vld [vmem:[#allocation12 + $0xc] sm:$0xf]
    %v2930 = vld [vmem:[#allocation12 + $0x10] sm:$0xf]
    %v2931 = vld [vmem:[#allocation12 + $0x14] sm:$0xf]
    %v2932 = vld [vmem:[#allocation12 + $0x18] sm:$0xf]
    %v2933 = vld [vmem:[#allocation12 + $0x1c] sm:$0xf]
    %v2934 = vld [vmem:[#allocation12 + $0x20] sm:$0xf]
    %v2935 = vld [vmem:[#allocation12 + $0x24] sm:$0xf]
    %v2936 = vld [vmem:[#allocation12 + $0x28] sm:$0xf]
    %v2937 = vld [vmem:[#allocation12 + $0x2c] sm:$0xf]
    %v2938 = vld [vmem:[#allocation12 + $0x30] sm:$0xf]
    %v2939 = vld [vmem:[#allocation12 + $0x34] sm:$0xf]
    %v2940 = vld [vmem:[#allocation12 + $0x38] sm:$0xf]
    %v2941 = vld [vmem:[#allocation12 + $0x3c] sm:$0xf]
    %v2942 = vld [vmem:[%s5] sm:$0x1]
    %v2944 = vperm.slane %v2942, 0
    %v2962 = vunpack.c.l.b16 %v2926
    %v2963 = vunpack.c.l.b16 %v2927
    %v2964 = vunpack.c.l.b16 %v2928
    %v2965 = vunpack.c.l.b16 %v2929
    %v2966 = vunpack.c.l.b16 %v2930
    %v2967 = vunpack.c.l.b16 %v2931
    %v2968 = vunpack.c.l.b16 %v2932
    %v2969 = vunpack.c.l.b16 %v2933
    %v2970 = vunpack.c.l.b16 %v2934
    %v2971 = vunpack.c.l.b16 %v2935
    %v2972 = vunpack.c.l.b16 %v2936
    %v2973 = vunpack.c.l.b16 %v2937
    %v2974 = vunpack.c.l.b16 %v2938
    %v2975 = vunpack.c.l.b16 %v2939
    %v2976 = vunpack.c.l.b16 %v2940
    %v2977 = vunpack.c.l.b16 %v2941
    %v2978 = vpack.c.b16 %v2963, %v2962
    %v2979 = vpack.c.b16 %v2965, %v2964
    %v2980 = vpack.c.b16 %v2967, %v2966
    %v2981 = vpack.c.b16 %v2969, %v2968
    %v2982 = vpack.c.b16 %v2971, %v2970
    %v2983 = vpack.c.b16 %v2973, %v2972
    %v2984 = vpack.c.b16 %v2975, %v2974
    %v2985 = vpack.c.b16 %v2977, %v2976
    %2994 = vmatpush.bf16.msra.mxu0 %v2985
    %2995 = vmatpush.bf16.msra.mxu0 %v2984
    %2996 = vmatpush.bf16.msra.mxu0 %v2983
    %2997 = vmatpush.bf16.msra.mxu0 %v2982
    %2998 = vmatpush.bf16.msra.mxu0 %v2981
    %2999 = vmatpush.bf16.msra.mxu0 %v2980
    %3000 = vmatpush.bf16.msra.mxu0 %v2979
    %3001 = vmatpush.bf16.msra.mxu0 %v2978
    %3002 = vmatmul.bf16.gmra.mxu0 %v2922
    %v3003 = vpop.f32.mrf.mxu0
    %v3004 = vadd.f32 %v2944, %v3003
    %v3005 = vpop.f32.mrf.mxu0
    %v3006 = vadd.f32 %v2944, %v3005
    %3007 = vmatmul.bf16.gmra.mxu0 %v2923
    %v3008 = vpop.f32.mrf.mxu0
    %v3009 = vadd.f32 %v2944, %v3008
    %v3010 = vpop.f32.mrf.mxu0
    %v3011 = vadd.f32 %v2944, %v3010
    %3012 = vmatmul.bf16.gmra.mxu0 %v2924
    %v3013 = vpop.f32.mrf.mxu0
    %v3014 = vadd.f32 %v2944, %v3013
    %v3015 = vpop.f32.mrf.mxu0
    %v3016 = vadd.f32 %v2944, %v3015
    %3017 = vmatmul.bf16.gmra.mxu0 %v2925
    %v3018 = vpop.f32.mrf.mxu0
    %v3019 = vadd.f32 %v2944, %v3018
    %v3020 = vpop.f32.mrf.mxu0
    %v3021 = vadd.f32 %v2944, %v3020
    %3022 = vdwg.mxu0
    %3023 = vst [vmem:[#allocation13] sm:$0xff] %v3004
    %3024 = vst [vmem:[#allocation13 + $0x8] sm:$0xff] %v3006
    %3025 = vst [vmem:[#allocation13 + $0x10] sm:$0xff] %v3009
    %3026 = vst [vmem:[#allocation13 + $0x18] sm:$0xff] %v3011
    %3027 = vst [vmem:[#allocation13 + $0x20] sm:$0xff] %v3014
    %3028 = vst [vmem:[#allocation13 + $0x28] sm:$0xff] %v3016
    %3029 = vst [vmem:[#allocation13 + $0x30] sm:$0xff] %v3019
    %3030 = vst [vmem:[#allocation13 + $0x38] sm:$0xff] %v3021
    // Predicated region
    $region46: #{tpu_custom_call.1} parent=1 // pred_check
      _
    $region47: #{tpu_custom_call.1} parent=1 // pred_check_branch
      %3032 = sbr.rel (0) target = $region49
    $region48: #{tpu_custom_call.1} parent=1 // pred_region
      %3034 = vsyncadd [#allocation6], 0
      %s3035 = sshll.u32 [#allocation13], 4
      %s3036 = int_to_ptr.vmem [resolvable:$true] %s3035
      %s3037 = sshll.u32 %s6, 4
      %s3038 = int_to_ptr.hbm [resolvable:$true] %s3037
      %3043 = dma.vmem_to_hbm [thread:$0]  %s3036, 1024, %s3038, [#allocation6], 128, 128, 8
    $region49: #{tpu_custom_call.1} parent=1 // pred_fallthru
      _
    // Predicated region
    $region50: #{tpu_custom_call.1} parent=1 // pred_check
      _
    $region51: #{tpu_custom_call.1} parent=1 // pred_check_branch
      %3045 = sbr.rel (0) target = $region53
    $region52: #{tpu_custom_call.1} parent=1 // pred_region
      %3047 = dma.done [#allocation6], 1024
    $region53: #{tpu_custom_call.1} parent=1 // pred_fallthru
      _
    %3048 = vsyncpa [#allocation5], 1
    %3049 = vsyncpa [#allocation8], 1
    %3050 = vsyncpa [#allocation11], 1
    %3051 = vsyncpa [#allocation6], 1

</llo_original>
